<compile_context>
chip_gen: v5e
topology: v5e:2x2
jax: 0.10.0
libtpu: 0.0.40
codegen_flags: <defaults>
</compile_context>

<pallas_src>
import math

import jax
import jax.numpy as jnp
import numpy as np
from jax import lax
from jax.experimental import pallas as pl
from jax.experimental.pallas import tpu as pltpu

NUM_GROUPS = 32
EPS = 1e-5


# ----------------------------------------------------------------------------
# In-kernel helpers
# ----------------------------------------------------------------------------
def _swish(z):
    # x * sigmoid(x); exp and the (approx) reciprocal both run on the EUP.
    return z * pl.reciprocal(1.0 + jnp.exp(-z), approx=True)


def _group_norm(h, gamma, beta, onehot):
    """GroupNorm over (channels-in-group, spatial) for one sample.

    h:      (N, C) f32   (N = H*W spatial positions)
    gamma:  (1, C) f32
    beta:   (1, C) f32
    onehot: (C, G) f32   host-precomputed group-membership one-hot
    """
    N, C = h.shape
    G = onehot.shape[1]
    inv_denom = 1.0 / float(N * (C // G))
    # One (2, C) x (C, G) reduce matmul for both sum and sum-of-squares.
    stats = jnp.concatenate(
        [jnp.sum(h, axis=0, keepdims=True),
         jnp.sum(h * h, axis=0, keepdims=True)], axis=0)            # (2, C)
    g = jnp.dot(stats, onehot,
                preferred_element_type=jnp.float32) * inv_denom     # (2, G)
    g_mean = g[0:1]                                                  # (1, G)
    # One-pass variance (clamped); activations here are O(1) so cancellation
    # is not a problem at these magnitudes.
    g_var = jnp.maximum(g[1:2] - g_mean * g_mean, 0.0)
    g_inv = lax.rsqrt(g_var + EPS)
    # One broadcast-back matmul for both mean and inv-std (contract the G
    # axis of the one-hot; avoids materializing onehot.T).
    dn = (((1,), (1,)), ((), ()))
    back = lax.dot_general(jnp.concatenate([g_mean, g_inv], axis=0), onehot,
                           dn, preferred_element_type=jnp.float32)  # (2, C)
    scale_c = back[1:2] * gamma                                      # inv*gamma
    bias_c = beta - back[0:1] * scale_c                              # beta-mean*scale
    return h * scale_c + bias_c


def _conv3x3_accum(a, w_ref, W, mask_l, mask_r):
    """3x3 'same' conv of one (HW, Cin) tile as 9 accumulated shifted matmuls.

    a:       (HW, Cin) f32, row-major spatial flatten (p = y*W + x)
    w_ref:   (9, Cin, Cout) bf16 tap weights, tap t = (dy+1)*3 + (dx+1)
    mask_l:  (HW, Cin) f32, 1.0 where column x-1 is in-bounds (dx = -1 taps)
    mask_r:  (HW, Cin) f32, 1.0 where column x+1 is in-bounds (dx = +1 taps)
    Vertical out-of-bounds rows are handled by the zero fill of the shift.
    """
    HW, C = a.shape
    acc = None
    for t in range(9):
        dy, dx = t // 3 - 1, t % 3 - 1
        s = dy * W + dx                       # flattened shift: want a[p + s]
        if s == 0:
            shifted = a
        elif s > 0:
            shifted = jnp.concatenate(
                [a[s:, :], jnp.zeros((s, C), a.dtype)], axis=0)
        else:
            shifted = jnp.concatenate(
                [jnp.zeros((-s, C), a.dtype), a[:s, :]], axis=0)
        if dx == -1:
            shifted = shifted * mask_l
        elif dx == 1:
            shifted = shifted * mask_r
        part = jnp.dot(shifted.astype(jnp.bfloat16), w_ref[t],
                       preferred_element_type=jnp.float32)
        acc = part if acc is None else acc + part
    return acc


# ----------------------------------------------------------------------------
# Fused kernel: GN1+Swish -> conv1 -> GN2+Swish -> conv2 + shortcut -> Attn
# ----------------------------------------------------------------------------
def _make_resblock_kernel(shortcut_is_conv, Cin, Cout, H, W):
    def kernel(x_ref, ml_ref, mr_ref,
               gn1_g_ref, gn1_b_ref, oh_in_ref, w1_ref, b1_ref,
               gn2_g_ref, gn2_b_ref, oh_out_ref, w2_ref, b2_ref,
               *rest):
        if shortcut_is_conv:
            (wsc_ref, agn_g_ref, agn_b_ref,
             wqkv_ref, bqkv_ref, wp_ref, bp_ref, o_ref) = rest
        else:
            (agn_g_ref, agn_b_ref,
             wqkv_ref, bqkv_ref, wp_ref, bp_ref, o_ref) = rest

        x = x_ref[0]                                   # (HW, Cin) f32
        ml = ml_ref[...]                               # (HW, Cmax) f32
        mr = mr_ref[...]

        # ---- block1: GroupNorm -> Swish -> 3x3 conv -----------------------
        a1 = _swish(_group_norm(x, gn1_g_ref[...], gn1_b_ref[...],
                                oh_in_ref[...]))
        h = _conv3x3_accum(a1, w1_ref, W, ml[:, :Cin], mr[:, :Cin])
        h = h + b1_ref[...]

        # ---- block2: GroupNorm -> Swish -> [Dropout: eval identity] -> conv
        a2 = _swish(_group_norm(h, gn2_g_ref[...], gn2_b_ref[...],
                                oh_out_ref[...]))
        h2 = _conv3x3_accum(a2, w2_ref, W, ml[:, :Cout], mr[:, :Cout])

        # ---- shortcut (1x1 conv or identity); sc bias pre-folded into b2 --
        if shortcut_is_conv:
            h2 = h2 + jnp.dot(x.astype(jnp.bfloat16), wsc_ref[...],
                              preferred_element_type=jnp.float32)
        else:
            h2 = h2 + x
        hres = h2 + b2_ref[...]                         # residual into attn

        # ---- AttnBlock -----------------------------------------------------
        hn = _group_norm(hres, agn_g_ref[...], agn_b_ref[...], oh_out_ref[...])
        # Fused QKV projection; the C**-0.5 score scale is pre-folded into the
        # q-part of wqkv/bqkv on the host.
        qkv = jnp.dot(hn.astype(jnp.bfloat16), wqkv_ref[...],
                      preferred_element_type=jnp.float32) + bqkv_ref[...]
        q = qkv[:, :Cout]
        k = qkv[:, Cout:2 * Cout]
        v = qkv[:, 2 * Cout:]
        # Scores: contract channel dims of q and k directly (no k.T).
        dn = (((1,), (1,)), ((), ()))
        w = lax.dot_general(q.astype(jnp.bfloat16), k.astype(jnp.bfloat16),
                            dn, preferred_element_type=jnp.float32)  # (HW, HW)
        w = w - jnp.max(w, axis=-1, keepdims=True)
        p = jnp.exp(w)
        p = p * pl.reciprocal(jnp.sum(p, axis=-1, keepdims=True), approx=True)
        att = jnp.dot(p.astype(jnp.bfloat16), v.astype(jnp.bfloat16),
                      preferred_element_type=jnp.float32)             # (HW, C)
        out = jnp.dot(att.astype(jnp.bfloat16), wp_ref[...],
                      preferred_element_type=jnp.float32) + bp_ref[...]
        o_ref[0] = hres + out

    return kernel


# ----------------------------------------------------------------------------
# Host-side layout plumbing (constants only; no activation-sized work)
# ----------------------------------------------------------------------------
def _group_onehot(C, G):
    return (jnp.arange(C)[:, None] // (C // G)
            == jnp.arange(G)[None, :]).astype(jnp.float32)        # (C, G)


def _edge_masks(H, W, C):
    """Horizontal-halo validity masks at full lane width C."""
    x = np.arange(H * W) % W
    ones = np.ones((1, C), np.float32)
    ml = (x >= 1).astype(np.float32)[:, None] * ones          # x-1 valid
    mr = (x <= W - 2).astype(np.float32)[:, None] * ones      # x+1 valid
    return jnp.asarray(ml), jnp.asarray(mr)


def _conv3x3_to_taps(w):
    """(Cout, Cin, 3, 3) torch-layout weight -> (9, Cin, Cout) tap matrices."""
    Cout, Cin = w.shape[0], w.shape[1]
    return jnp.transpose(w, (2, 3, 1, 0)).reshape(9, Cin, Cout)


# ----------------------------------------------------------------------------
# Full forward pass (one fused pallas_call)
# ----------------------------------------------------------------------------
def resblock_for_o_pallas(x_nchw, params):
    """x_nchw: (B, Cin, H, W) f32 -> (B, Cout, H, W) f32."""
    B, Cin, H, W = x_nchw.shape
    Cout = params["conv1_w"].shape[0]
    HW = H * W
    G = NUM_GROUPS
    Cmax = max(Cin, Cout)
    f32, bf16 = jnp.float32, jnp.bfloat16

    x_bnc = jnp.transpose(x_nchw, (0, 2, 3, 1)).reshape(B, HW, Cin)

    onehot_in = _group_onehot(Cin, G)
    onehot_out = _group_onehot(Cout, G)
    mask_l, mask_r = _edge_masks(H, W, Cmax)

    w1 = _conv3x3_to_taps(params["conv1_w"]).astype(bf16)      # (9, Cin, Cout)
    b1 = params["conv1_b"].reshape(1, Cout)
    w2 = _conv3x3_to_taps(params["conv2_w"]).astype(bf16)      # (9, Cout, Cout)

    shortcut_is_conv = (Cin != Cout)
    if shortcut_is_conv:
        wsc = params["sc_w"].reshape(Cout, Cin).T.astype(bf16)  # (Cin, Cout)
        b2 = (params["conv2_b"] + params["sc_b"]).reshape(1, Cout)
    else:
        b2 = params["conv2_b"].reshape(1, Cout)

    scale = float(Cout) ** (-0.5)
    wq = params["attn_wq"].reshape(Cout, Cout).T * scale        # scale folded
    wk = params["attn_wk"].reshape(Cout, Cout).T
    wv = params["attn_wv"].reshape(Cout, Cout).T
    wqkv = jnp.concatenate([wq, wk, wv], axis=1).astype(bf16)   # (Cout, 3Cout)
    bqkv = jnp.concatenate([params["attn_bq"] * scale,
                            params["attn_bk"],
                            params["attn_bv"]], axis=0).reshape(1, 3 * Cout)
    wp = params["attn_wp"].reshape(Cout, Cout).T.astype(bf16)
    bp = params["attn_bp"].reshape(1, Cout)

    def tile(hw, c):
        return pl.BlockSpec((1, hw, c), lambda b: (b, 0, 0))

    def c2(r, c):
        return pl.BlockSpec((r, c), lambda b: (0, 0))

    def c3(t, r, c):
        return pl.BlockSpec((t, r, c), lambda b: (0, 0, 0))

    # Constant weight specs could use pipeline_mode=pl.Buffered(1) to halve
    # their VMEM footprint at large HW; unnecessary at these shapes.
    in_specs = [tile(HW, Cin), c2(HW, Cmax), c2(HW, Cmax),
                c2(1, Cin), c2(1, Cin), c2(Cin, G), c3(9, Cin, Cout),
                c2(1, Cout),
                c2(1, Cout), c2(1, Cout), c2(Cout, G), c3(9, Cout, Cout),
                c2(1, Cout)]
    args = [x_bnc, mask_l, mask_r,
            params["gn1_g"].reshape(1, Cin), params["gn1_b"].reshape(1, Cin),
            onehot_in, w1, b1,
            params["gn2_g"].reshape(1, Cout), params["gn2_b"].reshape(1, Cout),
            onehot_out, w2, b2]
    if shortcut_is_conv:
        in_specs += [c2(Cin, Cout)]
        args += [wsc]
    in_specs += [c2(1, Cout), c2(1, Cout),
                 c2(Cout, 3 * Cout), c2(1, 3 * Cout),
                 c2(Cout, Cout), c2(1, Cout)]
    args += [params["attn_gn_g"].reshape(1, Cout),
             params["attn_gn_b"].reshape(1, Cout),
             wqkv, bqkv, wp, bp]

    cp = pltpu.CompilerParams(
        dimension_semantics=("parallel",),       # 2x on v7x's 2 TensorCores
        vmem_limit_bytes=48 * 1024 * 1024)       # 75% of v7x physical VMEM

    y_bnc = pl.pallas_call(
        _make_resblock_kernel(shortcut_is_conv, Cin, Cout, H, W),
        out_shape=jax.ShapeDtypeStruct((B, HW, Cout), f32),
        grid_spec=pltpu.PrefetchScalarGridSpec(
            num_scalar_prefetch=0, grid=(B,),
            in_specs=in_specs,
            out_specs=tile(HW, Cout)),
        compiler_params=cp,
    )(*args)

    return jnp.transpose(y_bnc.reshape(B, H, W, Cout), (0, 3, 1, 2))


# ----------------------------------------------------------------------------
# Pure-JAX f32 reference (mirrors the PyTorch module semantics)
# ----------------------------------------------------------------------------
def _gn_ref(x, gamma, beta):
    B, C, H, W = x.shape
    xg = x.reshape(B, NUM_GROUPS, C // NUM_GROUPS, H, W)
    mean = jnp.mean(xg, axis=(2, 3, 4), keepdims=True)
    var = jnp.mean((xg - mean) ** 2, axis=(2, 3, 4), keepdims=True)
    xn = ((xg - mean) / jnp.sqrt(var + EPS)).reshape(B, C, H, W)
    return xn * gamma.reshape(1, C, 1, 1) + beta.reshape(1, C, 1, 1)


def _swish_ref(x):
    return x * jax.nn.sigmoid(x)


def _conv_ref(x, w, b, pad):
    y = lax.conv_general_dilated(x, w, window_strides=(1, 1),
                                 padding=[(pad, pad), (pad, pad)],
                                 dimension_numbers=("NCHW", "OIHW", "NCHW"))
    return y + b.reshape(1, -1, 1, 1)


def resblock_for_o_ref(x, params):
    B, Cin, H, W = x.shape
    Cout = params["conv1_w"].shape[0]
    h = _conv_ref(_swish_ref(_gn_ref(x, params["gn1_g"], params["gn1_b"])),
                  params["conv1_w"], params["conv1_b"], 1)
    h = _conv_ref(_swish_ref(_gn_ref(h, params["gn2_g"], params["gn2_b"])),
                  params["conv2_w"], params["conv2_b"], 1)
    sc = (_conv_ref(x, params["sc_w"], params["sc_b"], 0)
          if Cin != Cout else x)
    h = h + sc
    # AttnBlock
    hn = _gn_ref(h, params["attn_gn_g"], params["attn_gn_b"])
    q = _conv_ref(hn, params["attn_wq"], params["attn_bq"], 0)
    k = _conv_ref(hn, params["attn_wk"], params["attn_bk"], 0)
    v = _conv_ref(hn, params["attn_wv"], params["attn_bv"], 0)
    HW = H * W
    qf = q.transpose(0, 2, 3, 1).reshape(B, HW, Cout)
    kf = k.reshape(B, Cout, HW)
    w = jnp.einsum("bnc,bcm->bnm", qf, kf) * (float(Cout) ** (-0.5))
    w = jax.nn.softmax(w, axis=-1)
    vf = v.transpose(0, 2, 3, 1).reshape(B, HW, Cout)
    a = jnp.einsum("bnm,bmc->bnc", w, vf)
    a = a.reshape(B, H, W, Cout).transpose(0, 3, 1, 2)
    out = _conv_ref(a, params["attn_wp"], params["attn_bp"], 0)
    return h + out


# ----------------------------------------------------------------------------
# Parameter construction + test
# ----------------------------------------------------------------------------
def make_params(key, Cin, Cout):
    ks = list(jax.random.split(key, 24))

    def nrm(k, shape, scale):
        return jax.random.normal(k, shape, jnp.float32) * scale

    p = {
        "gn1_g": nrm(ks[0], (Cin,), 0.1) + 1.0,
        "gn1_b": nrm(ks[1], (Cin,), 0.1),
        "conv1_w": nrm(ks[2], (Cout, Cin, 3, 3), 1.0 / math.sqrt(9 * Cin)),
        "conv1_b": nrm(ks[3], (Cout,), 0.01),
        "gn2_g": nrm(ks[4], (Cout,), 0.1) + 1.0,
        "gn2_b": nrm(ks[5], (Cout,), 0.1),
        "conv2_w": nrm(ks[6], (Cout, Cout, 3, 3), 1.0 / math.sqrt(9 * Cout)),
        "conv2_b": nrm(ks[7], (Cout,), 0.01),
        "attn_gn_g": nrm(ks[10], (Cout,), 0.1) + 1.0,
        "attn_gn_b": nrm(ks[11], (Cout,), 0.1),
    }
    if Cin != Cout:
        p["sc_w"] = nrm(ks[8], (Cout, Cin, 1, 1), 1.0 / math.sqrt(Cin))
        p["sc_b"] = nrm(ks[9], (Cout,), 0.01)
    s = 1.0 / math.sqrt(Cout)
    for i, nm in enumerate(["q", "k", "v", "p"]):
        p[f"attn_w{nm}"] = nrm(ks[12 + 2 * i], (Cout, Cout, 1, 1), s)
        p[f"attn_b{nm}"] = nrm(ks[13 + 2 * i], (Cout,), 0.01)
    return p


if __name__ == "__main__":
    # GroupNorm(32, C) requires C % 32 == 0; in_ch=64 / out_ch=128 exercises
    # the 1x1-conv shortcut path and keeps the hot channel dim 128-wide.
    B, Cin, Cout, H, W = 2, 64, 128, 16, 16
    key = jax.random.PRNGKey(0)
    kx, kp = jax.random.split(key)
    x = jax.random.normal(kx, (B, Cin, H, W), jnp.float32)
    params = make_params(kp, Cin, Cout)

    y = jax.block_until_ready(resblock_for_o_pallas(x, params))
    y_ref = jax.block_until_ready(resblock_for_o_ref(x, params))

    # bf16 MXU inputs + approx EUP reciprocals introduce ~1% noise vs the f32
    # reference; a real bug (wrong tap / norm / residual) gives O(1) errors.
    np.testing.assert_allclose(np.asarray(y), np.asarray(y_ref),
                               rtol=5e-2, atol=5e-2)
    print("KERNEL_OK")
</pallas_src>

<mosaic_0001>
module attributes {stable_mosaic.version = 11 : i64} {
  func.func @kernel(%arg0: i32, %arg1: memref<1x256x64xf32, #tpu.memory_space<vmem>>, %arg2: memref<256x128xf32, #tpu.memory_space<vmem>>, %arg3: memref<256x128xf32, #tpu.memory_space<vmem>>, %arg4: memref<1x64xf32, #tpu.memory_space<vmem>>, %arg5: memref<1x64xf32, #tpu.memory_space<vmem>>, %arg6: memref<64x32xf32, #tpu.memory_space<vmem>>, %arg7: memref<9x64x128xbf16, #tpu.memory_space<vmem>>, %arg8: memref<1x128xf32, #tpu.memory_space<vmem>>, %arg9: memref<1x128xf32, #tpu.memory_space<vmem>>, %arg10: memref<1x128xf32, #tpu.memory_space<vmem>>, %arg11: memref<128x32xf32, #tpu.memory_space<vmem>>, %arg12: memref<9x128x128xbf16, #tpu.memory_space<vmem>>, %arg13: memref<1x128xf32, #tpu.memory_space<vmem>>, %arg14: memref<64x128xbf16, #tpu.memory_space<vmem>>, %arg15: memref<1x128xf32, #tpu.memory_space<vmem>>, %arg16: memref<1x128xf32, #tpu.memory_space<vmem>>, %arg17: memref<128x384xbf16, #tpu.memory_space<vmem>>, %arg18: memref<1x384xf32, #tpu.memory_space<vmem>>, %arg19: memref<128x128xbf16, #tpu.memory_space<vmem>>, %arg20: memref<1x128xf32, #tpu.memory_space<vmem>>, %arg21: memref<1x256x128xf32, #tpu.memory_space<vmem>>) attributes {dimension_semantics = [#tpu.dimension_semantics<parallel>], iteration_bounds = array<i64: 2>, scalar_prefetch = 0 : i64, scratch_operands = 0 : i64, tpu.core_type = #tpu.core_type<tc>, window_params = [{transform_indices = @transform_0, window_bounds = array<i64: 1, 256, 64>}, {pipeline_mode = #tpu.pipeline_mode<synchronous>, transform_indices = @transform_1, window_bounds = array<i64: 256, 128>}, {pipeline_mode = #tpu.pipeline_mode<synchronous>, transform_indices = @transform_2, window_bounds = array<i64: 256, 128>}, {pipeline_mode = #tpu.pipeline_mode<synchronous>, transform_indices = @transform_3, window_bounds = array<i64: 1, 64>}, {pipeline_mode = #tpu.pipeline_mode<synchronous>, transform_indices = @transform_4, window_bounds = array<i64: 1, 64>}, {pipeline_mode = #tpu.pipeline_mode<synchronous>, transform_indices = @transform_5, window_bounds = array<i64: 64, 32>}, {pipeline_mode = #tpu.pipeline_mode<synchronous>, transform_indices = @transform_6, window_bounds = array<i64: 9, 64, 128>}, {pipeline_mode = #tpu.pipeline_mode<synchronous>, transform_indices = @transform_7, window_bounds = array<i64: 1, 128>}, {pipeline_mode = #tpu.pipeline_mode<synchronous>, transform_indices = @transform_8, window_bounds = array<i64: 1, 128>}, {pipeline_mode = #tpu.pipeline_mode<synchronous>, transform_indices = @transform_9, window_bounds = array<i64: 1, 128>}, {pipeline_mode = #tpu.pipeline_mode<synchronous>, transform_indices = @transform_10, window_bounds = array<i64: 128, 32>}, {pipeline_mode = #tpu.pipeline_mode<synchronous>, transform_indices = @transform_11, window_bounds = array<i64: 9, 128, 128>}, {pipeline_mode = #tpu.pipeline_mode<synchronous>, transform_indices = @transform_12, window_bounds = array<i64: 1, 128>}, {pipeline_mode = #tpu.pipeline_mode<synchronous>, transform_indices = @transform_13, window_bounds = array<i64: 64, 128>}, {pipeline_mode = #tpu.pipeline_mode<synchronous>, transform_indices = @transform_14, window_bounds = array<i64: 1, 128>}, {pipeline_mode = #tpu.pipeline_mode<synchronous>, transform_indices = @transform_15, window_bounds = array<i64: 1, 128>}, {pipeline_mode = #tpu.pipeline_mode<synchronous>, transform_indices = @transform_16, window_bounds = array<i64: 128, 384>}, {pipeline_mode = #tpu.pipeline_mode<synchronous>, transform_indices = @transform_17, window_bounds = array<i64: 1, 384>}, {pipeline_mode = #tpu.pipeline_mode<synchronous>, transform_indices = @transform_18, window_bounds = array<i64: 128, 128>}, {pipeline_mode = #tpu.pipeline_mode<synchronous>, transform_indices = @transform_19, window_bounds = array<i64: 1, 128>}, {transform_indices = @transform_20, window_bounds = array<i64: 1, 256, 128>}]} {
    %c0 = arith.constant 0 : index
    %c0_0 = arith.constant 0 : index
    %c0_1 = arith.constant 0 : index
    %0 = vector.load %arg1[%c0, %c0_0, %c0_1] : memref<1x256x64xf32, #tpu.memory_space<vmem>>, vector<1x256x64xf32>
    %1 = vector.shape_cast %0 : vector<1x256x64xf32> to vector<256x64xf32>
    %c0_2 = arith.constant 0 : index
    %c0_3 = arith.constant 0 : index
    %2 = vector.load %arg2[%c0_2, %c0_3] : memref<256x128xf32, #tpu.memory_space<vmem>>, vector<256x128xf32>
    %c0_4 = arith.constant 0 : index
    %c0_5 = arith.constant 0 : index
    %3 = vector.load %arg3[%c0_4, %c0_5] : memref<256x128xf32, #tpu.memory_space<vmem>>, vector<256x128xf32>
    %c0_6 = arith.constant 0 : index
    %c0_7 = arith.constant 0 : index
    %4 = vector.load %arg4[%c0_6, %c0_7] : memref<1x64xf32, #tpu.memory_space<vmem>>, vector<1x64xf32>
    %c0_8 = arith.constant 0 : index
    %c0_9 = arith.constant 0 : index
    %5 = vector.load %arg5[%c0_8, %c0_9] : memref<1x64xf32, #tpu.memory_space<vmem>>, vector<1x64xf32>
    %c0_10 = arith.constant 0 : index
    %c0_11 = arith.constant 0 : index
    %6 = vector.load %arg6[%c0_10, %c0_11] : memref<64x32xf32, #tpu.memory_space<vmem>>, vector<64x32xf32>
    %cst = arith.constant dense<0.000000e+00> : vector<64xf32>
    %7 = vector.multi_reduction <add>, %1, %cst [0] : vector<256x64xf32> to vector<64xf32>
    %8 = vector.shape_cast %7 : vector<64xf32> to vector<1x64xf32>
    %9 = arith.mulf %1, %1 : vector<256x64xf32>
    %cst_12 = arith.constant dense<0.000000e+00> : vector<64xf32>
    %10 = vector.multi_reduction <add>, %9, %cst_12 [0] : vector<256x64xf32> to vector<64xf32>
    %11 = vector.shape_cast %10 : vector<64xf32> to vector<1x64xf32>
    %12 = tpu.concatenate %8, %11 in 0 : vector<1x64xf32>, vector<1x64xf32> -> vector<2x64xf32>
    %cst_13 = arith.constant dense<0.000000e+00> : vector<2x32xf32>
    %13 = tpu.matmul %12, %6, %cst_13 {dimension_numbers = #tpu.dot_dimension_numbers<[1], [0], [0], [1], [0, 0, 1, 1], [], []>} : vector<2x64xf32>, vector<64x32xf32>, vector<2x32xf32> -> vector<2x32xf32>
    %cst_14 = arith.constant 0.001953125 : f32
    %14 = vector.broadcast %cst_14 : f32 to vector<2x32xf32>
    %15 = arith.mulf %13, %14 : vector<2x32xf32>
    %16 = vector.extract_strided_slice %15 {offsets = [0, 0], sizes = [1, 32], strides = [1, 1]} : vector<2x32xf32> to vector<1x32xf32>
    %17 = vector.extract_strided_slice %15 {offsets = [1, 0], sizes = [1, 32], strides = [1, 1]} : vector<2x32xf32> to vector<1x32xf32>
    %18 = arith.mulf %16, %16 : vector<1x32xf32>
    %19 = arith.subf %17, %18 : vector<1x32xf32>
    %cst_15 = arith.constant 0.000000e+00 : f32
    %20 = vector.broadcast %cst_15 : f32 to vector<1x32xf32>
    %21 = arith.maximumf %19, %20 : vector<1x32xf32>
    %cst_16 = arith.constant 9.99999974E-6 : f32
    %22 = vector.broadcast %cst_16 : f32 to vector<1x32xf32>
    %23 = arith.addf %21, %22 : vector<1x32xf32>
    %24 = math.rsqrt %23 : vector<1x32xf32>
    %25 = tpu.concatenate %16, %24 in 0 : vector<1x32xf32>, vector<1x32xf32> -> vector<2x32xf32>
    %cst_17 = arith.constant dense<0.000000e+00> : vector<2x64xf32>
    %26 = tpu.matmul %25, %6, %cst_17 {dimension_numbers = #tpu.dot_dimension_numbers<[1], [1], [0], [0], [0, 0, 1, 0], [], []>} : vector<2x32xf32>, vector<64x32xf32>, vector<2x64xf32> -> vector<2x64xf32>
    %27 = vector.extract_strided_slice %26 {offsets = [1, 0], sizes = [1, 64], strides = [1, 1]} : vector<2x64xf32> to vector<1x64xf32>
    %28 = arith.mulf %27, %4 : vector<1x64xf32>
    %29 = vector.extract_strided_slice %26 {offsets = [0, 0], sizes = [1, 64], strides = [1, 1]} : vector<2x64xf32> to vector<1x64xf32>
    %30 = arith.mulf %29, %28 : vector<1x64xf32>
    %31 = arith.subf %5, %30 : vector<1x64xf32>
    %32 = vector.broadcast %28 : vector<1x64xf32> to vector<256x64xf32>
    %33 = arith.mulf %1, %32 : vector<256x64xf32>
    %34 = vector.broadcast %31 : vector<1x64xf32> to vector<256x64xf32>
    %35 = arith.addf %33, %34 : vector<256x64xf32>
    %cst_18 = arith.constant 0.000000e+00 : f32
    %36 = vector.broadcast %cst_18 : f32 to vector<256x64xf32>
    %37 = arith.subf %36, %35 : vector<256x64xf32>
    %38 = math.exp %37 : vector<256x64xf32>
    %cst_19 = arith.constant 1.000000e+00 : f32
    %39 = vector.broadcast %cst_19 : f32 to vector<256x64xf32>
    %40 = arith.addf %39, %38 : vector<256x64xf32>
    %41 = tpu.reciprocal %40 {approx = true} : vector<256x64xf32> -> vector<256x64xf32>
    %42 = arith.mulf %35, %41 : vector<256x64xf32>
    %43 = vector.extract_strided_slice %2 {offsets = [0, 0], sizes = [256, 64], strides = [1, 1]} : vector<256x128xf32> to vector<256x64xf32>
    %44 = vector.extract_strided_slice %3 {offsets = [0, 0], sizes = [256, 64], strides = [1, 1]} : vector<256x128xf32> to vector<256x64xf32>
    %cst_20 = arith.constant 0.000000e+00 : f32
    %45 = vector.broadcast %cst_20 : f32 to vector<17x64xf32>
    %46 = vector.extract_strided_slice %42 {offsets = [0, 0], sizes = [239, 64], strides = [1, 1]} : vector<256x64xf32> to vector<239x64xf32>
    %47 = tpu.concatenate %45, %46 in 0 : vector<17x64xf32>, vector<239x64xf32> -> vector<256x64xf32>
    %48 = arith.mulf %47, %43 : vector<256x64xf32>
    %49 = arith.truncf %48 : vector<256x64xf32> to vector<256x64xbf16>
    %c0_21 = arith.constant 0 : index
    %c0_22 = arith.constant 0 : index
    %c0_23 = arith.constant 0 : index
    %50 = vector.load %arg7[%c0_21, %c0_22, %c0_23] : memref<9x64x128xbf16, #tpu.memory_space<vmem>>, vector<1x64x128xbf16>
    %51 = vector.shape_cast %50 : vector<1x64x128xbf16> to vector<64x128xbf16>
    %cst_24 = arith.constant dense<0.000000e+00> : vector<256x128xf32>
    %52 = tpu.matmul %49, %51, %cst_24 {dimension_numbers = #tpu.dot_dimension_numbers<[1], [0], [0], [1], [0, 0, 1, 1], [], []>} : vector<256x64xbf16>, vector<64x128xbf16>, vector<256x128xf32> -> vector<256x128xf32>
    %cst_25 = arith.constant 0.000000e+00 : f32
    %53 = vector.broadcast %cst_25 : f32 to vector<16x64xf32>
    %54 = vector.extract_strided_slice %42 {offsets = [0, 0], sizes = [240, 64], strides = [1, 1]} : vector<256x64xf32> to vector<240x64xf32>
    %55 = tpu.concatenate %53, %54 in 0 : vector<16x64xf32>, vector<240x64xf32> -> vector<256x64xf32>
    %56 = arith.truncf %55 : vector<256x64xf32> to vector<256x64xbf16>
    %c1 = arith.constant 1 : index
    %c0_26 = arith.constant 0 : index
    %c0_27 = arith.constant 0 : index
    %57 = vector.load %arg7[%c1, %c0_26, %c0_27] : memref<9x64x128xbf16, #tpu.memory_space<vmem>>, vector<1x64x128xbf16>
    %58 = vector.shape_cast %57 : vector<1x64x128xbf16> to vector<64x128xbf16>
    %cst_28 = arith.constant dense<0.000000e+00> : vector<256x128xf32>
    %59 = tpu.matmul %56, %58, %cst_28 {dimension_numbers = #tpu.dot_dimension_numbers<[1], [0], [0], [1], [0, 0, 1, 1], [], []>} : vector<256x64xbf16>, vector<64x128xbf16>, vector<256x128xf32> -> vector<256x128xf32>
    %60 = arith.addf %52, %59 : vector<256x128xf32>
    %cst_29 = arith.constant 0.000000e+00 : f32
    %61 = vector.broadcast %cst_29 : f32 to vector<15x64xf32>
    %62 = vector.extract_strided_slice %42 {offsets = [0, 0], sizes = [241, 64], strides = [1, 1]} : vector<256x64xf32> to vector<241x64xf32>
    %63 = tpu.concatenate %61, %62 in 0 : vector<15x64xf32>, vector<241x64xf32> -> vector<256x64xf32>
    %64 = arith.mulf %63, %44 : vector<256x64xf32>
    %65 = arith.truncf %64 : vector<256x64xf32> to vector<256x64xbf16>
    %c2 = arith.constant 2 : index
    %c0_30 = arith.constant 0 : index
    %c0_31 = arith.constant 0 : index
    %66 = vector.load %arg7[%c2, %c0_30, %c0_31] : memref<9x64x128xbf16, #tpu.memory_space<vmem>>, vector<1x64x128xbf16>
    %67 = vector.shape_cast %66 : vector<1x64x128xbf16> to vector<64x128xbf16>
    %cst_32 = arith.constant dense<0.000000e+00> : vector<256x128xf32>
    %68 = tpu.matmul %65, %67, %cst_32 {dimension_numbers = #tpu.dot_dimension_numbers<[1], [0], [0], [1], [0, 0, 1, 1], [], []>} : vector<256x64xbf16>, vector<64x128xbf16>, vector<256x128xf32> -> vector<256x128xf32>
    %69 = arith.addf %60, %68 : vector<256x128xf32>
    %cst_33 = arith.constant 0.000000e+00 : f32
    %70 = vector.broadcast %cst_33 : f32 to vector<1x64xf32>
    %71 = vector.extract_strided_slice %42 {offsets = [0, 0], sizes = [255, 64], strides = [1, 1]} : vector<256x64xf32> to vector<255x64xf32>
    %72 = tpu.concatenate %70, %71 in 0 : vector<1x64xf32>, vector<255x64xf32> -> vector<256x64xf32>
    %73 = arith.mulf %72, %43 : vector<256x64xf32>
    %74 = arith.truncf %73 : vector<256x64xf32> to vector<256x64xbf16>
    %c3 = arith.constant 3 : index
    %c0_34 = arith.constant 0 : index
    %c0_35 = arith.constant 0 : index
    %75 = vector.load %arg7[%c3, %c0_34, %c0_35] : memref<9x64x128xbf16, #tpu.memory_space<vmem>>, vector<1x64x128xbf16>
    %76 = vector.shape_cast %75 : vector<1x64x128xbf16> to vector<64x128xbf16>
    %cst_36 = arith.constant dense<0.000000e+00> : vector<256x128xf32>
    %77 = tpu.matmul %74, %76, %cst_36 {dimension_numbers = #tpu.dot_dimension_numbers<[1], [0], [0], [1], [0, 0, 1, 1], [], []>} : vector<256x64xbf16>, vector<64x128xbf16>, vector<256x128xf32> -> vector<256x128xf32>
    %78 = arith.addf %69, %77 : vector<256x128xf32>
    %79 = arith.truncf %42 : vector<256x64xf32> to vector<256x64xbf16>
    %c4 = arith.constant 4 : index
    %c0_37 = arith.constant 0 : index
    %c0_38 = arith.constant 0 : index
    %80 = vector.load %arg7[%c4, %c0_37, %c0_38] : memref<9x64x128xbf16, #tpu.memory_space<vmem>>, vector<1x64x128xbf16>
    %81 = vector.shape_cast %80 : vector<1x64x128xbf16> to vector<64x128xbf16>
    %cst_39 = arith.constant dense<0.000000e+00> : vector<256x128xf32>
    %82 = tpu.matmul %79, %81, %cst_39 {dimension_numbers = #tpu.dot_dimension_numbers<[1], [0], [0], [1], [0, 0, 1, 1], [], []>} : vector<256x64xbf16>, vector<64x128xbf16>, vector<256x128xf32> -> vector<256x128xf32>
    %83 = arith.addf %78, %82 : vector<256x128xf32>
    %84 = vector.extract_strided_slice %42 {offsets = [1, 0], sizes = [255, 64], strides = [1, 1]} : vector<256x64xf32> to vector<255x64xf32>
    %cst_40 = arith.constant 0.000000e+00 : f32
    %85 = vector.broadcast %cst_40 : f32 to vector<1x64xf32>
    %86 = tpu.concatenate %84, %85 in 0 : vector<255x64xf32>, vector<1x64xf32> -> vector<256x64xf32>
    %87 = arith.mulf %86, %44 : vector<256x64xf32>
    %88 = arith.truncf %87 : vector<256x64xf32> to vector<256x64xbf16>
    %c5 = arith.constant 5 : index
    %c0_41 = arith.constant 0 : index
    %c0_42 = arith.constant 0 : index
    %89 = vector.load %arg7[%c5, %c0_41, %c0_42] : memref<9x64x128xbf16, #tpu.memory_space<vmem>>, vector<1x64x128xbf16>
    %90 = vector.shape_cast %89 : vector<1x64x128xbf16> to vector<64x128xbf16>
    %cst_43 = arith.constant dense<0.000000e+00> : vector<256x128xf32>
    %91 = tpu.matmul %88, %90, %cst_43 {dimension_numbers = #tpu.dot_dimension_numbers<[1], [0], [0], [1], [0, 0, 1, 1], [], []>} : vector<256x64xbf16>, vector<64x128xbf16>, vector<256x128xf32> -> vector<256x128xf32>
    %92 = arith.addf %83, %91 : vector<256x128xf32>
    %93 = vector.extract_strided_slice %42 {offsets = [15, 0], sizes = [241, 64], strides = [1, 1]} : vector<256x64xf32> to vector<241x64xf32>
    %cst_44 = arith.constant 0.000000e+00 : f32
    %94 = vector.broadcast %cst_44 : f32 to vector<15x64xf32>
    %95 = tpu.concatenate %93, %94 in 0 : vector<241x64xf32>, vector<15x64xf32> -> vector<256x64xf32>
    %96 = arith.mulf %95, %43 : vector<256x64xf32>
    %97 = arith.truncf %96 : vector<256x64xf32> to vector<256x64xbf16>
    %c6 = arith.constant 6 : index
    %c0_45 = arith.constant 0 : index
    %c0_46 = arith.constant 0 : index
    %98 = vector.load %arg7[%c6, %c0_45, %c0_46] : memref<9x64x128xbf16, #tpu.memory_space<vmem>>, vector<1x64x128xbf16>
    %99 = vector.shape_cast %98 : vector<1x64x128xbf16> to vector<64x128xbf16>
    %cst_47 = arith.constant dense<0.000000e+00> : vector<256x128xf32>
    %100 = tpu.matmul %97, %99, %cst_47 {dimension_numbers = #tpu.dot_dimension_numbers<[1], [0], [0], [1], [0, 0, 1, 1], [], []>} : vector<256x64xbf16>, vector<64x128xbf16>, vector<256x128xf32> -> vector<256x128xf32>
    %101 = arith.addf %92, %100 : vector<256x128xf32>
    %102 = vector.extract_strided_slice %42 {offsets = [16, 0], sizes = [240, 64], strides = [1, 1]} : vector<256x64xf32> to vector<240x64xf32>
    %cst_48 = arith.constant 0.000000e+00 : f32
    %103 = vector.broadcast %cst_48 : f32 to vector<16x64xf32>
    %104 = tpu.concatenate %102, %103 in 0 : vector<240x64xf32>, vector<16x64xf32> -> vector<256x64xf32>
    %105 = arith.truncf %104 : vector<256x64xf32> to vector<256x64xbf16>
    %c7 = arith.constant 7 : index
    %c0_49 = arith.constant 0 : index
    %c0_50 = arith.constant 0 : index
    %106 = vector.load %arg7[%c7, %c0_49, %c0_50] : memref<9x64x128xbf16, #tpu.memory_space<vmem>>, vector<1x64x128xbf16>
    %107 = vector.shape_cast %106 : vector<1x64x128xbf16> to vector<64x128xbf16>
    %cst_51 = arith.constant dense<0.000000e+00> : vector<256x128xf32>
    %108 = tpu.matmul %105, %107, %cst_51 {dimension_numbers = #tpu.dot_dimension_numbers<[1], [0], [0], [1], [0, 0, 1, 1], [], []>} : vector<256x64xbf16>, vector<64x128xbf16>, vector<256x128xf32> -> vector<256x128xf32>
    %109 = arith.addf %101, %108 : vector<256x128xf32>
    %110 = vector.extract_strided_slice %42 {offsets = [17, 0], sizes = [239, 64], strides = [1, 1]} : vector<256x64xf32> to vector<239x64xf32>
    %cst_52 = arith.constant 0.000000e+00 : f32
    %111 = vector.broadcast %cst_52 : f32 to vector<17x64xf32>
    %112 = tpu.concatenate %110, %111 in 0 : vector<239x64xf32>, vector<17x64xf32> -> vector<256x64xf32>
    %113 = arith.mulf %112, %44 : vector<256x64xf32>
    %114 = arith.truncf %113 : vector<256x64xf32> to vector<256x64xbf16>
    %c8 = arith.constant 8 : index
    %c0_53 = arith.constant 0 : index
    %c0_54 = arith.constant 0 : index
    %115 = vector.load %arg7[%c8, %c0_53, %c0_54] : memref<9x64x128xbf16, #tpu.memory_space<vmem>>, vector<1x64x128xbf16>
    %116 = vector.shape_cast %115 : vector<1x64x128xbf16> to vector<64x128xbf16>
    %cst_55 = arith.constant dense<0.000000e+00> : vector<256x128xf32>
    %117 = tpu.matmul %114, %116, %cst_55 {dimension_numbers = #tpu.dot_dimension_numbers<[1], [0], [0], [1], [0, 0, 1, 1], [], []>} : vector<256x64xbf16>, vector<64x128xbf16>, vector<256x128xf32> -> vector<256x128xf32>
    %118 = arith.addf %109, %117 : vector<256x128xf32>
    %c0_56 = arith.constant 0 : index
    %c0_57 = arith.constant 0 : index
    %119 = vector.load %arg8[%c0_56, %c0_57] : memref<1x128xf32, #tpu.memory_space<vmem>>, vector<1x128xf32>
    %120 = vector.broadcast %119 : vector<1x128xf32> to vector<256x128xf32>
    %121 = arith.addf %118, %120 : vector<256x128xf32>
    %c0_58 = arith.constant 0 : index
    %c0_59 = arith.constant 0 : index
    %122 = vector.load %arg9[%c0_58, %c0_59] : memref<1x128xf32, #tpu.memory_space<vmem>>, vector<1x128xf32>
    %c0_60 = arith.constant 0 : index
    %c0_61 = arith.constant 0 : index
    %123 = vector.load %arg10[%c0_60, %c0_61] : memref<1x128xf32, #tpu.memory_space<vmem>>, vector<1x128xf32>
    %c0_62 = arith.constant 0 : index
    %c0_63 = arith.constant 0 : index
    %124 = vector.load %arg11[%c0_62, %c0_63] : memref<128x32xf32, #tpu.memory_space<vmem>>, vector<128x32xf32>
    %cst_64 = arith.constant dense<0.000000e+00> : vector<128xf32>
    %125 = vector.multi_reduction <add>, %121, %cst_64 [0] : vector<256x128xf32> to vector<128xf32>
    %126 = vector.shape_cast %125 : vector<128xf32> to vector<1x128xf32>
    %127 = arith.mulf %121, %121 : vector<256x128xf32>
    %cst_65 = arith.constant dense<0.000000e+00> : vector<128xf32>
    %128 = vector.multi_reduction <add>, %127, %cst_65 [0] : vector<256x128xf32> to vector<128xf32>
    %129 = vector.shape_cast %128 : vector<128xf32> to vector<1x128xf32>
    %130 = tpu.concatenate %126, %129 in 0 : vector<1x128xf32>, vector<1x128xf32> -> vector<2x128xf32>
    %cst_66 = arith.constant dense<0.000000e+00> : vector<2x32xf32>
    %131 = tpu.matmul %130, %124, %cst_66 {dimension_numbers = #tpu.dot_dimension_numbers<[1], [0], [0], [1], [0, 0, 1, 1], [], []>} : vector<2x128xf32>, vector<128x32xf32>, vector<2x32xf32> -> vector<2x32xf32>
    %cst_67 = arith.constant 9.765625E-4 : f32
    %132 = vector.broadcast %cst_67 : f32 to vector<2x32xf32>
    %133 = arith.mulf %131, %132 : vector<2x32xf32>
    %134 = vector.extract_strided_slice %133 {offsets = [0, 0], sizes = [1, 32], strides = [1, 1]} : vector<2x32xf32> to vector<1x32xf32>
    %135 = vector.extract_strided_slice %133 {offsets = [1, 0], sizes = [1, 32], strides = [1, 1]} : vector<2x32xf32> to vector<1x32xf32>
    %136 = arith.mulf %134, %134 : vector<1x32xf32>
    %137 = arith.subf %135, %136 : vector<1x32xf32>
    %cst_68 = arith.constant 0.000000e+00 : f32
    %138 = vector.broadcast %cst_68 : f32 to vector<1x32xf32>
    %139 = arith.maximumf %137, %138 : vector<1x32xf32>
    %cst_69 = arith.constant 9.99999974E-6 : f32
    %140 = vector.broadcast %cst_69 : f32 to vector<1x32xf32>
    %141 = arith.addf %139, %140 : vector<1x32xf32>
    %142 = math.rsqrt %141 : vector<1x32xf32>
    %143 = tpu.concatenate %134, %142 in 0 : vector<1x32xf32>, vector<1x32xf32> -> vector<2x32xf32>
    %cst_70 = arith.constant dense<0.000000e+00> : vector<2x128xf32>
    %144 = tpu.matmul %143, %124, %cst_70 {dimension_numbers = #tpu.dot_dimension_numbers<[1], [1], [0], [0], [0, 0, 1, 0], [], []>} : vector<2x32xf32>, vector<128x32xf32>, vector<2x128xf32> -> vector<2x128xf32>
    %145 = vector.extract_strided_slice %144 {offsets = [1, 0], sizes = [1, 128], strides = [1, 1]} : vector<2x128xf32> to vector<1x128xf32>
    %146 = arith.mulf %145, %122 : vector<1x128xf32>
    %147 = vector.extract_strided_slice %144 {offsets = [0, 0], sizes = [1, 128], strides = [1, 1]} : vector<2x128xf32> to vector<1x128xf32>
    %148 = arith.mulf %147, %146 : vector<1x128xf32>
    %149 = arith.subf %123, %148 : vector<1x128xf32>
    %150 = vector.broadcast %146 : vector<1x128xf32> to vector<256x128xf32>
    %151 = arith.mulf %121, %150 : vector<256x128xf32>
    %152 = vector.broadcast %149 : vector<1x128xf32> to vector<256x128xf32>
    %153 = arith.addf %151, %152 : vector<256x128xf32>
    %cst_71 = arith.constant 0.000000e+00 : f32
    %154 = vector.broadcast %cst_71 : f32 to vector<256x128xf32>
    %155 = arith.subf %154, %153 : vector<256x128xf32>
    %156 = math.exp %155 : vector<256x128xf32>
    %cst_72 = arith.constant 1.000000e+00 : f32
    %157 = vector.broadcast %cst_72 : f32 to vector<256x128xf32>
    %158 = arith.addf %157, %156 : vector<256x128xf32>
    %159 = tpu.reciprocal %158 {approx = true} : vector<256x128xf32> -> vector<256x128xf32>
    %160 = arith.mulf %153, %159 : vector<256x128xf32>
    %cst_73 = arith.constant 0.000000e+00 : f32
    %161 = vector.broadcast %cst_73 : f32 to vector<17x128xf32>
    %162 = vector.extract_strided_slice %160 {offsets = [0, 0], sizes = [239, 128], strides = [1, 1]} : vector<256x128xf32> to vector<239x128xf32>
    %163 = tpu.concatenate %161, %162 in 0 : vector<17x128xf32>, vector<239x128xf32> -> vector<256x128xf32>
    %164 = arith.mulf %163, %2 : vector<256x128xf32>
    %165 = arith.truncf %164 : vector<256x128xf32> to vector<256x128xbf16>
    %c0_74 = arith.constant 0 : index
    %c0_75 = arith.constant 0 : index
    %c0_76 = arith.constant 0 : index
    %166 = vector.load %arg12[%c0_74, %c0_75, %c0_76] : memref<9x128x128xbf16, #tpu.memory_space<vmem>>, vector<1x128x128xbf16>
    %167 = vector.shape_cast %166 : vector<1x128x128xbf16> to vector<128x128xbf16>
    %cst_77 = arith.constant dense<0.000000e+00> : vector<256x128xf32>
    %168 = tpu.matmul %165, %167, %cst_77 {dimension_numbers = #tpu.dot_dimension_numbers<[1], [0], [0], [1], [0, 0, 1, 1], [], []>} : vector<256x128xbf16>, vector<128x128xbf16>, vector<256x128xf32> -> vector<256x128xf32>
    %cst_78 = arith.constant 0.000000e+00 : f32
    %169 = vector.broadcast %cst_78 : f32 to vector<16x128xf32>
    %170 = vector.extract_strided_slice %160 {offsets = [0, 0], sizes = [240, 128], strides = [1, 1]} : vector<256x128xf32> to vector<240x128xf32>
    %171 = tpu.concatenate %169, %170 in 0 : vector<16x128xf32>, vector<240x128xf32> -> vector<256x128xf32>
    %172 = arith.truncf %171 : vector<256x128xf32> to vector<256x128xbf16>
    %c1_79 = arith.constant 1 : index
    %c0_80 = arith.constant 0 : index
    %c0_81 = arith.constant 0 : index
    %173 = vector.load %arg12[%c1_79, %c0_80, %c0_81] : memref<9x128x128xbf16, #tpu.memory_space<vmem>>, vector<1x128x128xbf16>
    %174 = vector.shape_cast %173 : vector<1x128x128xbf16> to vector<128x128xbf16>
    %cst_82 = arith.constant dense<0.000000e+00> : vector<256x128xf32>
    %175 = tpu.matmul %172, %174, %cst_82 {dimension_numbers = #tpu.dot_dimension_numbers<[1], [0], [0], [1], [0, 0, 1, 1], [], []>} : vector<256x128xbf16>, vector<128x128xbf16>, vector<256x128xf32> -> vector<256x128xf32>
    %176 = arith.addf %168, %175 : vector<256x128xf32>
    %cst_83 = arith.constant 0.000000e+00 : f32
    %177 = vector.broadcast %cst_83 : f32 to vector<15x128xf32>
    %178 = vector.extract_strided_slice %160 {offsets = [0, 0], sizes = [241, 128], strides = [1, 1]} : vector<256x128xf32> to vector<241x128xf32>
    %179 = tpu.concatenate %177, %178 in 0 : vector<15x128xf32>, vector<241x128xf32> -> vector<256x128xf32>
    %180 = arith.mulf %179, %3 : vector<256x128xf32>
    %181 = arith.truncf %180 : vector<256x128xf32> to vector<256x128xbf16>
    %c2_84 = arith.constant 2 : index
    %c0_85 = arith.constant 0 : index
    %c0_86 = arith.constant 0 : index
    %182 = vector.load %arg12[%c2_84, %c0_85, %c0_86] : memref<9x128x128xbf16, #tpu.memory_space<vmem>>, vector<1x128x128xbf16>
    %183 = vector.shape_cast %182 : vector<1x128x128xbf16> to vector<128x128xbf16>
    %cst_87 = arith.constant dense<0.000000e+00> : vector<256x128xf32>
    %184 = tpu.matmul %181, %183, %cst_87 {dimension_numbers = #tpu.dot_dimension_numbers<[1], [0], [0], [1], [0, 0, 1, 1], [], []>} : vector<256x128xbf16>, vector<128x128xbf16>, vector<256x128xf32> -> vector<256x128xf32>
    %185 = arith.addf %176, %184 : vector<256x128xf32>
    %cst_88 = arith.constant 0.000000e+00 : f32
    %186 = vector.broadcast %cst_88 : f32 to vector<1x128xf32>
    %187 = vector.extract_strided_slice %160 {offsets = [0, 0], sizes = [255, 128], strides = [1, 1]} : vector<256x128xf32> to vector<255x128xf32>
    %188 = tpu.concatenate %186, %187 in 0 : vector<1x128xf32>, vector<255x128xf32> -> vector<256x128xf32>
    %189 = arith.mulf %188, %2 : vector<256x128xf32>
    %190 = arith.truncf %189 : vector<256x128xf32> to vector<256x128xbf16>
    %c3_89 = arith.constant 3 : index
    %c0_90 = arith.constant 0 : index
    %c0_91 = arith.constant 0 : index
    %191 = vector.load %arg12[%c3_89, %c0_90, %c0_91] : memref<9x128x128xbf16, #tpu.memory_space<vmem>>, vector<1x128x128xbf16>
    %192 = vector.shape_cast %191 : vector<1x128x128xbf16> to vector<128x128xbf16>
    %cst_92 = arith.constant dense<0.000000e+00> : vector<256x128xf32>
    %193 = tpu.matmul %190, %192, %cst_92 {dimension_numbers = #tpu.dot_dimension_numbers<[1], [0], [0], [1], [0, 0, 1, 1], [], []>} : vector<256x128xbf16>, vector<128x128xbf16>, vector<256x128xf32> -> vector<256x128xf32>
    %194 = arith.addf %185, %193 : vector<256x128xf32>
    %195 = arith.truncf %160 : vector<256x128xf32> to vector<256x128xbf16>
    %c4_93 = arith.constant 4 : index
    %c0_94 = arith.constant 0 : index
    %c0_95 = arith.constant 0 : index
    %196 = vector.load %arg12[%c4_93, %c0_94, %c0_95] : memref<9x128x128xbf16, #tpu.memory_space<vmem>>, vector<1x128x128xbf16>
    %197 = vector.shape_cast %196 : vector<1x128x128xbf16> to vector<128x128xbf16>
    %cst_96 = arith.constant dense<0.000000e+00> : vector<256x128xf32>
    %198 = tpu.matmul %195, %197, %cst_96 {dimension_numbers = #tpu.dot_dimension_numbers<[1], [0], [0], [1], [0, 0, 1, 1], [], []>} : vector<256x128xbf16>, vector<128x128xbf16>, vector<256x128xf32> -> vector<256x128xf32>
    %199 = arith.addf %194, %198 : vector<256x128xf32>
    %200 = vector.extract_strided_slice %160 {offsets = [1, 0], sizes = [255, 128], strides = [1, 1]} : vector<256x128xf32> to vector<255x128xf32>
    %cst_97 = arith.constant 0.000000e+00 : f32
    %201 = vector.broadcast %cst_97 : f32 to vector<1x128xf32>
    %202 = tpu.concatenate %200, %201 in 0 : vector<255x128xf32>, vector<1x128xf32> -> vector<256x128xf32>
    %203 = arith.mulf %202, %3 : vector<256x128xf32>
    %204 = arith.truncf %203 : vector<256x128xf32> to vector<256x128xbf16>
    %c5_98 = arith.constant 5 : index
    %c0_99 = arith.constant 0 : index
    %c0_100 = arith.constant 0 : index
    %205 = vector.load %arg12[%c5_98, %c0_99, %c0_100] : memref<9x128x128xbf16, #tpu.memory_space<vmem>>, vector<1x128x128xbf16>
    %206 = vector.shape_cast %205 : vector<1x128x128xbf16> to vector<128x128xbf16>
    %cst_101 = arith.constant dense<0.000000e+00> : vector<256x128xf32>
    %207 = tpu.matmul %204, %206, %cst_101 {dimension_numbers = #tpu.dot_dimension_numbers<[1], [0], [0], [1], [0, 0, 1, 1], [], []>} : vector<256x128xbf16>, vector<128x128xbf16>, vector<256x128xf32> -> vector<256x128xf32>
    %208 = arith.addf %199, %207 : vector<256x128xf32>
    %209 = vector.extract_strided_slice %160 {offsets = [15, 0], sizes = [241, 128], strides = [1, 1]} : vector<256x128xf32> to vector<241x128xf32>
    %cst_102 = arith.constant 0.000000e+00 : f32
    %210 = vector.broadcast %cst_102 : f32 to vector<15x128xf32>
    %211 = tpu.concatenate %209, %210 in 0 : vector<241x128xf32>, vector<15x128xf32> -> vector<256x128xf32>
    %212 = arith.mulf %211, %2 : vector<256x128xf32>
    %213 = arith.truncf %212 : vector<256x128xf32> to vector<256x128xbf16>
    %c6_103 = arith.constant 6 : index
    %c0_104 = arith.constant 0 : index
    %c0_105 = arith.constant 0 : index
    %214 = vector.load %arg12[%c6_103, %c0_104, %c0_105] : memref<9x128x128xbf16, #tpu.memory_space<vmem>>, vector<1x128x128xbf16>
    %215 = vector.shape_cast %214 : vector<1x128x128xbf16> to vector<128x128xbf16>
    %cst_106 = arith.constant dense<0.000000e+00> : vector<256x128xf32>
    %216 = tpu.matmul %213, %215, %cst_106 {dimension_numbers = #tpu.dot_dimension_numbers<[1], [0], [0], [1], [0, 0, 1, 1], [], []>} : vector<256x128xbf16>, vector<128x128xbf16>, vector<256x128xf32> -> vector<256x128xf32>
    %217 = arith.addf %208, %216 : vector<256x128xf32>
    %218 = vector.extract_strided_slice %160 {offsets = [16, 0], sizes = [240, 128], strides = [1, 1]} : vector<256x128xf32> to vector<240x128xf32>
    %cst_107 = arith.constant 0.000000e+00 : f32
    %219 = vector.broadcast %cst_107 : f32 to vector<16x128xf32>
    %220 = tpu.concatenate %218, %219 in 0 : vector<240x128xf32>, vector<16x128xf32> -> vector<256x128xf32>
    %221 = arith.truncf %220 : vector<256x128xf32> to vector<256x128xbf16>
    %c7_108 = arith.constant 7 : index
    %c0_109 = arith.constant 0 : index
    %c0_110 = arith.constant 0 : index
    %222 = vector.load %arg12[%c7_108, %c0_109, %c0_110] : memref<9x128x128xbf16, #tpu.memory_space<vmem>>, vector<1x128x128xbf16>
    %223 = vector.shape_cast %222 : vector<1x128x128xbf16> to vector<128x128xbf16>
    %cst_111 = arith.constant dense<0.000000e+00> : vector<256x128xf32>
    %224 = tpu.matmul %221, %223, %cst_111 {dimension_numbers = #tpu.dot_dimension_numbers<[1], [0], [0], [1], [0, 0, 1, 1], [], []>} : vector<256x128xbf16>, vector<128x128xbf16>, vector<256x128xf32> -> vector<256x128xf32>
    %225 = arith.addf %217, %224 : vector<256x128xf32>
    %226 = vector.extract_strided_slice %160 {offsets = [17, 0], sizes = [239, 128], strides = [1, 1]} : vector<256x128xf32> to vector<239x128xf32>
    %cst_112 = arith.constant 0.000000e+00 : f32
    %227 = vector.broadcast %cst_112 : f32 to vector<17x128xf32>
    %228 = tpu.concatenate %226, %227 in 0 : vector<239x128xf32>, vector<17x128xf32> -> vector<256x128xf32>
    %229 = arith.mulf %228, %3 : vector<256x128xf32>
    %230 = arith.truncf %229 : vector<256x128xf32> to vector<256x128xbf16>
    %c8_113 = arith.constant 8 : index
    %c0_114 = arith.constant 0 : index
    %c0_115 = arith.constant 0 : index
    %231 = vector.load %arg12[%c8_113, %c0_114, %c0_115] : memref<9x128x128xbf16, #tpu.memory_space<vmem>>, vector<1x128x128xbf16>
    %232 = vector.shape_cast %231 : vector<1x128x128xbf16> to vector<128x128xbf16>
    %cst_116 = arith.constant dense<0.000000e+00> : vector<256x128xf32>
    %233 = tpu.matmul %230, %232, %cst_116 {dimension_numbers = #tpu.dot_dimension_numbers<[1], [0], [0], [1], [0, 0, 1, 1], [], []>} : vector<256x128xbf16>, vector<128x128xbf16>, vector<256x128xf32> -> vector<256x128xf32>
    %234 = arith.addf %225, %233 : vector<256x128xf32>
    %235 = arith.truncf %1 : vector<256x64xf32> to vector<256x64xbf16>
    %c0_117 = arith.constant 0 : index
    %c0_118 = arith.constant 0 : index
    %236 = vector.load %arg14[%c0_117, %c0_118] : memref<64x128xbf16, #tpu.memory_space<vmem>>, vector<64x128xbf16>
    %cst_119 = arith.constant dense<0.000000e+00> : vector<256x128xf32>
    %237 = tpu.matmul %235, %236, %cst_119 {dimension_numbers = #tpu.dot_dimension_numbers<[1], [0], [0], [1], [0, 0, 1, 1], [], []>} : vector<256x64xbf16>, vector<64x128xbf16>, vector<256x128xf32> -> vector<256x128xf32>
    %238 = arith.addf %234, %237 : vector<256x128xf32>
    %c0_120 = arith.constant 0 : index
    %c0_121 = arith.constant 0 : index
    %239 = vector.load %arg13[%c0_120, %c0_121] : memref<1x128xf32, #tpu.memory_space<vmem>>, vector<1x128xf32>
    %240 = vector.broadcast %239 : vector<1x128xf32> to vector<256x128xf32>
    %241 = arith.addf %238, %240 : vector<256x128xf32>
    %c0_122 = arith.constant 0 : index
    %c0_123 = arith.constant 0 : index
    %242 = vector.load %arg15[%c0_122, %c0_123] : memref<1x128xf32, #tpu.memory_space<vmem>>, vector<1x128xf32>
    %c0_124 = arith.constant 0 : index
    %c0_125 = arith.constant 0 : index
    %243 = vector.load %arg16[%c0_124, %c0_125] : memref<1x128xf32, #tpu.memory_space<vmem>>, vector<1x128xf32>
    %c0_126 = arith.constant 0 : index
    %c0_127 = arith.constant 0 : index
    %244 = vector.load %arg11[%c0_126, %c0_127] : memref<128x32xf32, #tpu.memory_space<vmem>>, vector<128x32xf32>
    %cst_128 = arith.constant dense<0.000000e+00> : vector<128xf32>
    %245 = vector.multi_reduction <add>, %241, %cst_128 [0] : vector<256x128xf32> to vector<128xf32>
    %246 = vector.shape_cast %245 : vector<128xf32> to vector<1x128xf32>
    %247 = arith.mulf %241, %241 : vector<256x128xf32>
    %cst_129 = arith.constant dense<0.000000e+00> : vector<128xf32>
    %248 = vector.multi_reduction <add>, %247, %cst_129 [0] : vector<256x128xf32> to vector<128xf32>
    %249 = vector.shape_cast %248 : vector<128xf32> to vector<1x128xf32>
    %250 = tpu.concatenate %246, %249 in 0 : vector<1x128xf32>, vector<1x128xf32> -> vector<2x128xf32>
    %cst_130 = arith.constant dense<0.000000e+00> : vector<2x32xf32>
    %251 = tpu.matmul %250, %244, %cst_130 {dimension_numbers = #tpu.dot_dimension_numbers<[1], [0], [0], [1], [0, 0, 1, 1], [], []>} : vector<2x128xf32>, vector<128x32xf32>, vector<2x32xf32> -> vector<2x32xf32>
    %cst_131 = arith.constant 9.765625E-4 : f32
    %252 = vector.broadcast %cst_131 : f32 to vector<2x32xf32>
    %253 = arith.mulf %251, %252 : vector<2x32xf32>
    %254 = vector.extract_strided_slice %253 {offsets = [0, 0], sizes = [1, 32], strides = [1, 1]} : vector<2x32xf32> to vector<1x32xf32>
    %255 = vector.extract_strided_slice %253 {offsets = [1, 0], sizes = [1, 32], strides = [1, 1]} : vector<2x32xf32> to vector<1x32xf32>
    %256 = arith.mulf %254, %254 : vector<1x32xf32>
    %257 = arith.subf %255, %256 : vector<1x32xf32>
    %cst_132 = arith.constant 0.000000e+00 : f32
    %258 = vector.broadcast %cst_132 : f32 to vector<1x32xf32>
    %259 = arith.maximumf %257, %258 : vector<1x32xf32>
    %cst_133 = arith.constant 9.99999974E-6 : f32
    %260 = vector.broadcast %cst_133 : f32 to vector<1x32xf32>
    %261 = arith.addf %259, %260 : vector<1x32xf32>
    %262 = math.rsqrt %261 : vector<1x32xf32>
    %263 = tpu.concatenate %254, %262 in 0 : vector<1x32xf32>, vector<1x32xf32> -> vector<2x32xf32>
    %cst_134 = arith.constant dense<0.000000e+00> : vector<2x128xf32>
    %264 = tpu.matmul %263, %244, %cst_134 {dimension_numbers = #tpu.dot_dimension_numbers<[1], [1], [0], [0], [0, 0, 1, 0], [], []>} : vector<2x32xf32>, vector<128x32xf32>, vector<2x128xf32> -> vector<2x128xf32>
    %265 = vector.extract_strided_slice %264 {offsets = [1, 0], sizes = [1, 128], strides = [1, 1]} : vector<2x128xf32> to vector<1x128xf32>
    %266 = arith.mulf %265, %242 : vector<1x128xf32>
    %267 = vector.extract_strided_slice %264 {offsets = [0, 0], sizes = [1, 128], strides = [1, 1]} : vector<2x128xf32> to vector<1x128xf32>
    %268 = arith.mulf %267, %266 : vector<1x128xf32>
    %269 = arith.subf %243, %268 : vector<1x128xf32>
    %270 = vector.broadcast %266 : vector<1x128xf32> to vector<256x128xf32>
    %271 = arith.mulf %241, %270 : vector<256x128xf32>
    %272 = vector.broadcast %269 : vector<1x128xf32> to vector<256x128xf32>
    %273 = arith.addf %271, %272 : vector<256x128xf32>
    %274 = arith.truncf %273 : vector<256x128xf32> to vector<256x128xbf16>
    %c0_135 = arith.constant 0 : index
    %c0_136 = arith.constant 0 : index
    %275 = vector.load %arg17[%c0_135, %c0_136] : memref<128x384xbf16, #tpu.memory_space<vmem>>, vector<128x384xbf16>
    %cst_137 = arith.constant dense<0.000000e+00> : vector<256x384xf32>
    %276 = tpu.matmul %274, %275, %cst_137 {dimension_numbers = #tpu.dot_dimension_numbers<[1], [0], [0], [1], [0, 0, 1, 1], [], []>} : vector<256x128xbf16>, vector<128x384xbf16>, vector<256x384xf32> -> vector<256x384xf32>
    %c0_138 = arith.constant 0 : index
    %c0_139 = arith.constant 0 : index
    %277 = vector.load %arg18[%c0_138, %c0_139] : memref<1x384xf32, #tpu.memory_space<vmem>>, vector<1x384xf32>
    %278 = vector.broadcast %277 : vector<1x384xf32> to vector<256x384xf32>
    %279 = arith.addf %276, %278 : vector<256x384xf32>
    %280 = vector.extract_strided_slice %279 {offsets = [0, 0], sizes = [256, 128], strides = [1, 1]} : vector<256x384xf32> to vector<256x128xf32>
    %281 = vector.extract_strided_slice %279 {offsets = [0, 128], sizes = [256, 128], strides = [1, 1]} : vector<256x384xf32> to vector<256x128xf32>
    %282 = vector.extract_strided_slice %279 {offsets = [0, 256], sizes = [256, 128], strides = [1, 1]} : vector<256x384xf32> to vector<256x128xf32>
    %283 = arith.truncf %280 : vector<256x128xf32> to vector<256x128xbf16>
    %284 = arith.truncf %281 : vector<256x128xf32> to vector<256x128xbf16>
    %cst_140 = arith.constant dense<0.000000e+00> : vector<256x256xf32>
    %285 = tpu.matmul %283, %284, %cst_140 {dimension_numbers = #tpu.dot_dimension_numbers<[1], [1], [0], [0], [0, 0, 1, 0], [], []>} : vector<256x128xbf16>, vector<256x128xbf16>, vector<256x256xf32> -> vector<256x256xf32>
    %cst_141 = arith.constant dense<0xFF800000> : vector<256xf32>
    %286 = vector.multi_reduction <maximumf>, %285, %cst_141 [1] : vector<256x256xf32> to vector<256xf32>
    %287 = vector.shape_cast %286 : vector<256xf32> to vector<256x1xf32>
    %288 = vector.broadcast %287 : vector<256x1xf32> to vector<256x256xf32>
    %289 = arith.subf %285, %288 : vector<256x256xf32>
    %290 = math.exp %289 : vector<256x256xf32>
    %cst_142 = arith.constant dense<0.000000e+00> : vector<256xf32>
    %291 = vector.multi_reduction <add>, %290, %cst_142 [1] : vector<256x256xf32> to vector<256xf32>
    %292 = vector.shape_cast %291 : vector<256xf32> to vector<256x1xf32>
    %293 = tpu.reciprocal %292 {approx = true} : vector<256x1xf32> -> vector<256x1xf32>
    %294 = vector.broadcast %293 : vector<256x1xf32> to vector<256x256xf32>
    %295 = arith.mulf %290, %294 : vector<256x256xf32>
    %296 = arith.truncf %295 : vector<256x256xf32> to vector<256x256xbf16>
    %297 = arith.truncf %282 : vector<256x128xf32> to vector<256x128xbf16>
    %cst_143 = arith.constant dense<0.000000e+00> : vector<256x128xf32>
    %298 = tpu.matmul %296, %297, %cst_143 {dimension_numbers = #tpu.dot_dimension_numbers<[1], [0], [0], [1], [0, 0, 1, 1], [], []>} : vector<256x256xbf16>, vector<256x128xbf16>, vector<256x128xf32> -> vector<256x128xf32>
    %299 = arith.truncf %298 : vector<256x128xf32> to vector<256x128xbf16>
    %c0_144 = arith.constant 0 : index
    %c0_145 = arith.constant 0 : index
    %300 = vector.load %arg19[%c0_144, %c0_145] : memref<128x128xbf16, #tpu.memory_space<vmem>>, vector<128x128xbf16>
    %cst_146 = arith.constant dense<0.000000e+00> : vector<256x128xf32>
    %301 = tpu.matmul %299, %300, %cst_146 {dimension_numbers = #tpu.dot_dimension_numbers<[1], [0], [0], [1], [0, 0, 1, 1], [], []>} : vector<256x128xbf16>, vector<128x128xbf16>, vector<256x128xf32> -> vector<256x128xf32>
    %c0_147 = arith.constant 0 : index
    %c0_148 = arith.constant 0 : index
    %302 = vector.load %arg20[%c0_147, %c0_148] : memref<1x128xf32, #tpu.memory_space<vmem>>, vector<1x128xf32>
    %303 = vector.broadcast %302 : vector<1x128xf32> to vector<256x128xf32>
    %304 = arith.addf %301, %303 : vector<256x128xf32>
    %305 = arith.addf %241, %304 : vector<256x128xf32>
    %c0_149 = arith.constant 0 : index
    %c0_150 = arith.constant 0 : index
    %c0_151 = arith.constant 0 : index
    %306 = vector.load %arg21[%c0_149, %c0_150, %c0_151] : memref<1x256x128xf32, #tpu.memory_space<vmem>>, vector<1x256x128xf32>
    %307 = vector.shape_cast %306 : vector<1x256x128xf32> to vector<256x128xf32>
    %308 = vector.shape_cast %305 : vector<256x128xf32> to vector<1x256x128xf32>
    tpu.vector_store %arg21[%c0_149, %c0_150, %c0_151], %308 {strides = array<i32>} : memref<1x256x128xf32, #tpu.memory_space<vmem>>, vector<1x256x128xf32>,
    return
  }
  func.func @transform_0(%arg0: i32) -> (i32, i32, i32) {
    %c0_i32 = arith.constant 0 : i32
    %c0_i32_0 = arith.constant 0 : i32
    %c0_i32_1 = arith.constant 0 : i32
    return %arg0, %c0_i32, %c0_i32_0 : i32, i32, i32
  }
  func.func @transform_1(%arg0: i32) -> (i32, i32) {
    %c0_i32 = arith.constant 0 : i32
    %c0_i32_0 = arith.constant 0 : i32
    %c0_i32_1 = arith.constant 0 : i32
    return %c0_i32, %c0_i32_0 : i32, i32
  }
  func.func @transform_2(%arg0: i32) -> (i32, i32) {
    %c0_i32 = arith.constant 0 : i32
    %c0_i32_0 = arith.constant 0 : i32
    %c0_i32_1 = arith.constant 0 : i32
    return %c0_i32, %c0_i32_0 : i32, i32
  }
  func.func @transform_3(%arg0: i32) -> (i32, i32) {
    %c0_i32 = arith.constant 0 : i32
    %c0_i32_0 = arith.constant 0 : i32
    %c0_i32_1 = arith.constant 0 : i32
    return %c0_i32, %c0_i32_0 : i32, i32
  }
  func.func @transform_4(%arg0: i32) -> (i32, i32) {
    %c0_i32 = arith.constant 0 : i32
    %c0_i32_0 = arith.constant 0 : i32
    %c0_i32_1 = arith.constant 0 : i32
    return %c0_i32, %c0_i32_0 : i32, i32
  }
  func.func @transform_5(%arg0: i32) -> (i32, i32) {
    %c0_i32 = arith.constant 0 : i32
    %c0_i32_0 = arith.constant 0 : i32
    %c0_i32_1 = arith.constant 0 : i32
    return %c0_i32, %c0_i32_0 : i32, i32
  }
  func.func @transform_6(%arg0: i32) -> (i32, i32, i32) {
    %c0_i32 = arith.constant 0 : i32
    %c0_i32_0 = arith.constant 0 : i32
    %c0_i32_1 = arith.constant 0 : i32
    %c0_i32_2 = arith.constant 0 : i32
    return %c0_i32, %c0_i32_0, %c0_i32_1 : i32, i32, i32
  }
  func.func @transform_7(%arg0: i32) -> (i32, i32) {
    %c0_i32 = arith.constant 0 : i32
    %c0_i32_0 = arith.constant 0 : i32
    %c0_i32_1 = arith.constant 0 : i32
    return %c0_i32, %c0_i32_0 : i32, i32
  }
  func.func @transform_8(%arg0: i32) -> (i32, i32) {
    %c0_i32 = arith.constant 0 : i32
    %c0_i32_0 = arith.constant 0 : i32
    %c0_i32_1 = arith.constant 0 : i32
    return %c0_i32, %c0_i32_0 : i32, i32
  }
  func.func @transform_9(%arg0: i32) -> (i32, i32) {
    %c0_i32 = arith.constant 0 : i32
    %c0_i32_0 = arith.constant 0 : i32
    %c0_i32_1 = arith.constant 0 : i32
    return %c0_i32, %c0_i32_0 : i32, i32
  }
  func.func @transform_10(%arg0: i32) -> (i32, i32) {
    %c0_i32 = arith.constant 0 : i32
    %c0_i32_0 = arith.constant 0 : i32
    %c0_i32_1 = arith.constant 0 : i32
    return %c0_i32, %c0_i32_0 : i32, i32
  }
  func.func @transform_11(%arg0: i32) -> (i32, i32, i32) {
    %c0_i32 = arith.constant 0 : i32
    %c0_i32_0 = arith.constant 0 : i32
    %c0_i32_1 = arith.constant 0 : i32
    %c0_i32_2 = arith.constant 0 : i32
    return %c0_i32, %c0_i32_0, %c0_i32_1 : i32, i32, i32
  }
  func.func @transform_12(%arg0: i32) -> (i32, i32) {
    %c0_i32 = arith.constant 0 : i32
    %c0_i32_0 = arith.constant 0 : i32
    %c0_i32_1 = arith.constant 0 : i32
    return %c0_i32, %c0_i32_0 : i32, i32
  }
  func.func @transform_13(%arg0: i32) -> (i32, i32) {
    %c0_i32 = arith.constant 0 : i32
    %c0_i32_0 = arith.constant 0 : i32
    %c0_i32_1 = arith.constant 0 : i32
    return %c0_i32, %c0_i32_0 : i32, i32
  }
  func.func @transform_14(%arg0: i32) -> (i32, i32) {
    %c0_i32 = arith.constant 0 : i32
    %c0_i32_0 = arith.constant 0 : i32
    %c0_i32_1 = arith.constant 0 : i32
    return %c0_i32, %c0_i32_0 : i32, i32
  }
  func.func @transform_15(%arg0: i32) -> (i32, i32) {
    %c0_i32 = arith.constant 0 : i32
    %c0_i32_0 = arith.constant 0 : i32
    %c0_i32_1 = arith.constant 0 : i32
    return %c0_i32, %c0_i32_0 : i32, i32
  }
  func.func @transform_16(%arg0: i32) -> (i32, i32) {
    %c0_i32 = arith.constant 0 : i32
    %c0_i32_0 = arith.constant 0 : i32
    %c0_i32_1 = arith.constant 0 : i32
    return %c0_i32, %c0_i32_0 : i32, i32
  }
  func.func @transform_17(%arg0: i32) -> (i32, i32) {
    %c0_i32 = arith.constant 0 : i32
    %c0_i32_0 = arith.constant 0 : i32
    %c0_i32_1 = arith.constant 0 : i32
    return %c0_i32, %c0_i32_0 : i32, i32
  }
  func.func @transform_18(%arg0: i32) -> (i32, i32) {
    %c0_i32 = arith.constant 0 : i32
    %c0_i32_0 = arith.constant 0 : i32
    %c0_i32_1 = arith.constant 0 : i32
    return %c0_i32, %c0_i32_0 : i32, i32
  }
  func.func @transform_19(%arg0: i32) -> (i32, i32) {
    %c0_i32 = arith.constant 0 : i32
    %c0_i32_0 = arith.constant 0 : i32
    %c0_i32_1 = arith.constant 0 : i32
    return %c0_i32, %c0_i32_0 : i32, i32
  }
  func.func @transform_20(%arg0: i32) -> (i32, i32, i32) {
    %c0_i32 = arith.constant 0 : i32
    %c0_i32_0 = arith.constant 0 : i32
    %c0_i32_1 = arith.constant 0 : i32
    return %arg0, %c0_i32, %c0_i32_0 : i32, i32, i32
  }
}

</mosaic_0001>

<llo_original>
// kernel: tpu_custom_call.1
$region0: #{tpu_custom_call.1}
  #allocation0 [shape = 'u32[]', space=smem, size = 0x4, offset = 0x4, fixed_abs, tag = 'smem constant byte address 0x4 - core index']
  #allocation1 [shape = 'u32[72,128]{1,0:T(1,128)}', space=vmem, size = 0x9000, scoped, tag = 'internal scratch']
  %s0 = inlined_call_operand.vmem [shape: f32[2,256,64], index: 0, kind: input, shape index: {}]
  %s1 = inlined_call_operand.hbm [shape: f32[256,128], index: 1, kind: input, shape index: {}]
  %s2 = inlined_call_operand.hbm [shape: f32[256,128], index: 2, kind: input, shape index: {}]
  %s3 = inlined_call_operand.vmem [shape: f32[1,64], index: 3, kind: input, shape index: {}]
  %s4 = inlined_call_operand.vmem [shape: f32[1,64], index: 4, kind: input, shape index: {}]
  %s5 = inlined_call_operand.vmem [shape: f32[64,32], index: 5, kind: input, shape index: {}]
  %s6 = inlined_call_operand.vmem [shape: bf16[9,64,128], index: 6, kind: input, shape index: {}]
  %s7 = inlined_call_operand.vmem [shape: f32[1,128], index: 7, kind: input, shape index: {}]
  %s8 = inlined_call_operand.vmem [shape: f32[1,128], index: 8, kind: input, shape index: {}]
  %s9 = inlined_call_operand.vmem [shape: f32[1,128], index: 9, kind: input, shape index: {}]
  %s10 = inlined_call_operand.vmem [shape: f32[128,32], index: 10, kind: input, shape index: {}]
  %s11 = inlined_call_operand.vmem [shape: bf16[9,128,128], index: 11, kind: input, shape index: {}]
  %s12 = inlined_call_operand.vmem [shape: f32[1,128], index: 12, kind: input, shape index: {}]
  %s13 = inlined_call_operand.vmem [shape: bf16[64,128], index: 13, kind: input, shape index: {}]
  %s14 = inlined_call_operand.vmem [shape: f32[1,128], index: 14, kind: input, shape index: {}]
  %s15 = inlined_call_operand.vmem [shape: f32[1,128], index: 15, kind: input, shape index: {}]
  %s16 = inlined_call_operand.hbm [shape: bf16[128,384], index: 16, kind: input, shape index: {}]
  %s17 = inlined_call_operand.vmem [shape: f32[1,384], index: 17, kind: input, shape index: {}]
  %s18 = inlined_call_operand.vmem [shape: bf16[128,128], index: 18, kind: input, shape index: {}]
  %s19 = inlined_call_operand.vmem [shape: f32[1,128], index: 19, kind: input, shape index: {}]
  %s20 = inlined_call_operand.hbm [shape: f32[2,256,128], index: 20, kind: output, shape index: {}]
  %s21 = sld [smem:[#allocation0]]
  $region125: #{tpu_custom_call.1} parent=0
    _
  %s23 = ssub.s32 1, %s21
  %s24 = scalar_select 0, %s23, %s21
  $region1: #{tpu_custom_call.1} parent=0
    #allocation2 [shape = 'u8[131072]{0}', space=vmem, size = 0x20000, scoped, tag = 'input window, operand 1, single buffered']
    #allocation3 [shape = 's32[2]{0}', space=sflag, size = 0x8, scoped, tag = 'scoped memory for tpu_custom_call.1']
    #allocation4 [shape = 's32[2]{0}', space=sflag, size = 0x8, scoped, tag = 'scoped memory for tpu_custom_call.1']
    #allocation5 [shape = 'u8[131072]{0}', space=vmem, size = 0x20000, scoped, tag = 'input window, operand 2, single buffered']
    #allocation6 [shape = 's32[1]{0}', space=sflag, size = 0x4, scoped, tag = 'scoped memory for tpu_custom_call.1']
    #allocation7 [shape = 'u8[98304]{0}', space=vmem, size = 0x18000, scoped, tag = 'input window, operand 16, single buffered']
    #allocation8 [shape = 'u8[262144]{0}', space=vmem, size = 0x40000, scoped, tag = 'output window, operand 0']
    %25 = vsyncpa [#allocation3], 0
    %26 = vsyncpa [#allocation6], 0
    %27 = vsyncpa [#allocation4], 0
    %s28 = scalar_lea.sflag [#allocation4], 1
    %29 = vsyncpa %s28, 0
    loop: start=0, step=1, limit=4
    $region2: #{tpu_custom_call.1} parent=1 // loop_pre_header
      _
    $region3: #{tpu_custom_call.1} parent=1 // loop_header
      %s31 = sphi 0, %s35
      %p32 = scmp.ge.s32.totalorder %s31, 4
      %s41 = sphi 0, %s43
      %s44 = sphi 0, %s41
      %s45 = sphi 0, %s44
      %s61 = sphi 0, %s45
      %s65 = sphi 0, %s65
      %s67 = sphi 0, %s65
      %s68 = sphi 0, %s67
      %s82 = sphi 0, %s68
      %s86 = sphi 0, %s86
      %s88 = sphi 0, %s86
      %s89 = sphi 0, %s88
      %s103 = sphi 0, %s89
      %s107 = sphi 0, %s107
      %s109 = sphi 0, %s107
      %s110 = sphi 0, %s109
      %s124 = sphi 0, %s110
      %s128 = sphi 0, %s128
      %s130 = sphi 0, %s128
      %s131 = sphi 0, %s130
      %s145 = sphi 0, %s131
      %s149 = sphi 0, %s149
      %s151 = sphi 0, %s149
      %s152 = sphi 0, %s151
      %s166 = sphi 0, %s152
      %s170 = sphi 0, %s170
      %s172 = sphi 0, %s170
      %s173 = sphi 0, %s172
      %s187 = sphi 0, %s173
      %s191 = sphi 0, %s191
      %s193 = sphi 0, %s191
      %s194 = sphi 0, %s193
      %s208 = sphi 0, %s194
      %s212 = sphi 0, %s212
      %s214 = sphi 0, %s212
      %s215 = sphi 0, %s214
      %s229 = sphi 0, %s215
      %s233 = sphi 0, %s233
      %s235 = sphi 0, %s233
      %s236 = sphi 0, %s235
      %s250 = sphi 0, %s236
      %s254 = sphi 0, %s254
      %s256 = sphi 0, %s254
      %s257 = sphi 0, %s256
      %s271 = sphi 0, %s257
      %s275 = sphi 0, %s275
      %s277 = sphi 0, %s275
      %s278 = sphi 0, %s277
      %s292 = sphi 0, %s278
      %s296 = sphi 0, %s296
      %s298 = sphi 0, %s296
      %s299 = sphi 0, %s298
      %s313 = sphi 0, %s299
      %s317 = sphi 0, %s317
      %s319 = sphi 0, %s317
      %s320 = sphi 0, %s319
      %s334 = sphi 0, %s320
      %s338 = sphi 0, %s338
      %s340 = sphi 0, %s338
      %s341 = sphi 0, %s340
      %s355 = sphi 0, %s341
      %s359 = sphi 0, %s359
      %s361 = sphi 0, %s359
      %s362 = sphi 0, %s361
      %s376 = sphi 0, %s362
      %s380 = sphi 0, %s380
      %s382 = sphi 0, %s380
      %s383 = sphi 0, %s382
      %s397 = sphi 0, %s383
      %s401 = sphi 0, %s401
      %s403 = sphi 0, %s401
      %s404 = sphi 0, %s403
      %s418 = sphi 0, %s404
      %s422 = sphi 0, %s422
      %s424 = sphi 0, %s422
      %s425 = sphi 0, %s424
      %s439 = sphi 0, %s425
      %s443 = sphi 0, %s443
      %s445 = sphi 0, %s443
      %s446 = sphi 0, %s445
      %s460 = sphi 0, %s446
      %s466 = sphi 0, %s468
      %s469 = sphi 0, %s466
      %s470 = sphi 0, %s469
      %s486 = sphi 0, %s470
    $region4: #{tpu_custom_call.1} parent=1 // loop_header_branch
      %34 = sbr.rel (%p32) target = $region8
    $region5: #{tpu_custom_call.1} parent=1 // loop_body
      %s36 = ssub.s32 %s31, 1
      %s37 = ssub.s32 %s31, 2
      %s38 = sadd.s32 %s31, 1
      %s39 = ssub.s32 %s31, %s38
      %p40 = scmp.eq.s32.totalorder %s39, 0
      %s42 = sadd.s32 %s41, 1
      %s43 = scalar_select %p40, %s41, %s42
      %p46 = pneg %p40
      %p47 = scmp.eq.s32.totalorder %s31, 1
      %p48 = por %p46, %p47
      %p49 = scmp.ne.s32.totalorder %s41, %s44
      %p50 = scmp.eq.s32.totalorder %s31, 0
      %p51 = por %p49, %p50
      %p52 = scmp.ne.s32.totalorder %s41, %s44
      %p53 = scmp.eq.s32.totalorder %s36, 1
      %p54 = por %p52, %p53
      %p55 = scmp.ne.s32.totalorder %s44, %s45
      %p56 = scmp.eq.s32.totalorder %s36, 0
      %p57 = por %p55, %p56
      %p58 = scmp.ne.s32.totalorder %s44, %s45
      %p59 = scmp.eq.s32.totalorder %s37, 1
      %p60 = por %p58, %p59
      %p62 = scmp.ne.s32.totalorder %s45, %s61
      %p63 = scmp.eq.s32.totalorder %s37, 0
      %p64 = por %p62, %p63
      %s66 = sadd.s32 %s65, 1
      %p69 = scmp.eq.s32.totalorder %s31, 1
      %p70 = scmp.ne.s32.totalorder %s65, %s67
      %p71 = scmp.eq.s32.totalorder %s31, 0
      %p72 = por %p70, %p71
      %p73 = scmp.ne.s32.totalorder %s65, %s67
      %p74 = scmp.eq.s32.totalorder %s36, 1
      %p75 = por %p73, %p74
      %p76 = scmp.ne.s32.totalorder %s67, %s68
      %p77 = scmp.eq.s32.totalorder %s36, 0
      %p78 = por %p76, %p77
      %p79 = scmp.ne.s32.totalorder %s67, %s68
      %p80 = scmp.eq.s32.totalorder %s37, 1
      %p81 = por %p79, %p80
      %p83 = scmp.ne.s32.totalorder %s68, %s82
      %p84 = scmp.eq.s32.totalorder %s37, 0
      %p85 = por %p83, %p84
      %s87 = sadd.s32 %s86, 1
      %p90 = scmp.eq.s32.totalorder %s31, 1
      %p91 = scmp.ne.s32.totalorder %s86, %s88
      %p92 = scmp.eq.s32.totalorder %s31, 0
      %p93 = por %p91, %p92
      %p94 = scmp.ne.s32.totalorder %s86, %s88
      %p95 = scmp.eq.s32.totalorder %s36, 1
      %p96 = por %p94, %p95
      %p97 = scmp.ne.s32.totalorder %s88, %s89
      %p98 = scmp.eq.s32.totalorder %s36, 0
      %p99 = por %p97, %p98
      %p100 = scmp.ne.s32.totalorder %s88, %s89
      %p101 = scmp.eq.s32.totalorder %s37, 1
      %p102 = por %p100, %p101
      %p104 = scmp.ne.s32.totalorder %s89, %s103
      %p105 = scmp.eq.s32.totalorder %s37, 0
      %p106 = por %p104, %p105
      %s108 = sadd.s32 %s107, 1
      %p111 = scmp.eq.s32.totalorder %s31, 1
      %p112 = scmp.ne.s32.totalorder %s107, %s109
      %p113 = scmp.eq.s32.totalorder %s31, 0
      %p114 = por %p112, %p113
      %p115 = scmp.ne.s32.totalorder %s107, %s109
      %p116 = scmp.eq.s32.totalorder %s36, 1
      %p117 = por %p115, %p116
      %p118 = scmp.ne.s32.totalorder %s109, %s110
      %p119 = scmp.eq.s32.totalorder %s36, 0
      %p120 = por %p118, %p119
      %p121 = scmp.ne.s32.totalorder %s109, %s110
      %p122 = scmp.eq.s32.totalorder %s37, 1
      %p123 = por %p121, %p122
      %p125 = scmp.ne.s32.totalorder %s110, %s124
      %p126 = scmp.eq.s32.totalorder %s37, 0
      %p127 = por %p125, %p126
      %s129 = sadd.s32 %s128, 1
      %p132 = scmp.eq.s32.totalorder %s31, 1
      %p133 = scmp.ne.s32.totalorder %s128, %s130
      %p134 = scmp.eq.s32.totalorder %s31, 0
      %p135 = por %p133, %p134
      %p136 = scmp.ne.s32.totalorder %s128, %s130
      %p137 = scmp.eq.s32.totalorder %s36, 1
      %p138 = por %p136, %p137
      %p139 = scmp.ne.s32.totalorder %s130, %s131
      %p140 = scmp.eq.s32.totalorder %s36, 0
      %p141 = por %p139, %p140
      %p142 = scmp.ne.s32.totalorder %s130, %s131
      %p143 = scmp.eq.s32.totalorder %s37, 1
      %p144 = por %p142, %p143
      %p146 = scmp.ne.s32.totalorder %s131, %s145
      %p147 = scmp.eq.s32.totalorder %s37, 0
      %p148 = por %p146, %p147
      %s150 = sadd.s32 %s149, 1
      %p153 = scmp.eq.s32.totalorder %s31, 1
      %p154 = scmp.ne.s32.totalorder %s149, %s151
      %p155 = scmp.eq.s32.totalorder %s31, 0
      %p156 = por %p154, %p155
      %p157 = scmp.ne.s32.totalorder %s149, %s151
      %p158 = scmp.eq.s32.totalorder %s36, 1
      %p159 = por %p157, %p158
      %p160 = scmp.ne.s32.totalorder %s151, %s152
      %p161 = scmp.eq.s32.totalorder %s36, 0
      %p162 = por %p160, %p161
      %p163 = scmp.ne.s32.totalorder %s151, %s152
      %p164 = scmp.eq.s32.totalorder %s37, 1
      %p165 = por %p163, %p164
      %p167 = scmp.ne.s32.totalorder %s152, %s166
      %p168 = scmp.eq.s32.totalorder %s37, 0
      %p169 = por %p167, %p168
      %s171 = sadd.s32 %s170, 1
      %p174 = scmp.eq.s32.totalorder %s31, 1
      %p175 = scmp.ne.s32.totalorder %s170, %s172
      %p176 = scmp.eq.s32.totalorder %s31, 0
      %p177 = por %p175, %p176
      %p178 = scmp.ne.s32.totalorder %s170, %s172
      %p179 = scmp.eq.s32.totalorder %s36, 1
      %p180 = por %p178, %p179
      %p181 = scmp.ne.s32.totalorder %s172, %s173
      %p182 = scmp.eq.s32.totalorder %s36, 0
      %p183 = por %p181, %p182
      %p184 = scmp.ne.s32.totalorder %s172, %s173
      %p185 = scmp.eq.s32.totalorder %s37, 1
      %p186 = por %p184, %p185
      %p188 = scmp.ne.s32.totalorder %s173, %s187
      %p189 = scmp.eq.s32.totalorder %s37, 0
      %p190 = por %p188, %p189
      %s192 = sadd.s32 %s191, 1
      %p195 = scmp.eq.s32.totalorder %s31, 1
      %p196 = scmp.ne.s32.totalorder %s191, %s193
      %p197 = scmp.eq.s32.totalorder %s31, 0
      %p198 = por %p196, %p197
      %p199 = scmp.ne.s32.totalorder %s191, %s193
      %p200 = scmp.eq.s32.totalorder %s36, 1
      %p201 = por %p199, %p200
      %p202 = scmp.ne.s32.totalorder %s193, %s194
      %p203 = scmp.eq.s32.totalorder %s36, 0
      %p204 = por %p202, %p203
      %p205 = scmp.ne.s32.totalorder %s193, %s194
      %p206 = scmp.eq.s32.totalorder %s37, 1
      %p207 = por %p205, %p206
      %p209 = scmp.ne.s32.totalorder %s194, %s208
      %p210 = scmp.eq.s32.totalorder %s37, 0
      %p211 = por %p209, %p210
      %s213 = sadd.s32 %s212, 1
      %p216 = scmp.eq.s32.totalorder %s31, 1
      %p217 = scmp.ne.s32.totalorder %s212, %s214
      %p218 = scmp.eq.s32.totalorder %s31, 0
      %p219 = por %p217, %p218
      %p220 = scmp.ne.s32.totalorder %s212, %s214
      %p221 = scmp.eq.s32.totalorder %s36, 1
      %p222 = por %p220, %p221
      %p223 = scmp.ne.s32.totalorder %s214, %s215
      %p224 = scmp.eq.s32.totalorder %s36, 0
      %p225 = por %p223, %p224
      %p226 = scmp.ne.s32.totalorder %s214, %s215
      %p227 = scmp.eq.s32.totalorder %s37, 1
      %p228 = por %p226, %p227
      %p230 = scmp.ne.s32.totalorder %s215, %s229
      %p231 = scmp.eq.s32.totalorder %s37, 0
      %p232 = por %p230, %p231
      %s234 = sadd.s32 %s233, 1
      %p237 = scmp.eq.s32.totalorder %s31, 1
      %p238 = scmp.ne.s32.totalorder %s233, %s235
      %p239 = scmp.eq.s32.totalorder %s31, 0
      %p240 = por %p238, %p239
      %p241 = scmp.ne.s32.totalorder %s233, %s235
      %p242 = scmp.eq.s32.totalorder %s36, 1
      %p243 = por %p241, %p242
      %p244 = scmp.ne.s32.totalorder %s235, %s236
      %p245 = scmp.eq.s32.totalorder %s36, 0
      %p246 = por %p244, %p245
      %p247 = scmp.ne.s32.totalorder %s235, %s236
      %p248 = scmp.eq.s32.totalorder %s37, 1
      %p249 = por %p247, %p248
      %p251 = scmp.ne.s32.totalorder %s236, %s250
      %p252 = scmp.eq.s32.totalorder %s37, 0
      %p253 = por %p251, %p252
      %s255 = sadd.s32 %s254, 1
      %p258 = scmp.eq.s32.totalorder %s31, 1
      %p259 = scmp.ne.s32.totalorder %s254, %s256
      %p260 = scmp.eq.s32.totalorder %s31, 0
      %p261 = por %p259, %p260
      %p262 = scmp.ne.s32.totalorder %s254, %s256
      %p263 = scmp.eq.s32.totalorder %s36, 1
      %p264 = por %p262, %p263
      %p265 = scmp.ne.s32.totalorder %s256, %s257
      %p266 = scmp.eq.s32.totalorder %s36, 0
      %p267 = por %p265, %p266
      %p268 = scmp.ne.s32.totalorder %s256, %s257
      %p269 = scmp.eq.s32.totalorder %s37, 1
      %p270 = por %p268, %p269
      %p272 = scmp.ne.s32.totalorder %s257, %s271
      %p273 = scmp.eq.s32.totalorder %s37, 0
      %p274 = por %p272, %p273
      %s276 = sadd.s32 %s275, 1
      %p279 = scmp.eq.s32.totalorder %s31, 1
      %p280 = scmp.ne.s32.totalorder %s275, %s277
      %p281 = scmp.eq.s32.totalorder %s31, 0
      %p282 = por %p280, %p281
      %p283 = scmp.ne.s32.totalorder %s275, %s277
      %p284 = scmp.eq.s32.totalorder %s36, 1
      %p285 = por %p283, %p284
      %p286 = scmp.ne.s32.totalorder %s277, %s278
      %p287 = scmp.eq.s32.totalorder %s36, 0
      %p288 = por %p286, %p287
      %p289 = scmp.ne.s32.totalorder %s277, %s278
      %p290 = scmp.eq.s32.totalorder %s37, 1
      %p291 = por %p289, %p290
      %p293 = scmp.ne.s32.totalorder %s278, %s292
      %p294 = scmp.eq.s32.totalorder %s37, 0
      %p295 = por %p293, %p294
      %s297 = sadd.s32 %s296, 1
      %p300 = scmp.eq.s32.totalorder %s31, 1
      %p301 = scmp.ne.s32.totalorder %s296, %s298
      %p302 = scmp.eq.s32.totalorder %s31, 0
      %p303 = por %p301, %p302
      %p304 = scmp.ne.s32.totalorder %s296, %s298
      %p305 = scmp.eq.s32.totalorder %s36, 1
      %p306 = por %p304, %p305
      %p307 = scmp.ne.s32.totalorder %s298, %s299
      %p308 = scmp.eq.s32.totalorder %s36, 0
      %p309 = por %p307, %p308
      %p310 = scmp.ne.s32.totalorder %s298, %s299
      %p311 = scmp.eq.s32.totalorder %s37, 1
      %p312 = por %p310, %p311
      %p314 = scmp.ne.s32.totalorder %s299, %s313
      %p315 = scmp.eq.s32.totalorder %s37, 0
      %p316 = por %p314, %p315
      %s318 = sadd.s32 %s317, 1
      %p321 = scmp.eq.s32.totalorder %s31, 1
      %p322 = scmp.ne.s32.totalorder %s317, %s319
      %p323 = scmp.eq.s32.totalorder %s31, 0
      %p324 = por %p322, %p323
      %p325 = scmp.ne.s32.totalorder %s317, %s319
      %p326 = scmp.eq.s32.totalorder %s36, 1
      %p327 = por %p325, %p326
      %p328 = scmp.ne.s32.totalorder %s319, %s320
      %p329 = scmp.eq.s32.totalorder %s36, 0
      %p330 = por %p328, %p329
      %p331 = scmp.ne.s32.totalorder %s319, %s320
      %p332 = scmp.eq.s32.totalorder %s37, 1
      %p333 = por %p331, %p332
      %p335 = scmp.ne.s32.totalorder %s320, %s334
      %p336 = scmp.eq.s32.totalorder %s37, 0
      %p337 = por %p335, %p336
      %s339 = sadd.s32 %s338, 1
      %p342 = scmp.eq.s32.totalorder %s31, 1
      %p343 = scmp.ne.s32.totalorder %s338, %s340
      %p344 = scmp.eq.s32.totalorder %s31, 0
      %p345 = por %p343, %p344
      %p346 = scmp.ne.s32.totalorder %s338, %s340
      %p347 = scmp.eq.s32.totalorder %s36, 1
      %p348 = por %p346, %p347
      %p349 = scmp.ne.s32.totalorder %s340, %s341
      %p350 = scmp.eq.s32.totalorder %s36, 0
      %p351 = por %p349, %p350
      %p352 = scmp.ne.s32.totalorder %s340, %s341
      %p353 = scmp.eq.s32.totalorder %s37, 1
      %p354 = por %p352, %p353
      %p356 = scmp.ne.s32.totalorder %s341, %s355
      %p357 = scmp.eq.s32.totalorder %s37, 0
      %p358 = por %p356, %p357
      %s360 = sadd.s32 %s359, 1
      %p363 = scmp.eq.s32.totalorder %s31, 1
      %p364 = scmp.ne.s32.totalorder %s359, %s361
      %p365 = scmp.eq.s32.totalorder %s31, 0
      %p366 = por %p364, %p365
      %p367 = scmp.ne.s32.totalorder %s359, %s361
      %p368 = scmp.eq.s32.totalorder %s36, 1
      %p369 = por %p367, %p368
      %p370 = scmp.ne.s32.totalorder %s361, %s362
      %p371 = scmp.eq.s32.totalorder %s36, 0
      %p372 = por %p370, %p371
      %p373 = scmp.ne.s32.totalorder %s361, %s362
      %p374 = scmp.eq.s32.totalorder %s37, 1
      %p375 = por %p373, %p374
      %p377 = scmp.ne.s32.totalorder %s362, %s376
      %p378 = scmp.eq.s32.totalorder %s37, 0
      %p379 = por %p377, %p378
      %s381 = sadd.s32 %s380, 1
      %p384 = scmp.eq.s32.totalorder %s31, 1
      %p385 = scmp.ne.s32.totalorder %s380, %s382
      %p386 = scmp.eq.s32.totalorder %s31, 0
      %p387 = por %p385, %p386
      %p388 = scmp.ne.s32.totalorder %s380, %s382
      %p389 = scmp.eq.s32.totalorder %s36, 1
      %p390 = por %p388, %p389
      %p391 = scmp.ne.s32.totalorder %s382, %s383
      %p392 = scmp.eq.s32.totalorder %s36, 0
      %p393 = por %p391, %p392
      %p394 = scmp.ne.s32.totalorder %s382, %s383
      %p395 = scmp.eq.s32.totalorder %s37, 1
      %p396 = por %p394, %p395
      %p398 = scmp.ne.s32.totalorder %s383, %s397
      %p399 = scmp.eq.s32.totalorder %s37, 0
      %p400 = por %p398, %p399
      %s402 = sadd.s32 %s401, 1
      %p405 = scmp.eq.s32.totalorder %s31, 1
      %p406 = scmp.ne.s32.totalorder %s401, %s403
      %p407 = scmp.eq.s32.totalorder %s31, 0
      %p408 = por %p406, %p407
      %p409 = scmp.ne.s32.totalorder %s401, %s403
      %p410 = scmp.eq.s32.totalorder %s36, 1
      %p411 = por %p409, %p410
      %p412 = scmp.ne.s32.totalorder %s403, %s404
      %p413 = scmp.eq.s32.totalorder %s36, 0
      %p414 = por %p412, %p413
      %p415 = scmp.ne.s32.totalorder %s403, %s404
      %p416 = scmp.eq.s32.totalorder %s37, 1
      %p417 = por %p415, %p416
      %p419 = scmp.ne.s32.totalorder %s404, %s418
      %p420 = scmp.eq.s32.totalorder %s37, 0
      %p421 = por %p419, %p420
      %s423 = sadd.s32 %s422, 1
      %p426 = scmp.eq.s32.totalorder %s31, 1
      %p427 = scmp.ne.s32.totalorder %s422, %s424
      %p428 = scmp.eq.s32.totalorder %s31, 0
      %p429 = por %p427, %p428
      %p430 = scmp.ne.s32.totalorder %s422, %s424
      %p431 = scmp.eq.s32.totalorder %s36, 1
      %p432 = por %p430, %p431
      %p433 = scmp.ne.s32.totalorder %s424, %s425
      %p434 = scmp.eq.s32.totalorder %s36, 0
      %p435 = por %p433, %p434
      %p436 = scmp.ne.s32.totalorder %s424, %s425
      %p437 = scmp.eq.s32.totalorder %s37, 1
      %p438 = por %p436, %p437
      %p440 = scmp.ne.s32.totalorder %s425, %s439
      %p441 = scmp.eq.s32.totalorder %s37, 0
      %p442 = por %p440, %p441
      %s444 = sadd.s32 %s443, 1
      %p447 = scmp.eq.s32.totalorder %s31, 1
      %p448 = scmp.ne.s32.totalorder %s443, %s445
      %p449 = scmp.eq.s32.totalorder %s31, 0
      %p450 = por %p448, %p449
      %p451 = scmp.ne.s32.totalorder %s443, %s445
      %p452 = scmp.eq.s32.totalorder %s36, 1
      %p453 = por %p451, %p452
      %p454 = scmp.ne.s32.totalorder %s445, %s446
      %p455 = scmp.eq.s32.totalorder %s36, 0
      %p456 = por %p454, %p455
      %p457 = scmp.ne.s32.totalorder %s445, %s446
      %p458 = scmp.eq.s32.totalorder %s37, 1
      %p459 = por %p457, %p458
      %p461 = scmp.ne.s32.totalorder %s446, %s460
      %p462 = scmp.eq.s32.totalorder %s37, 0
      %p463 = por %p461, %p462
      %s464 = ssub.s32 %s31, %s38
      %p465 = scmp.eq.s32.totalorder %s464, 0
      %s467 = sadd.s32 %s466, 1
      %s468 = scalar_select %p465, %s466, %s467
      %p471 = pneg %p465
      %p472 = scmp.eq.s32.totalorder %s31, 1
      %p473 = por %p471, %p472
      %p474 = scmp.ne.s32.totalorder %s466, %s469
      %p475 = scmp.eq.s32.totalorder %s31, 0
      %p476 = por %p474, %p475
      %p477 = scmp.ne.s32.totalorder %s466, %s469
      %p478 = scmp.eq.s32.totalorder %s36, 1
      %p479 = por %p477, %p478
      %p480 = scmp.ne.s32.totalorder %s469, %s470
      %p481 = scmp.eq.s32.totalorder %s36, 0
      %p482 = por %p480, %p481
      %p483 = scmp.ne.s32.totalorder %s469, %s470
      %p484 = scmp.eq.s32.totalorder %s37, 1
      %p485 = por %p483, %p484
      %p487 = scmp.ne.s32.totalorder %s470, %s486
      %p488 = scmp.eq.s32.totalorder %s37, 0
      %p489 = por %p487, %p488
      %p490 = scmp.le.s32.totalorder 1, %s31
      %p491 = scmp.lt.s32.totalorder %s31, 3
      %p492 = pnand %p490, %p491
      %p493 = pneg %p492
      // Predicated region
      $region9: #{tpu_custom_call.1} parent=5 // pred_check
        _
      $region10: #{tpu_custom_call.1} parent=5 // pred_check_branch
        %495 = sbr.rel (%p492) target = $region12
      $region11: #{tpu_custom_call.1} parent=5 // pred_region
        %s496 = ssub.s32 %s31, 1
        // Predicated region
        $region13: #{tpu_custom_call.1} parent=11 // pred_check
          %p497 = pneg %p78
        $region14: #{tpu_custom_call.1} parent=11 // pred_check_branch
          %499 = sbr.rel (%p497) target = $region16
        $region15: #{tpu_custom_call.1} parent=11 // pred_region
          %501 = vsyncadd [#allocation3], 0
          %s502 = sshll.u32 %s1, 4
          %s503 = int_to_ptr.hbm [resolvable:$true] %s502
          %s504 = sshll.u32 [#allocation2], 4
          %s505 = int_to_ptr.vmem [resolvable:$true] %s504
          %510 = dma.hbm_to_vmem [thread:$0]  %s503, 4096, %s505, [#allocation3], 128, 128, 8
        $region16: #{tpu_custom_call.1} parent=11 // pred_fallthru
          _
        // Predicated region
        $region17: #{tpu_custom_call.1} parent=11 // pred_check
          %p511 = pneg %p99
        $region18: #{tpu_custom_call.1} parent=11 // pred_check_branch
          %513 = sbr.rel (%p511) target = $region20
        $region19: #{tpu_custom_call.1} parent=11 // pred_region
          %515 = vsyncadd [#allocation6], 0
          %s516 = sshll.u32 %s2, 4
          %s517 = int_to_ptr.hbm [resolvable:$true] %s516
          %s518 = sshll.u32 [#allocation5], 4
          %s519 = int_to_ptr.vmem [resolvable:$true] %s518
          %524 = dma.hbm_to_vmem [thread:$0]  %s517, 4096, %s519, [#allocation6], 128, 128, 8
        $region20: #{tpu_custom_call.1} parent=11 // pred_fallthru
          _
        // Predicated region
        $region21: #{tpu_custom_call.1} parent=11 // pred_check
          %p525 = pneg %p120
        $region22: #{tpu_custom_call.1} parent=11 // pred_check_branch
          %527 = sbr.rel (%p525) target = $region24
        $region23: #{tpu_custom_call.1} parent=11 // pred_region
          _
        $region24: #{tpu_custom_call.1} parent=11 // pred_fallthru
          _
        // Predicated region
        $region25: #{tpu_custom_call.1} parent=11 // pred_check
          %p528 = pneg %p141
        $region26: #{tpu_custom_call.1} parent=11 // pred_check_branch
          %530 = sbr.rel (%p528) target = $region28
        $region27: #{tpu_custom_call.1} parent=11 // pred_region
          _
        $region28: #{tpu_custom_call.1} parent=11 // pred_fallthru
          _
        // Predicated region
        $region29: #{tpu_custom_call.1} parent=11 // pred_check
          %p531 = pneg %p162
        $region30: #{tpu_custom_call.1} parent=11 // pred_check_branch
          %533 = sbr.rel (%p531) target = $region32
        $region31: #{tpu_custom_call.1} parent=11 // pred_region
          _
        $region32: #{tpu_custom_call.1} parent=11 // pred_fallthru
          _
        // Predicated region
        $region33: #{tpu_custom_call.1} parent=11 // pred_check
          %p534 = pneg %p183
        $region34: #{tpu_custom_call.1} parent=11 // pred_check_branch
          %536 = sbr.rel (%p534) target = $region36
        $region35: #{tpu_custom_call.1} parent=11 // pred_region
          _
        $region36: #{tpu_custom_call.1} parent=11 // pred_fallthru
          _
        // Predicated region
        $region37: #{tpu_custom_call.1} parent=11 // pred_check
          %p537 = pneg %p204
        $region38: #{tpu_custom_call.1} parent=11 // pred_check_branch
          %539 = sbr.rel (%p537) target = $region40
        $region39: #{tpu_custom_call.1} parent=11 // pred_region
          _
        $region40: #{tpu_custom_call.1} parent=11 // pred_fallthru
          _
        // Predicated region
        $region41: #{tpu_custom_call.1} parent=11 // pred_check
          %p540 = pneg %p225
        $region42: #{tpu_custom_call.1} parent=11 // pred_check_branch
          %542 = sbr.rel (%p540) target = $region44
        $region43: #{tpu_custom_call.1} parent=11 // pred_region
          _
        $region44: #{tpu_custom_call.1} parent=11 // pred_fallthru
          _
        // Predicated region
        $region45: #{tpu_custom_call.1} parent=11 // pred_check
          %p543 = pneg %p246
        $region46: #{tpu_custom_call.1} parent=11 // pred_check_branch
          %545 = sbr.rel (%p543) target = $region48
        $region47: #{tpu_custom_call.1} parent=11 // pred_region
          _
        $region48: #{tpu_custom_call.1} parent=11 // pred_fallthru
          _
        // Predicated region
        $region49: #{tpu_custom_call.1} parent=11 // pred_check
          %p546 = pneg %p267
        $region50: #{tpu_custom_call.1} parent=11 // pred_check_branch
          %548 = sbr.rel (%p546) target = $region52
        $region51: #{tpu_custom_call.1} parent=11 // pred_region
          _
        $region52: #{tpu_custom_call.1} parent=11 // pred_fallthru
          _
        // Predicated region
        $region53: #{tpu_custom_call.1} parent=11 // pred_check
          %p549 = pneg %p288
        $region54: #{tpu_custom_call.1} parent=11 // pred_check_branch
          %551 = sbr.rel (%p549) target = $region56
        $region55: #{tpu_custom_call.1} parent=11 // pred_region
          _
        $region56: #{tpu_custom_call.1} parent=11 // pred_fallthru
          _
        // Predicated region
        $region57: #{tpu_custom_call.1} parent=11 // pred_check
          %p552 = pneg %p309
        $region58: #{tpu_custom_call.1} parent=11 // pred_check_branch
          %554 = sbr.rel (%p552) target = $region60
        $region59: #{tpu_custom_call.1} parent=11 // pred_region
          _
        $region60: #{tpu_custom_call.1} parent=11 // pred_fallthru
          _
        // Predicated region
        $region61: #{tpu_custom_call.1} parent=11 // pred_check
          %p555 = pneg %p330
        $region62: #{tpu_custom_call.1} parent=11 // pred_check_branch
          %557 = sbr.rel (%p555) target = $region64
        $region63: #{tpu_custom_call.1} parent=11 // pred_region
          _
        $region64: #{tpu_custom_call.1} parent=11 // pred_fallthru
          _
        // Predicated region
        $region65: #{tpu_custom_call.1} parent=11 // pred_check
          %p558 = pneg %p351
        $region66: #{tpu_custom_call.1} parent=11 // pred_check_branch
          %560 = sbr.rel (%p558) target = $region68
        $region67: #{tpu_custom_call.1} parent=11 // pred_region
          _
        $region68: #{tpu_custom_call.1} parent=11 // pred_fallthru
          _
        // Predicated region
        $region69: #{tpu_custom_call.1} parent=11 // pred_check
          %p561 = pneg %p372
        $region70: #{tpu_custom_call.1} parent=11 // pred_check_branch
          %563 = sbr.rel (%p561) target = $region72
        $region71: #{tpu_custom_call.1} parent=11 // pred_region
          _
        $region72: #{tpu_custom_call.1} parent=11 // pred_fallthru
          _
        // Predicated region
        $region73: #{tpu_custom_call.1} parent=11 // pred_check
          %p564 = pneg %p393
        $region74: #{tpu_custom_call.1} parent=11 // pred_check_branch
          %566 = sbr.rel (%p564) target = $region76
        $region75: #{tpu_custom_call.1} parent=11 // pred_region
          %568 = vsyncadd [#allocation6], 0
          %s569 = sshll.u32 %s16, 4
          %s570 = int_to_ptr.hbm [resolvable:$true] %s569
          %s571 = sshll.u32 [#allocation7], 4
          %s572 = int_to_ptr.vmem [resolvable:$true] %s571
          %577 = dma.hbm_to_vmem [thread:$0]  %s570, 3072, %s572, [#allocation6], 192, 192, 12
        $region76: #{tpu_custom_call.1} parent=11 // pred_fallthru
          _
        // Predicated region
        $region77: #{tpu_custom_call.1} parent=11 // pred_check
          %p578 = pneg %p414
        $region78: #{tpu_custom_call.1} parent=11 // pred_check_branch
          %580 = sbr.rel (%p578) target = $region80
        $region79: #{tpu_custom_call.1} parent=11 // pred_region
          _
        $region80: #{tpu_custom_call.1} parent=11 // pred_fallthru
          _
        // Predicated region
        $region81: #{tpu_custom_call.1} parent=11 // pred_check
          %p581 = pneg %p435
        $region82: #{tpu_custom_call.1} parent=11 // pred_check_branch
          %583 = sbr.rel (%p581) target = $region84
        $region83: #{tpu_custom_call.1} parent=11 // pred_region
          _
        $region84: #{tpu_custom_call.1} parent=11 // pred_fallthru
          _
        // Predicated region
        $region85: #{tpu_custom_call.1} parent=11 // pred_check
          %p584 = pneg %p456
        $region86: #{tpu_custom_call.1} parent=11 // pred_check_branch
          %586 = sbr.rel (%p584) target = $region88
        $region87: #{tpu_custom_call.1} parent=11 // pred_region
          _
        $region88: #{tpu_custom_call.1} parent=11 // pred_fallthru
          _
      $region12: #{tpu_custom_call.1} parent=5 // pred_fallthru
        _
      %p587 = scmp.lt.s32.totalorder %s31, 2
      // Predicated region
      $region89: #{tpu_custom_call.1} parent=5 // pred_check
        %p588 = pneg %p587
      $region90: #{tpu_custom_call.1} parent=5 // pred_check_branch
        %590 = sbr.rel (%p588) target = $region92
      $region91: #{tpu_custom_call.1} parent=5 // pred_region
        // Predicated region
        $region93: #{tpu_custom_call.1} parent=91 // pred_check
          %p591 = pneg %p51
        $region94: #{tpu_custom_call.1} parent=91 // pred_check_branch
          %593 = sbr.rel (%p591) target = $region96
        $region95: #{tpu_custom_call.1} parent=91 // pred_region
          %p594 = scmp.lt.s32.totalorder %s31, 1
          %s595 = scalar_select %p594, %s31, 1
          %s596 = smul.addr %s595, 32
          %s597 = smul.addr %s596, 8
          %s598 = scalar_lea.vmem %s0, %s597
        $region96: #{tpu_custom_call.1} parent=91 // pred_fallthru
          _
      $region92: #{tpu_custom_call.1} parent=5 // pred_fallthru
        _
      %p599 = scmp.le.s32.totalorder 1, %s31
      %p600 = scmp.lt.s32.totalorder %s31, 3
      %p601 = pnand %p599, %p600
      %p602 = pneg %p601
      // Predicated region
      $region97: #{tpu_custom_call.1} parent=5 // pred_check
        _
      $region98: #{tpu_custom_call.1} parent=5 // pred_check_branch
        %604 = sbr.rel (%p601) target = $region100
      $region99: #{tpu_custom_call.1} parent=5 // pred_region
        %s605 = ssub.s32 %s31, 1
        // Predicated region
        $region101: #{tpu_custom_call.1} parent=99 // pred_check
          %p606 = pneg %p78
        $region102: #{tpu_custom_call.1} parent=99 // pred_check_branch
          %608 = sbr.rel (%p606) target = $region104
        $region103: #{tpu_custom_call.1} parent=99 // pred_region
          %610 = dma.done [#allocation3], 4096
        $region104: #{tpu_custom_call.1} parent=99 // pred_fallthru
          _
        // Predicated region
        $region105: #{tpu_custom_call.1} parent=99 // pred_check
          %p611 = pneg %p99
        $region106: #{tpu_custom_call.1} parent=99 // pred_check_branch
          %613 = sbr.rel (%p611) target = $region108
        $region107: #{tpu_custom_call.1} parent=99 // pred_region
          %615 = dma.done [#allocation6], 4096
        $region108: #{tpu_custom_call.1} parent=99 // pred_fallthru
          _
        // Predicated region
        $region109: #{tpu_custom_call.1} parent=99 // pred_check
          %p616 = pneg %p393
        $region110: #{tpu_custom_call.1} parent=99 // pred_check_branch
          %618 = sbr.rel (%p616) target = $region112
        $region111: #{tpu_custom_call.1} parent=99 // pred_region
          %620 = dma.done [#allocation6], 3072
        $region112: #{tpu_custom_call.1} parent=99 // pred_fallthru
          _
        %p621 = scmp.lt.s32.totalorder %s36, 1
        %s622 = scalar_select %p621, %s36, 1
        %s623 = smul.addr %s622, 32
        %s624 = smul.addr %s623, 8
        %s625 = scalar_lea.vmem %s0, %s624
        %p626 = pneg %p57
        %p627 = pneg %p54
        %p628 = pneg %p78
        %p629 = pneg %p75
        %p630 = pneg %p99
        %p631 = pneg %p96
        %p632 = pneg %p120
        %p633 = pneg %p117
        %p634 = pneg %p141
        %p635 = pneg %p138
        %p636 = pneg %p162
        %p637 = pneg %p159
        %p638 = pneg %p183
        %p639 = pneg %p180
        %p640 = pneg %p204
        %p641 = pneg %p201
        %p642 = pneg %p225
        %p643 = pneg %p222
        %p644 = pneg %p246
        %p645 = pneg %p243
        %p646 = pneg %p267
        %p647 = pneg %p264
        %p648 = pneg %p288
        %p649 = pneg %p285
        %p650 = pneg %p309
        %p651 = pneg %p306
        %p652 = pneg %p330
        %p653 = pneg %p327
        %p654 = pneg %p351
        %p655 = pneg %p348
        %p656 = pneg %p372
        %p657 = pneg %p369
        %p658 = pneg %p393
        %p659 = pneg %p390
        %p660 = pneg %p414
        %p661 = pneg %p411
        %p662 = pneg %p435
        %p663 = pneg %p432
        %p664 = pneg %p456
        %p665 = pneg %p453
        %p666 = pneg %p482
        %p667 = pneg %p479
        %s668 = sand.u32 %s469, 1
        %s669 = scalar_lea.sflag [#allocation4], %s668
        %s670 = sand.u32 %s469, 1
        %s671 = smul.addr %s670, 256
        %s672 = scalar_lea.vmem [#allocation8], %s671
        %p673 = scmp.lt.s32.totalorder %s36, 1
        %s674 = scalar_select %p673, %s36, 1
        %s675 = smul.addr %s674, 32
        %s676 = smul.addr %s675, 8
        %s677 = scalar_lea.vmem %s0, %s676
        %v679 = vld [vmem:[%s677] sm:$0xff]
        %v680 = vld [vmem:[%s677 + $0x8] sm:$0xff]
        %v681 = vld [vmem:[%s677 + $0x10] sm:$0xff]
        %v682 = vld [vmem:[%s677 + $0x18] sm:$0xff]
        %v683 = vld [vmem:[%s677 + $0x20] sm:$0xff]
        %v684 = vld [vmem:[%s677 + $0x28] sm:$0xff]
        %v685 = vld [vmem:[%s677 + $0x30] sm:$0xff]
        %v686 = vld [vmem:[%s677 + $0x38] sm:$0xff]
        %v687 = vld [vmem:[%s677 + $0x40] sm:$0xff]
        %v688 = vld [vmem:[%s677 + $0x48] sm:$0xff]
        %v689 = vld [vmem:[%s677 + $0x50] sm:$0xff]
        %v690 = vld [vmem:[%s677 + $0x58] sm:$0xff]
        %v691 = vld [vmem:[%s677 + $0x60] sm:$0xff]
        %v692 = vld [vmem:[%s677 + $0x68] sm:$0xff]
        %v693 = vld [vmem:[%s677 + $0x70] sm:$0xff]
        %v694 = vld [vmem:[%s677 + $0x78] sm:$0xff]
        %v695 = vld [vmem:[%s677 + $0x80] sm:$0xff]
        %v696 = vld [vmem:[%s677 + $0x88] sm:$0xff]
        %v697 = vld [vmem:[%s677 + $0x90] sm:$0xff]
        %v698 = vld [vmem:[%s677 + $0x98] sm:$0xff]
        %v699 = vld [vmem:[%s677 + $0xa0] sm:$0xff]
        %v700 = vld [vmem:[%s677 + $0xa8] sm:$0xff]
        %v701 = vld [vmem:[%s677 + $0xb0] sm:$0xff]
        %v702 = vld [vmem:[%s677 + $0xb8] sm:$0xff]
        %v703 = vld [vmem:[%s677 + $0xc0] sm:$0xff]
        %v704 = vld [vmem:[%s677 + $0xc8] sm:$0xff]
        %v705 = vld [vmem:[%s677 + $0xd0] sm:$0xff]
        %v706 = vld [vmem:[%s677 + $0xd8] sm:$0xff]
        %v707 = vld [vmem:[%s677 + $0xe0] sm:$0xff]
        %v708 = vld [vmem:[%s677 + $0xe8] sm:$0xff]
        %v709 = vld [vmem:[%s677 + $0xf0] sm:$0xff]
        %v710 = vld [vmem:[%s677 + $0xf8] sm:$0xff]
        %v711 = vld [vmem:[#allocation2] sm:$0xff]
        %v712 = vld [vmem:[#allocation2 + $0x8] sm:$0xff]
        %v713 = vld [vmem:[#allocation2 + $0x10] sm:$0xff]
        %v714 = vld [vmem:[#allocation2 + $0x18] sm:$0xff]
        %v715 = vld [vmem:[#allocation2 + $0x20] sm:$0xff]
        %v716 = vld [vmem:[#allocation2 + $0x28] sm:$0xff]
        %v717 = vld [vmem:[#allocation2 + $0x30] sm:$0xff]
        %v718 = vld [vmem:[#allocation2 + $0x38] sm:$0xff]
        %v719 = vld [vmem:[#allocation2 + $0x40] sm:$0xff]
        %v720 = vld [vmem:[#allocation2 + $0x48] sm:$0xff]
        %v721 = vld [vmem:[#allocation2 + $0x50] sm:$0xff]
        %v722 = vld [vmem:[#allocation2 + $0x58] sm:$0xff]
        %v723 = vld [vmem:[#allocation2 + $0x60] sm:$0xff]
        %v724 = vld [vmem:[#allocation2 + $0x68] sm:$0xff]
        %v725 = vld [vmem:[#allocation2 + $0x70] sm:$0xff]
        %v726 = vld [vmem:[#allocation2 + $0x78] sm:$0xff]
        %v727 = vld [vmem:[#allocation2 + $0x80] sm:$0xff]
        %v728 = vld [vmem:[#allocation2 + $0x88] sm:$0xff]
        %v729 = vld [vmem:[#allocation2 + $0x90] sm:$0xff]
        %v730 = vld [vmem:[#allocation2 + $0x98] sm:$0xff]
        %v731 = vld [vmem:[#allocation2 + $0xa0] sm:$0xff]
        %v732 = vld [vmem:[#allocation2 + $0xa8] sm:$0xff]
        %v733 = vld [vmem:[#allocation2 + $0xb0] sm:$0xff]
        %v734 = vld [vmem:[#allocation2 + $0xb8] sm:$0xff]
        %v735 = vld [vmem:[#allocation2 + $0xc0] sm:$0xff]
        %v736 = vld [vmem:[#allocation2 + $0xc8] sm:$0xff]
        %v737 = vld [vmem:[#allocation2 + $0xd0] sm:$0xff]
        %v738 = vld [vmem:[#allocation2 + $0xd8] sm:$0xff]
        %v739 = vld [vmem:[#allocation2 + $0xe0] sm:$0xff]
        %v740 = vld [vmem:[#allocation2 + $0xe8] sm:$0xff]
        %v741 = vld [vmem:[#allocation2 + $0xf0] sm:$0xff]
        %v742 = vld [vmem:[#allocation2 + $0xf8] sm:$0xff]
        %v743 = vld [vmem:[#allocation5] sm:$0xff]
        %v744 = vld [vmem:[#allocation5 + $0x8] sm:$0xff]
        %v745 = vld [vmem:[#allocation5 + $0x10] sm:$0xff]
        %v746 = vld [vmem:[#allocation5 + $0x18] sm:$0xff]
        %v747 = vld [vmem:[#allocation5 + $0x20] sm:$0xff]
        %v748 = vld [vmem:[#allocation5 + $0x28] sm:$0xff]
        %v749 = vld [vmem:[#allocation5 + $0x30] sm:$0xff]
        %v750 = vld [vmem:[#allocation5 + $0x38] sm:$0xff]
        %v751 = vld [vmem:[#allocation5 + $0x40] sm:$0xff]
        %v752 = vld [vmem:[#allocation5 + $0x48] sm:$0xff]
        %v753 = vld [vmem:[#allocation5 + $0x50] sm:$0xff]
        %v754 = vld [vmem:[#allocation5 + $0x58] sm:$0xff]
        %v755 = vld [vmem:[#allocation5 + $0x60] sm:$0xff]
        %v756 = vld [vmem:[#allocation5 + $0x68] sm:$0xff]
        %v757 = vld [vmem:[#allocation5 + $0x70] sm:$0xff]
        %v758 = vld [vmem:[#allocation5 + $0x78] sm:$0xff]
        %v759 = vld [vmem:[#allocation5 + $0x80] sm:$0xff]
        %v760 = vld [vmem:[#allocation5 + $0x88] sm:$0xff]
        %v761 = vld [vmem:[#allocation5 + $0x90] sm:$0xff]
        %v762 = vld [vmem:[#allocation5 + $0x98] sm:$0xff]
        %v763 = vld [vmem:[#allocation5 + $0xa0] sm:$0xff]
        %v764 = vld [vmem:[#allocation5 + $0xa8] sm:$0xff]
        %v765 = vld [vmem:[#allocation5 + $0xb0] sm:$0xff]
        %v766 = vld [vmem:[#allocation5 + $0xb8] sm:$0xff]
        %v767 = vld [vmem:[#allocation5 + $0xc0] sm:$0xff]
        %v768 = vld [vmem:[#allocation5 + $0xc8] sm:$0xff]
        %v769 = vld [vmem:[#allocation5 + $0xd0] sm:$0xff]
        %v770 = vld [vmem:[#allocation5 + $0xd8] sm:$0xff]
        %v771 = vld [vmem:[#allocation5 + $0xe0] sm:$0xff]
        %v772 = vld [vmem:[#allocation5 + $0xe8] sm:$0xff]
        %v773 = vld [vmem:[#allocation5 + $0xf0] sm:$0xff]
        %v774 = vld [vmem:[#allocation5 + $0xf8] sm:$0xff]
        %v775 = vld [vmem:[%s3] sm:$0x1]
        %v776 = vld [vmem:[%s4] sm:$0x1]
        %v777 = vld [vmem:[%s5] sm:$0xff]
        %v778 = vld [vmem:[%s5 + $0x8] sm:$0xff]
        %v779 = vld [vmem:[%s5 + $0x10] sm:$0xff]
        %v780 = vld [vmem:[%s5 + $0x18] sm:$0xff]
        %v781 = vld [vmem:[%s5 + $0x20] sm:$0xff]
        %v782 = vld [vmem:[%s5 + $0x28] sm:$0xff]
        %v783 = vld [vmem:[%s5 + $0x30] sm:$0xff]
        %v784 = vld [vmem:[%s5 + $0x38] sm:$0xff]
        %vm785 = vcmask 523264
        %v786 = vsel %vm785, %v679, 0.0
        %v787 = vsel %vm785, %v680, 0.0
        %v788 = vadd.f32 %v786, %v787
        %v789 = vsel %vm785, %v681, 0.0
        %v790 = vadd.f32 %v788, %v789
        %v791 = vsel %vm785, %v682, 0.0
        %v792 = vadd.f32 %v790, %v791
        %v793 = vsel %vm785, %v683, 0.0
        %v794 = vadd.f32 %v792, %v793
        %v795 = vsel %vm785, %v684, 0.0
        %v796 = vadd.f32 %v794, %v795
        %v797 = vsel %vm785, %v685, 0.0
        %v798 = vadd.f32 %v796, %v797
        %v799 = vsel %vm785, %v686, 0.0
        %v800 = vadd.f32 %v798, %v799
        %v801 = vsel %vm785, %v687, 0.0
        %v802 = vadd.f32 %v800, %v801
        %v803 = vsel %vm785, %v688, 0.0
        %v804 = vadd.f32 %v802, %v803
        %v805 = vsel %vm785, %v689, 0.0
        %v806 = vadd.f32 %v804, %v805
        %v807 = vsel %vm785, %v690, 0.0
        %v808 = vadd.f32 %v806, %v807
        %v809 = vsel %vm785, %v691, 0.0
        %v810 = vadd.f32 %v808, %v809
        %v811 = vsel %vm785, %v692, 0.0
        %v812 = vadd.f32 %v810, %v811
        %v813 = vsel %vm785, %v693, 0.0
        %v814 = vadd.f32 %v812, %v813
        %v815 = vsel %vm785, %v694, 0.0
        %v816 = vadd.f32 %v814, %v815
        %v817 = vsel %vm785, %v695, 0.0
        %v818 = vadd.f32 %v816, %v817
        %v819 = vsel %vm785, %v696, 0.0
        %v820 = vadd.f32 %v818, %v819
        %v821 = vsel %vm785, %v697, 0.0
        %v822 = vadd.f32 %v820, %v821
        %v823 = vsel %vm785, %v698, 0.0
        %v824 = vadd.f32 %v822, %v823
        %v825 = vsel %vm785, %v699, 0.0
        %v826 = vadd.f32 %v824, %v825
        %v827 = vsel %vm785, %v700, 0.0
        %v828 = vadd.f32 %v826, %v827
        %v829 = vsel %vm785, %v701, 0.0
        %v830 = vadd.f32 %v828, %v829
        %v831 = vsel %vm785, %v702, 0.0
        %v832 = vadd.f32 %v830, %v831
        %v833 = vsel %vm785, %v703, 0.0
        %v834 = vadd.f32 %v832, %v833
        %v835 = vsel %vm785, %v704, 0.0
        %v836 = vadd.f32 %v834, %v835
        %v837 = vsel %vm785, %v705, 0.0
        %v838 = vadd.f32 %v836, %v837
        %v839 = vsel %vm785, %v706, 0.0
        %v840 = vadd.f32 %v838, %v839
        %v841 = vsel %vm785, %v707, 0.0
        %v842 = vadd.f32 %v840, %v841
        %v843 = vsel %vm785, %v708, 0.0
        %v844 = vadd.f32 %v842, %v843
        %v845 = vsel %vm785, %v709, 0.0
        %v846 = vadd.f32 %v844, %v845
        %v847 = vsel %vm785, %v710, 0.0
        %v848 = vadd.f32 %v846, %v847
        %v849 = vrot.slane %v848, 4
        %v850 = vadd.f32 %v848, %v849
        %v851 = vrot.slane %v850, 2
        %v852 = vadd.f32 %v850, %v851
        %v853 = vrot.slane %v852, 1
        %v854 = vadd.f32 %v852, %v853
        %v855 = vmul.f32 %v679, %v679
        %v856 = vmul.f32 %v680, %v680
        %v857 = vmul.f32 %v681, %v681
        %v858 = vmul.f32 %v682, %v682
        %v859 = vmul.f32 %v683, %v683
        %v860 = vmul.f32 %v684, %v684
        %v861 = vmul.f32 %v685, %v685
        %v862 = vmul.f32 %v686, %v686
        %v863 = vmul.f32 %v687, %v687
        %v864 = vmul.f32 %v688, %v688
        %v865 = vmul.f32 %v689, %v689
        %v866 = vmul.f32 %v690, %v690
        %v867 = vmul.f32 %v691, %v691
        %v868 = vmul.f32 %v692, %v692
        %v869 = vmul.f32 %v693, %v693
        %v870 = vmul.f32 %v694, %v694
        %v871 = vmul.f32 %v695, %v695
        %v872 = vmul.f32 %v696, %v696
        %v873 = vmul.f32 %v697, %v697
        %v874 = vmul.f32 %v698, %v698
        %v875 = vmul.f32 %v699, %v699
        %v876 = vmul.f32 %v700, %v700
        %v877 = vmul.f32 %v701, %v701
        %v878 = vmul.f32 %v702, %v702
        %v879 = vmul.f32 %v703, %v703
        %v880 = vmul.f32 %v704, %v704
        %v881 = vmul.f32 %v705, %v705
        %v882 = vmul.f32 %v706, %v706
        %v883 = vmul.f32 %v707, %v707
        %v884 = vmul.f32 %v708, %v708
        %v885 = vmul.f32 %v709, %v709
        %v886 = vmul.f32 %v710, %v710
        %v887 = vsel %vm785, %v855, 0.0
        %v888 = vsel %vm785, %v856, 0.0
        %v889 = vadd.f32 %v887, %v888
        %v890 = vsel %vm785, %v857, 0.0
        %v891 = vadd.f32 %v889, %v890
        %v892 = vsel %vm785, %v858, 0.0
        %v893 = vadd.f32 %v891, %v892
        %v894 = vsel %vm785, %v859, 0.0
        %v895 = vadd.f32 %v893, %v894
        %v896 = vsel %vm785, %v860, 0.0
        %v897 = vadd.f32 %v895, %v896
        %v898 = vsel %vm785, %v861, 0.0
        %v899 = vadd.f32 %v897, %v898
        %v900 = vsel %vm785, %v862, 0.0
        %v901 = vadd.f32 %v899, %v900
        %v902 = vsel %vm785, %v863, 0.0
        %v903 = vadd.f32 %v901, %v902
        %v904 = vsel %vm785, %v864, 0.0
        %v905 = vadd.f32 %v903, %v904
        %v906 = vsel %vm785, %v865, 0.0
        %v907 = vadd.f32 %v905, %v906
        %v908 = vsel %vm785, %v866, 0.0
        %v909 = vadd.f32 %v907, %v908
        %v910 = vsel %vm785, %v867, 0.0
        %v911 = vadd.f32 %v909, %v910
        %v912 = vsel %vm785, %v868, 0.0
        %v913 = vadd.f32 %v911, %v912
        %v914 = vsel %vm785, %v869, 0.0
        %v915 = vadd.f32 %v913, %v914
        %v916 = vsel %vm785, %v870, 0.0
        %v917 = vadd.f32 %v915, %v916
        %v918 = vsel %vm785, %v871, 0.0
        %v919 = vadd.f32 %v917, %v918
        %v920 = vsel %vm785, %v872, 0.0
        %v921 = vadd.f32 %v919, %v920
        %v922 = vsel %vm785, %v873, 0.0
        %v923 = vadd.f32 %v921, %v922
        %v924 = vsel %vm785, %v874, 0.0
        %v925 = vadd.f32 %v923, %v924
        %v926 = vsel %vm785, %v875, 0.0
        %v927 = vadd.f32 %v925, %v926
        %v928 = vsel %vm785, %v876, 0.0
        %v929 = vadd.f32 %v927, %v928
        %v930 = vsel %vm785, %v877, 0.0
        %v931 = vadd.f32 %v929, %v930
        %v932 = vsel %vm785, %v878, 0.0
        %v933 = vadd.f32 %v931, %v932
        %v934 = vsel %vm785, %v879, 0.0
        %v935 = vadd.f32 %v933, %v934
        %v936 = vsel %vm785, %v880, 0.0
        %v937 = vadd.f32 %v935, %v936
        %v938 = vsel %vm785, %v881, 0.0
        %v939 = vadd.f32 %v937, %v938
        %v940 = vsel %vm785, %v882, 0.0
        %v941 = vadd.f32 %v939, %v940
        %v942 = vsel %vm785, %v883, 0.0
        %v943 = vadd.f32 %v941, %v942
        %v944 = vsel %vm785, %v884, 0.0
        %v945 = vadd.f32 %v943, %v944
        %v946 = vsel %vm785, %v885, 0.0
        %v947 = vadd.f32 %v945, %v946
        %v948 = vsel %vm785, %v886, 0.0
        %v949 = vadd.f32 %v947, %v948
        %v950 = vrot.slane %v949, 4
        %v951 = vadd.f32 %v949, %v950
        %v952 = vrot.slane %v951, 2
        %v953 = vadd.f32 %v951, %v952
        %v954 = vrot.slane %v953, 1
        %v955 = vadd.f32 %v953, %v954
        %vm956 = vcmask 1040384
        %v957 = vsel %vm956, %v854, %v955
        %v959 = vsel %vm785, %v957, 0
        %961 = vmatpush.msra.mxu0 0.0
        %962 = vmatpush.msra.mxu0 0.0
        %963 = vmatpush.msra.mxu0 0.0
        %964 = vmatpush.msra.mxu0 0.0
        %965 = vmatpush.msra.mxu0 0.0
        %966 = vmatpush.msra.mxu0 0.0
        %967 = vmatpush.msra.mxu0 0.0
        %968 = vmatpush.msra.mxu0 0.0
        %969 = vmatpush.msra.mxu0 %v784
        %970 = vmatpush.msra.mxu0 %v783
        %971 = vmatpush.msra.mxu0 %v782
        %972 = vmatpush.msra.mxu0 %v781
        %973 = vmatpush.msra.mxu0 %v780
        %974 = vmatpush.msra.mxu0 %v779
        %975 = vmatpush.msra.mxu0 %v778
        %976 = vmatpush.msra.mxu0 %v777
        %977 = vmatmul.f32.gmra.mxu0 %v959
        %v978 = vpop.f32.mrf.mxu0
        %v979 = vadd.f32 0.0, %v978
        %980 = vdwg.mxu0
        %v981 = vmul.f32 %v979, 0.001953125
        %v982 = vmul.f32 %v981, %v981
        %v984 = vrot.slane %v982, 7
        %v986 = vsub.f32 %v981, %v984
        %v987 = vmax.f32 %v986, 0.0
        %v988 = vadd.f32 %v987, 1e-05
        %v989 = vrsqrt.pop %v988
        %v990 = vmul.f32 %v989, %v988
        %v991 = vmul.f32 %v990, %v989
        %v992 = vmul.f32 0.5, %v991
        %v993 = vsub.f32 1.5, %v992
        %v994 = vmul.f32 %v989, %v993
        %vm995 = vweird.f32 %v988
        %vm996 = vweird.f32 %v989
        %vm997 = vmor %vm995, %vm996
        %v998 = vsel %vm997, %v989, %v994
        %v999 = vsel %vm956, %v981, %v998
        %vm1000 = vcmask 261120
        %v1002 = vsel %vm1000, %v999, 0
        %v1005 = vsel %vm1000, %v777, 0
        %v1008 = vsel %vm1000, %v778, 0
        %v1011 = vsel %vm1000, %v779, 0
        %v1014 = vsel %vm1000, %v780, 0
        %v1017 = vsel %vm1000, %v781, 0
        %v1020 = vsel %vm1000, %v782, 0
        %v1023 = vsel %vm1000, %v783, 0
        %v1026 = vsel %vm1000, %v784, 0
        %1028 = vmatpush.xpose.msra.mxu0 0.0
        %1029 = vmatpush.xpose.msra.mxu0 0.0
        %1030 = vmatpush.xpose.msra.mxu0 0.0
        %1031 = vmatpush.xpose.msra.mxu0 0.0
        %1032 = vmatpush.xpose.msra.mxu0 0.0
        %1033 = vmatpush.xpose.msra.mxu0 0.0
        %1034 = vmatpush.xpose.msra.mxu0 0.0
        %1035 = vmatpush.xpose.msra.mxu0 0.0
        %1036 = vmatpush.xpose.msra.mxu0 %v1026
        %1037 = vmatpush.xpose.msra.mxu0 %v1023
        %1038 = vmatpush.xpose.msra.mxu0 %v1020
        %1039 = vmatpush.xpose.msra.mxu0 %v1017
        %1040 = vmatpush.xpose.msra.mxu0 %v1014
        %1041 = vmatpush.xpose.msra.mxu0 %v1011
        %1042 = vmatpush.xpose.msra.mxu0 %v1008
        %1043 = vmatpush.xpose.msra.mxu0 %v1005
        %1044 = vmatmul.f32.gmra.mxu0 %v1002
        %v1045 = vpop.f32.mrf.mxu0
        %v1046 = vadd.f32 0.0, %v1045
        %1047 = vdwg.mxu0
        %v1049 = vperm.slane %v775, 0
        %v1051 = vmul.f32 %v1046, %v1049
        %v1053 = vrot.slane %v1051, 1
        %v1055 = vmul.f32 %v1046, %v1053
        %v1056 = vsub.f32 %v776, %v1055
        %v1057 = vperm.slane %v1051, 1
        %v1058 = vmul.f32 %v679, %v1057
        %v1059 = vmul.f32 %v680, %v1057
        %v1060 = vmul.f32 %v681, %v1057
        %v1061 = vmul.f32 %v682, %v1057
        %v1062 = vmul.f32 %v683, %v1057
        %v1063 = vmul.f32 %v684, %v1057
        %v1064 = vmul.f32 %v685, %v1057
        %v1065 = vmul.f32 %v686, %v1057
        %v1066 = vmul.f32 %v687, %v1057
        %v1067 = vmul.f32 %v688, %v1057
        %v1068 = vmul.f32 %v689, %v1057
        %v1069 = vmul.f32 %v690, %v1057
        %v1070 = vmul.f32 %v691, %v1057
        %v1071 = vmul.f32 %v692, %v1057
        %v1072 = vmul.f32 %v693, %v1057
        %v1073 = vmul.f32 %v694, %v1057
        %v1074 = vmul.f32 %v695, %v1057
        %v1075 = vmul.f32 %v696, %v1057
        %v1076 = vmul.f32 %v697, %v1057
        %v1077 = vmul.f32 %v698, %v1057
        %v1078 = vmul.f32 %v699, %v1057
        %v1079 = vmul.f32 %v700, %v1057
        %v1080 = vmul.f32 %v701, %v1057
        %v1081 = vmul.f32 %v702, %v1057
        %v1082 = vmul.f32 %v703, %v1057
        %v1083 = vmul.f32 %v704, %v1057
        %v1084 = vmul.f32 %v705, %v1057
        %v1085 = vmul.f32 %v706, %v1057
        %v1086 = vmul.f32 %v707, %v1057
        %v1087 = vmul.f32 %v708, %v1057
        %v1088 = vmul.f32 %v709, %v1057
        %v1089 = vmul.f32 %v710, %v1057
        %v1091 = vperm.slane %v1056, 0
        %v1093 = vadd.f32 %v1058, %v1091
        %v1094 = vadd.f32 %v1059, %v1091
        %v1095 = vadd.f32 %v1060, %v1091
        %v1096 = vadd.f32 %v1061, %v1091
        %v1097 = vadd.f32 %v1062, %v1091
        %v1098 = vadd.f32 %v1063, %v1091
        %v1099 = vadd.f32 %v1064, %v1091
        %v1100 = vadd.f32 %v1065, %v1091
        %v1101 = vadd.f32 %v1066, %v1091
        %v1102 = vadd.f32 %v1067, %v1091
        %v1103 = vadd.f32 %v1068, %v1091
        %v1104 = vadd.f32 %v1069, %v1091
        %v1105 = vadd.f32 %v1070, %v1091
        %v1106 = vadd.f32 %v1071, %v1091
        %v1107 = vadd.f32 %v1072, %v1091
        %v1108 = vadd.f32 %v1073, %v1091
        %v1109 = vadd.f32 %v1074, %v1091
        %v1110 = vadd.f32 %v1075, %v1091
        %v1111 = vadd.f32 %v1076, %v1091
        %v1112 = vadd.f32 %v1077, %v1091
        %v1113 = vadd.f32 %v1078, %v1091
        %v1114 = vadd.f32 %v1079, %v1091
        %v1115 = vadd.f32 %v1080, %v1091
        %v1116 = vadd.f32 %v1081, %v1091
        %v1117 = vadd.f32 %v1082, %v1091
        %v1118 = vadd.f32 %v1083, %v1091
        %v1119 = vadd.f32 %v1084, %v1091
        %v1120 = vadd.f32 %v1085, %v1091
        %v1121 = vadd.f32 %v1086, %v1091
        %v1122 = vadd.f32 %v1087, %v1091
        %v1123 = vadd.f32 %v1088, %v1091
        %v1124 = vadd.f32 %v1089, %v1091
        %v1125 = vsub.f32 0.0, %v1093
        %v1126 = vsub.f32 0.0, %v1094
        %v1127 = vsub.f32 0.0, %v1095
        %v1128 = vsub.f32 0.0, %v1096
        %v1129 = vsub.f32 0.0, %v1097
        %v1130 = vsub.f32 0.0, %v1098
        %v1131 = vsub.f32 0.0, %v1099
        %v1132 = vsub.f32 0.0, %v1100
        %v1133 = vsub.f32 0.0, %v1101
        %v1134 = vsub.f32 0.0, %v1102
        %v1135 = vsub.f32 0.0, %v1103
        %v1136 = vsub.f32 0.0, %v1104
        %v1137 = vsub.f32 0.0, %v1105
        %v1138 = vsub.f32 0.0, %v1106
        %v1139 = vsub.f32 0.0, %v1107
        %v1140 = vsub.f32 0.0, %v1108
        %v1141 = vsub.f32 0.0, %v1109
        %v1142 = vsub.f32 0.0, %v1110
        %v1143 = vsub.f32 0.0, %v1111
        %v1144 = vsub.f32 0.0, %v1112
        %v1145 = vsub.f32 0.0, %v1113
        %v1146 = vsub.f32 0.0, %v1114
        %v1147 = vsub.f32 0.0, %v1115
        %v1148 = vsub.f32 0.0, %v1116
        %v1149 = vsub.f32 0.0, %v1117
        %v1150 = vsub.f32 0.0, %v1118
        %v1151 = vsub.f32 0.0, %v1119
        %v1152 = vsub.f32 0.0, %v1120
        %v1153 = vsub.f32 0.0, %v1121
        %v1154 = vsub.f32 0.0, %v1122
        %v1155 = vsub.f32 0.0, %v1123
        %v1156 = vsub.f32 0.0, %v1124
        %v1157 = vmul.f32 %v1125, 1.442695
        %v1158 = vpow.pop %v1157
        %v1159 = vmul.f32 %v1126, 1.442695
        %v1160 = vpow.pop %v1159
        %v1161 = vmul.f32 %v1127, 1.442695
        %v1162 = vpow.pop %v1161
        %v1163 = vmul.f32 %v1128, 1.442695
        %v1164 = vpow.pop %v1163
        %v1165 = vmul.f32 %v1129, 1.442695
        %v1166 = vpow.pop %v1165
        %v1167 = vmul.f32 %v1130, 1.442695
        %v1168 = vpow.pop %v1167
        %v1169 = vmul.f32 %v1131, 1.442695
        %v1170 = vpow.pop %v1169
        %v1171 = vmul.f32 %v1132, 1.442695
        %v1172 = vpow.pop %v1171
        %v1173 = vmul.f32 %v1133, 1.442695
        %v1174 = vpow.pop %v1173
        %v1175 = vmul.f32 %v1134, 1.442695
        %v1176 = vpow.pop %v1175
        %v1177 = vmul.f32 %v1135, 1.442695
        %v1178 = vpow.pop %v1177
        %v1179 = vmul.f32 %v1136, 1.442695
        %v1180 = vpow.pop %v1179
        %v1181 = vmul.f32 %v1137, 1.442695
        %v1182 = vpow.pop %v1181
        %v1183 = vmul.f32 %v1138, 1.442695
        %v1184 = vpow.pop %v1183
        %v1185 = vmul.f32 %v1139, 1.442695
        %v1186 = vpow.pop %v1185
        %v1187 = vmul.f32 %v1140, 1.442695
        %v1188 = vpow.pop %v1187
        %v1189 = vmul.f32 %v1141, 1.442695
        %v1190 = vpow.pop %v1189
        %v1191 = vmul.f32 %v1142, 1.442695
        %v1192 = vpow.pop %v1191
        %v1193 = vmul.f32 %v1143, 1.442695
        %v1194 = vpow.pop %v1193
        %v1195 = vmul.f32 %v1144, 1.442695
        %v1196 = vpow.pop %v1195
        %v1197 = vmul.f32 %v1145, 1.442695
        %v1198 = vpow.pop %v1197
        %v1199 = vmul.f32 %v1146, 1.442695
        %v1200 = vpow.pop %v1199
        %v1201 = vmul.f32 %v1147, 1.442695
        %v1202 = vpow.pop %v1201
        %v1203 = vmul.f32 %v1148, 1.442695
        %v1204 = vpow.pop %v1203
        %v1205 = vmul.f32 %v1149, 1.442695
        %v1206 = vpow.pop %v1205
        %v1207 = vmul.f32 %v1150, 1.442695
        %v1208 = vpow.pop %v1207
        %v1209 = vmul.f32 %v1151, 1.442695
        %v1210 = vpow.pop %v1209
        %v1211 = vmul.f32 %v1152, 1.442695
        %v1212 = vpow.pop %v1211
        %v1213 = vmul.f32 %v1153, 1.442695
        %v1214 = vpow.pop %v1213
        %v1215 = vmul.f32 %v1154, 1.442695
        %v1216 = vpow.pop %v1215
        %v1217 = vmul.f32 %v1155, 1.442695
        %v1218 = vpow.pop %v1217
        %v1219 = vmul.f32 %v1156, 1.442695
        %v1220 = vpow.pop %v1219
        %v1221 = vadd.f32 %v1158, 1.0
        %v1222 = vadd.f32 %v1160, 1.0
        %v1223 = vadd.f32 %v1162, 1.0
        %v1224 = vadd.f32 %v1164, 1.0
        %v1225 = vadd.f32 %v1166, 1.0
        %v1226 = vadd.f32 %v1168, 1.0
        %v1227 = vadd.f32 %v1170, 1.0
        %v1228 = vadd.f32 %v1172, 1.0
        %v1229 = vadd.f32 %v1174, 1.0
        %v1230 = vadd.f32 %v1176, 1.0
        %v1231 = vadd.f32 %v1178, 1.0
        %v1232 = vadd.f32 %v1180, 1.0
        %v1233 = vadd.f32 %v1182, 1.0
        %v1234 = vadd.f32 %v1184, 1.0
        %v1235 = vadd.f32 %v1186, 1.0
        %v1236 = vadd.f32 %v1188, 1.0
        %v1237 = vadd.f32 %v1190, 1.0
        %v1238 = vadd.f32 %v1192, 1.0
        %v1239 = vadd.f32 %v1194, 1.0
        %v1240 = vadd.f32 %v1196, 1.0
        %v1241 = vadd.f32 %v1198, 1.0
        %v1242 = vadd.f32 %v1200, 1.0
        %v1243 = vadd.f32 %v1202, 1.0
        %v1244 = vadd.f32 %v1204, 1.0
        %v1245 = vadd.f32 %v1206, 1.0
        %v1246 = vadd.f32 %v1208, 1.0
        %v1247 = vadd.f32 %v1210, 1.0
        %v1248 = vadd.f32 %v1212, 1.0
        %v1249 = vadd.f32 %v1214, 1.0
        %v1250 = vadd.f32 %v1216, 1.0
        %v1251 = vadd.f32 %v1218, 1.0
        %v1252 = vadd.f32 %v1220, 1.0
        %v1253 = vrcp.pop %v1221
        %v1254 = vrcp.pop %v1222
        %v1255 = vrcp.pop %v1223
        %v1256 = vrcp.pop %v1224
        %v1257 = vrcp.pop %v1225
        %v1258 = vrcp.pop %v1226
        %v1259 = vrcp.pop %v1227
        %v1260 = vrcp.pop %v1228
        %v1261 = vrcp.pop %v1229
        %v1262 = vrcp.pop %v1230
        %v1263 = vrcp.pop %v1231
        %v1264 = vrcp.pop %v1232
        %v1265 = vrcp.pop %v1233
        %v1266 = vrcp.pop %v1234
        %v1267 = vrcp.pop %v1235
        %v1268 = vrcp.pop %v1236
        %v1269 = vrcp.pop %v1237
        %v1270 = vrcp.pop %v1238
        %v1271 = vrcp.pop %v1239
        %v1272 = vrcp.pop %v1240
        %v1273 = vrcp.pop %v1241
        %v1274 = vrcp.pop %v1242
        %v1275 = vrcp.pop %v1243
        %v1276 = vrcp.pop %v1244
        %v1277 = vrcp.pop %v1245
        %v1278 = vrcp.pop %v1246
        %v1279 = vrcp.pop %v1247
        %v1280 = vrcp.pop %v1248
        %v1281 = vrcp.pop %v1249
        %v1282 = vrcp.pop %v1250
        %v1283 = vrcp.pop %v1251
        %v1284 = vrcp.pop %v1252
        %v1285 = vmul.f32 %v1093, %v1253
        %v1286 = vmul.f32 %v1094, %v1254
        %v1287 = vmul.f32 %v1095, %v1255
        %v1288 = vmul.f32 %v1096, %v1256
        %v1289 = vmul.f32 %v1097, %v1257
        %v1290 = vmul.f32 %v1098, %v1258
        %v1291 = vmul.f32 %v1099, %v1259
        %v1292 = vmul.f32 %v1100, %v1260
        %v1293 = vmul.f32 %v1101, %v1261
        %v1294 = vmul.f32 %v1102, %v1262
        %v1295 = vmul.f32 %v1103, %v1263
        %v1296 = vmul.f32 %v1104, %v1264
        %v1297 = vmul.f32 %v1105, %v1265
        %v1298 = vmul.f32 %v1106, %v1266
        %v1299 = vmul.f32 %v1107, %v1267
        %v1300 = vmul.f32 %v1108, %v1268
        %v1301 = vmul.f32 %v1109, %v1269
        %v1302 = vmul.f32 %v1110, %v1270
        %v1303 = vmul.f32 %v1111, %v1271
        %v1304 = vmul.f32 %v1112, %v1272
        %v1305 = vmul.f32 %v1113, %v1273
        %v1306 = vmul.f32 %v1114, %v1274
        %v1307 = vmul.f32 %v1115, %v1275
        %v1308 = vmul.f32 %v1116, %v1276
        %v1309 = vmul.f32 %v1117, %v1277
        %v1310 = vmul.f32 %v1118, %v1278
        %v1311 = vmul.f32 %v1119, %v1279
        %v1312 = vmul.f32 %v1120, %v1280
        %v1313 = vmul.f32 %v1121, %v1281
        %v1314 = vmul.f32 %v1122, %v1282
        %v1315 = vmul.f32 %v1123, %v1283
        %v1316 = vmul.f32 %v1124, %v1284
        %v1347 = vrot.slane %v1285, 7
        %v1348 = vrot.slane %v1286, 7
        %v1349 = vsel %vm956, %v1347, %v1348
        %v1350 = vrot.slane %v1287, 7
        %v1351 = vsel %vm956, %v1348, %v1350
        %v1352 = vrot.slane %v1288, 7
        %v1353 = vsel %vm956, %v1350, %v1352
        %v1354 = vrot.slane %v1289, 7
        %v1355 = vsel %vm956, %v1352, %v1354
        %v1356 = vrot.slane %v1290, 7
        %v1357 = vsel %vm956, %v1354, %v1356
        %v1358 = vrot.slane %v1291, 7
        %v1359 = vsel %vm956, %v1356, %v1358
        %v1360 = vrot.slane %v1292, 7
        %v1361 = vsel %vm956, %v1358, %v1360
        %v1362 = vrot.slane %v1293, 7
        %v1363 = vsel %vm956, %v1360, %v1362
        %v1364 = vrot.slane %v1294, 7
        %v1365 = vsel %vm956, %v1362, %v1364
        %v1366 = vrot.slane %v1295, 7
        %v1367 = vsel %vm956, %v1364, %v1366
        %v1368 = vrot.slane %v1296, 7
        %v1369 = vsel %vm956, %v1366, %v1368
        %v1370 = vrot.slane %v1297, 7
        %v1371 = vsel %vm956, %v1368, %v1370
        %v1372 = vrot.slane %v1298, 7
        %v1373 = vsel %vm956, %v1370, %v1372
        %v1374 = vrot.slane %v1299, 7
        %v1375 = vsel %vm956, %v1372, %v1374
        %v1376 = vrot.slane %v1300, 7
        %v1377 = vsel %vm956, %v1374, %v1376
        %v1378 = vrot.slane %v1301, 7
        %v1379 = vsel %vm956, %v1376, %v1378
        %v1380 = vrot.slane %v1302, 7
        %v1381 = vsel %vm956, %v1378, %v1380
        %v1382 = vrot.slane %v1303, 7
        %v1383 = vsel %vm956, %v1380, %v1382
        %v1384 = vrot.slane %v1304, 7
        %v1385 = vsel %vm956, %v1382, %v1384
        %v1386 = vrot.slane %v1305, 7
        %v1387 = vsel %vm956, %v1384, %v1386
        %v1388 = vrot.slane %v1306, 7
        %v1389 = vsel %vm956, %v1386, %v1388
        %v1390 = vrot.slane %v1307, 7
        %v1391 = vsel %vm956, %v1388, %v1390
        %v1392 = vrot.slane %v1308, 7
        %v1393 = vsel %vm956, %v1390, %v1392
        %v1394 = vrot.slane %v1309, 7
        %v1395 = vsel %vm956, %v1392, %v1394
        %v1396 = vrot.slane %v1310, 7
        %v1397 = vsel %vm956, %v1394, %v1396
        %v1398 = vrot.slane %v1311, 7
        %v1399 = vsel %vm956, %v1396, %v1398
        %v1400 = vrot.slane %v1312, 7
        %v1401 = vsel %vm956, %v1398, %v1400
        %v1402 = vrot.slane %v1313, 7
        %v1403 = vsel %vm956, %v1400, %v1402
        %v1404 = vrot.slane %v1314, 7
        %v1405 = vsel %vm956, %v1402, %v1404
        %v1436 = vsel %vm956, 0.0, %v1347
        %v1437 = vmul.f32 %v711, 0.0
        %v1438 = vmul.f32 %v712, 0.0
        %v1439 = vmul.f32 %v1436, %v713
        %v1440 = vmul.f32 %v1349, %v714
        %v1441 = vmul.f32 %v1351, %v715
        %v1442 = vmul.f32 %v1353, %v716
        %v1443 = vmul.f32 %v1355, %v717
        %v1444 = vmul.f32 %v1357, %v718
        %v1445 = vmul.f32 %v1359, %v719
        %v1446 = vmul.f32 %v1361, %v720
        %v1447 = vmul.f32 %v1363, %v721
        %v1448 = vmul.f32 %v1365, %v722
        %v1449 = vmul.f32 %v1367, %v723
        %v1450 = vmul.f32 %v1369, %v724
        %v1451 = vmul.f32 %v1371, %v725
        %v1452 = vmul.f32 %v1373, %v726
        %v1453 = vmul.f32 %v1375, %v727
        %v1454 = vmul.f32 %v1377, %v728
        %v1455 = vmul.f32 %v1379, %v729
        %v1456 = vmul.f32 %v1381, %v730
        %v1457 = vmul.f32 %v1383, %v731
        %v1458 = vmul.f32 %v1385, %v732
        %v1459 = vmul.f32 %v1387, %v733
        %v1460 = vmul.f32 %v1389, %v734
        %v1461 = vmul.f32 %v1391, %v735
        %v1462 = vmul.f32 %v1393, %v736
        %v1463 = vmul.f32 %v1395, %v737
        %v1464 = vmul.f32 %v1397, %v738
        %v1465 = vmul.f32 %v1399, %v739
        %v1466 = vmul.f32 %v1401, %v740
        %v1467 = vmul.f32 %v1403, %v741
        %v1468 = vmul.f32 %v1405, %v742
        %v1469 = vpack.c.bf16 %v1438, %v1437
        %v1470 = vpack.c.bf16 %v1440, %v1439
        %v1471 = vpack.c.bf16 %v1442, %v1441
        %v1472 = vpack.c.bf16 %v1444, %v1443
        %v1473 = vpack.c.bf16 %v1446, %v1445
        %v1474 = vpack.c.bf16 %v1448, %v1447
        %v1475 = vpack.c.bf16 %v1450, %v1449
        %v1476 = vpack.c.bf16 %v1452, %v1451
        %v1477 = vpack.c.bf16 %v1454, %v1453
        %v1478 = vpack.c.bf16 %v1456, %v1455
        %v1479 = vpack.c.bf16 %v1458, %v1457
        %v1480 = vpack.c.bf16 %v1460, %v1459
        %v1481 = vpack.c.bf16 %v1462, %v1461
        %v1482 = vpack.c.bf16 %v1464, %v1463
        %v1483 = vpack.c.bf16 %v1466, %v1465
        %v1484 = vpack.c.bf16 %v1468, %v1467
        %v1485 = vld [vmem:[%s6] sm:$0xf]
        %v1486 = vld [vmem:[%s6 + $0x4] sm:$0xf]
        %v1487 = vld [vmem:[%s6 + $0x8] sm:$0xf]
        %v1488 = vld [vmem:[%s6 + $0xc] sm:$0xf]
        %v1489 = vld [vmem:[%s6 + $0x10] sm:$0xf]
        %v1490 = vld [vmem:[%s6 + $0x14] sm:$0xf]
        %v1491 = vld [vmem:[%s6 + $0x18] sm:$0xf]
        %v1492 = vld [vmem:[%s6 + $0x1c] sm:$0xf]
        %v1493 = vpack.c.bf16 0.0, 0.0
        %v1494 = vpack.c.bf16 %v1286, %v1285
        %v1495 = vpack.c.bf16 %v1288, %v1287
        %v1496 = vpack.c.bf16 %v1290, %v1289
        %v1497 = vpack.c.bf16 %v1292, %v1291
        %v1498 = vpack.c.bf16 %v1294, %v1293
        %v1499 = vpack.c.bf16 %v1296, %v1295
        %v1500 = vpack.c.bf16 %v1298, %v1297
        %v1501 = vpack.c.bf16 %v1300, %v1299
        %v1502 = vpack.c.bf16 %v1302, %v1301
        %v1503 = vpack.c.bf16 %v1304, %v1303
        %v1504 = vpack.c.bf16 %v1306, %v1305
        %v1505 = vpack.c.bf16 %v1308, %v1307
        %v1506 = vpack.c.bf16 %v1310, %v1309
        %v1507 = vpack.c.bf16 %v1312, %v1311
        %v1508 = vpack.c.bf16 %v1314, %v1313
        %s1509 = scalar_lea.vmem %s6, 32
        %v1510 = vld [vmem:[%s1509] sm:$0xf]
        %v1511 = vld [vmem:[%s1509 + $0x4] sm:$0xf]
        %v1512 = vld [vmem:[%s1509 + $0x8] sm:$0xf]
        %v1513 = vld [vmem:[%s1509 + $0xc] sm:$0xf]
        %v1514 = vld [vmem:[%s1509 + $0x10] sm:$0xf]
        %v1515 = vld [vmem:[%s1509 + $0x14] sm:$0xf]
        %v1516 = vld [vmem:[%s1509 + $0x18] sm:$0xf]
        %v1517 = vld [vmem:[%s1509 + $0x1c] sm:$0xf]
        %v1526 = vunpack.c.l.b16 %v1510
        %v1527 = vunpack.c.l.b16 %v1511
        %v1528 = vunpack.c.l.b16 %v1512
        %v1529 = vunpack.c.l.b16 %v1513
        %v1530 = vunpack.c.l.b16 %v1514
        %v1531 = vunpack.c.l.b16 %v1515
        %v1532 = vunpack.c.l.b16 %v1516
        %v1533 = vunpack.c.l.b16 %v1517
        %v1534 = vpack.c.b16 %v1527, %v1526
        %v1535 = vpack.c.b16 %v1529, %v1528
        %v1536 = vpack.c.b16 %v1531, %v1530
        %v1537 = vpack.c.b16 %v1533, %v1532
        %v1543 = vsel %vm785, %v1493, 0
        %v1546 = vsel %vm785, %v1494, 0
        %v1549 = vsel %vm785, %v1495, 0
        %v1552 = vsel %vm785, %v1496, 0
        %v1555 = vsel %vm785, %v1497, 0
        %v1558 = vsel %vm785, %v1498, 0
        %v1561 = vsel %vm785, %v1499, 0
        %v1564 = vsel %vm785, %v1500, 0
        %v1567 = vsel %vm785, %v1501, 0
        %v1570 = vsel %vm785, %v1502, 0
        %v1573 = vsel %vm785, %v1503, 0
        %v1576 = vsel %vm785, %v1504, 0
        %v1579 = vsel %vm785, %v1505, 0
        %v1582 = vsel %vm785, %v1506, 0
        %v1585 = vsel %vm785, %v1507, 0
        %v1588 = vsel %vm785, %v1508, 0
        %1590 = vmatpush.bf16.msra.mxu0 0
        %1591 = vmatpush.bf16.msra.mxu0 0
        %1592 = vmatpush.bf16.msra.mxu0 0
        %1593 = vmatpush.bf16.msra.mxu0 0
        %1594 = vmatpush.bf16.msra.mxu0 %v1537
        %1595 = vmatpush.bf16.msra.mxu0 %v1536
        %1596 = vmatpush.bf16.msra.mxu0 %v1535
        %1597 = vmatpush.bf16.msra.mxu0 %v1534
        %1598 = vmatmul.bf16.gmra.mxu0 %v1543
        %v1599 = vpop.f32.mrf.mxu0
        %v1600 = vadd.f32 0.0, %v1599
        %v1601 = vpop.f32.mrf.mxu0
        %v1602 = vadd.f32 0.0, %v1601
        %1603 = vmatmul.bf16.gmra.mxu0 %v1546
        %v1604 = vpop.f32.mrf.mxu0
        %v1605 = vadd.f32 0.0, %v1604
        %v1606 = vpop.f32.mrf.mxu0
        %v1607 = vadd.f32 0.0, %v1606
        %1608 = vmatmul.bf16.gmra.mxu0 %v1549
        %v1609 = vpop.f32.mrf.mxu0
        %v1610 = vadd.f32 0.0, %v1609
        %v1611 = vpop.f32.mrf.mxu0
        %v1612 = vadd.f32 0.0, %v1611
        %1613 = vmatmul.bf16.gmra.mxu0 %v1552
        %v1614 = vpop.f32.mrf.mxu0
        %v1615 = vadd.f32 0.0, %v1614
        %v1616 = vpop.f32.mrf.mxu0
        %v1617 = vadd.f32 0.0, %v1616
        %1618 = vmatmul.bf16.gmra.mxu0 %v1555
        %v1619 = vpop.f32.mrf.mxu0
        %v1620 = vadd.f32 0.0, %v1619
        %v1621 = vpop.f32.mrf.mxu0
        %v1622 = vadd.f32 0.0, %v1621
        %1623 = vmatmul.bf16.gmra.mxu0 %v1558
        %v1624 = vpop.f32.mrf.mxu0
        %v1625 = vadd.f32 0.0, %v1624
        %v1626 = vpop.f32.mrf.mxu0
        %v1627 = vadd.f32 0.0, %v1626
        %1628 = vmatmul.bf16.gmra.mxu0 %v1561
        %v1629 = vpop.f32.mrf.mxu0
        %v1630 = vadd.f32 0.0, %v1629
        %v1631 = vpop.f32.mrf.mxu0
        %v1632 = vadd.f32 0.0, %v1631
        %1633 = vmatmul.bf16.gmra.mxu0 %v1564
        %v1634 = vpop.f32.mrf.mxu0
        %v1635 = vadd.f32 0.0, %v1634
        %v1636 = vpop.f32.mrf.mxu0
        %v1637 = vadd.f32 0.0, %v1636
        %1638 = vmatmul.bf16.gmra.mxu0 %v1567
        %v1639 = vpop.f32.mrf.mxu0
        %v1640 = vadd.f32 0.0, %v1639
        %v1641 = vpop.f32.mrf.mxu0
        %v1642 = vadd.f32 0.0, %v1641
        %1643 = vmatmul.bf16.gmra.mxu0 %v1570
        %v1644 = vpop.f32.mrf.mxu0
        %v1645 = vadd.f32 0.0, %v1644
        %v1646 = vpop.f32.mrf.mxu0
        %v1647 = vadd.f32 0.0, %v1646
        %1648 = vmatmul.bf16.gmra.mxu0 %v1573
        %v1649 = vpop.f32.mrf.mxu0
        %v1650 = vadd.f32 0.0, %v1649
        %v1651 = vpop.f32.mrf.mxu0
        %v1652 = vadd.f32 0.0, %v1651
        %1653 = vmatmul.bf16.gmra.mxu0 %v1576
        %v1654 = vpop.f32.mrf.mxu0
        %v1655 = vadd.f32 0.0, %v1654
        %v1656 = vpop.f32.mrf.mxu0
        %v1657 = vadd.f32 0.0, %v1656
        %1658 = vmatmul.bf16.gmra.mxu0 %v1579
        %v1659 = vpop.f32.mrf.mxu0
        %v1660 = vadd.f32 0.0, %v1659
        %v1661 = vpop.f32.mrf.mxu0
        %v1662 = vadd.f32 0.0, %v1661
        %1663 = vmatmul.bf16.gmra.mxu0 %v1582
        %v1664 = vpop.f32.mrf.mxu0
        %v1665 = vadd.f32 0.0, %v1664
        %v1666 = vpop.f32.mrf.mxu0
        %v1667 = vadd.f32 0.0, %v1666
        %1668 = vmatmul.bf16.gmra.mxu0 %v1585
        %v1669 = vpop.f32.mrf.mxu0
        %v1670 = vadd.f32 0.0, %v1669
        %v1671 = vpop.f32.mrf.mxu0
        %v1672 = vadd.f32 0.0, %v1671
        %1673 = vmatmul.bf16.gmra.mxu0 %v1588
        %v1674 = vpop.f32.mrf.mxu0
        %v1675 = vadd.f32 0.0, %v1674
        %v1676 = vpop.f32.mrf.mxu0
        %v1677 = vadd.f32 0.0, %v1676
        %1678 = vdwg.mxu0
        %v1687 = vunpack.c.l.b16 %v1485
        %v1688 = vunpack.c.l.b16 %v1486
        %v1689 = vunpack.c.l.b16 %v1487
        %v1690 = vunpack.c.l.b16 %v1488
        %v1691 = vunpack.c.l.b16 %v1489
        %v1692 = vunpack.c.l.b16 %v1490
        %v1693 = vunpack.c.l.b16 %v1491
        %v1694 = vunpack.c.l.b16 %v1492
        %v1695 = vpack.c.b16 %v1688, %v1687
        %v1696 = vpack.c.b16 %v1690, %v1689
        %v1697 = vpack.c.b16 %v1692, %v1691
        %v1698 = vpack.c.b16 %v1694, %v1693
        %v1704 = vsel %vm785, %v1469, 0
        %v1707 = vsel %vm785, %v1470, 0
        %v1710 = vsel %vm785, %v1471, 0
        %v1713 = vsel %vm785, %v1472, 0
        %v1716 = vsel %vm785, %v1473, 0
        %v1719 = vsel %vm785, %v1474, 0
        %v1722 = vsel %vm785, %v1475, 0
        %v1725 = vsel %vm785, %v1476, 0
        %v1728 = vsel %vm785, %v1477, 0
        %v1731 = vsel %vm785, %v1478, 0
        %v1734 = vsel %vm785, %v1479, 0
        %v1737 = vsel %vm785, %v1480, 0
        %v1740 = vsel %vm785, %v1481, 0
        %v1743 = vsel %vm785, %v1482, 0
        %v1746 = vsel %vm785, %v1483, 0
        %v1749 = vsel %vm785, %v1484, 0
        %1751 = vmatpush.bf16.msra.mxu0 0
        %1752 = vmatpush.bf16.msra.mxu0 0
        %1753 = vmatpush.bf16.msra.mxu0 0
        %1754 = vmatpush.bf16.msra.mxu0 0
        %1755 = vmatpush.bf16.msra.mxu0 %v1698
        %1756 = vmatpush.bf16.msra.mxu0 %v1697
        %1757 = vmatpush.bf16.msra.mxu0 %v1696
        %1758 = vmatpush.bf16.msra.mxu0 %v1695
        %1759 = vmatmul.bf16.gmra.mxu0 %v1704
        %v1760 = vpop.f32.mrf.mxu0
        %v1761 = vadd.f32 %v1600, %v1760
        %v1762 = vpop.f32.mrf.mxu0
        %v1763 = vadd.f32 %v1602, %v1762
        %1764 = vmatmul.bf16.gmra.mxu0 %v1707
        %v1765 = vpop.f32.mrf.mxu0
        %v1766 = vadd.f32 %v1605, %v1765
        %v1767 = vpop.f32.mrf.mxu0
        %v1768 = vadd.f32 %v1607, %v1767
        %1769 = vmatmul.bf16.gmra.mxu0 %v1710
        %v1770 = vpop.f32.mrf.mxu0
        %v1771 = vadd.f32 %v1610, %v1770
        %v1772 = vpop.f32.mrf.mxu0
        %v1773 = vadd.f32 %v1612, %v1772
        %1774 = vmatmul.bf16.gmra.mxu0 %v1713
        %v1775 = vpop.f32.mrf.mxu0
        %v1776 = vadd.f32 %v1615, %v1775
        %v1777 = vpop.f32.mrf.mxu0
        %v1778 = vadd.f32 %v1617, %v1777
        %1779 = vmatmul.bf16.gmra.mxu0 %v1716
        %v1780 = vpop.f32.mrf.mxu0
        %v1781 = vadd.f32 %v1620, %v1780
        %v1782 = vpop.f32.mrf.mxu0
        %v1783 = vadd.f32 %v1622, %v1782
        %1784 = vmatmul.bf16.gmra.mxu0 %v1719
        %v1785 = vpop.f32.mrf.mxu0
        %v1786 = vadd.f32 %v1625, %v1785
        %v1787 = vpop.f32.mrf.mxu0
        %v1788 = vadd.f32 %v1627, %v1787
        %1789 = vmatmul.bf16.gmra.mxu0 %v1722
        %v1790 = vpop.f32.mrf.mxu0
        %v1791 = vadd.f32 %v1630, %v1790
        %v1792 = vpop.f32.mrf.mxu0
        %v1793 = vadd.f32 %v1632, %v1792
        %1794 = vmatmul.bf16.gmra.mxu0 %v1725
        %v1795 = vpop.f32.mrf.mxu0
        %v1796 = vadd.f32 %v1635, %v1795
        %v1797 = vpop.f32.mrf.mxu0
        %v1798 = vadd.f32 %v1637, %v1797
        %1799 = vmatmul.bf16.gmra.mxu0 %v1728
        %v1800 = vpop.f32.mrf.mxu0
        %v1801 = vadd.f32 %v1640, %v1800
        %v1802 = vpop.f32.mrf.mxu0
        %v1803 = vadd.f32 %v1642, %v1802
        %1804 = vmatmul.bf16.gmra.mxu0 %v1731
        %v1805 = vpop.f32.mrf.mxu0
        %v1806 = vadd.f32 %v1645, %v1805
        %v1807 = vpop.f32.mrf.mxu0
        %v1808 = vadd.f32 %v1647, %v1807
        %1809 = vmatmul.bf16.gmra.mxu0 %v1734
        %v1810 = vpop.f32.mrf.mxu0
        %v1811 = vadd.f32 %v1650, %v1810
        %v1812 = vpop.f32.mrf.mxu0
        %v1813 = vadd.f32 %v1652, %v1812
        %1814 = vmatmul.bf16.gmra.mxu0 %v1737
        %v1815 = vpop.f32.mrf.mxu0
        %v1816 = vadd.f32 %v1655, %v1815
        %v1817 = vpop.f32.mrf.mxu0
        %v1818 = vadd.f32 %v1657, %v1817
        %1819 = vmatmul.bf16.gmra.mxu0 %v1740
        %v1820 = vpop.f32.mrf.mxu0
        %v1821 = vadd.f32 %v1660, %v1820
        %v1822 = vpop.f32.mrf.mxu0
        %v1823 = vadd.f32 %v1662, %v1822
        %1824 = vmatmul.bf16.gmra.mxu0 %v1743
        %v1825 = vpop.f32.mrf.mxu0
        %v1826 = vadd.f32 %v1665, %v1825
        %v1827 = vpop.f32.mrf.mxu0
        %v1828 = vadd.f32 %v1667, %v1827
        %1829 = vmatmul.bf16.gmra.mxu0 %v1746
        %v1830 = vpop.f32.mrf.mxu0
        %v1831 = vadd.f32 %v1670, %v1830
        %v1832 = vpop.f32.mrf.mxu0
        %v1833 = vadd.f32 %v1672, %v1832
        %1834 = vmatmul.bf16.gmra.mxu0 %v1749
        %v1835 = vpop.f32.mrf.mxu0
        %v1836 = vadd.f32 %v1675, %v1835
        %v1837 = vpop.f32.mrf.mxu0
        %v1838 = vadd.f32 %v1677, %v1837
        %1839 = vdwg.mxu0
        %vm1841 = vcmask 1046528
        %v1842 = vrot.slane %v1285, 1
        %v1843 = vrot.slane %v1286, 1
        %v1844 = vsel %vm1841, %v1842, %v1843
        %v1845 = vrot.slane %v1287, 1
        %v1846 = vsel %vm1841, %v1843, %v1845
        %v1847 = vrot.slane %v1288, 1
        %v1848 = vsel %vm1841, %v1845, %v1847
        %v1849 = vrot.slane %v1289, 1
        %v1850 = vsel %vm1841, %v1847, %v1849
        %v1851 = vrot.slane %v1290, 1
        %v1852 = vsel %vm1841, %v1849, %v1851
        %v1853 = vrot.slane %v1291, 1
        %v1854 = vsel %vm1841, %v1851, %v1853
        %v1855 = vrot.slane %v1292, 1
        %v1856 = vsel %vm1841, %v1853, %v1855
        %v1857 = vrot.slane %v1293, 1
        %v1858 = vsel %vm1841, %v1855, %v1857
        %v1859 = vrot.slane %v1294, 1
        %v1860 = vsel %vm1841, %v1857, %v1859
        %v1861 = vrot.slane %v1295, 1
        %v1862 = vsel %vm1841, %v1859, %v1861
        %v1863 = vrot.slane %v1296, 1
        %v1864 = vsel %vm1841, %v1861, %v1863
        %v1865 = vrot.slane %v1297, 1
        %v1866 = vsel %vm1841, %v1863, %v1865
        %v1867 = vrot.slane %v1298, 1
        %v1868 = vsel %vm1841, %v1865, %v1867
        %v1869 = vrot.slane %v1299, 1
        %v1870 = vsel %vm1841, %v1867, %v1869
        %v1871 = vrot.slane %v1300, 1
        %v1872 = vsel %vm1841, %v1869, %v1871
        %v1873 = vrot.slane %v1301, 1
        %v1874 = vsel %vm1841, %v1871, %v1873
        %v1875 = vrot.slane %v1302, 1
        %v1876 = vsel %vm1841, %v1873, %v1875
        %v1877 = vrot.slane %v1303, 1
        %v1878 = vsel %vm1841, %v1875, %v1877
        %v1879 = vrot.slane %v1304, 1
        %v1880 = vsel %vm1841, %v1877, %v1879
        %v1881 = vrot.slane %v1305, 1
        %v1882 = vsel %vm1841, %v1879, %v1881
        %v1883 = vrot.slane %v1306, 1
        %v1884 = vsel %vm1841, %v1881, %v1883
        %v1885 = vrot.slane %v1307, 1
        %v1886 = vsel %vm1841, %v1883, %v1885
        %v1887 = vrot.slane %v1308, 1
        %v1888 = vsel %vm1841, %v1885, %v1887
        %v1889 = vrot.slane %v1309, 1
        %v1890 = vsel %vm1841, %v1887, %v1889
        %v1891 = vrot.slane %v1310, 1
        %v1892 = vsel %vm1841, %v1889, %v1891
        %v1893 = vrot.slane %v1311, 1
        %v1894 = vsel %vm1841, %v1891, %v1893
        %v1895 = vrot.slane %v1312, 1
        %v1896 = vsel %vm1841, %v1893, %v1895
        %v1897 = vrot.slane %v1313, 1
        %v1898 = vsel %vm1841, %v1895, %v1897
        %v1899 = vrot.slane %v1314, 1
        %v1900 = vsel %vm1841, %v1897, %v1899
        %v1901 = vrot.slane %v1315, 1
        %v1902 = vsel %vm1841, %v1899, %v1901
        %v1934 = vsel %vm1841, 0.0, %v1842
        %v1935 = vmul.f32 %v743, 0.0
        %v1936 = vmul.f32 %v1934, %v744
        %v1937 = vmul.f32 %v1844, %v745
        %v1938 = vmul.f32 %v1846, %v746
        %v1939 = vmul.f32 %v1848, %v747
        %v1940 = vmul.f32 %v1850, %v748
        %v1941 = vmul.f32 %v1852, %v749
        %v1942 = vmul.f32 %v1854, %v750
        %v1943 = vmul.f32 %v1856, %v751
        %v1944 = vmul.f32 %v1858, %v752
        %v1945 = vmul.f32 %v1860, %v753
        %v1946 = vmul.f32 %v1862, %v754
        %v1947 = vmul.f32 %v1864, %v755
        %v1948 = vmul.f32 %v1866, %v756
        %v1949 = vmul.f32 %v1868, %v757
        %v1950 = vmul.f32 %v1870, %v758
        %v1951 = vmul.f32 %v1872, %v759
        %v1952 = vmul.f32 %v1874, %v760
        %v1953 = vmul.f32 %v1876, %v761
        %v1954 = vmul.f32 %v1878, %v762
        %v1955 = vmul.f32 %v1880, %v763
        %v1956 = vmul.f32 %v1882, %v764
        %v1957 = vmul.f32 %v1884, %v765
        %v1958 = vmul.f32 %v1886, %v766
        %v1959 = vmul.f32 %v1888, %v767
        %v1960 = vmul.f32 %v1890, %v768
        %v1961 = vmul.f32 %v1892, %v769
        %v1962 = vmul.f32 %v1894, %v770
        %v1963 = vmul.f32 %v1896, %v771
        %v1964 = vmul.f32 %v1898, %v772
        %v1965 = vmul.f32 %v1900, %v773
        %v1966 = vmul.f32 %v1902, %v774
        %v1967 = vpack.c.bf16 %v1936, %v1935
        %v1968 = vpack.c.bf16 %v1938, %v1937
        %v1969 = vpack.c.bf16 %v1940, %v1939
        %v1970 = vpack.c.bf16 %v1942, %v1941
        %v1971 = vpack.c.bf16 %v1944, %v1943
        %v1972 = vpack.c.bf16 %v1946, %v1945
        %v1973 = vpack.c.bf16 %v1948, %v1947
        %v1974 = vpack.c.bf16 %v1950, %v1949
        %v1975 = vpack.c.bf16 %v1952, %v1951
        %v1976 = vpack.c.bf16 %v1954, %v1953
        %v1977 = vpack.c.bf16 %v1956, %v1955
        %v1978 = vpack.c.bf16 %v1958, %v1957
        %v1979 = vpack.c.bf16 %v1960, %v1959
        %v1980 = vpack.c.bf16 %v1962, %v1961
        %v1981 = vpack.c.bf16 %v1964, %v1963
        %v1982 = vpack.c.bf16 %v1966, %v1965
        %s1983 = scalar_lea.vmem %s6, 64
        %v1984 = vld [vmem:[%s1983] sm:$0xf]
        %v1985 = vld [vmem:[%s1983 + $0x4] sm:$0xf]
        %v1986 = vld [vmem:[%s1983 + $0x8] sm:$0xf]
        %v1987 = vld [vmem:[%s1983 + $0xc] sm:$0xf]
        %v1988 = vld [vmem:[%s1983 + $0x10] sm:$0xf]
        %v1989 = vld [vmem:[%s1983 + $0x14] sm:$0xf]
        %v1990 = vld [vmem:[%s1983 + $0x18] sm:$0xf]
        %v1991 = vld [vmem:[%s1983 + $0x1c] sm:$0xf]
        %v2000 = vunpack.c.l.b16 %v1984
        %v2001 = vunpack.c.l.b16 %v1985
        %v2002 = vunpack.c.l.b16 %v1986
        %v2003 = vunpack.c.l.b16 %v1987
        %v2004 = vunpack.c.l.b16 %v1988
        %v2005 = vunpack.c.l.b16 %v1989
        %v2006 = vunpack.c.l.b16 %v1990
        %v2007 = vunpack.c.l.b16 %v1991
        %v2008 = vpack.c.b16 %v2001, %v2000
        %v2009 = vpack.c.b16 %v2003, %v2002
        %v2010 = vpack.c.b16 %v2005, %v2004
        %v2011 = vpack.c.b16 %v2007, %v2006
        %v2017 = vsel %vm785, %v1967, 0
        %v2020 = vsel %vm785, %v1968, 0
        %v2023 = vsel %vm785, %v1969, 0
        %v2026 = vsel %vm785, %v1970, 0
        %v2029 = vsel %vm785, %v1971, 0
        %v2032 = vsel %vm785, %v1972, 0
        %v2035 = vsel %vm785, %v1973, 0
        %v2038 = vsel %vm785, %v1974, 0
        %v2041 = vsel %vm785, %v1975, 0
        %v2044 = vsel %vm785, %v1976, 0
        %v2047 = vsel %vm785, %v1977, 0
        %v2050 = vsel %vm785, %v1978, 0
        %v2053 = vsel %vm785, %v1979, 0
        %v2056 = vsel %vm785, %v1980, 0
        %v2059 = vsel %vm785, %v1981, 0
        %v2062 = vsel %vm785, %v1982, 0
        %2064 = vmatpush.bf16.msra.mxu0 0
        %2065 = vmatpush.bf16.msra.mxu0 0
        %2066 = vmatpush.bf16.msra.mxu0 0
        %2067 = vmatpush.bf16.msra.mxu0 0
        %2068 = vmatpush.bf16.msra.mxu0 %v2011
        %2069 = vmatpush.bf16.msra.mxu0 %v2010
        %2070 = vmatpush.bf16.msra.mxu0 %v2009
        %2071 = vmatpush.bf16.msra.mxu0 %v2008
        %2072 = vmatmul.bf16.gmra.mxu0 %v2017
        %v2073 = vpop.f32.mrf.mxu0
        %v2074 = vadd.f32 0.0, %v2073
        %v2075 = vpop.f32.mrf.mxu0
        %v2076 = vadd.f32 0.0, %v2075
        %2077 = vmatmul.bf16.gmra.mxu0 %v2020
        %v2078 = vpop.f32.mrf.mxu0
        %v2079 = vadd.f32 0.0, %v2078
        %v2080 = vpop.f32.mrf.mxu0
        %v2081 = vadd.f32 0.0, %v2080
        %2082 = vmatmul.bf16.gmra.mxu0 %v2023
        %v2083 = vpop.f32.mrf.mxu0
        %v2084 = vadd.f32 0.0, %v2083
        %v2085 = vpop.f32.mrf.mxu0
        %v2086 = vadd.f32 0.0, %v2085
        %2087 = vmatmul.bf16.gmra.mxu0 %v2026
        %v2088 = vpop.f32.mrf.mxu0
        %v2089 = vadd.f32 0.0, %v2088
        %v2090 = vpop.f32.mrf.mxu0
        %v2091 = vadd.f32 0.0, %v2090
        %2092 = vmatmul.bf16.gmra.mxu0 %v2029
        %v2093 = vpop.f32.mrf.mxu0
        %v2094 = vadd.f32 0.0, %v2093
        %v2095 = vpop.f32.mrf.mxu0
        %v2096 = vadd.f32 0.0, %v2095
        %2097 = vmatmul.bf16.gmra.mxu0 %v2032
        %v2098 = vpop.f32.mrf.mxu0
        %v2099 = vadd.f32 0.0, %v2098
        %v2100 = vpop.f32.mrf.mxu0
        %v2101 = vadd.f32 0.0, %v2100
        %2102 = vmatmul.bf16.gmra.mxu0 %v2035
        %v2103 = vpop.f32.mrf.mxu0
        %v2104 = vadd.f32 0.0, %v2103
        %v2105 = vpop.f32.mrf.mxu0
        %v2106 = vadd.f32 0.0, %v2105
        %2107 = vmatmul.bf16.gmra.mxu0 %v2038
        %v2108 = vpop.f32.mrf.mxu0
        %v2109 = vadd.f32 0.0, %v2108
        %v2110 = vpop.f32.mrf.mxu0
        %v2111 = vadd.f32 0.0, %v2110
        %2112 = vmatmul.bf16.gmra.mxu0 %v2041
        %v2113 = vpop.f32.mrf.mxu0
        %v2114 = vadd.f32 0.0, %v2113
        %v2115 = vpop.f32.mrf.mxu0
        %v2116 = vadd.f32 0.0, %v2115
        %2117 = vmatmul.bf16.gmra.mxu0 %v2044
        %v2118 = vpop.f32.mrf.mxu0
        %v2119 = vadd.f32 0.0, %v2118
        %v2120 = vpop.f32.mrf.mxu0
        %v2121 = vadd.f32 0.0, %v2120
        %2122 = vmatmul.bf16.gmra.mxu0 %v2047
        %v2123 = vpop.f32.mrf.mxu0
        %v2124 = vadd.f32 0.0, %v2123
        %v2125 = vpop.f32.mrf.mxu0
        %v2126 = vadd.f32 0.0, %v2125
        %2127 = vmatmul.bf16.gmra.mxu0 %v2050
        %v2128 = vpop.f32.mrf.mxu0
        %v2129 = vadd.f32 0.0, %v2128
        %v2130 = vpop.f32.mrf.mxu0
        %v2131 = vadd.f32 0.0, %v2130
        %2132 = vmatmul.bf16.gmra.mxu0 %v2053
        %v2133 = vpop.f32.mrf.mxu0
        %v2134 = vadd.f32 0.0, %v2133
        %v2135 = vpop.f32.mrf.mxu0
        %v2136 = vadd.f32 0.0, %v2135
        %2137 = vmatmul.bf16.gmra.mxu0 %v2056
        %v2138 = vpop.f32.mrf.mxu0
        %v2139 = vadd.f32 0.0, %v2138
        %v2140 = vpop.f32.mrf.mxu0
        %v2141 = vadd.f32 0.0, %v2140
        %2142 = vmatmul.bf16.gmra.mxu0 %v2059
        %v2143 = vpop.f32.mrf.mxu0
        %v2144 = vadd.f32 0.0, %v2143
        %v2145 = vpop.f32.mrf.mxu0
        %v2146 = vadd.f32 0.0, %v2145
        %2147 = vmatmul.bf16.gmra.mxu0 %v2062
        %v2148 = vpop.f32.mrf.mxu0
        %v2149 = vadd.f32 0.0, %v2148
        %v2150 = vpop.f32.mrf.mxu0
        %v2151 = vadd.f32 0.0, %v2150
        %2152 = vdwg.mxu0
        %v2153 = vadd.f32 %v1761, %v2074
        %v2154 = vadd.f32 %v1763, %v2076
        %v2155 = vadd.f32 %v1766, %v2079
        %v2156 = vadd.f32 %v1768, %v2081
        %v2157 = vadd.f32 %v1771, %v2084
        %v2158 = vadd.f32 %v1773, %v2086
        %v2159 = vadd.f32 %v1776, %v2089
        %v2160 = vadd.f32 %v1778, %v2091
        %v2161 = vadd.f32 %v1781, %v2094
        %v2162 = vadd.f32 %v1783, %v2096
        %v2163 = vadd.f32 %v1786, %v2099
        %v2164 = vadd.f32 %v1788, %v2101
        %v2165 = vadd.f32 %v1791, %v2104
        %v2166 = vadd.f32 %v1793, %v2106
        %v2167 = vadd.f32 %v1796, %v2109
        %v2168 = vadd.f32 %v1798, %v2111
        %v2169 = vadd.f32 %v1801, %v2114
        %v2170 = vadd.f32 %v1803, %v2116
        %v2171 = vadd.f32 %v1806, %v2119
        %v2172 = vadd.f32 %v1808, %v2121
        %v2173 = vadd.f32 %v1811, %v2124
        %v2174 = vadd.f32 %v1813, %v2126
        %v2175 = vadd.f32 %v1816, %v2129
        %v2176 = vadd.f32 %v1818, %v2131
        %v2177 = vadd.f32 %v1821, %v2134
        %v2178 = vadd.f32 %v1823, %v2136
        %v2179 = vadd.f32 %v1826, %v2139
        %v2180 = vadd.f32 %v1828, %v2141
        %v2181 = vadd.f32 %v1831, %v2144
        %v2182 = vadd.f32 %v1833, %v2146
        %v2183 = vadd.f32 %v1836, %v2149
        %v2184 = vadd.f32 %v1838, %v2151
        %v2186 = vrot.slane %v1315, 7
        %v2187 = vsel %vm956, %v1404, %v2186
        %v2188 = vrot.slane %v1316, 7
        %v2189 = vsel %vm956, %v2186, %v2188
        %v2192 = vmul.f32 %v1436, %v711
        %v2193 = vmul.f32 %v1349, %v712
        %v2194 = vmul.f32 %v1351, %v713
        %v2195 = vmul.f32 %v1353, %v714
        %v2196 = vmul.f32 %v1355, %v715
        %v2197 = vmul.f32 %v1357, %v716
        %v2198 = vmul.f32 %v1359, %v717
        %v2199 = vmul.f32 %v1361, %v718
        %v2200 = vmul.f32 %v1363, %v719
        %v2201 = vmul.f32 %v1365, %v720
        %v2202 = vmul.f32 %v1367, %v721
        %v2203 = vmul.f32 %v1369, %v722
        %v2204 = vmul.f32 %v1371, %v723
        %v2205 = vmul.f32 %v1373, %v724
        %v2206 = vmul.f32 %v1375, %v725
        %v2207 = vmul.f32 %v1377, %v726
        %v2208 = vmul.f32 %v1379, %v727
        %v2209 = vmul.f32 %v1381, %v728
        %v2210 = vmul.f32 %v1383, %v729
        %v2211 = vmul.f32 %v1385, %v730
        %v2212 = vmul.f32 %v1387, %v731
        %v2213 = vmul.f32 %v1389, %v732
        %v2214 = vmul.f32 %v1391, %v733
        %v2215 = vmul.f32 %v1393, %v734
        %v2216 = vmul.f32 %v1395, %v735
        %v2217 = vmul.f32 %v1397, %v736
        %v2218 = vmul.f32 %v1399, %v737
        %v2219 = vmul.f32 %v1401, %v738
        %v2220 = vmul.f32 %v1403, %v739
        %v2221 = vmul.f32 %v1405, %v740
        %v2222 = vmul.f32 %v2187, %v741
        %v2223 = vmul.f32 %v2189, %v742
        %v2224 = vpack.c.bf16 %v2193, %v2192
        %v2225 = vpack.c.bf16 %v2195, %v2194
        %v2226 = vpack.c.bf16 %v2197, %v2196
        %v2227 = vpack.c.bf16 %v2199, %v2198
        %v2228 = vpack.c.bf16 %v2201, %v2200
        %v2229 = vpack.c.bf16 %v2203, %v2202
        %v2230 = vpack.c.bf16 %v2205, %v2204
        %v2231 = vpack.c.bf16 %v2207, %v2206
        %v2232 = vpack.c.bf16 %v2209, %v2208
        %v2233 = vpack.c.bf16 %v2211, %v2210
        %v2234 = vpack.c.bf16 %v2213, %v2212
        %v2235 = vpack.c.bf16 %v2215, %v2214
        %v2236 = vpack.c.bf16 %v2217, %v2216
        %v2237 = vpack.c.bf16 %v2219, %v2218
        %v2238 = vpack.c.bf16 %v2221, %v2220
        %v2239 = vpack.c.bf16 %v2223, %v2222
        %s2240 = scalar_lea.vmem %s6, 96
        %v2241 = vld [vmem:[%s2240] sm:$0xf]
        %v2242 = vld [vmem:[%s2240 + $0x4] sm:$0xf]
        %v2243 = vld [vmem:[%s2240 + $0x8] sm:$0xf]
        %v2244 = vld [vmem:[%s2240 + $0xc] sm:$0xf]
        %v2245 = vld [vmem:[%s2240 + $0x10] sm:$0xf]
        %v2246 = vld [vmem:[%s2240 + $0x14] sm:$0xf]
        %v2247 = vld [vmem:[%s2240 + $0x18] sm:$0xf]
        %v2248 = vld [vmem:[%s2240 + $0x1c] sm:$0xf]
        %v2257 = vunpack.c.l.b16 %v2241
        %v2258 = vunpack.c.l.b16 %v2242
        %v2259 = vunpack.c.l.b16 %v2243
        %v2260 = vunpack.c.l.b16 %v2244
        %v2261 = vunpack.c.l.b16 %v2245
        %v2262 = vunpack.c.l.b16 %v2246
        %v2263 = vunpack.c.l.b16 %v2247
        %v2264 = vunpack.c.l.b16 %v2248
        %v2265 = vpack.c.b16 %v2258, %v2257
        %v2266 = vpack.c.b16 %v2260, %v2259
        %v2267 = vpack.c.b16 %v2262, %v2261
        %v2268 = vpack.c.b16 %v2264, %v2263
        %v2274 = vsel %vm785, %v2224, 0
        %v2277 = vsel %vm785, %v2225, 0
        %v2280 = vsel %vm785, %v2226, 0
        %v2283 = vsel %vm785, %v2227, 0
        %v2286 = vsel %vm785, %v2228, 0
        %v2289 = vsel %vm785, %v2229, 0
        %v2292 = vsel %vm785, %v2230, 0
        %v2295 = vsel %vm785, %v2231, 0
        %v2298 = vsel %vm785, %v2232, 0
        %v2301 = vsel %vm785, %v2233, 0
        %v2304 = vsel %vm785, %v2234, 0
        %v2307 = vsel %vm785, %v2235, 0
        %v2310 = vsel %vm785, %v2236, 0
        %v2313 = vsel %vm785, %v2237, 0
        %v2316 = vsel %vm785, %v2238, 0
        %v2319 = vsel %vm785, %v2239, 0
        %2321 = vmatpush.bf16.msra.mxu0 0
        %2322 = vmatpush.bf16.msra.mxu0 0
        %2323 = vmatpush.bf16.msra.mxu0 0
        %2324 = vmatpush.bf16.msra.mxu0 0
        %2325 = vmatpush.bf16.msra.mxu0 %v2268
        %2326 = vmatpush.bf16.msra.mxu0 %v2267
        %2327 = vmatpush.bf16.msra.mxu0 %v2266
        %2328 = vmatpush.bf16.msra.mxu0 %v2265
        %2329 = vmatmul.bf16.gmra.mxu0 %v2274
        %v2330 = vpop.f32.mrf.mxu0
        %v2331 = vadd.f32 0.0, %v2330
        %v2332 = vpop.f32.mrf.mxu0
        %v2333 = vadd.f32 0.0, %v2332
        %2334 = vmatmul.bf16.gmra.mxu0 %v2277
        %v2335 = vpop.f32.mrf.mxu0
        %v2336 = vadd.f32 0.0, %v2335
        %v2337 = vpop.f32.mrf.mxu0
        %v2338 = vadd.f32 0.0, %v2337
        %2339 = vmatmul.bf16.gmra.mxu0 %v2280
        %v2340 = vpop.f32.mrf.mxu0
        %v2341 = vadd.f32 0.0, %v2340
        %v2342 = vpop.f32.mrf.mxu0
        %v2343 = vadd.f32 0.0, %v2342
        %2344 = vmatmul.bf16.gmra.mxu0 %v2283
        %v2345 = vpop.f32.mrf.mxu0
        %v2346 = vadd.f32 0.0, %v2345
        %v2347 = vpop.f32.mrf.mxu0
        %v2348 = vadd.f32 0.0, %v2347
        %2349 = vmatmul.bf16.gmra.mxu0 %v2286
        %v2350 = vpop.f32.mrf.mxu0
        %v2351 = vadd.f32 0.0, %v2350
        %v2352 = vpop.f32.mrf.mxu0
        %v2353 = vadd.f32 0.0, %v2352
        %2354 = vmatmul.bf16.gmra.mxu0 %v2289
        %v2355 = vpop.f32.mrf.mxu0
        %v2356 = vadd.f32 0.0, %v2355
        %v2357 = vpop.f32.mrf.mxu0
        %v2358 = vadd.f32 0.0, %v2357
        %2359 = vmatmul.bf16.gmra.mxu0 %v2292
        %v2360 = vpop.f32.mrf.mxu0
        %v2361 = vadd.f32 0.0, %v2360
        %v2362 = vpop.f32.mrf.mxu0
        %v2363 = vadd.f32 0.0, %v2362
        %2364 = vmatmul.bf16.gmra.mxu0 %v2295
        %v2365 = vpop.f32.mrf.mxu0
        %v2366 = vadd.f32 0.0, %v2365
        %v2367 = vpop.f32.mrf.mxu0
        %v2368 = vadd.f32 0.0, %v2367
        %2369 = vmatmul.bf16.gmra.mxu0 %v2298
        %v2370 = vpop.f32.mrf.mxu0
        %v2371 = vadd.f32 0.0, %v2370
        %v2372 = vpop.f32.mrf.mxu0
        %v2373 = vadd.f32 0.0, %v2372
        %2374 = vmatmul.bf16.gmra.mxu0 %v2301
        %v2375 = vpop.f32.mrf.mxu0
        %v2376 = vadd.f32 0.0, %v2375
        %v2377 = vpop.f32.mrf.mxu0
        %v2378 = vadd.f32 0.0, %v2377
        %2379 = vmatmul.bf16.gmra.mxu0 %v2304
        %v2380 = vpop.f32.mrf.mxu0
        %v2381 = vadd.f32 0.0, %v2380
        %v2382 = vpop.f32.mrf.mxu0
        %v2383 = vadd.f32 0.0, %v2382
        %2384 = vmatmul.bf16.gmra.mxu0 %v2307
        %v2385 = vpop.f32.mrf.mxu0
        %v2386 = vadd.f32 0.0, %v2385
        %v2387 = vpop.f32.mrf.mxu0
        %v2388 = vadd.f32 0.0, %v2387
        %2389 = vmatmul.bf16.gmra.mxu0 %v2310
        %v2390 = vpop.f32.mrf.mxu0
        %v2391 = vadd.f32 0.0, %v2390
        %v2392 = vpop.f32.mrf.mxu0
        %v2393 = vadd.f32 0.0, %v2392
        %2394 = vmatmul.bf16.gmra.mxu0 %v2313
        %v2395 = vpop.f32.mrf.mxu0
        %v2396 = vadd.f32 0.0, %v2395
        %v2397 = vpop.f32.mrf.mxu0
        %v2398 = vadd.f32 0.0, %v2397
        %2399 = vmatmul.bf16.gmra.mxu0 %v2316
        %v2400 = vpop.f32.mrf.mxu0
        %v2401 = vadd.f32 0.0, %v2400
        %v2402 = vpop.f32.mrf.mxu0
        %v2403 = vadd.f32 0.0, %v2402
        %2404 = vmatmul.bf16.gmra.mxu0 %v2319
        %v2405 = vpop.f32.mrf.mxu0
        %v2406 = vadd.f32 0.0, %v2405
        %v2407 = vpop.f32.mrf.mxu0
        %v2408 = vadd.f32 0.0, %v2407
        %2409 = vdwg.mxu0
        %v2410 = vadd.f32 %v2153, %v2331
        %v2411 = vadd.f32 %v2154, %v2333
        %v2412 = vadd.f32 %v2155, %v2336
        %v2413 = vadd.f32 %v2156, %v2338
        %v2414 = vadd.f32 %v2157, %v2341
        %v2415 = vadd.f32 %v2158, %v2343
        %v2416 = vadd.f32 %v2159, %v2346
        %v2417 = vadd.f32 %v2160, %v2348
        %v2418 = vadd.f32 %v2161, %v2351
        %v2419 = vadd.f32 %v2162, %v2353
        %v2420 = vadd.f32 %v2163, %v2356
        %v2421 = vadd.f32 %v2164, %v2358
        %v2422 = vadd.f32 %v2165, %v2361
        %v2423 = vadd.f32 %v2166, %v2363
        %v2424 = vadd.f32 %v2167, %v2366
        %v2425 = vadd.f32 %v2168, %v2368
        %v2426 = vadd.f32 %v2169, %v2371
        %v2427 = vadd.f32 %v2170, %v2373
        %v2428 = vadd.f32 %v2171, %v2376
        %v2429 = vadd.f32 %v2172, %v2378
        %v2430 = vadd.f32 %v2173, %v2381
        %v2431 = vadd.f32 %v2174, %v2383
        %v2432 = vadd.f32 %v2175, %v2386
        %v2433 = vadd.f32 %v2176, %v2388
        %v2434 = vadd.f32 %v2177, %v2391
        %v2435 = vadd.f32 %v2178, %v2393
        %v2436 = vadd.f32 %v2179, %v2396
        %v2437 = vadd.f32 %v2180, %v2398
        %v2438 = vadd.f32 %v2181, %v2401
        %v2439 = vadd.f32 %v2182, %v2403
        %v2440 = vadd.f32 %v2183, %v2406
        %v2441 = vadd.f32 %v2184, %v2408
        %v2442 = vpack.c.bf16 %v1316, %v1315
        %s2443 = scalar_lea.vmem %s6, 128
        %v2444 = vld [vmem:[%s2443] sm:$0xf]
        %v2445 = vld [vmem:[%s2443 + $0x4] sm:$0xf]
        %v2446 = vld [vmem:[%s2443 + $0x8] sm:$0xf]
        %v2447 = vld [vmem:[%s2443 + $0xc] sm:$0xf]
        %v2448 = vld [vmem:[%s2443 + $0x10] sm:$0xf]
        %v2449 = vld [vmem:[%s2443 + $0x14] sm:$0xf]
        %v2450 = vld [vmem:[%s2443 + $0x18] sm:$0xf]
        %v2451 = vld [vmem:[%s2443 + $0x1c] sm:$0xf]
        %v2460 = vunpack.c.l.b16 %v2444
        %v2461 = vunpack.c.l.b16 %v2445
        %v2462 = vunpack.c.l.b16 %v2446
        %v2463 = vunpack.c.l.b16 %v2447
        %v2464 = vunpack.c.l.b16 %v2448
        %v2465 = vunpack.c.l.b16 %v2449
        %v2466 = vunpack.c.l.b16 %v2450
        %v2467 = vunpack.c.l.b16 %v2451
        %v2468 = vpack.c.b16 %v2461, %v2460
        %v2469 = vpack.c.b16 %v2463, %v2462
        %v2470 = vpack.c.b16 %v2465, %v2464
        %v2471 = vpack.c.b16 %v2467, %v2466
        %v2477 = vsel %vm785, %v2442, 0
        %2479 = vmatpush.bf16.msra.mxu0 0
        %2480 = vmatpush.bf16.msra.mxu0 0
        %2481 = vmatpush.bf16.msra.mxu0 0
        %2482 = vmatpush.bf16.msra.mxu0 0
        %2483 = vmatpush.bf16.msra.mxu0 %v2471
        %2484 = vmatpush.bf16.msra.mxu0 %v2470
        %2485 = vmatpush.bf16.msra.mxu0 %v2469
        %2486 = vmatpush.bf16.msra.mxu0 %v2468
        %2487 = vmatmul.bf16.gmra.mxu0 %v1546
        %v2488 = vpop.f32.mrf.mxu0
        %v2489 = vadd.f32 0.0, %v2488
        %v2490 = vpop.f32.mrf.mxu0
        %v2491 = vadd.f32 0.0, %v2490
        %2492 = vmatmul.bf16.gmra.mxu0 %v1549
        %v2493 = vpop.f32.mrf.mxu0
        %v2494 = vadd.f32 0.0, %v2493
        %v2495 = vpop.f32.mrf.mxu0
        %v2496 = vadd.f32 0.0, %v2495
        %2497 = vmatmul.bf16.gmra.mxu0 %v1552
        %v2498 = vpop.f32.mrf.mxu0
        %v2499 = vadd.f32 0.0, %v2498
        %v2500 = vpop.f32.mrf.mxu0
        %v2501 = vadd.f32 0.0, %v2500
        %2502 = vmatmul.bf16.gmra.mxu0 %v1555
        %v2503 = vpop.f32.mrf.mxu0
        %v2504 = vadd.f32 0.0, %v2503
        %v2505 = vpop.f32.mrf.mxu0
        %v2506 = vadd.f32 0.0, %v2505
        %2507 = vmatmul.bf16.gmra.mxu0 %v1558
        %v2508 = vpop.f32.mrf.mxu0
        %v2509 = vadd.f32 0.0, %v2508
        %v2510 = vpop.f32.mrf.mxu0
        %v2511 = vadd.f32 0.0, %v2510
        %2512 = vmatmul.bf16.gmra.mxu0 %v1561
        %v2513 = vpop.f32.mrf.mxu0
        %v2514 = vadd.f32 0.0, %v2513
        %v2515 = vpop.f32.mrf.mxu0
        %v2516 = vadd.f32 0.0, %v2515
        %2517 = vmatmul.bf16.gmra.mxu0 %v1564
        %v2518 = vpop.f32.mrf.mxu0
        %v2519 = vadd.f32 0.0, %v2518
        %v2520 = vpop.f32.mrf.mxu0
        %v2521 = vadd.f32 0.0, %v2520
        %2522 = vmatmul.bf16.gmra.mxu0 %v1567
        %v2523 = vpop.f32.mrf.mxu0
        %v2524 = vadd.f32 0.0, %v2523
        %v2525 = vpop.f32.mrf.mxu0
        %v2526 = vadd.f32 0.0, %v2525
        %2527 = vmatmul.bf16.gmra.mxu0 %v1570
        %v2528 = vpop.f32.mrf.mxu0
        %v2529 = vadd.f32 0.0, %v2528
        %v2530 = vpop.f32.mrf.mxu0
        %v2531 = vadd.f32 0.0, %v2530
        %2532 = vmatmul.bf16.gmra.mxu0 %v1573
        %v2533 = vpop.f32.mrf.mxu0
        %v2534 = vadd.f32 0.0, %v2533
        %v2535 = vpop.f32.mrf.mxu0
        %v2536 = vadd.f32 0.0, %v2535
        %2537 = vmatmul.bf16.gmra.mxu0 %v1576
        %v2538 = vpop.f32.mrf.mxu0
        %v2539 = vadd.f32 0.0, %v2538
        %v2540 = vpop.f32.mrf.mxu0
        %v2541 = vadd.f32 0.0, %v2540
        %2542 = vmatmul.bf16.gmra.mxu0 %v1579
        %v2543 = vpop.f32.mrf.mxu0
        %v2544 = vadd.f32 0.0, %v2543
        %v2545 = vpop.f32.mrf.mxu0
        %v2546 = vadd.f32 0.0, %v2545
        %2547 = vmatmul.bf16.gmra.mxu0 %v1582
        %v2548 = vpop.f32.mrf.mxu0
        %v2549 = vadd.f32 0.0, %v2548
        %v2550 = vpop.f32.mrf.mxu0
        %v2551 = vadd.f32 0.0, %v2550
        %2552 = vmatmul.bf16.gmra.mxu0 %v1585
        %v2553 = vpop.f32.mrf.mxu0
        %v2554 = vadd.f32 0.0, %v2553
        %v2555 = vpop.f32.mrf.mxu0
        %v2556 = vadd.f32 0.0, %v2555
        %2557 = vmatmul.bf16.gmra.mxu0 %v1588
        %v2558 = vpop.f32.mrf.mxu0
        %v2559 = vadd.f32 0.0, %v2558
        %v2560 = vpop.f32.mrf.mxu0
        %v2561 = vadd.f32 0.0, %v2560
        %2562 = vmatmul.bf16.gmra.mxu0 %v2477
        %v2563 = vpop.f32.mrf.mxu0
        %v2564 = vadd.f32 0.0, %v2563
        %v2565 = vpop.f32.mrf.mxu0
        %v2566 = vadd.f32 0.0, %v2565
        %2567 = vdwg.mxu0
        %v2568 = vadd.f32 %v2410, %v2489
        %v2569 = vadd.f32 %v2411, %v2491
        %v2570 = vadd.f32 %v2412, %v2494
        %v2571 = vadd.f32 %v2413, %v2496
        %v2572 = vadd.f32 %v2414, %v2499
        %v2573 = vadd.f32 %v2415, %v2501
        %v2574 = vadd.f32 %v2416, %v2504
        %v2575 = vadd.f32 %v2417, %v2506
        %v2576 = vadd.f32 %v2418, %v2509
        %v2577 = vadd.f32 %v2419, %v2511
        %v2578 = vadd.f32 %v2420, %v2514
        %v2579 = vadd.f32 %v2421, %v2516
        %v2580 = vadd.f32 %v2422, %v2519
        %v2581 = vadd.f32 %v2423, %v2521
        %v2582 = vadd.f32 %v2424, %v2524
        %v2583 = vadd.f32 %v2425, %v2526
        %v2584 = vadd.f32 %v2426, %v2529
        %v2585 = vadd.f32 %v2427, %v2531
        %v2586 = vadd.f32 %v2428, %v2534
        %v2587 = vadd.f32 %v2429, %v2536
        %v2588 = vadd.f32 %v2430, %v2539
        %v2589 = vadd.f32 %v2431, %v2541
        %v2590 = vadd.f32 %v2432, %v2544
        %v2591 = vadd.f32 %v2433, %v2546
        %v2592 = vadd.f32 %v2434, %v2549
        %v2593 = vadd.f32 %v2435, %v2551
        %v2594 = vadd.f32 %v2436, %v2554
        %v2595 = vadd.f32 %v2437, %v2556
        %v2596 = vadd.f32 %v2438, %v2559
        %v2597 = vadd.f32 %v2439, %v2561
        %v2598 = vadd.f32 %v2440, %v2564
        %v2599 = vadd.f32 %v2441, %v2566
        %v2600 = vrot.slane %v1316, 1
        %v2601 = vsel %vm1841, %v1901, %v2600
        %v2604 = vsel %vm1841, %v2600, 0.0
        %v2605 = vmul.f32 %v1844, %v743
        %v2606 = vmul.f32 %v1846, %v744
        %v2607 = vmul.f32 %v1848, %v745
        %v2608 = vmul.f32 %v1850, %v746
        %v2609 = vmul.f32 %v1852, %v747
        %v2610 = vmul.f32 %v1854, %v748
        %v2611 = vmul.f32 %v1856, %v749
        %v2612 = vmul.f32 %v1858, %v750
        %v2613 = vmul.f32 %v1860, %v751
        %v2614 = vmul.f32 %v1862, %v752
        %v2615 = vmul.f32 %v1864, %v753
        %v2616 = vmul.f32 %v1866, %v754
        %v2617 = vmul.f32 %v1868, %v755
        %v2618 = vmul.f32 %v1870, %v756
        %v2619 = vmul.f32 %v1872, %v757
        %v2620 = vmul.f32 %v1874, %v758
        %v2621 = vmul.f32 %v1876, %v759
        %v2622 = vmul.f32 %v1878, %v760
        %v2623 = vmul.f32 %v1880, %v761
        %v2624 = vmul.f32 %v1882, %v762
        %v2625 = vmul.f32 %v1884, %v763
        %v2626 = vmul.f32 %v1886, %v764
        %v2627 = vmul.f32 %v1888, %v765
        %v2628 = vmul.f32 %v1890, %v766
        %v2629 = vmul.f32 %v1892, %v767
        %v2630 = vmul.f32 %v1894, %v768
        %v2631 = vmul.f32 %v1896, %v769
        %v2632 = vmul.f32 %v1898, %v770
        %v2633 = vmul.f32 %v1900, %v771
        %v2634 = vmul.f32 %v1902, %v772
        %v2635 = vmul.f32 %v2601, %v773
        %v2636 = vmul.f32 %v2604, %v774
        %v2637 = vpack.c.bf16 %v2606, %v2605
        %v2638 = vpack.c.bf16 %v2608, %v2607
        %v2639 = vpack.c.bf16 %v2610, %v2609
        %v2640 = vpack.c.bf16 %v2612, %v2611
        %v2641 = vpack.c.bf16 %v2614, %v2613
        %v2642 = vpack.c.bf16 %v2616, %v2615
        %v2643 = vpack.c.bf16 %v2618, %v2617
        %v2644 = vpack.c.bf16 %v2620, %v2619
        %v2645 = vpack.c.bf16 %v2622, %v2621
        %v2646 = vpack.c.bf16 %v2624, %v2623
        %v2647 = vpack.c.bf16 %v2626, %v2625
        %v2648 = vpack.c.bf16 %v2628, %v2627
        %v2649 = vpack.c.bf16 %v2630, %v2629
        %v2650 = vpack.c.bf16 %v2632, %v2631
        %v2651 = vpack.c.bf16 %v2634, %v2633
        %v2652 = vpack.c.bf16 %v2636, %v2635
        %s2653 = scalar_lea.vmem %s6, 160
        %v2654 = vld [vmem:[%s2653] sm:$0xf]
        %v2655 = vld [vmem:[%s2653 + $0x4] sm:$0xf]
        %v2656 = vld [vmem:[%s2653 + $0x8] sm:$0xf]
        %v2657 = vld [vmem:[%s2653 + $0xc] sm:$0xf]
        %v2658 = vld [vmem:[%s2653 + $0x10] sm:$0xf]
        %v2659 = vld [vmem:[%s2653 + $0x14] sm:$0xf]
        %v2660 = vld [vmem:[%s2653 + $0x18] sm:$0xf]
        %v2661 = vld [vmem:[%s2653 + $0x1c] sm:$0xf]
        %v2670 = vunpack.c.l.b16 %v2654
        %v2671 = vunpack.c.l.b16 %v2655
        %v2672 = vunpack.c.l.b16 %v2656
        %v2673 = vunpack.c.l.b16 %v2657
        %v2674 = vunpack.c.l.b16 %v2658
        %v2675 = vunpack.c.l.b16 %v2659
        %v2676 = vunpack.c.l.b16 %v2660
        %v2677 = vunpack.c.l.b16 %v2661
        %v2678 = vpack.c.b16 %v2671, %v2670
        %v2679 = vpack.c.b16 %v2673, %v2672
        %v2680 = vpack.c.b16 %v2675, %v2674
        %v2681 = vpack.c.b16 %v2677, %v2676
        %v2687 = vsel %vm785, %v2637, 0
        %v2690 = vsel %vm785, %v2638, 0
        %v2693 = vsel %vm785, %v2639, 0
        %v2696 = vsel %vm785, %v2640, 0
        %v2699 = vsel %vm785, %v2641, 0
        %v2702 = vsel %vm785, %v2642, 0
        %v2705 = vsel %vm785, %v2643, 0
        %v2708 = vsel %vm785, %v2644, 0
        %v2711 = vsel %vm785, %v2645, 0
        %v2714 = vsel %vm785, %v2646, 0
        %v2717 = vsel %vm785, %v2647, 0
        %v2720 = vsel %vm785, %v2648, 0
        %v2723 = vsel %vm785, %v2649, 0
        %v2726 = vsel %vm785, %v2650, 0
        %v2729 = vsel %vm785, %v2651, 0
        %v2732 = vsel %vm785, %v2652, 0
        %2734 = vmatpush.bf16.msra.mxu0 0
        %2735 = vmatpush.bf16.msra.mxu0 0
        %2736 = vmatpush.bf16.msra.mxu0 0
        %2737 = vmatpush.bf16.msra.mxu0 0
        %2738 = vmatpush.bf16.msra.mxu0 %v2681
        %2739 = vmatpush.bf16.msra.mxu0 %v2680
        %2740 = vmatpush.bf16.msra.mxu0 %v2679
        %2741 = vmatpush.bf16.msra.mxu0 %v2678
        %2742 = vmatmul.bf16.gmra.mxu0 %v2687
        %v2743 = vpop.f32.mrf.mxu0
        %v2744 = vadd.f32 0.0, %v2743
        %v2745 = vpop.f32.mrf.mxu0
        %v2746 = vadd.f32 0.0, %v2745
        %2747 = vmatmul.bf16.gmra.mxu0 %v2690
        %v2748 = vpop.f32.mrf.mxu0
        %v2749 = vadd.f32 0.0, %v2748
        %v2750 = vpop.f32.mrf.mxu0
        %v2751 = vadd.f32 0.0, %v2750
        %2752 = vmatmul.bf16.gmra.mxu0 %v2693
        %v2753 = vpop.f32.mrf.mxu0
        %v2754 = vadd.f32 0.0, %v2753
        %v2755 = vpop.f32.mrf.mxu0
        %v2756 = vadd.f32 0.0, %v2755
        %2757 = vmatmul.bf16.gmra.mxu0 %v2696
        %v2758 = vpop.f32.mrf.mxu0
        %v2759 = vadd.f32 0.0, %v2758
        %v2760 = vpop.f32.mrf.mxu0
        %v2761 = vadd.f32 0.0, %v2760
        %2762 = vmatmul.bf16.gmra.mxu0 %v2699
        %v2763 = vpop.f32.mrf.mxu0
        %v2764 = vadd.f32 0.0, %v2763
        %v2765 = vpop.f32.mrf.mxu0
        %v2766 = vadd.f32 0.0, %v2765
        %2767 = vmatmul.bf16.gmra.mxu0 %v2702
        %v2768 = vpop.f32.mrf.mxu0
        %v2769 = vadd.f32 0.0, %v2768
        %v2770 = vpop.f32.mrf.mxu0
        %v2771 = vadd.f32 0.0, %v2770
        %2772 = vmatmul.bf16.gmra.mxu0 %v2705
        %v2773 = vpop.f32.mrf.mxu0
        %v2774 = vadd.f32 0.0, %v2773
        %v2775 = vpop.f32.mrf.mxu0
        %v2776 = vadd.f32 0.0, %v2775
        %2777 = vmatmul.bf16.gmra.mxu0 %v2708
        %v2778 = vpop.f32.mrf.mxu0
        %v2779 = vadd.f32 0.0, %v2778
        %v2780 = vpop.f32.mrf.mxu0
        %v2781 = vadd.f32 0.0, %v2780
        %2782 = vmatmul.bf16.gmra.mxu0 %v2711
        %v2783 = vpop.f32.mrf.mxu0
        %v2784 = vadd.f32 0.0, %v2783
        %v2785 = vpop.f32.mrf.mxu0
        %v2786 = vadd.f32 0.0, %v2785
        %2787 = vmatmul.bf16.gmra.mxu0 %v2714
        %v2788 = vpop.f32.mrf.mxu0
        %v2789 = vadd.f32 0.0, %v2788
        %v2790 = vpop.f32.mrf.mxu0
        %v2791 = vadd.f32 0.0, %v2790
        %2792 = vmatmul.bf16.gmra.mxu0 %v2717
        %v2793 = vpop.f32.mrf.mxu0
        %v2794 = vadd.f32 0.0, %v2793
        %v2795 = vpop.f32.mrf.mxu0
        %v2796 = vadd.f32 0.0, %v2795
        %2797 = vmatmul.bf16.gmra.mxu0 %v2720
        %v2798 = vpop.f32.mrf.mxu0
        %v2799 = vadd.f32 0.0, %v2798
        %v2800 = vpop.f32.mrf.mxu0
        %v2801 = vadd.f32 0.0, %v2800
        %2802 = vmatmul.bf16.gmra.mxu0 %v2723
        %v2803 = vpop.f32.mrf.mxu0
        %v2804 = vadd.f32 0.0, %v2803
        %v2805 = vpop.f32.mrf.mxu0
        %v2806 = vadd.f32 0.0, %v2805
        %2807 = vmatmul.bf16.gmra.mxu0 %v2726
        %v2808 = vpop.f32.mrf.mxu0
        %v2809 = vadd.f32 0.0, %v2808
        %v2810 = vpop.f32.mrf.mxu0
        %v2811 = vadd.f32 0.0, %v2810
        %2812 = vmatmul.bf16.gmra.mxu0 %v2729
        %v2813 = vpop.f32.mrf.mxu0
        %v2814 = vadd.f32 0.0, %v2813
        %v2815 = vpop.f32.mrf.mxu0
        %v2816 = vadd.f32 0.0, %v2815
        %2817 = vmatmul.bf16.gmra.mxu0 %v2732
        %v2818 = vpop.f32.mrf.mxu0
        %v2819 = vadd.f32 0.0, %v2818
        %v2820 = vpop.f32.mrf.mxu0
        %v2821 = vadd.f32 0.0, %v2820
        %2822 = vdwg.mxu0
        %v2823 = vadd.f32 %v2568, %v2744
        %v2824 = vadd.f32 %v2569, %v2746
        %v2825 = vadd.f32 %v2570, %v2749
        %v2826 = vadd.f32 %v2571, %v2751
        %v2827 = vadd.f32 %v2572, %v2754
        %v2828 = vadd.f32 %v2573, %v2756
        %v2829 = vadd.f32 %v2574, %v2759
        %v2830 = vadd.f32 %v2575, %v2761
        %v2831 = vadd.f32 %v2576, %v2764
        %v2832 = vadd.f32 %v2577, %v2766
        %v2833 = vadd.f32 %v2578, %v2769
        %v2834 = vadd.f32 %v2579, %v2771
        %v2835 = vadd.f32 %v2580, %v2774
        %v2836 = vadd.f32 %v2581, %v2776
        %v2837 = vadd.f32 %v2582, %v2779
        %v2838 = vadd.f32 %v2583, %v2781
        %v2839 = vadd.f32 %v2584, %v2784
        %v2840 = vadd.f32 %v2585, %v2786
        %v2841 = vadd.f32 %v2586, %v2789
        %v2842 = vadd.f32 %v2587, %v2791
        %v2843 = vadd.f32 %v2588, %v2794
        %v2844 = vadd.f32 %v2589, %v2796
        %v2845 = vadd.f32 %v2590, %v2799
        %v2846 = vadd.f32 %v2591, %v2801
        %v2847 = vadd.f32 %v2592, %v2804
        %v2848 = vadd.f32 %v2593, %v2806
        %v2849 = vadd.f32 %v2594, %v2809
        %v2850 = vadd.f32 %v2595, %v2811
        %v2851 = vadd.f32 %v2596, %v2814
        %v2852 = vadd.f32 %v2597, %v2816
        %v2853 = vadd.f32 %v2598, %v2819
        %v2854 = vadd.f32 %v2599, %v2821
        %v2856 = vsel %vm956, %v2188, 0.0
        %v2857 = vmul.f32 %v1351, %v711
        %v2858 = vmul.f32 %v1353, %v712
        %v2859 = vmul.f32 %v1355, %v713
        %v2860 = vmul.f32 %v1357, %v714
        %v2861 = vmul.f32 %v1359, %v715
        %v2862 = vmul.f32 %v1361, %v716
        %v2863 = vmul.f32 %v1363, %v717
        %v2864 = vmul.f32 %v1365, %v718
        %v2865 = vmul.f32 %v1367, %v719
        %v2866 = vmul.f32 %v1369, %v720
        %v2867 = vmul.f32 %v1371, %v721
        %v2868 = vmul.f32 %v1373, %v722
        %v2869 = vmul.f32 %v1375, %v723
        %v2870 = vmul.f32 %v1377, %v724
        %v2871 = vmul.f32 %v1379, %v725
        %v2872 = vmul.f32 %v1381, %v726
        %v2873 = vmul.f32 %v1383, %v727
        %v2874 = vmul.f32 %v1385, %v728
        %v2875 = vmul.f32 %v1387, %v729
        %v2876 = vmul.f32 %v1389, %v730
        %v2877 = vmul.f32 %v1391, %v731
        %v2878 = vmul.f32 %v1393, %v732
        %v2879 = vmul.f32 %v1395, %v733
        %v2880 = vmul.f32 %v1397, %v734
        %v2881 = vmul.f32 %v1399, %v735
        %v2882 = vmul.f32 %v1401, %v736
        %v2883 = vmul.f32 %v1403, %v737
        %v2884 = vmul.f32 %v1405, %v738
        %v2885 = vmul.f32 %v2187, %v739
        %v2886 = vmul.f32 %v2189, %v740
        %v2887 = vmul.f32 %v2856, %v741
        %v2888 = vmul.f32 %v742, 0.0
        %v2889 = vpack.c.bf16 %v2858, %v2857
        %v2890 = vpack.c.bf16 %v2860, %v2859
        %v2891 = vpack.c.bf16 %v2862, %v2861
        %v2892 = vpack.c.bf16 %v2864, %v2863
        %v2893 = vpack.c.bf16 %v2866, %v2865
        %v2894 = vpack.c.bf16 %v2868, %v2867
        %v2895 = vpack.c.bf16 %v2870, %v2869
        %v2896 = vpack.c.bf16 %v2872, %v2871
        %v2897 = vpack.c.bf16 %v2874, %v2873
        %v2898 = vpack.c.bf16 %v2876, %v2875
        %v2899 = vpack.c.bf16 %v2878, %v2877
        %v2900 = vpack.c.bf16 %v2880, %v2879
        %v2901 = vpack.c.bf16 %v2882, %v2881
        %v2902 = vpack.c.bf16 %v2884, %v2883
        %v2903 = vpack.c.bf16 %v2886, %v2885
        %v2904 = vpack.c.bf16 %v2888, %v2887
        %s2905 = scalar_lea.vmem %s6, 192
        %v2906 = vld [vmem:[%s2905] sm:$0xf]
        %v2907 = vld [vmem:[%s2905 + $0x4] sm:$0xf]
        %v2908 = vld [vmem:[%s2905 + $0x8] sm:$0xf]
        %v2909 = vld [vmem:[%s2905 + $0xc] sm:$0xf]
        %v2910 = vld [vmem:[%s2905 + $0x10] sm:$0xf]
        %v2911 = vld [vmem:[%s2905 + $0x14] sm:$0xf]
        %v2912 = vld [vmem:[%s2905 + $0x18] sm:$0xf]
        %v2913 = vld [vmem:[%s2905 + $0x1c] sm:$0xf]
        %v2922 = vunpack.c.l.b16 %v2906
        %v2923 = vunpack.c.l.b16 %v2907
        %v2924 = vunpack.c.l.b16 %v2908
        %v2925 = vunpack.c.l.b16 %v2909
        %v2926 = vunpack.c.l.b16 %v2910
        %v2927 = vunpack.c.l.b16 %v2911
        %v2928 = vunpack.c.l.b16 %v2912
        %v2929 = vunpack.c.l.b16 %v2913
        %v2930 = vpack.c.b16 %v2923, %v2922
        %v2931 = vpack.c.b16 %v2925, %v2924
        %v2932 = vpack.c.b16 %v2927, %v2926
        %v2933 = vpack.c.b16 %v2929, %v2928
        %v2939 = vsel %vm785, %v2889, 0
        %v2942 = vsel %vm785, %v2890, 0
        %v2945 = vsel %vm785, %v2891, 0
        %v2948 = vsel %vm785, %v2892, 0
        %v2951 = vsel %vm785, %v2893, 0
        %v2954 = vsel %vm785, %v2894, 0
        %v2957 = vsel %vm785, %v2895, 0
        %v2960 = vsel %vm785, %v2896, 0
        %v2963 = vsel %vm785, %v2897, 0
        %v2966 = vsel %vm785, %v2898, 0
        %v2969 = vsel %vm785, %v2899, 0
        %v2972 = vsel %vm785, %v2900, 0
        %v2975 = vsel %vm785, %v2901, 0
        %v2978 = vsel %vm785, %v2902, 0
        %v2981 = vsel %vm785, %v2903, 0
        %v2984 = vsel %vm785, %v2904, 0
        %2986 = vmatpush.bf16.msra.mxu0 0
        %2987 = vmatpush.bf16.msra.mxu0 0
        %2988 = vmatpush.bf16.msra.mxu0 0
        %2989 = vmatpush.bf16.msra.mxu0 0
        %2990 = vmatpush.bf16.msra.mxu0 %v2933
        %2991 = vmatpush.bf16.msra.mxu0 %v2932
        %2992 = vmatpush.bf16.msra.mxu0 %v2931
        %2993 = vmatpush.bf16.msra.mxu0 %v2930
        %2994 = vmatmul.bf16.gmra.mxu0 %v2939
        %v2995 = vpop.f32.mrf.mxu0
        %v2996 = vadd.f32 0.0, %v2995
        %v2997 = vpop.f32.mrf.mxu0
        %v2998 = vadd.f32 0.0, %v2997
        %2999 = vmatmul.bf16.gmra.mxu0 %v2942
        %v3000 = vpop.f32.mrf.mxu0
        %v3001 = vadd.f32 0.0, %v3000
        %v3002 = vpop.f32.mrf.mxu0
        %v3003 = vadd.f32 0.0, %v3002
        %3004 = vmatmul.bf16.gmra.mxu0 %v2945
        %v3005 = vpop.f32.mrf.mxu0
        %v3006 = vadd.f32 0.0, %v3005
        %v3007 = vpop.f32.mrf.mxu0
        %v3008 = vadd.f32 0.0, %v3007
        %3009 = vmatmul.bf16.gmra.mxu0 %v2948
        %v3010 = vpop.f32.mrf.mxu0
        %v3011 = vadd.f32 0.0, %v3010
        %v3012 = vpop.f32.mrf.mxu0
        %v3013 = vadd.f32 0.0, %v3012
        %3014 = vmatmul.bf16.gmra.mxu0 %v2951
        %v3015 = vpop.f32.mrf.mxu0
        %v3016 = vadd.f32 0.0, %v3015
        %v3017 = vpop.f32.mrf.mxu0
        %v3018 = vadd.f32 0.0, %v3017
        %3019 = vmatmul.bf16.gmra.mxu0 %v2954
        %v3020 = vpop.f32.mrf.mxu0
        %v3021 = vadd.f32 0.0, %v3020
        %v3022 = vpop.f32.mrf.mxu0
        %v3023 = vadd.f32 0.0, %v3022
        %3024 = vmatmul.bf16.gmra.mxu0 %v2957
        %v3025 = vpop.f32.mrf.mxu0
        %v3026 = vadd.f32 0.0, %v3025
        %v3027 = vpop.f32.mrf.mxu0
        %v3028 = vadd.f32 0.0, %v3027
        %3029 = vmatmul.bf16.gmra.mxu0 %v2960
        %v3030 = vpop.f32.mrf.mxu0
        %v3031 = vadd.f32 0.0, %v3030
        %v3032 = vpop.f32.mrf.mxu0
        %v3033 = vadd.f32 0.0, %v3032
        %3034 = vmatmul.bf16.gmra.mxu0 %v2963
        %v3035 = vpop.f32.mrf.mxu0
        %v3036 = vadd.f32 0.0, %v3035
        %v3037 = vpop.f32.mrf.mxu0
        %v3038 = vadd.f32 0.0, %v3037
        %3039 = vmatmul.bf16.gmra.mxu0 %v2966
        %v3040 = vpop.f32.mrf.mxu0
        %v3041 = vadd.f32 0.0, %v3040
        %v3042 = vpop.f32.mrf.mxu0
        %v3043 = vadd.f32 0.0, %v3042
        %3044 = vmatmul.bf16.gmra.mxu0 %v2969
        %v3045 = vpop.f32.mrf.mxu0
        %v3046 = vadd.f32 0.0, %v3045
        %v3047 = vpop.f32.mrf.mxu0
        %v3048 = vadd.f32 0.0, %v3047
        %3049 = vmatmul.bf16.gmra.mxu0 %v2972
        %v3050 = vpop.f32.mrf.mxu0
        %v3051 = vadd.f32 0.0, %v3050
        %v3052 = vpop.f32.mrf.mxu0
        %v3053 = vadd.f32 0.0, %v3052
        %3054 = vmatmul.bf16.gmra.mxu0 %v2975
        %v3055 = vpop.f32.mrf.mxu0
        %v3056 = vadd.f32 0.0, %v3055
        %v3057 = vpop.f32.mrf.mxu0
        %v3058 = vadd.f32 0.0, %v3057
        %3059 = vmatmul.bf16.gmra.mxu0 %v2978
        %v3060 = vpop.f32.mrf.mxu0
        %v3061 = vadd.f32 0.0, %v3060
        %v3062 = vpop.f32.mrf.mxu0
        %v3063 = vadd.f32 0.0, %v3062
        %3064 = vmatmul.bf16.gmra.mxu0 %v2981
        %v3065 = vpop.f32.mrf.mxu0
        %v3066 = vadd.f32 0.0, %v3065
        %v3067 = vpop.f32.mrf.mxu0
        %v3068 = vadd.f32 0.0, %v3067
        %3069 = vmatmul.bf16.gmra.mxu0 %v2984
        %v3070 = vpop.f32.mrf.mxu0
        %v3071 = vadd.f32 0.0, %v3070
        %v3072 = vpop.f32.mrf.mxu0
        %v3073 = vadd.f32 0.0, %v3072
        %3074 = vdwg.mxu0
        %v3075 = vadd.f32 %v2823, %v2996
        %v3076 = vadd.f32 %v2824, %v2998
        %v3077 = vadd.f32 %v2825, %v3001
        %v3078 = vadd.f32 %v2826, %v3003
        %v3079 = vadd.f32 %v2827, %v3006
        %v3080 = vadd.f32 %v2828, %v3008
        %v3081 = vadd.f32 %v2829, %v3011
        %v3082 = vadd.f32 %v2830, %v3013
        %v3083 = vadd.f32 %v2831, %v3016
        %v3084 = vadd.f32 %v2832, %v3018
        %v3085 = vadd.f32 %v2833, %v3021
        %v3086 = vadd.f32 %v2834, %v3023
        %v3087 = vadd.f32 %v2835, %v3026
        %v3088 = vadd.f32 %v2836, %v3028
        %v3089 = vadd.f32 %v2837, %v3031
        %v3090 = vadd.f32 %v2838, %v3033
        %v3091 = vadd.f32 %v2839, %v3036
        %v3092 = vadd.f32 %v2840, %v3038
        %v3093 = vadd.f32 %v2841, %v3041
        %v3094 = vadd.f32 %v2842, %v3043
        %v3095 = vadd.f32 %v2843, %v3046
        %v3096 = vadd.f32 %v2844, %v3048
        %v3097 = vadd.f32 %v2845, %v3051
        %v3098 = vadd.f32 %v2846, %v3053
        %v3099 = vadd.f32 %v2847, %v3056
        %v3100 = vadd.f32 %v2848, %v3058
        %v3101 = vadd.f32 %v2849, %v3061
        %v3102 = vadd.f32 %v2850, %v3063
        %v3103 = vadd.f32 %v2851, %v3066
        %v3104 = vadd.f32 %v2852, %v3068
        %v3105 = vadd.f32 %v2853, %v3071
        %v3106 = vadd.f32 %v2854, %v3073
        %s3107 = scalar_lea.vmem %s6, 224
        %v3108 = vld [vmem:[%s3107] sm:$0xf]
        %v3109 = vld [vmem:[%s3107 + $0x4] sm:$0xf]
        %v3110 = vld [vmem:[%s3107 + $0x8] sm:$0xf]
        %v3111 = vld [vmem:[%s3107 + $0xc] sm:$0xf]
        %v3112 = vld [vmem:[%s3107 + $0x10] sm:$0xf]
        %v3113 = vld [vmem:[%s3107 + $0x14] sm:$0xf]
        %v3114 = vld [vmem:[%s3107 + $0x18] sm:$0xf]
        %v3115 = vld [vmem:[%s3107 + $0x1c] sm:$0xf]
        %v3124 = vunpack.c.l.b16 %v3108
        %v3125 = vunpack.c.l.b16 %v3109
        %v3126 = vunpack.c.l.b16 %v3110
        %v3127 = vunpack.c.l.b16 %v3111
        %v3128 = vunpack.c.l.b16 %v3112
        %v3129 = vunpack.c.l.b16 %v3113
        %v3130 = vunpack.c.l.b16 %v3114
        %v3131 = vunpack.c.l.b16 %v3115
        %v3132 = vpack.c.b16 %v3125, %v3124
        %v3133 = vpack.c.b16 %v3127, %v3126
        %v3134 = vpack.c.b16 %v3129, %v3128
        %v3135 = vpack.c.b16 %v3131, %v3130
        %3140 = vmatpush.bf16.msra.mxu0 0
        %3141 = vmatpush.bf16.msra.mxu0 0
        %3142 = vmatpush.bf16.msra.mxu0 0
        %3143 = vmatpush.bf16.msra.mxu0 0
        %3144 = vmatpush.bf16.msra.mxu0 %v3135
        %3145 = vmatpush.bf16.msra.mxu0 %v3134
        %3146 = vmatpush.bf16.msra.mxu0 %v3133
        %3147 = vmatpush.bf16.msra.mxu0 %v3132
        %3148 = vmatmul.bf16.gmra.mxu0 %v1549
        %v3149 = vpop.f32.mrf.mxu0
        %v3150 = vadd.f32 0.0, %v3149
        %v3151 = vpop.f32.mrf.mxu0
        %v3152 = vadd.f32 0.0, %v3151
        %3153 = vmatmul.bf16.gmra.mxu0 %v1552
        %v3154 = vpop.f32.mrf.mxu0
        %v3155 = vadd.f32 0.0, %v3154
        %v3156 = vpop.f32.mrf.mxu0
        %v3157 = vadd.f32 0.0, %v3156
        %3158 = vmatmul.bf16.gmra.mxu0 %v1555
        %v3159 = vpop.f32.mrf.mxu0
        %v3160 = vadd.f32 0.0, %v3159
        %v3161 = vpop.f32.mrf.mxu0
        %v3162 = vadd.f32 0.0, %v3161
        %3163 = vmatmul.bf16.gmra.mxu0 %v1558
        %v3164 = vpop.f32.mrf.mxu0
        %v3165 = vadd.f32 0.0, %v3164
        %v3166 = vpop.f32.mrf.mxu0
        %v3167 = vadd.f32 0.0, %v3166
        %3168 = vmatmul.bf16.gmra.mxu0 %v1561
        %v3169 = vpop.f32.mrf.mxu0
        %v3170 = vadd.f32 0.0, %v3169
        %v3171 = vpop.f32.mrf.mxu0
        %v3172 = vadd.f32 0.0, %v3171
        %3173 = vmatmul.bf16.gmra.mxu0 %v1564
        %v3174 = vpop.f32.mrf.mxu0
        %v3175 = vadd.f32 0.0, %v3174
        %v3176 = vpop.f32.mrf.mxu0
        %v3177 = vadd.f32 0.0, %v3176
        %3178 = vmatmul.bf16.gmra.mxu0 %v1567
        %v3179 = vpop.f32.mrf.mxu0
        %v3180 = vadd.f32 0.0, %v3179
        %v3181 = vpop.f32.mrf.mxu0
        %v3182 = vadd.f32 0.0, %v3181
        %3183 = vmatmul.bf16.gmra.mxu0 %v1570
        %v3184 = vpop.f32.mrf.mxu0
        %v3185 = vadd.f32 0.0, %v3184
        %v3186 = vpop.f32.mrf.mxu0
        %v3187 = vadd.f32 0.0, %v3186
        %3188 = vmatmul.bf16.gmra.mxu0 %v1573
        %v3189 = vpop.f32.mrf.mxu0
        %v3190 = vadd.f32 0.0, %v3189
        %v3191 = vpop.f32.mrf.mxu0
        %v3192 = vadd.f32 0.0, %v3191
        %3193 = vmatmul.bf16.gmra.mxu0 %v1576
        %v3194 = vpop.f32.mrf.mxu0
        %v3195 = vadd.f32 0.0, %v3194
        %v3196 = vpop.f32.mrf.mxu0
        %v3197 = vadd.f32 0.0, %v3196
        %3198 = vmatmul.bf16.gmra.mxu0 %v1579
        %v3199 = vpop.f32.mrf.mxu0
        %v3200 = vadd.f32 0.0, %v3199
        %v3201 = vpop.f32.mrf.mxu0
        %v3202 = vadd.f32 0.0, %v3201
        %3203 = vmatmul.bf16.gmra.mxu0 %v1582
        %v3204 = vpop.f32.mrf.mxu0
        %v3205 = vadd.f32 0.0, %v3204
        %v3206 = vpop.f32.mrf.mxu0
        %v3207 = vadd.f32 0.0, %v3206
        %3208 = vmatmul.bf16.gmra.mxu0 %v1585
        %v3209 = vpop.f32.mrf.mxu0
        %v3210 = vadd.f32 0.0, %v3209
        %v3211 = vpop.f32.mrf.mxu0
        %v3212 = vadd.f32 0.0, %v3211
        %3213 = vmatmul.bf16.gmra.mxu0 %v1588
        %v3214 = vpop.f32.mrf.mxu0
        %v3215 = vadd.f32 0.0, %v3214
        %v3216 = vpop.f32.mrf.mxu0
        %v3217 = vadd.f32 0.0, %v3216
        %3218 = vmatmul.bf16.gmra.mxu0 %v2477
        %v3219 = vpop.f32.mrf.mxu0
        %v3220 = vadd.f32 0.0, %v3219
        %v3221 = vpop.f32.mrf.mxu0
        %v3222 = vadd.f32 0.0, %v3221
        %3223 = vmatmul.bf16.gmra.mxu0 %v1543
        %v3224 = vpop.f32.mrf.mxu0
        %v3225 = vadd.f32 0.0, %v3224
        %v3226 = vpop.f32.mrf.mxu0
        %v3227 = vadd.f32 0.0, %v3226
        %3228 = vdwg.mxu0
        %v3229 = vadd.f32 %v3075, %v3150
        %v3230 = vadd.f32 %v3076, %v3152
        %v3231 = vadd.f32 %v3077, %v3155
        %v3232 = vadd.f32 %v3078, %v3157
        %v3233 = vadd.f32 %v3079, %v3160
        %v3234 = vadd.f32 %v3080, %v3162
        %v3235 = vadd.f32 %v3081, %v3165
        %v3236 = vadd.f32 %v3082, %v3167
        %v3237 = vadd.f32 %v3083, %v3170
        %v3238 = vadd.f32 %v3084, %v3172
        %v3239 = vadd.f32 %v3085, %v3175
        %v3240 = vadd.f32 %v3086, %v3177
        %v3241 = vadd.f32 %v3087, %v3180
        %v3242 = vadd.f32 %v3088, %v3182
        %v3243 = vadd.f32 %v3089, %v3185
        %v3244 = vadd.f32 %v3090, %v3187
        %v3245 = vadd.f32 %v3091, %v3190
        %v3246 = vadd.f32 %v3092, %v3192
        %v3247 = vadd.f32 %v3093, %v3195
        %v3248 = vadd.f32 %v3094, %v3197
        %v3249 = vadd.f32 %v3095, %v3200
        %v3250 = vadd.f32 %v3096, %v3202
        %v3251 = vadd.f32 %v3097, %v3205
        %v3252 = vadd.f32 %v3098, %v3207
        %v3253 = vadd.f32 %v3099, %v3210
        %v3254 = vadd.f32 %v3100, %v3212
        %v3255 = vadd.f32 %v3101, %v3215
        %v3256 = vadd.f32 %v3102, %v3217
        %v3257 = vadd.f32 %v3103, %v3220
        %v3258 = vadd.f32 %v3104, %v3222
        %v3259 = vadd.f32 %v3105, %v3225
        %v3260 = vadd.f32 %v3106, %v3227
        %v3261 = vmul.f32 %v1848, %v743
        %v3262 = vmul.f32 %v1850, %v744
        %v3263 = vmul.f32 %v1852, %v745
        %v3264 = vmul.f32 %v1854, %v746
        %v3265 = vmul.f32 %v1856, %v747
        %v3266 = vmul.f32 %v1858, %v748
        %v3267 = vmul.f32 %v1860, %v749
        %v3268 = vmul.f32 %v1862, %v750
        %v3269 = vmul.f32 %v1864, %v751
        %v3270 = vmul.f32 %v1866, %v752
        %v3271 = vmul.f32 %v1868, %v753
        %v3272 = vmul.f32 %v1870, %v754
        %v3273 = vmul.f32 %v1872, %v755
        %v3274 = vmul.f32 %v1874, %v756
        %v3275 = vmul.f32 %v1876, %v757
        %v3276 = vmul.f32 %v1878, %v758
        %v3277 = vmul.f32 %v1880, %v759
        %v3278 = vmul.f32 %v1882, %v760
        %v3279 = vmul.f32 %v1884, %v761
        %v3280 = vmul.f32 %v1886, %v762
        %v3281 = vmul.f32 %v1888, %v763
        %v3282 = vmul.f32 %v1890, %v764
        %v3283 = vmul.f32 %v1892, %v765
        %v3284 = vmul.f32 %v1894, %v766
        %v3285 = vmul.f32 %v1896, %v767
        %v3286 = vmul.f32 %v1898, %v768
        %v3287 = vmul.f32 %v1900, %v769
        %v3288 = vmul.f32 %v1902, %v770
        %v3289 = vmul.f32 %v2601, %v771
        %v3290 = vmul.f32 %v2604, %v772
        %v3291 = vmul.f32 %v773, 0.0
        %v3292 = vmul.f32 %v774, 0.0
        %v3293 = vpack.c.bf16 %v3262, %v3261
        %v3294 = vpack.c.bf16 %v3264, %v3263
        %v3295 = vpack.c.bf16 %v3266, %v3265
        %v3296 = vpack.c.bf16 %v3268, %v3267
        %v3297 = vpack.c.bf16 %v3270, %v3269
        %v3298 = vpack.c.bf16 %v3272, %v3271
        %v3299 = vpack.c.bf16 %v3274, %v3273
        %v3300 = vpack.c.bf16 %v3276, %v3275
        %v3301 = vpack.c.bf16 %v3278, %v3277
        %v3302 = vpack.c.bf16 %v3280, %v3279
        %v3303 = vpack.c.bf16 %v3282, %v3281
        %v3304 = vpack.c.bf16 %v3284, %v3283
        %v3305 = vpack.c.bf16 %v3286, %v3285
        %v3306 = vpack.c.bf16 %v3288, %v3287
        %v3307 = vpack.c.bf16 %v3290, %v3289
        %v3308 = vpack.c.bf16 %v3292, %v3291
        %s3309 = scalar_lea.vmem %s6, 256
        %v3310 = vld [vmem:[%s3309] sm:$0xf]
        %v3311 = vld [vmem:[%s3309 + $0x4] sm:$0xf]
        %v3312 = vld [vmem:[%s3309 + $0x8] sm:$0xf]
        %v3313 = vld [vmem:[%s3309 + $0xc] sm:$0xf]
        %v3314 = vld [vmem:[%s3309 + $0x10] sm:$0xf]
        %v3315 = vld [vmem:[%s3309 + $0x14] sm:$0xf]
        %v3316 = vld [vmem:[%s3309 + $0x18] sm:$0xf]
        %v3317 = vld [vmem:[%s3309 + $0x1c] sm:$0xf]
        %v3326 = vunpack.c.l.b16 %v3310
        %v3327 = vunpack.c.l.b16 %v3311
        %v3328 = vunpack.c.l.b16 %v3312
        %v3329 = vunpack.c.l.b16 %v3313
        %v3330 = vunpack.c.l.b16 %v3314
        %v3331 = vunpack.c.l.b16 %v3315
        %v3332 = vunpack.c.l.b16 %v3316
        %v3333 = vunpack.c.l.b16 %v3317
        %v3334 = vpack.c.b16 %v3327, %v3326
        %v3335 = vpack.c.b16 %v3329, %v3328
        %v3336 = vpack.c.b16 %v3331, %v3330
        %v3337 = vpack.c.b16 %v3333, %v3332
        %v3343 = vsel %vm785, %v3293, 0
        %v3346 = vsel %vm785, %v3294, 0
        %v3349 = vsel %vm785, %v3295, 0
        %v3352 = vsel %vm785, %v3296, 0
        %v3355 = vsel %vm785, %v3297, 0
        %v3358 = vsel %vm785, %v3298, 0
        %v3361 = vsel %vm785, %v3299, 0
        %v3364 = vsel %vm785, %v3300, 0
        %v3367 = vsel %vm785, %v3301, 0
        %v3370 = vsel %vm785, %v3302, 0
        %v3373 = vsel %vm785, %v3303, 0
        %v3376 = vsel %vm785, %v3304, 0
        %v3379 = vsel %vm785, %v3305, 0
        %v3382 = vsel %vm785, %v3306, 0
        %v3385 = vsel %vm785, %v3307, 0
        %v3388 = vsel %vm785, %v3308, 0
        %3390 = vmatpush.bf16.msra.mxu0 0
        %3391 = vmatpush.bf16.msra.mxu0 0
        %3392 = vmatpush.bf16.msra.mxu0 0
        %3393 = vmatpush.bf16.msra.mxu0 0
        %3394 = vmatpush.bf16.msra.mxu0 %v3337
        %3395 = vmatpush.bf16.msra.mxu0 %v3336
        %3396 = vmatpush.bf16.msra.mxu0 %v3335
        %3397 = vmatpush.bf16.msra.mxu0 %v3334
        %3398 = vmatmul.bf16.gmra.mxu0 %v3343
        %v3399 = vpop.f32.mrf.mxu0
        %v3400 = vadd.f32 0.0, %v3399
        %v3401 = vpop.f32.mrf.mxu0
        %v3402 = vadd.f32 0.0, %v3401
        %3403 = vmatmul.bf16.gmra.mxu0 %v3346
        %v3404 = vpop.f32.mrf.mxu0
        %v3405 = vadd.f32 0.0, %v3404
        %v3406 = vpop.f32.mrf.mxu0
        %v3407 = vadd.f32 0.0, %v3406
        %3408 = vmatmul.bf16.gmra.mxu0 %v3349
        %v3409 = vpop.f32.mrf.mxu0
        %v3410 = vadd.f32 0.0, %v3409
        %v3411 = vpop.f32.mrf.mxu0
        %v3412 = vadd.f32 0.0, %v3411
        %3413 = vmatmul.bf16.gmra.mxu0 %v3352
        %v3414 = vpop.f32.mrf.mxu0
        %v3415 = vadd.f32 0.0, %v3414
        %v3416 = vpop.f32.mrf.mxu0
        %v3417 = vadd.f32 0.0, %v3416
        %3418 = vmatmul.bf16.gmra.mxu0 %v3355
        %v3419 = vpop.f32.mrf.mxu0
        %v3420 = vadd.f32 0.0, %v3419
        %v3421 = vpop.f32.mrf.mxu0
        %v3422 = vadd.f32 0.0, %v3421
        %3423 = vmatmul.bf16.gmra.mxu0 %v3358
        %v3424 = vpop.f32.mrf.mxu0
        %v3425 = vadd.f32 0.0, %v3424
        %v3426 = vpop.f32.mrf.mxu0
        %v3427 = vadd.f32 0.0, %v3426
        %3428 = vmatmul.bf16.gmra.mxu0 %v3361
        %v3429 = vpop.f32.mrf.mxu0
        %v3430 = vadd.f32 0.0, %v3429
        %v3431 = vpop.f32.mrf.mxu0
        %v3432 = vadd.f32 0.0, %v3431
        %3433 = vmatmul.bf16.gmra.mxu0 %v3364
        %v3434 = vpop.f32.mrf.mxu0
        %v3435 = vadd.f32 0.0, %v3434
        %v3436 = vpop.f32.mrf.mxu0
        %v3437 = vadd.f32 0.0, %v3436
        %3438 = vmatmul.bf16.gmra.mxu0 %v3367
        %v3439 = vpop.f32.mrf.mxu0
        %v3440 = vadd.f32 0.0, %v3439
        %v3441 = vpop.f32.mrf.mxu0
        %v3442 = vadd.f32 0.0, %v3441
        %3443 = vmatmul.bf16.gmra.mxu0 %v3370
        %v3444 = vpop.f32.mrf.mxu0
        %v3445 = vadd.f32 0.0, %v3444
        %v3446 = vpop.f32.mrf.mxu0
        %v3447 = vadd.f32 0.0, %v3446
        %3448 = vmatmul.bf16.gmra.mxu0 %v3373
        %v3449 = vpop.f32.mrf.mxu0
        %v3450 = vadd.f32 0.0, %v3449
        %v3451 = vpop.f32.mrf.mxu0
        %v3452 = vadd.f32 0.0, %v3451
        %3453 = vmatmul.bf16.gmra.mxu0 %v3376
        %v3454 = vpop.f32.mrf.mxu0
        %v3455 = vadd.f32 0.0, %v3454
        %v3456 = vpop.f32.mrf.mxu0
        %v3457 = vadd.f32 0.0, %v3456
        %3458 = vmatmul.bf16.gmra.mxu0 %v3379
        %v3459 = vpop.f32.mrf.mxu0
        %v3460 = vadd.f32 0.0, %v3459
        %v3461 = vpop.f32.mrf.mxu0
        %v3462 = vadd.f32 0.0, %v3461
        %3463 = vmatmul.bf16.gmra.mxu0 %v3382
        %v3464 = vpop.f32.mrf.mxu0
        %v3465 = vadd.f32 0.0, %v3464
        %v3466 = vpop.f32.mrf.mxu0
        %v3467 = vadd.f32 0.0, %v3466
        %3468 = vmatmul.bf16.gmra.mxu0 %v3385
        %v3469 = vpop.f32.mrf.mxu0
        %v3470 = vadd.f32 0.0, %v3469
        %v3471 = vpop.f32.mrf.mxu0
        %v3472 = vadd.f32 0.0, %v3471
        %3473 = vmatmul.bf16.gmra.mxu0 %v3388
        %v3474 = vpop.f32.mrf.mxu0
        %v3475 = vadd.f32 0.0, %v3474
        %v3476 = vpop.f32.mrf.mxu0
        %v3477 = vadd.f32 0.0, %v3476
        %3478 = vdwg.mxu0
        %v3479 = vadd.f32 %v3229, %v3400
        %v3480 = vadd.f32 %v3230, %v3402
        %v3481 = vadd.f32 %v3231, %v3405
        %v3482 = vadd.f32 %v3232, %v3407
        %v3483 = vadd.f32 %v3233, %v3410
        %v3484 = vadd.f32 %v3234, %v3412
        %v3485 = vadd.f32 %v3235, %v3415
        %v3486 = vadd.f32 %v3236, %v3417
        %v3487 = vadd.f32 %v3237, %v3420
        %v3488 = vadd.f32 %v3238, %v3422
        %v3489 = vadd.f32 %v3239, %v3425
        %v3490 = vadd.f32 %v3240, %v3427
        %v3491 = vadd.f32 %v3241, %v3430
        %v3492 = vadd.f32 %v3242, %v3432
        %v3493 = vadd.f32 %v3243, %v3435
        %v3494 = vadd.f32 %v3244, %v3437
        %v3495 = vadd.f32 %v3245, %v3440
        %v3496 = vadd.f32 %v3246, %v3442
        %v3497 = vadd.f32 %v3247, %v3445
        %v3498 = vadd.f32 %v3248, %v3447
        %v3499 = vadd.f32 %v3249, %v3450
        %v3500 = vadd.f32 %v3250, %v3452
        %v3501 = vadd.f32 %v3251, %v3455
        %v3502 = vadd.f32 %v3252, %v3457
        %v3503 = vadd.f32 %v3253, %v3460
        %v3504 = vadd.f32 %v3254, %v3462
        %v3505 = vadd.f32 %v3255, %v3465
        %v3506 = vadd.f32 %v3256, %v3467
        %v3507 = vadd.f32 %v3257, %v3470
        %v3508 = vadd.f32 %v3258, %v3472
        %v3509 = vadd.f32 %v3259, %v3475
        %v3510 = vadd.f32 %v3260, %v3477
        %v3511 = vld [vmem:[%s7] sm:$0x1]
        %v3513 = vperm.slane %v3511, 0
        %v3515 = vadd.f32 %v3479, %v3513
        %v3516 = vadd.f32 %v3480, %v3513
        %v3517 = vadd.f32 %v3481, %v3513
        %v3518 = vadd.f32 %v3482, %v3513
        %v3519 = vadd.f32 %v3483, %v3513
        %v3520 = vadd.f32 %v3484, %v3513
        %v3521 = vadd.f32 %v3485, %v3513
        %v3522 = vadd.f32 %v3486, %v3513
        %v3523 = vadd.f32 %v3487, %v3513
        %v3524 = vadd.f32 %v3488, %v3513
        %v3525 = vadd.f32 %v3489, %v3513
        %v3526 = vadd.f32 %v3490, %v3513
        %v3527 = vadd.f32 %v3491, %v3513
        %v3528 = vadd.f32 %v3492, %v3513
        %v3529 = vadd.f32 %v3493, %v3513
        %v3530 = vadd.f32 %v3494, %v3513
        %v3531 = vadd.f32 %v3495, %v3513
        %v3532 = vadd.f32 %v3496, %v3513
        %v3533 = vadd.f32 %v3497, %v3513
        %v3534 = vadd.f32 %v3498, %v3513
        %v3535 = vadd.f32 %v3499, %v3513
        %v3536 = vadd.f32 %v3500, %v3513
        %v3537 = vadd.f32 %v3501, %v3513
        %v3538 = vadd.f32 %v3502, %v3513
        %v3539 = vadd.f32 %v3503, %v3513
        %v3540 = vadd.f32 %v3504, %v3513
        %v3541 = vadd.f32 %v3505, %v3513
        %v3542 = vadd.f32 %v3506, %v3513
        %v3543 = vadd.f32 %v3507, %v3513
        %v3544 = vadd.f32 %v3508, %v3513
        %v3545 = vadd.f32 %v3509, %v3513
        %v3546 = vadd.f32 %v3510, %v3513
        %v3547 = vld [vmem:[%s8] sm:$0x1]
        %v3548 = vld [vmem:[%s9] sm:$0x1]
        %v3549 = vld [vmem:[%s10] sm:$0xff]
        %v3550 = vld [vmem:[%s10 + $0x8] sm:$0xff]
        %v3551 = vld [vmem:[%s10 + $0x10] sm:$0xff]
        %v3552 = vld [vmem:[%s10 + $0x18] sm:$0xff]
        %v3553 = vld [vmem:[%s10 + $0x20] sm:$0xff]
        %v3554 = vld [vmem:[%s10 + $0x28] sm:$0xff]
        %v3555 = vld [vmem:[%s10 + $0x30] sm:$0xff]
        %v3556 = vld [vmem:[%s10 + $0x38] sm:$0xff]
        %v3557 = vld [vmem:[%s10 + $0x40] sm:$0xff]
        %v3558 = vld [vmem:[%s10 + $0x48] sm:$0xff]
        %v3559 = vld [vmem:[%s10 + $0x50] sm:$0xff]
        %v3560 = vld [vmem:[%s10 + $0x58] sm:$0xff]
        %v3561 = vld [vmem:[%s10 + $0x60] sm:$0xff]
        %v3562 = vld [vmem:[%s10 + $0x68] sm:$0xff]
        %v3563 = vld [vmem:[%s10 + $0x70] sm:$0xff]
        %v3564 = vld [vmem:[%s10 + $0x78] sm:$0xff]
        %v3565 = vadd.f32 %v3515, %v3516
        %v3566 = vadd.f32 %v3565, %v3517
        %v3567 = vadd.f32 %v3566, %v3518
        %v3568 = vadd.f32 %v3567, %v3519
        %v3569 = vadd.f32 %v3568, %v3520
        %v3570 = vadd.f32 %v3569, %v3521
        %v3571 = vadd.f32 %v3570, %v3522
        %v3572 = vadd.f32 %v3571, %v3523
        %v3573 = vadd.f32 %v3572, %v3524
        %v3574 = vadd.f32 %v3573, %v3525
        %v3575 = vadd.f32 %v3574, %v3526
        %v3576 = vadd.f32 %v3575, %v3527
        %v3577 = vadd.f32 %v3576, %v3528
        %v3578 = vadd.f32 %v3577, %v3529
        %v3579 = vadd.f32 %v3578, %v3530
        %v3580 = vadd.f32 %v3579, %v3531
        %v3581 = vadd.f32 %v3580, %v3532
        %v3582 = vadd.f32 %v3581, %v3533
        %v3583 = vadd.f32 %v3582, %v3534
        %v3584 = vadd.f32 %v3583, %v3535
        %v3585 = vadd.f32 %v3584, %v3536
        %v3586 = vadd.f32 %v3585, %v3537
        %v3587 = vadd.f32 %v3586, %v3538
        %v3588 = vadd.f32 %v3587, %v3539
        %v3589 = vadd.f32 %v3588, %v3540
        %v3590 = vadd.f32 %v3589, %v3541
        %v3591 = vadd.f32 %v3590, %v3542
        %v3592 = vadd.f32 %v3591, %v3543
        %v3593 = vadd.f32 %v3592, %v3544
        %v3594 = vadd.f32 %v3593, %v3545
        %v3595 = vadd.f32 %v3594, %v3546
        %v3596 = vrot.slane %v3595, 4
        %v3597 = vadd.f32 %v3595, %v3596
        %v3598 = vrot.slane %v3597, 2
        %v3599 = vadd.f32 %v3597, %v3598
        %v3600 = vrot.slane %v3599, 1
        %v3601 = vadd.f32 %v3599, %v3600
        %v3602 = vmul.f32 %v3515, %v3515
        %v3603 = vmul.f32 %v3516, %v3516
        %v3604 = vmul.f32 %v3517, %v3517
        %v3605 = vmul.f32 %v3518, %v3518
        %v3606 = vmul.f32 %v3519, %v3519
        %v3607 = vmul.f32 %v3520, %v3520
        %v3608 = vmul.f32 %v3521, %v3521
        %v3609 = vmul.f32 %v3522, %v3522
        %v3610 = vmul.f32 %v3523, %v3523
        %v3611 = vmul.f32 %v3524, %v3524
        %v3612 = vmul.f32 %v3525, %v3525
        %v3613 = vmul.f32 %v3526, %v3526
        %v3614 = vmul.f32 %v3527, %v3527
        %v3615 = vmul.f32 %v3528, %v3528
        %v3616 = vmul.f32 %v3529, %v3529
        %v3617 = vmul.f32 %v3530, %v3530
        %v3618 = vmul.f32 %v3531, %v3531
        %v3619 = vmul.f32 %v3532, %v3532
        %v3620 = vmul.f32 %v3533, %v3533
        %v3621 = vmul.f32 %v3534, %v3534
        %v3622 = vmul.f32 %v3535, %v3535
        %v3623 = vmul.f32 %v3536, %v3536
        %v3624 = vmul.f32 %v3537, %v3537
        %v3625 = vmul.f32 %v3538, %v3538
        %v3626 = vmul.f32 %v3539, %v3539
        %v3627 = vmul.f32 %v3540, %v3540
        %v3628 = vmul.f32 %v3541, %v3541
        %v3629 = vmul.f32 %v3542, %v3542
        %v3630 = vmul.f32 %v3543, %v3543
        %v3631 = vmul.f32 %v3544, %v3544
        %v3632 = vmul.f32 %v3545, %v3545
        %v3633 = vmul.f32 %v3546, %v3546
        %v3634 = vadd.f32 %v3602, %v3603
        %v3635 = vadd.f32 %v3634, %v3604
        %v3636 = vadd.f32 %v3635, %v3605
        %v3637 = vadd.f32 %v3636, %v3606
        %v3638 = vadd.f32 %v3637, %v3607
        %v3639 = vadd.f32 %v3638, %v3608
        %v3640 = vadd.f32 %v3639, %v3609
        %v3641 = vadd.f32 %v3640, %v3610
        %v3642 = vadd.f32 %v3641, %v3611
        %v3643 = vadd.f32 %v3642, %v3612
        %v3644 = vadd.f32 %v3643, %v3613
        %v3645 = vadd.f32 %v3644, %v3614
        %v3646 = vadd.f32 %v3645, %v3615
        %v3647 = vadd.f32 %v3646, %v3616
        %v3648 = vadd.f32 %v3647, %v3617
        %v3649 = vadd.f32 %v3648, %v3618
        %v3650 = vadd.f32 %v3649, %v3619
        %v3651 = vadd.f32 %v3650, %v3620
        %v3652 = vadd.f32 %v3651, %v3621
        %v3653 = vadd.f32 %v3652, %v3622
        %v3654 = vadd.f32 %v3653, %v3623
        %v3655 = vadd.f32 %v3654, %v3624
        %v3656 = vadd.f32 %v3655, %v3625
        %v3657 = vadd.f32 %v3656, %v3626
        %v3658 = vadd.f32 %v3657, %v3627
        %v3659 = vadd.f32 %v3658, %v3628
        %v3660 = vadd.f32 %v3659, %v3629
        %v3661 = vadd.f32 %v3660, %v3630
        %v3662 = vadd.f32 %v3661, %v3631
        %v3663 = vadd.f32 %v3662, %v3632
        %v3664 = vadd.f32 %v3663, %v3633
        %v3665 = vrot.slane %v3664, 4
        %v3666 = vadd.f32 %v3664, %v3665
        %v3667 = vrot.slane %v3666, 2
        %v3668 = vadd.f32 %v3666, %v3667
        %v3669 = vrot.slane %v3668, 1
        %v3670 = vadd.f32 %v3668, %v3669
        %v3671 = vsel %vm956, %v3601, %v3670
        %3672 = vmatpush.msra.mxu0 %v3564
        %3673 = vmatpush.msra.mxu0 %v3563
        %3674 = vmatpush.msra.mxu0 %v3562
        %3675 = vmatpush.msra.mxu0 %v3561
        %3676 = vmatpush.msra.mxu0 %v3560
        %3677 = vmatpush.msra.mxu0 %v3559
        %3678 = vmatpush.msra.mxu0 %v3558
        %3679 = vmatpush.msra.mxu0 %v3557
        %3680 = vmatpush.msra.mxu0 %v3556
        %3681 = vmatpush.msra.mxu0 %v3555
        %3682 = vmatpush.msra.mxu0 %v3554
        %3683 = vmatpush.msra.mxu0 %v3553
        %3684 = vmatpush.msra.mxu0 %v3552
        %3685 = vmatpush.msra.mxu0 %v3551
        %3686 = vmatpush.msra.mxu0 %v3550
        %3687 = vmatpush.msra.mxu0 %v3549
        %3688 = vmatmul.f32.gmra.mxu0 %v3671
        %v3689 = vpop.f32.mrf.mxu0
        %v3690 = vadd.f32 0.0, %v3689
        %3691 = vdwg.mxu0
        %v3692 = vmul.f32 %v3690, 0.0009765625
        %v3693 = vmul.f32 %v3692, %v3692
        %v3695 = vrot.slane %v3693, 7
        %v3697 = vsub.f32 %v3692, %v3695
        %v3698 = vmax.f32 %v3697, 0.0
        %v3699 = vadd.f32 %v3698, 1e-05
        %v3700 = vrsqrt.pop %v3699
        %v3701 = vmul.f32 %v3700, %v3699
        %v3702 = vmul.f32 %v3701, %v3700
        %v3703 = vmul.f32 0.5, %v3702
        %v3704 = vsub.f32 1.5, %v3703
        %v3705 = vmul.f32 %v3700, %v3704
        %vm3706 = vweird.f32 %v3699
        %vm3707 = vweird.f32 %v3700
        %vm3708 = vmor %vm3706, %vm3707
        %v3709 = vsel %vm3708, %v3700, %v3705
        %v3710 = vsel %vm956, %v3692, %v3709
        %v3712 = vsel %vm1000, %v3710, 0
        %v3715 = vsel %vm1000, %v3549, 0
        %v3718 = vsel %vm1000, %v3550, 0
        %v3721 = vsel %vm1000, %v3551, 0
        %v3724 = vsel %vm1000, %v3552, 0
        %v3727 = vsel %vm1000, %v3553, 0
        %v3730 = vsel %vm1000, %v3554, 0
        %v3733 = vsel %vm1000, %v3555, 0
        %v3736 = vsel %vm1000, %v3556, 0
        %v3739 = vsel %vm1000, %v3557, 0
        %v3742 = vsel %vm1000, %v3558, 0
        %v3745 = vsel %vm1000, %v3559, 0
        %v3748 = vsel %vm1000, %v3560, 0
        %v3751 = vsel %vm1000, %v3561, 0
        %v3754 = vsel %vm1000, %v3562, 0
        %v3757 = vsel %vm1000, %v3563, 0
        %v3760 = vsel %vm1000, %v3564, 0
        %3762 = vmatpush.xpose.msra.mxu0 %v3760
        %3763 = vmatpush.xpose.msra.mxu0 %v3757
        %3764 = vmatpush.xpose.msra.mxu0 %v3754
        %3765 = vmatpush.xpose.msra.mxu0 %v3751
        %3766 = vmatpush.xpose.msra.mxu0 %v3748
        %3767 = vmatpush.xpose.msra.mxu0 %v3745
        %3768 = vmatpush.xpose.msra.mxu0 %v3742
        %3769 = vmatpush.xpose.msra.mxu0 %v3739
        %3770 = vmatpush.xpose.msra.mxu0 %v3736
        %3771 = vmatpush.xpose.msra.mxu0 %v3733
        %3772 = vmatpush.xpose.msra.mxu0 %v3730
        %3773 = vmatpush.xpose.msra.mxu0 %v3727
        %3774 = vmatpush.xpose.msra.mxu0 %v3724
        %3775 = vmatpush.xpose.msra.mxu0 %v3721
        %3776 = vmatpush.xpose.msra.mxu0 %v3718
        %3777 = vmatpush.xpose.msra.mxu0 %v3715
        %3778 = vmatmul.f32.gmra.mxu0 %v3712
        %v3779 = vpop.f32.mrf.mxu0
        %v3780 = vadd.f32 0.0, %v3779
        %3781 = vdwg.mxu0
        %v3783 = vperm.slane %v3547, 0
        %v3785 = vmul.f32 %v3780, %v3783
        %v3787 = vrot.slane %v3785, 1
        %v3789 = vmul.f32 %v3780, %v3787
        %v3790 = vsub.f32 %v3548, %v3789
        %v3791 = vperm.slane %v3785, 1
        %v3792 = vmul.f32 %v3515, %v3791
        %v3793 = vmul.f32 %v3516, %v3791
        %v3794 = vmul.f32 %v3517, %v3791
        %v3795 = vmul.f32 %v3518, %v3791
        %v3796 = vmul.f32 %v3519, %v3791
        %v3797 = vmul.f32 %v3520, %v3791
        %v3798 = vmul.f32 %v3521, %v3791
        %v3799 = vmul.f32 %v3522, %v3791
        %v3800 = vmul.f32 %v3523, %v3791
        %v3801 = vmul.f32 %v3524, %v3791
        %v3802 = vmul.f32 %v3525, %v3791
        %v3803 = vmul.f32 %v3526, %v3791
        %v3804 = vmul.f32 %v3527, %v3791
        %v3805 = vmul.f32 %v3528, %v3791
        %v3806 = vmul.f32 %v3529, %v3791
        %v3807 = vmul.f32 %v3530, %v3791
        %v3808 = vmul.f32 %v3531, %v3791
        %v3809 = vmul.f32 %v3532, %v3791
        %v3810 = vmul.f32 %v3533, %v3791
        %v3811 = vmul.f32 %v3534, %v3791
        %v3812 = vmul.f32 %v3535, %v3791
        %v3813 = vmul.f32 %v3536, %v3791
        %v3814 = vmul.f32 %v3537, %v3791
        %v3815 = vmul.f32 %v3538, %v3791
        %v3816 = vmul.f32 %v3539, %v3791
        %v3817 = vmul.f32 %v3540, %v3791
        %v3818 = vmul.f32 %v3541, %v3791
        %v3819 = vmul.f32 %v3542, %v3791
        %v3820 = vmul.f32 %v3543, %v3791
        %v3821 = vmul.f32 %v3544, %v3791
        %v3822 = vmul.f32 %v3545, %v3791
        %v3823 = vmul.f32 %v3546, %v3791
        %v3825 = vperm.slane %v3790, 0
        %v3827 = vadd.f32 %v3792, %v3825
        %v3828 = vadd.f32 %v3793, %v3825
        %v3829 = vadd.f32 %v3794, %v3825
        %v3830 = vadd.f32 %v3795, %v3825
        %v3831 = vadd.f32 %v3796, %v3825
        %v3832 = vadd.f32 %v3797, %v3825
        %v3833 = vadd.f32 %v3798, %v3825
        %v3834 = vadd.f32 %v3799, %v3825
        %v3835 = vadd.f32 %v3800, %v3825
        %v3836 = vadd.f32 %v3801, %v3825
        %v3837 = vadd.f32 %v3802, %v3825
        %v3838 = vadd.f32 %v3803, %v3825
        %v3839 = vadd.f32 %v3804, %v3825
        %v3840 = vadd.f32 %v3805, %v3825
        %v3841 = vadd.f32 %v3806, %v3825
        %v3842 = vadd.f32 %v3807, %v3825
        %v3843 = vadd.f32 %v3808, %v3825
        %v3844 = vadd.f32 %v3809, %v3825
        %v3845 = vadd.f32 %v3810, %v3825
        %v3846 = vadd.f32 %v3811, %v3825
        %v3847 = vadd.f32 %v3812, %v3825
        %v3848 = vadd.f32 %v3813, %v3825
        %v3849 = vadd.f32 %v3814, %v3825
        %v3850 = vadd.f32 %v3815, %v3825
        %v3851 = vadd.f32 %v3816, %v3825
        %v3852 = vadd.f32 %v3817, %v3825
        %v3853 = vadd.f32 %v3818, %v3825
        %v3854 = vadd.f32 %v3819, %v3825
        %v3855 = vadd.f32 %v3820, %v3825
        %v3856 = vadd.f32 %v3821, %v3825
        %v3857 = vadd.f32 %v3822, %v3825
        %v3858 = vadd.f32 %v3823, %v3825
        %v3859 = vsub.f32 0.0, %v3827
        %v3860 = vsub.f32 0.0, %v3828
        %v3861 = vsub.f32 0.0, %v3829
        %v3862 = vsub.f32 0.0, %v3830
        %v3863 = vsub.f32 0.0, %v3831
        %v3864 = vsub.f32 0.0, %v3832
        %v3865 = vsub.f32 0.0, %v3833
        %v3866 = vsub.f32 0.0, %v3834
        %v3867 = vsub.f32 0.0, %v3835
        %v3868 = vsub.f32 0.0, %v3836
        %v3869 = vsub.f32 0.0, %v3837
        %v3870 = vsub.f32 0.0, %v3838
        %v3871 = vsub.f32 0.0, %v3839
        %v3872 = vsub.f32 0.0, %v3840
        %v3873 = vsub.f32 0.0, %v3841
        %v3874 = vsub.f32 0.0, %v3842
        %v3875 = vsub.f32 0.0, %v3843
        %v3876 = vsub.f32 0.0, %v3844
        %v3877 = vsub.f32 0.0, %v3845
        %v3878 = vsub.f32 0.0, %v3846
        %v3879 = vsub.f32 0.0, %v3847
        %v3880 = vsub.f32 0.0, %v3848
        %v3881 = vsub.f32 0.0, %v3849
        %v3882 = vsub.f32 0.0, %v3850
        %v3883 = vsub.f32 0.0, %v3851
        %v3884 = vsub.f32 0.0, %v3852
        %v3885 = vsub.f32 0.0, %v3853
        %v3886 = vsub.f32 0.0, %v3854
        %v3887 = vsub.f32 0.0, %v3855
        %v3888 = vsub.f32 0.0, %v3856
        %v3889 = vsub.f32 0.0, %v3857
        %v3890 = vsub.f32 0.0, %v3858
        %v3891 = vmul.f32 %v3859, 1.442695
        %v3892 = vpow.pop %v3891
        %v3893 = vmul.f32 %v3860, 1.442695
        %v3894 = vpow.pop %v3893
        %v3895 = vmul.f32 %v3861, 1.442695
        %v3896 = vpow.pop %v3895
        %v3897 = vmul.f32 %v3862, 1.442695
        %v3898 = vpow.pop %v3897
        %v3899 = vmul.f32 %v3863, 1.442695
        %v3900 = vpow.pop %v3899
        %v3901 = vmul.f32 %v3864, 1.442695
        %v3902 = vpow.pop %v3901
        %v3903 = vmul.f32 %v3865, 1.442695
        %v3904 = vpow.pop %v3903
        %v3905 = vmul.f32 %v3866, 1.442695
        %v3906 = vpow.pop %v3905
        %v3907 = vmul.f32 %v3867, 1.442695
        %v3908 = vpow.pop %v3907
        %v3909 = vmul.f32 %v3868, 1.442695
        %v3910 = vpow.pop %v3909
        %v3911 = vmul.f32 %v3869, 1.442695
        %v3912 = vpow.pop %v3911
        %v3913 = vmul.f32 %v3870, 1.442695
        %v3914 = vpow.pop %v3913
        %v3915 = vmul.f32 %v3871, 1.442695
        %v3916 = vpow.pop %v3915
        %v3917 = vmul.f32 %v3872, 1.442695
        %v3918 = vpow.pop %v3917
        %v3919 = vmul.f32 %v3873, 1.442695
        %v3920 = vpow.pop %v3919
        %v3921 = vmul.f32 %v3874, 1.442695
        %v3922 = vpow.pop %v3921
        %v3923 = vmul.f32 %v3875, 1.442695
        %v3924 = vpow.pop %v3923
        %v3925 = vmul.f32 %v3876, 1.442695
        %v3926 = vpow.pop %v3925
        %v3927 = vmul.f32 %v3877, 1.442695
        %v3928 = vpow.pop %v3927
        %v3929 = vmul.f32 %v3878, 1.442695
        %v3930 = vpow.pop %v3929
        %v3931 = vmul.f32 %v3879, 1.442695
        %v3932 = vpow.pop %v3931
        %v3933 = vmul.f32 %v3880, 1.442695
        %v3934 = vpow.pop %v3933
        %v3935 = vmul.f32 %v3881, 1.442695
        %v3936 = vpow.pop %v3935
        %v3937 = vmul.f32 %v3882, 1.442695
        %v3938 = vpow.pop %v3937
        %v3939 = vmul.f32 %v3883, 1.442695
        %v3940 = vpow.pop %v3939
        %v3941 = vmul.f32 %v3884, 1.442695
        %v3942 = vpow.pop %v3941
        %v3943 = vmul.f32 %v3885, 1.442695
        %v3944 = vpow.pop %v3943
        %v3945 = vmul.f32 %v3886, 1.442695
        %v3946 = vpow.pop %v3945
        %v3947 = vmul.f32 %v3887, 1.442695
        %v3948 = vpow.pop %v3947
        %v3949 = vmul.f32 %v3888, 1.442695
        %v3950 = vpow.pop %v3949
        %v3951 = vmul.f32 %v3889, 1.442695
        %v3952 = vpow.pop %v3951
        %v3953 = vmul.f32 %v3890, 1.442695
        %v3954 = vpow.pop %v3953
        %v3955 = vadd.f32 %v3892, 1.0
        %v3956 = vadd.f32 %v3894, 1.0
        %v3957 = vadd.f32 %v3896, 1.0
        %v3958 = vadd.f32 %v3898, 1.0
        %v3959 = vadd.f32 %v3900, 1.0
        %v3960 = vadd.f32 %v3902, 1.0
        %v3961 = vadd.f32 %v3904, 1.0
        %v3962 = vadd.f32 %v3906, 1.0
        %v3963 = vadd.f32 %v3908, 1.0
        %v3964 = vadd.f32 %v3910, 1.0
        %v3965 = vadd.f32 %v3912, 1.0
        %v3966 = vadd.f32 %v3914, 1.0
        %v3967 = vadd.f32 %v3916, 1.0
        %v3968 = vadd.f32 %v3918, 1.0
        %v3969 = vadd.f32 %v3920, 1.0
        %v3970 = vadd.f32 %v3922, 1.0
        %v3971 = vadd.f32 %v3924, 1.0
        %v3972 = vadd.f32 %v3926, 1.0
        %v3973 = vadd.f32 %v3928, 1.0
        %v3974 = vadd.f32 %v3930, 1.0
        %v3975 = vadd.f32 %v3932, 1.0
        %v3976 = vadd.f32 %v3934, 1.0
        %v3977 = vadd.f32 %v3936, 1.0
        %v3978 = vadd.f32 %v3938, 1.0
        %v3979 = vadd.f32 %v3940, 1.0
        %v3980 = vadd.f32 %v3942, 1.0
        %v3981 = vadd.f32 %v3944, 1.0
        %v3982 = vadd.f32 %v3946, 1.0
        %v3983 = vadd.f32 %v3948, 1.0
        %v3984 = vadd.f32 %v3950, 1.0
        %v3985 = vadd.f32 %v3952, 1.0
        %v3986 = vadd.f32 %v3954, 1.0
        %v3987 = vrcp.pop %v3955
        %v3988 = vrcp.pop %v3956
        %v3989 = vrcp.pop %v3957
        %v3990 = vrcp.pop %v3958
        %v3991 = vrcp.pop %v3959
        %v3992 = vrcp.pop %v3960
        %v3993 = vrcp.pop %v3961
        %v3994 = vrcp.pop %v3962
        %v3995 = vrcp.pop %v3963
        %v3996 = vrcp.pop %v3964
        %v3997 = vrcp.pop %v3965
        %v3998 = vrcp.pop %v3966
        %v3999 = vrcp.pop %v3967
        %v4000 = vrcp.pop %v3968
        %v4001 = vrcp.pop %v3969
        %v4002 = vrcp.pop %v3970
        %v4003 = vrcp.pop %v3971
        %v4004 = vrcp.pop %v3972
        %v4005 = vrcp.pop %v3973
        %v4006 = vrcp.pop %v3974
        %v4007 = vrcp.pop %v3975
        %v4008 = vrcp.pop %v3976
        %v4009 = vrcp.pop %v3977
        %v4010 = vrcp.pop %v3978
        %v4011 = vrcp.pop %v3979
        %v4012 = vrcp.pop %v3980
        %v4013 = vrcp.pop %v3981
        %v4014 = vrcp.pop %v3982
        %v4015 = vrcp.pop %v3983
        %v4016 = vrcp.pop %v3984
        %v4017 = vrcp.pop %v3985
        %v4018 = vrcp.pop %v3986
        %v4019 = vmul.f32 %v3827, %v3987
        %v4020 = vmul.f32 %v3828, %v3988
        %v4021 = vmul.f32 %v3829, %v3989
        %v4022 = vmul.f32 %v3830, %v3990
        %v4023 = vmul.f32 %v3831, %v3991
        %v4024 = vmul.f32 %v3832, %v3992
        %v4025 = vmul.f32 %v3833, %v3993
        %v4026 = vmul.f32 %v3834, %v3994
        %v4027 = vmul.f32 %v3835, %v3995
        %v4028 = vmul.f32 %v3836, %v3996
        %v4029 = vmul.f32 %v3837, %v3997
        %v4030 = vmul.f32 %v3838, %v3998
        %v4031 = vmul.f32 %v3839, %v3999
        %v4032 = vmul.f32 %v3840, %v4000
        %v4033 = vmul.f32 %v3841, %v4001
        %v4034 = vmul.f32 %v3842, %v4002
        %v4035 = vmul.f32 %v3843, %v4003
        %v4036 = vmul.f32 %v3844, %v4004
        %v4037 = vmul.f32 %v3845, %v4005
        %v4038 = vmul.f32 %v3846, %v4006
        %v4039 = vmul.f32 %v3847, %v4007
        %v4040 = vmul.f32 %v3848, %v4008
        %v4041 = vmul.f32 %v3849, %v4009
        %v4042 = vmul.f32 %v3850, %v4010
        %v4043 = vmul.f32 %v3851, %v4011
        %v4044 = vmul.f32 %v3852, %v4012
        %v4045 = vmul.f32 %v3853, %v4013
        %v4046 = vmul.f32 %v3854, %v4014
        %v4047 = vmul.f32 %v3855, %v4015
        %v4048 = vmul.f32 %v3856, %v4016
        %v4049 = vmul.f32 %v3857, %v4017
        %v4050 = vmul.f32 %v3858, %v4018
        %v4081 = vrot.slane %v4019, 7
        %v4082 = vrot.slane %v4020, 7
        %v4083 = vsel %vm956, %v4081, %v4082
        %v4084 = vrot.slane %v4021, 7
        %v4085 = vsel %vm956, %v4082, %v4084
        %v4086 = vrot.slane %v4022, 7
        %v4087 = vsel %vm956, %v4084, %v4086
        %v4088 = vrot.slane %v4023, 7
        %v4089 = vsel %vm956, %v4086, %v4088
        %v4090 = vrot.slane %v4024, 7
        %v4091 = vsel %vm956, %v4088, %v4090
        %v4092 = vrot.slane %v4025, 7
        %v4093 = vsel %vm956, %v4090, %v4092
        %v4094 = vrot.slane %v4026, 7
        %v4095 = vsel %vm956, %v4092, %v4094
        %v4096 = vrot.slane %v4027, 7
        %v4097 = vsel %vm956, %v4094, %v4096
        %v4098 = vrot.slane %v4028, 7
        %v4099 = vsel %vm956, %v4096, %v4098
        %v4100 = vrot.slane %v4029, 7
        %v4101 = vsel %vm956, %v4098, %v4100
        %v4102 = vrot.slane %v4030, 7
        %v4103 = vsel %vm956, %v4100, %v4102
        %v4104 = vrot.slane %v4031, 7
        %v4105 = vsel %vm956, %v4102, %v4104
        %v4106 = vrot.slane %v4032, 7
        %v4107 = vsel %vm956, %v4104, %v4106
        %v4108 = vrot.slane %v4033, 7
        %v4109 = vsel %vm956, %v4106, %v4108
        %v4110 = vrot.slane %v4034, 7
        %v4111 = vsel %vm956, %v4108, %v4110
        %v4112 = vrot.slane %v4035, 7
        %v4113 = vsel %vm956, %v4110, %v4112
        %v4114 = vrot.slane %v4036, 7
        %v4115 = vsel %vm956, %v4112, %v4114
        %v4116 = vrot.slane %v4037, 7
        %v4117 = vsel %vm956, %v4114, %v4116
        %v4118 = vrot.slane %v4038, 7
        %v4119 = vsel %vm956, %v4116, %v4118
        %v4120 = vrot.slane %v4039, 7
        %v4121 = vsel %vm956, %v4118, %v4120
        %v4122 = vrot.slane %v4040, 7
        %v4123 = vsel %vm956, %v4120, %v4122
        %v4124 = vrot.slane %v4041, 7
        %v4125 = vsel %vm956, %v4122, %v4124
        %v4126 = vrot.slane %v4042, 7
        %v4127 = vsel %vm956, %v4124, %v4126
        %v4128 = vrot.slane %v4043, 7
        %v4129 = vsel %vm956, %v4126, %v4128
        %v4130 = vrot.slane %v4044, 7
        %v4131 = vsel %vm956, %v4128, %v4130
        %v4132 = vrot.slane %v4045, 7
        %v4133 = vsel %vm956, %v4130, %v4132
        %v4134 = vrot.slane %v4046, 7
        %v4135 = vsel %vm956, %v4132, %v4134
        %v4136 = vrot.slane %v4047, 7
        %v4137 = vsel %vm956, %v4134, %v4136
        %v4138 = vrot.slane %v4048, 7
        %v4139 = vsel %vm956, %v4136, %v4138
        %v4170 = vsel %vm956, 0.0, %v4081
        %v4171 = vmul.f32 %v4170, %v713
        %v4172 = vmul.f32 %v4083, %v714
        %v4173 = vmul.f32 %v4085, %v715
        %v4174 = vmul.f32 %v4087, %v716
        %v4175 = vmul.f32 %v4089, %v717
        %v4176 = vmul.f32 %v4091, %v718
        %v4177 = vmul.f32 %v4093, %v719
        %v4178 = vmul.f32 %v4095, %v720
        %v4179 = vmul.f32 %v4097, %v721
        %v4180 = vmul.f32 %v4099, %v722
        %v4181 = vmul.f32 %v4101, %v723
        %v4182 = vmul.f32 %v4103, %v724
        %v4183 = vmul.f32 %v4105, %v725
        %v4184 = vmul.f32 %v4107, %v726
        %v4185 = vmul.f32 %v4109, %v727
        %v4186 = vmul.f32 %v4111, %v728
        %v4187 = vmul.f32 %v4113, %v729
        %v4188 = vmul.f32 %v4115, %v730
        %v4189 = vmul.f32 %v4117, %v731
        %v4190 = vmul.f32 %v4119, %v732
        %v4191 = vmul.f32 %v4121, %v733
        %v4192 = vmul.f32 %v4123, %v734
        %v4193 = vmul.f32 %v4125, %v735
        %v4194 = vmul.f32 %v4127, %v736
        %v4195 = vmul.f32 %v4129, %v737
        %v4196 = vmul.f32 %v4131, %v738
        %v4197 = vmul.f32 %v4133, %v739
        %v4198 = vmul.f32 %v4135, %v740
        %v4199 = vmul.f32 %v4137, %v741
        %v4200 = vmul.f32 %v4139, %v742
        %v4201 = vpack.c.bf16 %v4172, %v4171
        %v4202 = vpack.c.bf16 %v4174, %v4173
        %v4203 = vpack.c.bf16 %v4176, %v4175
        %v4204 = vpack.c.bf16 %v4178, %v4177
        %v4205 = vpack.c.bf16 %v4180, %v4179
        %v4206 = vpack.c.bf16 %v4182, %v4181
        %v4207 = vpack.c.bf16 %v4184, %v4183
        %v4208 = vpack.c.bf16 %v4186, %v4185
        %v4209 = vpack.c.bf16 %v4188, %v4187
        %v4210 = vpack.c.bf16 %v4190, %v4189
        %v4211 = vpack.c.bf16 %v4192, %v4191
        %v4212 = vpack.c.bf16 %v4194, %v4193
        %v4213 = vpack.c.bf16 %v4196, %v4195
        %v4214 = vpack.c.bf16 %v4198, %v4197
        %v4215 = vpack.c.bf16 %v4200, %v4199
        %v4216 = vld [vmem:[%s11] sm:$0xf]
        %v4217 = vld [vmem:[%s11 + $0x4] sm:$0xf]
        %v4218 = vld [vmem:[%s11 + $0x8] sm:$0xf]
        %v4219 = vld [vmem:[%s11 + $0xc] sm:$0xf]
        %v4220 = vld [vmem:[%s11 + $0x10] sm:$0xf]
        %v4221 = vld [vmem:[%s11 + $0x14] sm:$0xf]
        %v4222 = vld [vmem:[%s11 + $0x18] sm:$0xf]
        %v4223 = vld [vmem:[%s11 + $0x1c] sm:$0xf]
        %v4224 = vld [vmem:[%s11 + $0x20] sm:$0xf]
        %v4225 = vld [vmem:[%s11 + $0x24] sm:$0xf]
        %v4226 = vld [vmem:[%s11 + $0x28] sm:$0xf]
        %v4227 = vld [vmem:[%s11 + $0x2c] sm:$0xf]
        %v4228 = vld [vmem:[%s11 + $0x30] sm:$0xf]
        %v4229 = vld [vmem:[%s11 + $0x34] sm:$0xf]
        %v4230 = vld [vmem:[%s11 + $0x38] sm:$0xf]
        %v4231 = vld [vmem:[%s11 + $0x3c] sm:$0xf]
        %v4232 = vpack.c.bf16 %v4020, %v4019
        %v4233 = vpack.c.bf16 %v4022, %v4021
        %v4234 = vpack.c.bf16 %v4024, %v4023
        %v4235 = vpack.c.bf16 %v4026, %v4025
        %v4236 = vpack.c.bf16 %v4028, %v4027
        %v4237 = vpack.c.bf16 %v4030, %v4029
        %v4238 = vpack.c.bf16 %v4032, %v4031
        %v4239 = vpack.c.bf16 %v4034, %v4033
        %v4240 = vpack.c.bf16 %v4036, %v4035
        %v4241 = vpack.c.bf16 %v4038, %v4037
        %v4242 = vpack.c.bf16 %v4040, %v4039
        %v4243 = vpack.c.bf16 %v4042, %v4041
        %v4244 = vpack.c.bf16 %v4044, %v4043
        %v4245 = vpack.c.bf16 %v4046, %v4045
        %v4246 = vpack.c.bf16 %v4048, %v4047
        %s4247 = scalar_lea.vmem %s11, 64
        %v4248 = vld [vmem:[%s4247] sm:$0xf]
        %v4249 = vld [vmem:[%s4247 + $0x4] sm:$0xf]
        %v4250 = vld [vmem:[%s4247 + $0x8] sm:$0xf]
        %v4251 = vld [vmem:[%s4247 + $0xc] sm:$0xf]
        %v4252 = vld [vmem:[%s4247 + $0x10] sm:$0xf]
        %v4253 = vld [vmem:[%s4247 + $0x14] sm:$0xf]
        %v4254 = vld [vmem:[%s4247 + $0x18] sm:$0xf]
        %v4255 = vld [vmem:[%s4247 + $0x1c] sm:$0xf]
        %v4256 = vld [vmem:[%s4247 + $0x20] sm:$0xf]
        %v4257 = vld [vmem:[%s4247 + $0x24] sm:$0xf]
        %v4258 = vld [vmem:[%s4247 + $0x28] sm:$0xf]
        %v4259 = vld [vmem:[%s4247 + $0x2c] sm:$0xf]
        %v4260 = vld [vmem:[%s4247 + $0x30] sm:$0xf]
        %v4261 = vld [vmem:[%s4247 + $0x34] sm:$0xf]
        %v4262 = vld [vmem:[%s4247 + $0x38] sm:$0xf]
        %v4263 = vld [vmem:[%s4247 + $0x3c] sm:$0xf]
        %v4280 = vunpack.c.l.b16 %v4248
        %v4281 = vunpack.c.l.b16 %v4249
        %v4282 = vunpack.c.l.b16 %v4250
        %v4283 = vunpack.c.l.b16 %v4251
        %v4284 = vunpack.c.l.b16 %v4252
        %v4285 = vunpack.c.l.b16 %v4253
        %v4286 = vunpack.c.l.b16 %v4254
        %v4287 = vunpack.c.l.b16 %v4255
        %v4288 = vunpack.c.l.b16 %v4256
        %v4289 = vunpack.c.l.b16 %v4257
        %v4290 = vunpack.c.l.b16 %v4258
        %v4291 = vunpack.c.l.b16 %v4259
        %v4292 = vunpack.c.l.b16 %v4260
        %v4293 = vunpack.c.l.b16 %v4261
        %v4294 = vunpack.c.l.b16 %v4262
        %v4295 = vunpack.c.l.b16 %v4263
        %v4296 = vpack.c.b16 %v4281, %v4280
        %v4297 = vpack.c.b16 %v4283, %v4282
        %v4298 = vpack.c.b16 %v4285, %v4284
        %v4299 = vpack.c.b16 %v4287, %v4286
        %v4300 = vpack.c.b16 %v4289, %v4288
        %v4301 = vpack.c.b16 %v4291, %v4290
        %v4302 = vpack.c.b16 %v4293, %v4292
        %v4303 = vpack.c.b16 %v4295, %v4294
        %4312 = vmatpush.bf16.msra.mxu0 %v4303
        %4313 = vmatpush.bf16.msra.mxu0 %v4302
        %4314 = vmatpush.bf16.msra.mxu0 %v4301
        %4315 = vmatpush.bf16.msra.mxu0 %v4300
        %4316 = vmatpush.bf16.msra.mxu0 %v4299
        %4317 = vmatpush.bf16.msra.mxu0 %v4298
        %4318 = vmatpush.bf16.msra.mxu0 %v4297
        %4319 = vmatpush.bf16.msra.mxu0 %v4296
        %4320 = vmatmul.bf16.gmra.mxu0 %v1493
        %v4321 = vpop.f32.mrf.mxu0
        %v4322 = vadd.f32 0.0, %v4321
        %v4323 = vpop.f32.mrf.mxu0
        %v4324 = vadd.f32 0.0, %v4323
        %4325 = vmatmul.bf16.gmra.mxu0 %v4232
        %v4326 = vpop.f32.mrf.mxu0
        %v4327 = vadd.f32 0.0, %v4326
        %v4328 = vpop.f32.mrf.mxu0
        %v4329 = vadd.f32 0.0, %v4328
        %4330 = vmatmul.bf16.gmra.mxu0 %v4233
        %v4331 = vpop.f32.mrf.mxu0
        %v4332 = vadd.f32 0.0, %v4331
        %v4333 = vpop.f32.mrf.mxu0
        %v4334 = vadd.f32 0.0, %v4333
        %4335 = vmatmul.bf16.gmra.mxu0 %v4234
        %v4336 = vpop.f32.mrf.mxu0
        %v4337 = vadd.f32 0.0, %v4336
        %v4338 = vpop.f32.mrf.mxu0
        %v4339 = vadd.f32 0.0, %v4338
        %4340 = vmatmul.bf16.gmra.mxu0 %v4235
        %v4341 = vpop.f32.mrf.mxu0
        %v4342 = vadd.f32 0.0, %v4341
        %v4343 = vpop.f32.mrf.mxu0
        %v4344 = vadd.f32 0.0, %v4343
        %4345 = vmatmul.bf16.gmra.mxu0 %v4236
        %v4346 = vpop.f32.mrf.mxu0
        %v4347 = vadd.f32 0.0, %v4346
        %v4348 = vpop.f32.mrf.mxu0
        %v4349 = vadd.f32 0.0, %v4348
        %4350 = vmatmul.bf16.gmra.mxu0 %v4237
        %v4351 = vpop.f32.mrf.mxu0
        %v4352 = vadd.f32 0.0, %v4351
        %v4353 = vpop.f32.mrf.mxu0
        %v4354 = vadd.f32 0.0, %v4353
        %4355 = vmatmul.bf16.gmra.mxu0 %v4238
        %v4356 = vpop.f32.mrf.mxu0
        %v4357 = vadd.f32 0.0, %v4356
        %v4358 = vpop.f32.mrf.mxu0
        %v4359 = vadd.f32 0.0, %v4358
        %4360 = vmatmul.bf16.gmra.mxu0 %v4239
        %v4361 = vpop.f32.mrf.mxu0
        %v4362 = vadd.f32 0.0, %v4361
        %v4363 = vpop.f32.mrf.mxu0
        %v4364 = vadd.f32 0.0, %v4363
        %4365 = vmatmul.bf16.gmra.mxu0 %v4240
        %v4366 = vpop.f32.mrf.mxu0
        %v4367 = vadd.f32 0.0, %v4366
        %v4368 = vpop.f32.mrf.mxu0
        %v4369 = vadd.f32 0.0, %v4368
        %4370 = vmatmul.bf16.gmra.mxu0 %v4241
        %v4371 = vpop.f32.mrf.mxu0
        %v4372 = vadd.f32 0.0, %v4371
        %v4373 = vpop.f32.mrf.mxu0
        %v4374 = vadd.f32 0.0, %v4373
        %4375 = vmatmul.bf16.gmra.mxu0 %v4242
        %v4376 = vpop.f32.mrf.mxu0
        %v4377 = vadd.f32 0.0, %v4376
        %v4378 = vpop.f32.mrf.mxu0
        %v4379 = vadd.f32 0.0, %v4378
        %4380 = vmatmul.bf16.gmra.mxu0 %v4243
        %v4381 = vpop.f32.mrf.mxu0
        %v4382 = vadd.f32 0.0, %v4381
        %v4383 = vpop.f32.mrf.mxu0
        %v4384 = vadd.f32 0.0, %v4383
        %4385 = vmatmul.bf16.gmra.mxu0 %v4244
        %v4386 = vpop.f32.mrf.mxu0
        %v4387 = vadd.f32 0.0, %v4386
        %v4388 = vpop.f32.mrf.mxu0
        %v4389 = vadd.f32 0.0, %v4388
        %4390 = vmatmul.bf16.gmra.mxu0 %v4245
        %v4391 = vpop.f32.mrf.mxu0
        %v4392 = vadd.f32 0.0, %v4391
        %v4393 = vpop.f32.mrf.mxu0
        %v4394 = vadd.f32 0.0, %v4393
        %4395 = vmatmul.bf16.gmra.mxu0 %v4246
        %v4396 = vpop.f32.mrf.mxu0
        %v4397 = vadd.f32 0.0, %v4396
        %v4398 = vpop.f32.mrf.mxu0
        %v4399 = vadd.f32 0.0, %v4398
        %4400 = vdwg.mxu0
        %v4417 = vunpack.c.l.b16 %v4216
        %v4418 = vunpack.c.l.b16 %v4217
        %v4419 = vunpack.c.l.b16 %v4218
        %v4420 = vunpack.c.l.b16 %v4219
        %v4421 = vunpack.c.l.b16 %v4220
        %v4422 = vunpack.c.l.b16 %v4221
        %v4423 = vunpack.c.l.b16 %v4222
        %v4424 = vunpack.c.l.b16 %v4223
        %v4425 = vunpack.c.l.b16 %v4224
        %v4426 = vunpack.c.l.b16 %v4225
        %v4427 = vunpack.c.l.b16 %v4226
        %v4428 = vunpack.c.l.b16 %v4227
        %v4429 = vunpack.c.l.b16 %v4228
        %v4430 = vunpack.c.l.b16 %v4229
        %v4431 = vunpack.c.l.b16 %v4230
        %v4432 = vunpack.c.l.b16 %v4231
        %v4433 = vpack.c.b16 %v4418, %v4417
        %v4434 = vpack.c.b16 %v4420, %v4419
        %v4435 = vpack.c.b16 %v4422, %v4421
        %v4436 = vpack.c.b16 %v4424, %v4423
        %v4437 = vpack.c.b16 %v4426, %v4425
        %v4438 = vpack.c.b16 %v4428, %v4427
        %v4439 = vpack.c.b16 %v4430, %v4429
        %v4440 = vpack.c.b16 %v4432, %v4431
        %4449 = vmatpush.bf16.msra.mxu0 %v4440
        %4450 = vmatpush.bf16.msra.mxu0 %v4439
        %4451 = vmatpush.bf16.msra.mxu0 %v4438
        %4452 = vmatpush.bf16.msra.mxu0 %v4437
        %4453 = vmatpush.bf16.msra.mxu0 %v4436
        %4454 = vmatpush.bf16.msra.mxu0 %v4435
        %4455 = vmatpush.bf16.msra.mxu0 %v4434
        %4456 = vmatpush.bf16.msra.mxu0 %v4433
        %4457 = vmatmul.bf16.gmra.mxu0 %v1469
        %v4458 = vpop.f32.mrf.mxu0
        %v4459 = vadd.f32 %v4322, %v4458
        %v4460 = vpop.f32.mrf.mxu0
        %v4461 = vadd.f32 %v4324, %v4460
        %4462 = vmatmul.bf16.gmra.mxu0 %v4201
        %v4463 = vpop.f32.mrf.mxu0
        %v4464 = vadd.f32 %v4327, %v4463
        %v4465 = vpop.f32.mrf.mxu0
        %v4466 = vadd.f32 %v4329, %v4465
        %4467 = vmatmul.bf16.gmra.mxu0 %v4202
        %v4468 = vpop.f32.mrf.mxu0
        %v4469 = vadd.f32 %v4332, %v4468
        %v4470 = vpop.f32.mrf.mxu0
        %v4471 = vadd.f32 %v4334, %v4470
        %4472 = vmatmul.bf16.gmra.mxu0 %v4203
        %v4473 = vpop.f32.mrf.mxu0
        %v4474 = vadd.f32 %v4337, %v4473
        %v4475 = vpop.f32.mrf.mxu0
        %v4476 = vadd.f32 %v4339, %v4475
        %4477 = vmatmul.bf16.gmra.mxu0 %v4204
        %v4478 = vpop.f32.mrf.mxu0
        %v4479 = vadd.f32 %v4342, %v4478
        %v4480 = vpop.f32.mrf.mxu0
        %v4481 = vadd.f32 %v4344, %v4480
        %4482 = vmatmul.bf16.gmra.mxu0 %v4205
        %v4483 = vpop.f32.mrf.mxu0
        %v4484 = vadd.f32 %v4347, %v4483
        %v4485 = vpop.f32.mrf.mxu0
        %v4486 = vadd.f32 %v4349, %v4485
        %4487 = vmatmul.bf16.gmra.mxu0 %v4206
        %v4488 = vpop.f32.mrf.mxu0
        %v4489 = vadd.f32 %v4352, %v4488
        %v4490 = vpop.f32.mrf.mxu0
        %v4491 = vadd.f32 %v4354, %v4490
        %4492 = vmatmul.bf16.gmra.mxu0 %v4207
        %v4493 = vpop.f32.mrf.mxu0
        %v4494 = vadd.f32 %v4357, %v4493
        %v4495 = vpop.f32.mrf.mxu0
        %v4496 = vadd.f32 %v4359, %v4495
        %4497 = vmatmul.bf16.gmra.mxu0 %v4208
        %v4498 = vpop.f32.mrf.mxu0
        %v4499 = vadd.f32 %v4362, %v4498
        %v4500 = vpop.f32.mrf.mxu0
        %v4501 = vadd.f32 %v4364, %v4500
        %4502 = vmatmul.bf16.gmra.mxu0 %v4209
        %v4503 = vpop.f32.mrf.mxu0
        %v4504 = vadd.f32 %v4367, %v4503
        %v4505 = vpop.f32.mrf.mxu0
        %v4506 = vadd.f32 %v4369, %v4505
        %4507 = vmatmul.bf16.gmra.mxu0 %v4210
        %v4508 = vpop.f32.mrf.mxu0
        %v4509 = vadd.f32 %v4372, %v4508
        %v4510 = vpop.f32.mrf.mxu0
        %v4511 = vadd.f32 %v4374, %v4510
        %4512 = vmatmul.bf16.gmra.mxu0 %v4211
        %v4513 = vpop.f32.mrf.mxu0
        %v4514 = vadd.f32 %v4377, %v4513
        %v4515 = vpop.f32.mrf.mxu0
        %v4516 = vadd.f32 %v4379, %v4515
        %4517 = vmatmul.bf16.gmra.mxu0 %v4212
        %v4518 = vpop.f32.mrf.mxu0
        %v4519 = vadd.f32 %v4382, %v4518
        %v4520 = vpop.f32.mrf.mxu0
        %v4521 = vadd.f32 %v4384, %v4520
        %4522 = vmatmul.bf16.gmra.mxu0 %v4213
        %v4523 = vpop.f32.mrf.mxu0
        %v4524 = vadd.f32 %v4387, %v4523
        %v4525 = vpop.f32.mrf.mxu0
        %v4526 = vadd.f32 %v4389, %v4525
        %4527 = vmatmul.bf16.gmra.mxu0 %v4214
        %v4528 = vpop.f32.mrf.mxu0
        %v4529 = vadd.f32 %v4392, %v4528
        %v4530 = vpop.f32.mrf.mxu0
        %v4531 = vadd.f32 %v4394, %v4530
        %4532 = vmatmul.bf16.gmra.mxu0 %v4215
        %v4533 = vpop.f32.mrf.mxu0
        %v4534 = vadd.f32 %v4397, %v4533
        %v4535 = vpop.f32.mrf.mxu0
        %v4536 = vadd.f32 %v4399, %v4535
        %4537 = vdwg.mxu0
        %v4539 = vrot.slane %v4019, 1
        %v4540 = vrot.slane %v4020, 1
        %v4541 = vsel %vm1841, %v4539, %v4540
        %v4542 = vrot.slane %v4021, 1
        %v4543 = vsel %vm1841, %v4540, %v4542
        %v4544 = vrot.slane %v4022, 1
        %v4545 = vsel %vm1841, %v4542, %v4544
        %v4546 = vrot.slane %v4023, 1
        %v4547 = vsel %vm1841, %v4544, %v4546
        %v4548 = vrot.slane %v4024, 1
        %v4549 = vsel %vm1841, %v4546, %v4548
        %v4550 = vrot.slane %v4025, 1
        %v4551 = vsel %vm1841, %v4548, %v4550
        %v4552 = vrot.slane %v4026, 1
        %v4553 = vsel %vm1841, %v4550, %v4552
        %v4554 = vrot.slane %v4027, 1
        %v4555 = vsel %vm1841, %v4552, %v4554
        %v4556 = vrot.slane %v4028, 1
        %v4557 = vsel %vm1841, %v4554, %v4556
        %v4558 = vrot.slane %v4029, 1
        %v4559 = vsel %vm1841, %v4556, %v4558
        %v4560 = vrot.slane %v4030, 1
        %v4561 = vsel %vm1841, %v4558, %v4560
        %v4562 = vrot.slane %v4031, 1
        %v4563 = vsel %vm1841, %v4560, %v4562
        %v4564 = vrot.slane %v4032, 1
        %v4565 = vsel %vm1841, %v4562, %v4564
        %v4566 = vrot.slane %v4033, 1
        %v4567 = vsel %vm1841, %v4564, %v4566
        %v4568 = vrot.slane %v4034, 1
        %v4569 = vsel %vm1841, %v4566, %v4568
        %v4570 = vrot.slane %v4035, 1
        %v4571 = vsel %vm1841, %v4568, %v4570
        %v4572 = vrot.slane %v4036, 1
        %v4573 = vsel %vm1841, %v4570, %v4572
        %v4574 = vrot.slane %v4037, 1
        %v4575 = vsel %vm1841, %v4572, %v4574
        %v4576 = vrot.slane %v4038, 1
        %v4577 = vsel %vm1841, %v4574, %v4576
        %v4578 = vrot.slane %v4039, 1
        %v4579 = vsel %vm1841, %v4576, %v4578
        %v4580 = vrot.slane %v4040, 1
        %v4581 = vsel %vm1841, %v4578, %v4580
        %v4582 = vrot.slane %v4041, 1
        %v4583 = vsel %vm1841, %v4580, %v4582
        %v4584 = vrot.slane %v4042, 1
        %v4585 = vsel %vm1841, %v4582, %v4584
        %v4586 = vrot.slane %v4043, 1
        %v4587 = vsel %vm1841, %v4584, %v4586
        %v4588 = vrot.slane %v4044, 1
        %v4589 = vsel %vm1841, %v4586, %v4588
        %v4590 = vrot.slane %v4045, 1
        %v4591 = vsel %vm1841, %v4588, %v4590
        %v4592 = vrot.slane %v4046, 1
        %v4593 = vsel %vm1841, %v4590, %v4592
        %v4594 = vrot.slane %v4047, 1
        %v4595 = vsel %vm1841, %v4592, %v4594
        %v4596 = vrot.slane %v4048, 1
        %v4597 = vsel %vm1841, %v4594, %v4596
        %v4598 = vrot.slane %v4049, 1
        %v4599 = vsel %vm1841, %v4596, %v4598
        %v4631 = vsel %vm1841, 0.0, %v4539
        %v4632 = vmul.f32 %v4631, %v744
        %v4633 = vmul.f32 %v4541, %v745
        %v4634 = vmul.f32 %v4543, %v746
        %v4635 = vmul.f32 %v4545, %v747
        %v4636 = vmul.f32 %v4547, %v748
        %v4637 = vmul.f32 %v4549, %v749
        %v4638 = vmul.f32 %v4551, %v750
        %v4639 = vmul.f32 %v4553, %v751
        %v4640 = vmul.f32 %v4555, %v752
        %v4641 = vmul.f32 %v4557, %v753
        %v4642 = vmul.f32 %v4559, %v754
        %v4643 = vmul.f32 %v4561, %v755
        %v4644 = vmul.f32 %v4563, %v756
        %v4645 = vmul.f32 %v4565, %v757
        %v4646 = vmul.f32 %v4567, %v758
        %v4647 = vmul.f32 %v4569, %v759
        %v4648 = vmul.f32 %v4571, %v760
        %v4649 = vmul.f32 %v4573, %v761
        %v4650 = vmul.f32 %v4575, %v762
        %v4651 = vmul.f32 %v4577, %v763
        %v4652 = vmul.f32 %v4579, %v764
        %v4653 = vmul.f32 %v4581, %v765
        %v4654 = vmul.f32 %v4583, %v766
        %v4655 = vmul.f32 %v4585, %v767
        %v4656 = vmul.f32 %v4587, %v768
        %v4657 = vmul.f32 %v4589, %v769
        %v4658 = vmul.f32 %v4591, %v770
        %v4659 = vmul.f32 %v4593, %v771
        %v4660 = vmul.f32 %v4595, %v772
        %v4661 = vmul.f32 %v4597, %v773
        %v4662 = vmul.f32 %v4599, %v774
        %v4663 = vpack.c.bf16 %v4632, %v1935
        %v4664 = vpack.c.bf16 %v4634, %v4633
        %v4665 = vpack.c.bf16 %v4636, %v4635
        %v4666 = vpack.c.bf16 %v4638, %v4637
        %v4667 = vpack.c.bf16 %v4640, %v4639
        %v4668 = vpack.c.bf16 %v4642, %v4641
        %v4669 = vpack.c.bf16 %v4644, %v4643
        %v4670 = vpack.c.bf16 %v4646, %v4645
        %v4671 = vpack.c.bf16 %v4648, %v4647
        %v4672 = vpack.c.bf16 %v4650, %v4649
        %v4673 = vpack.c.bf16 %v4652, %v4651
        %v4674 = vpack.c.bf16 %v4654, %v4653
        %v4675 = vpack.c.bf16 %v4656, %v4655
        %v4676 = vpack.c.bf16 %v4658, %v4657
        %v4677 = vpack.c.bf16 %v4660, %v4659
        %v4678 = vpack.c.bf16 %v4662, %v4661
        %s4679 = scalar_lea.vmem %s11, 128
        %v4680 = vld [vmem:[%s4679] sm:$0xf]
        %v4681 = vld [vmem:[%s4679 + $0x4] sm:$0xf]
        %v4682 = vld [vmem:[%s4679 + $0x8] sm:$0xf]
        %v4683 = vld [vmem:[%s4679 + $0xc] sm:$0xf]
        %v4684 = vld [vmem:[%s4679 + $0x10] sm:$0xf]
        %v4685 = vld [vmem:[%s4679 + $0x14] sm:$0xf]
        %v4686 = vld [vmem:[%s4679 + $0x18] sm:$0xf]
        %v4687 = vld [vmem:[%s4679 + $0x1c] sm:$0xf]
        %v4688 = vld [vmem:[%s4679 + $0x20] sm:$0xf]
        %v4689 = vld [vmem:[%s4679 + $0x24] sm:$0xf]
        %v4690 = vld [vmem:[%s4679 + $0x28] sm:$0xf]
        %v4691 = vld [vmem:[%s4679 + $0x2c] sm:$0xf]
        %v4692 = vld [vmem:[%s4679 + $0x30] sm:$0xf]
        %v4693 = vld [vmem:[%s4679 + $0x34] sm:$0xf]
        %v4694 = vld [vmem:[%s4679 + $0x38] sm:$0xf]
        %v4695 = vld [vmem:[%s4679 + $0x3c] sm:$0xf]
        %v4712 = vunpack.c.l.b16 %v4680
        %v4713 = vunpack.c.l.b16 %v4681
        %v4714 = vunpack.c.l.b16 %v4682
        %v4715 = vunpack.c.l.b16 %v4683
        %v4716 = vunpack.c.l.b16 %v4684
        %v4717 = vunpack.c.l.b16 %v4685
        %v4718 = vunpack.c.l.b16 %v4686
        %v4719 = vunpack.c.l.b16 %v4687
        %v4720 = vunpack.c.l.b16 %v4688
        %v4721 = vunpack.c.l.b16 %v4689
        %v4722 = vunpack.c.l.b16 %v4690
        %v4723 = vunpack.c.l.b16 %v4691
        %v4724 = vunpack.c.l.b16 %v4692
        %v4725 = vunpack.c.l.b16 %v4693
        %v4726 = vunpack.c.l.b16 %v4694
        %v4727 = vunpack.c.l.b16 %v4695
        %v4728 = vpack.c.b16 %v4713, %v4712
        %v4729 = vpack.c.b16 %v4715, %v4714
        %v4730 = vpack.c.b16 %v4717, %v4716
        %v4731 = vpack.c.b16 %v4719, %v4718
        %v4732 = vpack.c.b16 %v4721, %v4720
        %v4733 = vpack.c.b16 %v4723, %v4722
        %v4734 = vpack.c.b16 %v4725, %v4724
        %v4735 = vpack.c.b16 %v4727, %v4726
        %4744 = vmatpush.bf16.msra.mxu0 %v4735
        %4745 = vmatpush.bf16.msra.mxu0 %v4734
        %4746 = vmatpush.bf16.msra.mxu0 %v4733
        %4747 = vmatpush.bf16.msra.mxu0 %v4732
        %4748 = vmatpush.bf16.msra.mxu0 %v4731
        %4749 = vmatpush.bf16.msra.mxu0 %v4730
        %4750 = vmatpush.bf16.msra.mxu0 %v4729
        %4751 = vmatpush.bf16.msra.mxu0 %v4728
        %4752 = vmatmul.bf16.gmra.mxu0 %v4663
        %v4753 = vpop.f32.mrf.mxu0
        %v4754 = vadd.f32 0.0, %v4753
        %v4755 = vpop.f32.mrf.mxu0
        %v4756 = vadd.f32 0.0, %v4755
        %4757 = vmatmul.bf16.gmra.mxu0 %v4664
        %v4758 = vpop.f32.mrf.mxu0
        %v4759 = vadd.f32 0.0, %v4758
        %v4760 = vpop.f32.mrf.mxu0
        %v4761 = vadd.f32 0.0, %v4760
        %4762 = vmatmul.bf16.gmra.mxu0 %v4665
        %v4763 = vpop.f32.mrf.mxu0
        %v4764 = vadd.f32 0.0, %v4763
        %v4765 = vpop.f32.mrf.mxu0
        %v4766 = vadd.f32 0.0, %v4765
        %4767 = vmatmul.bf16.gmra.mxu0 %v4666
        %v4768 = vpop.f32.mrf.mxu0
        %v4769 = vadd.f32 0.0, %v4768
        %v4770 = vpop.f32.mrf.mxu0
        %v4771 = vadd.f32 0.0, %v4770
        %4772 = vmatmul.bf16.gmra.mxu0 %v4667
        %v4773 = vpop.f32.mrf.mxu0
        %v4774 = vadd.f32 0.0, %v4773
        %v4775 = vpop.f32.mrf.mxu0
        %v4776 = vadd.f32 0.0, %v4775
        %4777 = vmatmul.bf16.gmra.mxu0 %v4668
        %v4778 = vpop.f32.mrf.mxu0
        %v4779 = vadd.f32 0.0, %v4778
        %v4780 = vpop.f32.mrf.mxu0
        %v4781 = vadd.f32 0.0, %v4780
        %4782 = vmatmul.bf16.gmra.mxu0 %v4669
        %v4783 = vpop.f32.mrf.mxu0
        %v4784 = vadd.f32 0.0, %v4783
        %v4785 = vpop.f32.mrf.mxu0
        %v4786 = vadd.f32 0.0, %v4785
        %4787 = vmatmul.bf16.gmra.mxu0 %v4670
        %v4788 = vpop.f32.mrf.mxu0
        %v4789 = vadd.f32 0.0, %v4788
        %v4790 = vpop.f32.mrf.mxu0
        %v4791 = vadd.f32 0.0, %v4790
        %4792 = vmatmul.bf16.gmra.mxu0 %v4671
        %v4793 = vpop.f32.mrf.mxu0
        %v4794 = vadd.f32 0.0, %v4793
        %v4795 = vpop.f32.mrf.mxu0
        %v4796 = vadd.f32 0.0, %v4795
        %4797 = vmatmul.bf16.gmra.mxu0 %v4672
        %v4798 = vpop.f32.mrf.mxu0
        %v4799 = vadd.f32 0.0, %v4798
        %v4800 = vpop.f32.mrf.mxu0
        %v4801 = vadd.f32 0.0, %v4800
        %4802 = vmatmul.bf16.gmra.mxu0 %v4673
        %v4803 = vpop.f32.mrf.mxu0
        %v4804 = vadd.f32 0.0, %v4803
        %v4805 = vpop.f32.mrf.mxu0
        %v4806 = vadd.f32 0.0, %v4805
        %4807 = vmatmul.bf16.gmra.mxu0 %v4674
        %v4808 = vpop.f32.mrf.mxu0
        %v4809 = vadd.f32 0.0, %v4808
        %v4810 = vpop.f32.mrf.mxu0
        %v4811 = vadd.f32 0.0, %v4810
        %4812 = vmatmul.bf16.gmra.mxu0 %v4675
        %v4813 = vpop.f32.mrf.mxu0
        %v4814 = vadd.f32 0.0, %v4813
        %v4815 = vpop.f32.mrf.mxu0
        %v4816 = vadd.f32 0.0, %v4815
        %4817 = vmatmul.bf16.gmra.mxu0 %v4676
        %v4818 = vpop.f32.mrf.mxu0
        %v4819 = vadd.f32 0.0, %v4818
        %v4820 = vpop.f32.mrf.mxu0
        %v4821 = vadd.f32 0.0, %v4820
        %4822 = vmatmul.bf16.gmra.mxu0 %v4677
        %v4823 = vpop.f32.mrf.mxu0
        %v4824 = vadd.f32 0.0, %v4823
        %v4825 = vpop.f32.mrf.mxu0
        %v4826 = vadd.f32 0.0, %v4825
        %4827 = vmatmul.bf16.gmra.mxu0 %v4678
        %v4828 = vpop.f32.mrf.mxu0
        %v4829 = vadd.f32 0.0, %v4828
        %v4830 = vpop.f32.mrf.mxu0
        %v4831 = vadd.f32 0.0, %v4830
        %4832 = vdwg.mxu0
        %v4833 = vadd.f32 %v4459, %v4754
        %v4834 = vadd.f32 %v4461, %v4756
        %v4835 = vadd.f32 %v4464, %v4759
        %v4836 = vadd.f32 %v4466, %v4761
        %v4837 = vadd.f32 %v4469, %v4764
        %v4838 = vadd.f32 %v4471, %v4766
        %v4839 = vadd.f32 %v4474, %v4769
        %v4840 = vadd.f32 %v4476, %v4771
        %v4841 = vadd.f32 %v4479, %v4774
        %v4842 = vadd.f32 %v4481, %v4776
        %v4843 = vadd.f32 %v4484, %v4779
        %v4844 = vadd.f32 %v4486, %v4781
        %v4845 = vadd.f32 %v4489, %v4784
        %v4846 = vadd.f32 %v4491, %v4786
        %v4847 = vadd.f32 %v4494, %v4789
        %v4848 = vadd.f32 %v4496, %v4791
        %v4849 = vadd.f32 %v4499, %v4794
        %v4850 = vadd.f32 %v4501, %v4796
        %v4851 = vadd.f32 %v4504, %v4799
        %v4852 = vadd.f32 %v4506, %v4801
        %v4853 = vadd.f32 %v4509, %v4804
        %v4854 = vadd.f32 %v4511, %v4806
        %v4855 = vadd.f32 %v4514, %v4809
        %v4856 = vadd.f32 %v4516, %v4811
        %v4857 = vadd.f32 %v4519, %v4814
        %v4858 = vadd.f32 %v4521, %v4816
        %v4859 = vadd.f32 %v4524, %v4819
        %v4860 = vadd.f32 %v4526, %v4821
        %v4861 = vadd.f32 %v4529, %v4824
        %v4862 = vadd.f32 %v4531, %v4826
        %v4863 = vadd.f32 %v4534, %v4829
        %v4864 = vadd.f32 %v4536, %v4831
        %v4866 = vrot.slane %v4049, 7
        %v4867 = vsel %vm956, %v4138, %v4866
        %v4868 = vrot.slane %v4050, 7
        %v4869 = vsel %vm956, %v4866, %v4868
        %v4872 = vmul.f32 %v4170, %v711
        %v4873 = vmul.f32 %v4083, %v712
        %v4874 = vmul.f32 %v4085, %v713
        %v4875 = vmul.f32 %v4087, %v714
        %v4876 = vmul.f32 %v4089, %v715
        %v4877 = vmul.f32 %v4091, %v716
        %v4878 = vmul.f32 %v4093, %v717
        %v4879 = vmul.f32 %v4095, %v718
        %v4880 = vmul.f32 %v4097, %v719
        %v4881 = vmul.f32 %v4099, %v720
        %v4882 = vmul.f32 %v4101, %v721
        %v4883 = vmul.f32 %v4103, %v722
        %v4884 = vmul.f32 %v4105, %v723
        %v4885 = vmul.f32 %v4107, %v724
        %v4886 = vmul.f32 %v4109, %v725
        %v4887 = vmul.f32 %v4111, %v726
        %v4888 = vmul.f32 %v4113, %v727
        %v4889 = vmul.f32 %v4115, %v728
        %v4890 = vmul.f32 %v4117, %v729
        %v4891 = vmul.f32 %v4119, %v730
        %v4892 = vmul.f32 %v4121, %v731
        %v4893 = vmul.f32 %v4123, %v732
        %v4894 = vmul.f32 %v4125, %v733
        %v4895 = vmul.f32 %v4127, %v734
        %v4896 = vmul.f32 %v4129, %v735
        %v4897 = vmul.f32 %v4131, %v736
        %v4898 = vmul.f32 %v4133, %v737
        %v4899 = vmul.f32 %v4135, %v738
        %v4900 = vmul.f32 %v4137, %v739
        %v4901 = vmul.f32 %v4139, %v740
        %v4902 = vmul.f32 %v4867, %v741
        %v4903 = vmul.f32 %v4869, %v742
        %v4904 = vpack.c.bf16 %v4873, %v4872
        %v4905 = vpack.c.bf16 %v4875, %v4874
        %v4906 = vpack.c.bf16 %v4877, %v4876
        %v4907 = vpack.c.bf16 %v4879, %v4878
        %v4908 = vpack.c.bf16 %v4881, %v4880
        %v4909 = vpack.c.bf16 %v4883, %v4882
        %v4910 = vpack.c.bf16 %v4885, %v4884
        %v4911 = vpack.c.bf16 %v4887, %v4886
        %v4912 = vpack.c.bf16 %v4889, %v4888
        %v4913 = vpack.c.bf16 %v4891, %v4890
        %v4914 = vpack.c.bf16 %v4893, %v4892
        %v4915 = vpack.c.bf16 %v4895, %v4894
        %v4916 = vpack.c.bf16 %v4897, %v4896
        %v4917 = vpack.c.bf16 %v4899, %v4898
        %v4918 = vpack.c.bf16 %v4901, %v4900
        %v4919 = vpack.c.bf16 %v4903, %v4902
        %s4920 = scalar_lea.vmem %s11, 192
        %v4921 = vld [vmem:[%s4920] sm:$0xf]
        %v4922 = vld [vmem:[%s4920 + $0x4] sm:$0xf]
        %v4923 = vld [vmem:[%s4920 + $0x8] sm:$0xf]
        %v4924 = vld [vmem:[%s4920 + $0xc] sm:$0xf]
        %v4925 = vld [vmem:[%s4920 + $0x10] sm:$0xf]
        %v4926 = vld [vmem:[%s4920 + $0x14] sm:$0xf]
        %v4927 = vld [vmem:[%s4920 + $0x18] sm:$0xf]
        %v4928 = vld [vmem:[%s4920 + $0x1c] sm:$0xf]
        %v4929 = vld [vmem:[%s4920 + $0x20] sm:$0xf]
        %v4930 = vld [vmem:[%s4920 + $0x24] sm:$0xf]
        %v4931 = vld [vmem:[%s4920 + $0x28] sm:$0xf]
        %v4932 = vld [vmem:[%s4920 + $0x2c] sm:$0xf]
        %v4933 = vld [vmem:[%s4920 + $0x30] sm:$0xf]
        %v4934 = vld [vmem:[%s4920 + $0x34] sm:$0xf]
        %v4935 = vld [vmem:[%s4920 + $0x38] sm:$0xf]
        %v4936 = vld [vmem:[%s4920 + $0x3c] sm:$0xf]
        %v4953 = vunpack.c.l.b16 %v4921
        %v4954 = vunpack.c.l.b16 %v4922
        %v4955 = vunpack.c.l.b16 %v4923
        %v4956 = vunpack.c.l.b16 %v4924
        %v4957 = vunpack.c.l.b16 %v4925
        %v4958 = vunpack.c.l.b16 %v4926
        %v4959 = vunpack.c.l.b16 %v4927
        %v4960 = vunpack.c.l.b16 %v4928
        %v4961 = vunpack.c.l.b16 %v4929
        %v4962 = vunpack.c.l.b16 %v4930
        %v4963 = vunpack.c.l.b16 %v4931
        %v4964 = vunpack.c.l.b16 %v4932
        %v4965 = vunpack.c.l.b16 %v4933
        %v4966 = vunpack.c.l.b16 %v4934
        %v4967 = vunpack.c.l.b16 %v4935
        %v4968 = vunpack.c.l.b16 %v4936
        %v4969 = vpack.c.b16 %v4954, %v4953
        %v4970 = vpack.c.b16 %v4956, %v4955
        %v4971 = vpack.c.b16 %v4958, %v4957
        %v4972 = vpack.c.b16 %v4960, %v4959
        %v4973 = vpack.c.b16 %v4962, %v4961
        %v4974 = vpack.c.b16 %v4964, %v4963
        %v4975 = vpack.c.b16 %v4966, %v4965
        %v4976 = vpack.c.b16 %v4968, %v4967
        %4985 = vmatpush.bf16.msra.mxu0 %v4976
        %4986 = vmatpush.bf16.msra.mxu0 %v4975
        %4987 = vmatpush.bf16.msra.mxu0 %v4974
        %4988 = vmatpush.bf16.msra.mxu0 %v4973
        %4989 = vmatpush.bf16.msra.mxu0 %v4972
        %4990 = vmatpush.bf16.msra.mxu0 %v4971
        %4991 = vmatpush.bf16.msra.mxu0 %v4970
        %4992 = vmatpush.bf16.msra.mxu0 %v4969
        %4993 = vmatmul.bf16.gmra.mxu0 %v4904
        %v4994 = vpop.f32.mrf.mxu0
        %v4995 = vadd.f32 0.0, %v4994
        %v4996 = vpop.f32.mrf.mxu0
        %v4997 = vadd.f32 0.0, %v4996
        %4998 = vmatmul.bf16.gmra.mxu0 %v4905
        %v4999 = vpop.f32.mrf.mxu0
        %v5000 = vadd.f32 0.0, %v4999
        %v5001 = vpop.f32.mrf.mxu0
        %v5002 = vadd.f32 0.0, %v5001
        %5003 = vmatmul.bf16.gmra.mxu0 %v4906
        %v5004 = vpop.f32.mrf.mxu0
        %v5005 = vadd.f32 0.0, %v5004
        %v5006 = vpop.f32.mrf.mxu0
        %v5007 = vadd.f32 0.0, %v5006
        %5008 = vmatmul.bf16.gmra.mxu0 %v4907
        %v5009 = vpop.f32.mrf.mxu0
        %v5010 = vadd.f32 0.0, %v5009
        %v5011 = vpop.f32.mrf.mxu0
        %v5012 = vadd.f32 0.0, %v5011
        %5013 = vmatmul.bf16.gmra.mxu0 %v4908
        %v5014 = vpop.f32.mrf.mxu0
        %v5015 = vadd.f32 0.0, %v5014
        %v5016 = vpop.f32.mrf.mxu0
        %v5017 = vadd.f32 0.0, %v5016
        %5018 = vmatmul.bf16.gmra.mxu0 %v4909
        %v5019 = vpop.f32.mrf.mxu0
        %v5020 = vadd.f32 0.0, %v5019
        %v5021 = vpop.f32.mrf.mxu0
        %v5022 = vadd.f32 0.0, %v5021
        %5023 = vmatmul.bf16.gmra.mxu0 %v4910
        %v5024 = vpop.f32.mrf.mxu0
        %v5025 = vadd.f32 0.0, %v5024
        %v5026 = vpop.f32.mrf.mxu0
        %v5027 = vadd.f32 0.0, %v5026
        %5028 = vmatmul.bf16.gmra.mxu0 %v4911
        %v5029 = vpop.f32.mrf.mxu0
        %v5030 = vadd.f32 0.0, %v5029
        %v5031 = vpop.f32.mrf.mxu0
        %v5032 = vadd.f32 0.0, %v5031
        %5033 = vmatmul.bf16.gmra.mxu0 %v4912
        %v5034 = vpop.f32.mrf.mxu0
        %v5035 = vadd.f32 0.0, %v5034
        %v5036 = vpop.f32.mrf.mxu0
        %v5037 = vadd.f32 0.0, %v5036
        %5038 = vmatmul.bf16.gmra.mxu0 %v4913
        %v5039 = vpop.f32.mrf.mxu0
        %v5040 = vadd.f32 0.0, %v5039
        %v5041 = vpop.f32.mrf.mxu0
        %v5042 = vadd.f32 0.0, %v5041
        %5043 = vmatmul.bf16.gmra.mxu0 %v4914
        %v5044 = vpop.f32.mrf.mxu0
        %v5045 = vadd.f32 0.0, %v5044
        %v5046 = vpop.f32.mrf.mxu0
        %v5047 = vadd.f32 0.0, %v5046
        %5048 = vmatmul.bf16.gmra.mxu0 %v4915
        %v5049 = vpop.f32.mrf.mxu0
        %v5050 = vadd.f32 0.0, %v5049
        %v5051 = vpop.f32.mrf.mxu0
        %v5052 = vadd.f32 0.0, %v5051
        %5053 = vmatmul.bf16.gmra.mxu0 %v4916
        %v5054 = vpop.f32.mrf.mxu0
        %v5055 = vadd.f32 0.0, %v5054
        %v5056 = vpop.f32.mrf.mxu0
        %v5057 = vadd.f32 0.0, %v5056
        %5058 = vmatmul.bf16.gmra.mxu0 %v4917
        %v5059 = vpop.f32.mrf.mxu0
        %v5060 = vadd.f32 0.0, %v5059
        %v5061 = vpop.f32.mrf.mxu0
        %v5062 = vadd.f32 0.0, %v5061
        %5063 = vmatmul.bf16.gmra.mxu0 %v4918
        %v5064 = vpop.f32.mrf.mxu0
        %v5065 = vadd.f32 0.0, %v5064
        %v5066 = vpop.f32.mrf.mxu0
        %v5067 = vadd.f32 0.0, %v5066
        %5068 = vmatmul.bf16.gmra.mxu0 %v4919
        %v5069 = vpop.f32.mrf.mxu0
        %v5070 = vadd.f32 0.0, %v5069
        %v5071 = vpop.f32.mrf.mxu0
        %v5072 = vadd.f32 0.0, %v5071
        %5073 = vdwg.mxu0
        %v5074 = vadd.f32 %v4833, %v4995
        %v5075 = vadd.f32 %v4834, %v4997
        %v5076 = vadd.f32 %v4835, %v5000
        %v5077 = vadd.f32 %v4836, %v5002
        %v5078 = vadd.f32 %v4837, %v5005
        %v5079 = vadd.f32 %v4838, %v5007
        %v5080 = vadd.f32 %v4839, %v5010
        %v5081 = vadd.f32 %v4840, %v5012
        %v5082 = vadd.f32 %v4841, %v5015
        %v5083 = vadd.f32 %v4842, %v5017
        %v5084 = vadd.f32 %v4843, %v5020
        %v5085 = vadd.f32 %v4844, %v5022
        %v5086 = vadd.f32 %v4845, %v5025
        %v5087 = vadd.f32 %v4846, %v5027
        %v5088 = vadd.f32 %v4847, %v5030
        %v5089 = vadd.f32 %v4848, %v5032
        %v5090 = vadd.f32 %v4849, %v5035
        %v5091 = vadd.f32 %v4850, %v5037
        %v5092 = vadd.f32 %v4851, %v5040
        %v5093 = vadd.f32 %v4852, %v5042
        %v5094 = vadd.f32 %v4853, %v5045
        %v5095 = vadd.f32 %v4854, %v5047
        %v5096 = vadd.f32 %v4855, %v5050
        %v5097 = vadd.f32 %v4856, %v5052
        %v5098 = vadd.f32 %v4857, %v5055
        %v5099 = vadd.f32 %v4858, %v5057
        %v5100 = vadd.f32 %v4859, %v5060
        %v5101 = vadd.f32 %v4860, %v5062
        %v5102 = vadd.f32 %v4861, %v5065
        %v5103 = vadd.f32 %v4862, %v5067
        %v5104 = vadd.f32 %v4863, %v5070
        %v5105 = vadd.f32 %v4864, %v5072
        %v5106 = vpack.c.bf16 %v4050, %v4049
        %s5107 = scalar_lea.vmem %s11, 256
        %v5108 = vld [vmem:[%s5107] sm:$0xf]
        %v5109 = vld [vmem:[%s5107 + $0x4] sm:$0xf]
        %v5110 = vld [vmem:[%s5107 + $0x8] sm:$0xf]
        %v5111 = vld [vmem:[%s5107 + $0xc] sm:$0xf]
        %v5112 = vld [vmem:[%s5107 + $0x10] sm:$0xf]
        %v5113 = vld [vmem:[%s5107 + $0x14] sm:$0xf]
        %v5114 = vld [vmem:[%s5107 + $0x18] sm:$0xf]
        %v5115 = vld [vmem:[%s5107 + $0x1c] sm:$0xf]
        %v5116 = vld [vmem:[%s5107 + $0x20] sm:$0xf]
        %v5117 = vld [vmem:[%s5107 + $0x24] sm:$0xf]
        %v5118 = vld [vmem:[%s5107 + $0x28] sm:$0xf]
        %v5119 = vld [vmem:[%s5107 + $0x2c] sm:$0xf]
        %v5120 = vld [vmem:[%s5107 + $0x30] sm:$0xf]
        %v5121 = vld [vmem:[%s5107 + $0x34] sm:$0xf]
        %v5122 = vld [vmem:[%s5107 + $0x38] sm:$0xf]
        %v5123 = vld [vmem:[%s5107 + $0x3c] sm:$0xf]
        %v5140 = vunpack.c.l.b16 %v5108
        %v5141 = vunpack.c.l.b16 %v5109
        %v5142 = vunpack.c.l.b16 %v5110
        %v5143 = vunpack.c.l.b16 %v5111
        %v5144 = vunpack.c.l.b16 %v5112
        %v5145 = vunpack.c.l.b16 %v5113
        %v5146 = vunpack.c.l.b16 %v5114
        %v5147 = vunpack.c.l.b16 %v5115
        %v5148 = vunpack.c.l.b16 %v5116
        %v5149 = vunpack.c.l.b16 %v5117
        %v5150 = vunpack.c.l.b16 %v5118
        %v5151 = vunpack.c.l.b16 %v5119
        %v5152 = vunpack.c.l.b16 %v5120
        %v5153 = vunpack.c.l.b16 %v5121
        %v5154 = vunpack.c.l.b16 %v5122
        %v5155 = vunpack.c.l.b16 %v5123
        %v5156 = vpack.c.b16 %v5141, %v5140
        %v5157 = vpack.c.b16 %v5143, %v5142
        %v5158 = vpack.c.b16 %v5145, %v5144
        %v5159 = vpack.c.b16 %v5147, %v5146
        %v5160 = vpack.c.b16 %v5149, %v5148
        %v5161 = vpack.c.b16 %v5151, %v5150
        %v5162 = vpack.c.b16 %v5153, %v5152
        %v5163 = vpack.c.b16 %v5155, %v5154
        %5172 = vmatpush.bf16.msra.mxu0 %v5163
        %5173 = vmatpush.bf16.msra.mxu0 %v5162
        %5174 = vmatpush.bf16.msra.mxu0 %v5161
        %5175 = vmatpush.bf16.msra.mxu0 %v5160
        %5176 = vmatpush.bf16.msra.mxu0 %v5159
        %5177 = vmatpush.bf16.msra.mxu0 %v5158
        %5178 = vmatpush.bf16.msra.mxu0 %v5157
        %5179 = vmatpush.bf16.msra.mxu0 %v5156
        %5180 = vmatmul.bf16.gmra.mxu0 %v4232
        %v5181 = vpop.f32.mrf.mxu0
        %v5182 = vadd.f32 0.0, %v5181
        %v5183 = vpop.f32.mrf.mxu0
        %v5184 = vadd.f32 0.0, %v5183
        %5185 = vmatmul.bf16.gmra.mxu0 %v4233
        %v5186 = vpop.f32.mrf.mxu0
        %v5187 = vadd.f32 0.0, %v5186
        %v5188 = vpop.f32.mrf.mxu0
        %v5189 = vadd.f32 0.0, %v5188
        %5190 = vmatmul.bf16.gmra.mxu0 %v4234
        %v5191 = vpop.f32.mrf.mxu0
        %v5192 = vadd.f32 0.0, %v5191
        %v5193 = vpop.f32.mrf.mxu0
        %v5194 = vadd.f32 0.0, %v5193
        %5195 = vmatmul.bf16.gmra.mxu0 %v4235
        %v5196 = vpop.f32.mrf.mxu0
        %v5197 = vadd.f32 0.0, %v5196
        %v5198 = vpop.f32.mrf.mxu0
        %v5199 = vadd.f32 0.0, %v5198
        %5200 = vmatmul.bf16.gmra.mxu0 %v4236
        %v5201 = vpop.f32.mrf.mxu0
        %v5202 = vadd.f32 0.0, %v5201
        %v5203 = vpop.f32.mrf.mxu0
        %v5204 = vadd.f32 0.0, %v5203
        %5205 = vmatmul.bf16.gmra.mxu0 %v4237
        %v5206 = vpop.f32.mrf.mxu0
        %v5207 = vadd.f32 0.0, %v5206
        %v5208 = vpop.f32.mrf.mxu0
        %v5209 = vadd.f32 0.0, %v5208
        %5210 = vmatmul.bf16.gmra.mxu0 %v4238
        %v5211 = vpop.f32.mrf.mxu0
        %v5212 = vadd.f32 0.0, %v5211
        %v5213 = vpop.f32.mrf.mxu0
        %v5214 = vadd.f32 0.0, %v5213
        %5215 = vmatmul.bf16.gmra.mxu0 %v4239
        %v5216 = vpop.f32.mrf.mxu0
        %v5217 = vadd.f32 0.0, %v5216
        %v5218 = vpop.f32.mrf.mxu0
        %v5219 = vadd.f32 0.0, %v5218
        %5220 = vmatmul.bf16.gmra.mxu0 %v4240
        %v5221 = vpop.f32.mrf.mxu0
        %v5222 = vadd.f32 0.0, %v5221
        %v5223 = vpop.f32.mrf.mxu0
        %v5224 = vadd.f32 0.0, %v5223
        %5225 = vmatmul.bf16.gmra.mxu0 %v4241
        %v5226 = vpop.f32.mrf.mxu0
        %v5227 = vadd.f32 0.0, %v5226
        %v5228 = vpop.f32.mrf.mxu0
        %v5229 = vadd.f32 0.0, %v5228
        %5230 = vmatmul.bf16.gmra.mxu0 %v4242
        %v5231 = vpop.f32.mrf.mxu0
        %v5232 = vadd.f32 0.0, %v5231
        %v5233 = vpop.f32.mrf.mxu0
        %v5234 = vadd.f32 0.0, %v5233
        %5235 = vmatmul.bf16.gmra.mxu0 %v4243
        %v5236 = vpop.f32.mrf.mxu0
        %v5237 = vadd.f32 0.0, %v5236
        %v5238 = vpop.f32.mrf.mxu0
        %v5239 = vadd.f32 0.0, %v5238
        %5240 = vmatmul.bf16.gmra.mxu0 %v4244
        %v5241 = vpop.f32.mrf.mxu0
        %v5242 = vadd.f32 0.0, %v5241
        %v5243 = vpop.f32.mrf.mxu0
        %v5244 = vadd.f32 0.0, %v5243
        %5245 = vmatmul.bf16.gmra.mxu0 %v4245
        %v5246 = vpop.f32.mrf.mxu0
        %v5247 = vadd.f32 0.0, %v5246
        %v5248 = vpop.f32.mrf.mxu0
        %v5249 = vadd.f32 0.0, %v5248
        %5250 = vmatmul.bf16.gmra.mxu0 %v4246
        %v5251 = vpop.f32.mrf.mxu0
        %v5252 = vadd.f32 0.0, %v5251
        %v5253 = vpop.f32.mrf.mxu0
        %v5254 = vadd.f32 0.0, %v5253
        %5255 = vmatmul.bf16.gmra.mxu0 %v5106
        %v5256 = vpop.f32.mrf.mxu0
        %v5257 = vadd.f32 0.0, %v5256
        %v5258 = vpop.f32.mrf.mxu0
        %v5259 = vadd.f32 0.0, %v5258
        %5260 = vdwg.mxu0
        %v5261 = vadd.f32 %v5074, %v5182
        %v5262 = vadd.f32 %v5075, %v5184
        %v5263 = vadd.f32 %v5076, %v5187
        %v5264 = vadd.f32 %v5077, %v5189
        %v5265 = vadd.f32 %v5078, %v5192
        %v5266 = vadd.f32 %v5079, %v5194
        %v5267 = vadd.f32 %v5080, %v5197
        %v5268 = vadd.f32 %v5081, %v5199
        %v5269 = vadd.f32 %v5082, %v5202
        %v5270 = vadd.f32 %v5083, %v5204
        %v5271 = vadd.f32 %v5084, %v5207
        %v5272 = vadd.f32 %v5085, %v5209
        %v5273 = vadd.f32 %v5086, %v5212
        %v5274 = vadd.f32 %v5087, %v5214
        %v5275 = vadd.f32 %v5088, %v5217
        %v5276 = vadd.f32 %v5089, %v5219
        %v5277 = vadd.f32 %v5090, %v5222
        %v5278 = vadd.f32 %v5091, %v5224
        %v5279 = vadd.f32 %v5092, %v5227
        %v5280 = vadd.f32 %v5093, %v5229
        %v5281 = vadd.f32 %v5094, %v5232
        %v5282 = vadd.f32 %v5095, %v5234
        %v5283 = vadd.f32 %v5096, %v5237
        %v5284 = vadd.f32 %v5097, %v5239
        %v5285 = vadd.f32 %v5098, %v5242
        %v5286 = vadd.f32 %v5099, %v5244
        %v5287 = vadd.f32 %v5100, %v5247
        %v5288 = vadd.f32 %v5101, %v5249
        %v5289 = vadd.f32 %v5102, %v5252
        %v5290 = vadd.f32 %v5103, %v5254
        %v5291 = vadd.f32 %v5104, %v5257
        %v5292 = vadd.f32 %v5105, %v5259
        %v5293 = vrot.slane %v4050, 1
        %v5294 = vsel %vm1841, %v4598, %v5293
        %v5297 = vsel %vm1841, %v5293, 0.0
        %v5298 = vmul.f32 %v4541, %v743
        %v5299 = vmul.f32 %v4543, %v744
        %v5300 = vmul.f32 %v4545, %v745
        %v5301 = vmul.f32 %v4547, %v746
        %v5302 = vmul.f32 %v4549, %v747
        %v5303 = vmul.f32 %v4551, %v748
        %v5304 = vmul.f32 %v4553, %v749
        %v5305 = vmul.f32 %v4555, %v750
        %v5306 = vmul.f32 %v4557, %v751
        %v5307 = vmul.f32 %v4559, %v752
        %v5308 = vmul.f32 %v4561, %v753
        %v5309 = vmul.f32 %v4563, %v754
        %v5310 = vmul.f32 %v4565, %v755
        %v5311 = vmul.f32 %v4567, %v756
        %v5312 = vmul.f32 %v4569, %v757
        %v5313 = vmul.f32 %v4571, %v758
        %v5314 = vmul.f32 %v4573, %v759
        %v5315 = vmul.f32 %v4575, %v760
        %v5316 = vmul.f32 %v4577, %v761
        %v5317 = vmul.f32 %v4579, %v762
        %v5318 = vmul.f32 %v4581, %v763
        %v5319 = vmul.f32 %v4583, %v764
        %v5320 = vmul.f32 %v4585, %v765
        %v5321 = vmul.f32 %v4587, %v766
        %v5322 = vmul.f32 %v4589, %v767
        %v5323 = vmul.f32 %v4591, %v768
        %v5324 = vmul.f32 %v4593, %v769
        %v5325 = vmul.f32 %v4595, %v770
        %v5326 = vmul.f32 %v4597, %v771
        %v5327 = vmul.f32 %v4599, %v772
        %v5328 = vmul.f32 %v5294, %v773
        %v5329 = vmul.f32 %v5297, %v774
        %v5330 = vpack.c.bf16 %v5299, %v5298
        %v5331 = vpack.c.bf16 %v5301, %v5300
        %v5332 = vpack.c.bf16 %v5303, %v5302
        %v5333 = vpack.c.bf16 %v5305, %v5304
        %v5334 = vpack.c.bf16 %v5307, %v5306
        %v5335 = vpack.c.bf16 %v5309, %v5308
        %v5336 = vpack.c.bf16 %v5311, %v5310
        %v5337 = vpack.c.bf16 %v5313, %v5312
        %v5338 = vpack.c.bf16 %v5315, %v5314
        %v5339 = vpack.c.bf16 %v5317, %v5316
        %v5340 = vpack.c.bf16 %v5319, %v5318
        %v5341 = vpack.c.bf16 %v5321, %v5320
        %v5342 = vpack.c.bf16 %v5323, %v5322
        %v5343 = vpack.c.bf16 %v5325, %v5324
        %v5344 = vpack.c.bf16 %v5327, %v5326
        %v5345 = vpack.c.bf16 %v5329, %v5328
        %s5346 = scalar_lea.vmem %s11, 320
        %v5347 = vld [vmem:[%s5346] sm:$0xf]
        %v5348 = vld [vmem:[%s5346 + $0x4] sm:$0xf]
        %v5349 = vld [vmem:[%s5346 + $0x8] sm:$0xf]
        %v5350 = vld [vmem:[%s5346 + $0xc] sm:$0xf]
        %v5351 = vld [vmem:[%s5346 + $0x10] sm:$0xf]
        %v5352 = vld [vmem:[%s5346 + $0x14] sm:$0xf]
        %v5353 = vld [vmem:[%s5346 + $0x18] sm:$0xf]
        %v5354 = vld [vmem:[%s5346 + $0x1c] sm:$0xf]
        %v5355 = vld [vmem:[%s5346 + $0x20] sm:$0xf]
        %v5356 = vld [vmem:[%s5346 + $0x24] sm:$0xf]
        %v5357 = vld [vmem:[%s5346 + $0x28] sm:$0xf]
        %v5358 = vld [vmem:[%s5346 + $0x2c] sm:$0xf]
        %v5359 = vld [vmem:[%s5346 + $0x30] sm:$0xf]
        %v5360 = vld [vmem:[%s5346 + $0x34] sm:$0xf]
        %v5361 = vld [vmem:[%s5346 + $0x38] sm:$0xf]
        %v5362 = vld [vmem:[%s5346 + $0x3c] sm:$0xf]
        %v5379 = vunpack.c.l.b16 %v5347
        %v5380 = vunpack.c.l.b16 %v5348
        %v5381 = vunpack.c.l.b16 %v5349
        %v5382 = vunpack.c.l.b16 %v5350
        %v5383 = vunpack.c.l.b16 %v5351
        %v5384 = vunpack.c.l.b16 %v5352
        %v5385 = vunpack.c.l.b16 %v5353
        %v5386 = vunpack.c.l.b16 %v5354
        %v5387 = vunpack.c.l.b16 %v5355
        %v5388 = vunpack.c.l.b16 %v5356
        %v5389 = vunpack.c.l.b16 %v5357
        %v5390 = vunpack.c.l.b16 %v5358
        %v5391 = vunpack.c.l.b16 %v5359
        %v5392 = vunpack.c.l.b16 %v5360
        %v5393 = vunpack.c.l.b16 %v5361
        %v5394 = vunpack.c.l.b16 %v5362
        %v5395 = vpack.c.b16 %v5380, %v5379
        %v5396 = vpack.c.b16 %v5382, %v5381
        %v5397 = vpack.c.b16 %v5384, %v5383
        %v5398 = vpack.c.b16 %v5386, %v5385
        %v5399 = vpack.c.b16 %v5388, %v5387
        %v5400 = vpack.c.b16 %v5390, %v5389
        %v5401 = vpack.c.b16 %v5392, %v5391
        %v5402 = vpack.c.b16 %v5394, %v5393
        %5411 = vmatpush.bf16.msra.mxu0 %v5402
        %5412 = vmatpush.bf16.msra.mxu0 %v5401
        %5413 = vmatpush.bf16.msra.mxu0 %v5400
        %5414 = vmatpush.bf16.msra.mxu0 %v5399
        %5415 = vmatpush.bf16.msra.mxu0 %v5398
        %5416 = vmatpush.bf16.msra.mxu0 %v5397
        %5417 = vmatpush.bf16.msra.mxu0 %v5396
        %5418 = vmatpush.bf16.msra.mxu0 %v5395
        %5419 = vmatmul.bf16.gmra.mxu0 %v5330
        %v5420 = vpop.f32.mrf.mxu0
        %v5421 = vadd.f32 0.0, %v5420
        %v5422 = vpop.f32.mrf.mxu0
        %v5423 = vadd.f32 0.0, %v5422
        %5424 = vmatmul.bf16.gmra.mxu0 %v5331
        %v5425 = vpop.f32.mrf.mxu0
        %v5426 = vadd.f32 0.0, %v5425
        %v5427 = vpop.f32.mrf.mxu0
        %v5428 = vadd.f32 0.0, %v5427
        %5429 = vmatmul.bf16.gmra.mxu0 %v5332
        %v5430 = vpop.f32.mrf.mxu0
        %v5431 = vadd.f32 0.0, %v5430
        %v5432 = vpop.f32.mrf.mxu0
        %v5433 = vadd.f32 0.0, %v5432
        %5434 = vmatmul.bf16.gmra.mxu0 %v5333
        %v5435 = vpop.f32.mrf.mxu0
        %v5436 = vadd.f32 0.0, %v5435
        %v5437 = vpop.f32.mrf.mxu0
        %v5438 = vadd.f32 0.0, %v5437
        %5439 = vmatmul.bf16.gmra.mxu0 %v5334
        %v5440 = vpop.f32.mrf.mxu0
        %v5441 = vadd.f32 0.0, %v5440
        %v5442 = vpop.f32.mrf.mxu0
        %v5443 = vadd.f32 0.0, %v5442
        %5444 = vmatmul.bf16.gmra.mxu0 %v5335
        %v5445 = vpop.f32.mrf.mxu0
        %v5446 = vadd.f32 0.0, %v5445
        %v5447 = vpop.f32.mrf.mxu0
        %v5448 = vadd.f32 0.0, %v5447
        %5449 = vmatmul.bf16.gmra.mxu0 %v5336
        %v5450 = vpop.f32.mrf.mxu0
        %v5451 = vadd.f32 0.0, %v5450
        %v5452 = vpop.f32.mrf.mxu0
        %v5453 = vadd.f32 0.0, %v5452
        %5454 = vmatmul.bf16.gmra.mxu0 %v5337
        %v5455 = vpop.f32.mrf.mxu0
        %v5456 = vadd.f32 0.0, %v5455
        %v5457 = vpop.f32.mrf.mxu0
        %v5458 = vadd.f32 0.0, %v5457
        %5459 = vmatmul.bf16.gmra.mxu0 %v5338
        %v5460 = vpop.f32.mrf.mxu0
        %v5461 = vadd.f32 0.0, %v5460
        %v5462 = vpop.f32.mrf.mxu0
        %v5463 = vadd.f32 0.0, %v5462
        %5464 = vmatmul.bf16.gmra.mxu0 %v5339
        %v5465 = vpop.f32.mrf.mxu0
        %v5466 = vadd.f32 0.0, %v5465
        %v5467 = vpop.f32.mrf.mxu0
        %v5468 = vadd.f32 0.0, %v5467
        %5469 = vmatmul.bf16.gmra.mxu0 %v5340
        %v5470 = vpop.f32.mrf.mxu0
        %v5471 = vadd.f32 0.0, %v5470
        %v5472 = vpop.f32.mrf.mxu0
        %v5473 = vadd.f32 0.0, %v5472
        %5474 = vmatmul.bf16.gmra.mxu0 %v5341
        %v5475 = vpop.f32.mrf.mxu0
        %v5476 = vadd.f32 0.0, %v5475
        %v5477 = vpop.f32.mrf.mxu0
        %v5478 = vadd.f32 0.0, %v5477
        %5479 = vmatmul.bf16.gmra.mxu0 %v5342
        %v5480 = vpop.f32.mrf.mxu0
        %v5481 = vadd.f32 0.0, %v5480
        %v5482 = vpop.f32.mrf.mxu0
        %v5483 = vadd.f32 0.0, %v5482
        %5484 = vmatmul.bf16.gmra.mxu0 %v5343
        %v5485 = vpop.f32.mrf.mxu0
        %v5486 = vadd.f32 0.0, %v5485
        %v5487 = vpop.f32.mrf.mxu0
        %v5488 = vadd.f32 0.0, %v5487
        %5489 = vmatmul.bf16.gmra.mxu0 %v5344
        %v5490 = vpop.f32.mrf.mxu0
        %v5491 = vadd.f32 0.0, %v5490
        %v5492 = vpop.f32.mrf.mxu0
        %v5493 = vadd.f32 0.0, %v5492
        %5494 = vmatmul.bf16.gmra.mxu0 %v5345
        %v5495 = vpop.f32.mrf.mxu0
        %v5496 = vadd.f32 0.0, %v5495
        %v5497 = vpop.f32.mrf.mxu0
        %v5498 = vadd.f32 0.0, %v5497
        %5499 = vdwg.mxu0
        %v5500 = vadd.f32 %v5261, %v5421
        %v5501 = vadd.f32 %v5262, %v5423
        %v5502 = vadd.f32 %v5263, %v5426
        %v5503 = vadd.f32 %v5264, %v5428
        %v5504 = vadd.f32 %v5265, %v5431
        %v5505 = vadd.f32 %v5266, %v5433
        %v5506 = vadd.f32 %v5267, %v5436
        %v5507 = vadd.f32 %v5268, %v5438
        %v5508 = vadd.f32 %v5269, %v5441
        %v5509 = vadd.f32 %v5270, %v5443
        %v5510 = vadd.f32 %v5271, %v5446
        %v5511 = vadd.f32 %v5272, %v5448
        %v5512 = vadd.f32 %v5273, %v5451
        %v5513 = vadd.f32 %v5274, %v5453
        %v5514 = vadd.f32 %v5275, %v5456
        %v5515 = vadd.f32 %v5276, %v5458
        %v5516 = vadd.f32 %v5277, %v5461
        %v5517 = vadd.f32 %v5278, %v5463
        %v5518 = vadd.f32 %v5279, %v5466
        %v5519 = vadd.f32 %v5280, %v5468
        %v5520 = vadd.f32 %v5281, %v5471
        %v5521 = vadd.f32 %v5282, %v5473
        %v5522 = vadd.f32 %v5283, %v5476
        %v5523 = vadd.f32 %v5284, %v5478
        %v5524 = vadd.f32 %v5285, %v5481
        %v5525 = vadd.f32 %v5286, %v5483
        %v5526 = vadd.f32 %v5287, %v5486
        %v5527 = vadd.f32 %v5288, %v5488
        %v5528 = vadd.f32 %v5289, %v5491
        %v5529 = vadd.f32 %v5290, %v5493
        %v5530 = vadd.f32 %v5291, %v5496
        %v5531 = vadd.f32 %v5292, %v5498
        %v5533 = vsel %vm956, %v4868, 0.0
        %v5534 = vmul.f32 %v4085, %v711
        %v5535 = vmul.f32 %v4087, %v712
        %v5536 = vmul.f32 %v4089, %v713
        %v5537 = vmul.f32 %v4091, %v714
        %v5538 = vmul.f32 %v4093, %v715
        %v5539 = vmul.f32 %v4095, %v716
        %v5540 = vmul.f32 %v4097, %v717
        %v5541 = vmul.f32 %v4099, %v718
        %v5542 = vmul.f32 %v4101, %v719
        %v5543 = vmul.f32 %v4103, %v720
        %v5544 = vmul.f32 %v4105, %v721
        %v5545 = vmul.f32 %v4107, %v722
        %v5546 = vmul.f32 %v4109, %v723
        %v5547 = vmul.f32 %v4111, %v724
        %v5548 = vmul.f32 %v4113, %v725
        %v5549 = vmul.f32 %v4115, %v726
        %v5550 = vmul.f32 %v4117, %v727
        %v5551 = vmul.f32 %v4119, %v728
        %v5552 = vmul.f32 %v4121, %v729
        %v5553 = vmul.f32 %v4123, %v730
        %v5554 = vmul.f32 %v4125, %v731
        %v5555 = vmul.f32 %v4127, %v732
        %v5556 = vmul.f32 %v4129, %v733
        %v5557 = vmul.f32 %v4131, %v734
        %v5558 = vmul.f32 %v4133, %v735
        %v5559 = vmul.f32 %v4135, %v736
        %v5560 = vmul.f32 %v4137, %v737
        %v5561 = vmul.f32 %v4139, %v738
        %v5562 = vmul.f32 %v4867, %v739
        %v5563 = vmul.f32 %v4869, %v740
        %v5564 = vmul.f32 %v5533, %v741
        %v5565 = vpack.c.bf16 %v5535, %v5534
        %v5566 = vpack.c.bf16 %v5537, %v5536
        %v5567 = vpack.c.bf16 %v5539, %v5538
        %v5568 = vpack.c.bf16 %v5541, %v5540
        %v5569 = vpack.c.bf16 %v5543, %v5542
        %v5570 = vpack.c.bf16 %v5545, %v5544
        %v5571 = vpack.c.bf16 %v5547, %v5546
        %v5572 = vpack.c.bf16 %v5549, %v5548
        %v5573 = vpack.c.bf16 %v5551, %v5550
        %v5574 = vpack.c.bf16 %v5553, %v5552
        %v5575 = vpack.c.bf16 %v5555, %v5554
        %v5576 = vpack.c.bf16 %v5557, %v5556
        %v5577 = vpack.c.bf16 %v5559, %v5558
        %v5578 = vpack.c.bf16 %v5561, %v5560
        %v5579 = vpack.c.bf16 %v5563, %v5562
        %v5580 = vpack.c.bf16 %v2888, %v5564
        %s5581 = scalar_lea.vmem %s11, 384
        %v5582 = vld [vmem:[%s5581] sm:$0xf]
        %v5583 = vld [vmem:[%s5581 + $0x4] sm:$0xf]
        %v5584 = vld [vmem:[%s5581 + $0x8] sm:$0xf]
        %v5585 = vld [vmem:[%s5581 + $0xc] sm:$0xf]
        %v5586 = vld [vmem:[%s5581 + $0x10] sm:$0xf]
        %v5587 = vld [vmem:[%s5581 + $0x14] sm:$0xf]
        %v5588 = vld [vmem:[%s5581 + $0x18] sm:$0xf]
        %v5589 = vld [vmem:[%s5581 + $0x1c] sm:$0xf]
        %v5590 = vld [vmem:[%s5581 + $0x20] sm:$0xf]
        %v5591 = vld [vmem:[%s5581 + $0x24] sm:$0xf]
        %v5592 = vld [vmem:[%s5581 + $0x28] sm:$0xf]
        %v5593 = vld [vmem:[%s5581 + $0x2c] sm:$0xf]
        %v5594 = vld [vmem:[%s5581 + $0x30] sm:$0xf]
        %v5595 = vld [vmem:[%s5581 + $0x34] sm:$0xf]
        %v5596 = vld [vmem:[%s5581 + $0x38] sm:$0xf]
        %v5597 = vld [vmem:[%s5581 + $0x3c] sm:$0xf]
        %v5614 = vunpack.c.l.b16 %v5582
        %v5615 = vunpack.c.l.b16 %v5583
        %v5616 = vunpack.c.l.b16 %v5584
        %v5617 = vunpack.c.l.b16 %v5585
        %v5618 = vunpack.c.l.b16 %v5586
        %v5619 = vunpack.c.l.b16 %v5587
        %v5620 = vunpack.c.l.b16 %v5588
        %v5621 = vunpack.c.l.b16 %v5589
        %v5622 = vunpack.c.l.b16 %v5590
        %v5623 = vunpack.c.l.b16 %v5591
        %v5624 = vunpack.c.l.b16 %v5592
        %v5625 = vunpack.c.l.b16 %v5593
        %v5626 = vunpack.c.l.b16 %v5594
        %v5627 = vunpack.c.l.b16 %v5595
        %v5628 = vunpack.c.l.b16 %v5596
        %v5629 = vunpack.c.l.b16 %v5597
        %v5630 = vpack.c.b16 %v5615, %v5614
        %v5631 = vpack.c.b16 %v5617, %v5616
        %v5632 = vpack.c.b16 %v5619, %v5618
        %v5633 = vpack.c.b16 %v5621, %v5620
        %v5634 = vpack.c.b16 %v5623, %v5622
        %v5635 = vpack.c.b16 %v5625, %v5624
        %v5636 = vpack.c.b16 %v5627, %v5626
        %v5637 = vpack.c.b16 %v5629, %v5628
        %5646 = vmatpush.bf16.msra.mxu0 %v5637
        %5647 = vmatpush.bf16.msra.mxu0 %v5636
        %5648 = vmatpush.bf16.msra.mxu0 %v5635
        %5649 = vmatpush.bf16.msra.mxu0 %v5634
        %5650 = vmatpush.bf16.msra.mxu0 %v5633
        %5651 = vmatpush.bf16.msra.mxu0 %v5632
        %5652 = vmatpush.bf16.msra.mxu0 %v5631
        %5653 = vmatpush.bf16.msra.mxu0 %v5630
        %5654 = vmatmul.bf16.gmra.mxu0 %v5565
        %v5655 = vpop.f32.mrf.mxu0
        %v5656 = vadd.f32 0.0, %v5655
        %v5657 = vpop.f32.mrf.mxu0
        %v5658 = vadd.f32 0.0, %v5657
        %5659 = vmatmul.bf16.gmra.mxu0 %v5566
        %v5660 = vpop.f32.mrf.mxu0
        %v5661 = vadd.f32 0.0, %v5660
        %v5662 = vpop.f32.mrf.mxu0
        %v5663 = vadd.f32 0.0, %v5662
        %5664 = vmatmul.bf16.gmra.mxu0 %v5567
        %v5665 = vpop.f32.mrf.mxu0
        %v5666 = vadd.f32 0.0, %v5665
        %v5667 = vpop.f32.mrf.mxu0
        %v5668 = vadd.f32 0.0, %v5667
        %5669 = vmatmul.bf16.gmra.mxu0 %v5568
        %v5670 = vpop.f32.mrf.mxu0
        %v5671 = vadd.f32 0.0, %v5670
        %v5672 = vpop.f32.mrf.mxu0
        %v5673 = vadd.f32 0.0, %v5672
        %5674 = vmatmul.bf16.gmra.mxu0 %v5569
        %v5675 = vpop.f32.mrf.mxu0
        %v5676 = vadd.f32 0.0, %v5675
        %v5677 = vpop.f32.mrf.mxu0
        %v5678 = vadd.f32 0.0, %v5677
        %5679 = vmatmul.bf16.gmra.mxu0 %v5570
        %v5680 = vpop.f32.mrf.mxu0
        %v5681 = vadd.f32 0.0, %v5680
        %v5682 = vpop.f32.mrf.mxu0
        %v5683 = vadd.f32 0.0, %v5682
        %5684 = vmatmul.bf16.gmra.mxu0 %v5571
        %v5685 = vpop.f32.mrf.mxu0
        %v5686 = vadd.f32 0.0, %v5685
        %v5687 = vpop.f32.mrf.mxu0
        %v5688 = vadd.f32 0.0, %v5687
        %5689 = vmatmul.bf16.gmra.mxu0 %v5572
        %v5690 = vpop.f32.mrf.mxu0
        %v5691 = vadd.f32 0.0, %v5690
        %v5692 = vpop.f32.mrf.mxu0
        %v5693 = vadd.f32 0.0, %v5692
        %5694 = vmatmul.bf16.gmra.mxu0 %v5573
        %v5695 = vpop.f32.mrf.mxu0
        %v5696 = vadd.f32 0.0, %v5695
        %v5697 = vpop.f32.mrf.mxu0
        %v5698 = vadd.f32 0.0, %v5697
        %5699 = vmatmul.bf16.gmra.mxu0 %v5574
        %v5700 = vpop.f32.mrf.mxu0
        %v5701 = vadd.f32 0.0, %v5700
        %v5702 = vpop.f32.mrf.mxu0
        %v5703 = vadd.f32 0.0, %v5702
        %5704 = vmatmul.bf16.gmra.mxu0 %v5575
        %v5705 = vpop.f32.mrf.mxu0
        %v5706 = vadd.f32 0.0, %v5705
        %v5707 = vpop.f32.mrf.mxu0
        %v5708 = vadd.f32 0.0, %v5707
        %5709 = vmatmul.bf16.gmra.mxu0 %v5576
        %v5710 = vpop.f32.mrf.mxu0
        %v5711 = vadd.f32 0.0, %v5710
        %v5712 = vpop.f32.mrf.mxu0
        %v5713 = vadd.f32 0.0, %v5712
        %5714 = vmatmul.bf16.gmra.mxu0 %v5577
        %v5715 = vpop.f32.mrf.mxu0
        %v5716 = vadd.f32 0.0, %v5715
        %v5717 = vpop.f32.mrf.mxu0
        %v5718 = vadd.f32 0.0, %v5717
        %5719 = vmatmul.bf16.gmra.mxu0 %v5578
        %v5720 = vpop.f32.mrf.mxu0
        %v5721 = vadd.f32 0.0, %v5720
        %v5722 = vpop.f32.mrf.mxu0
        %v5723 = vadd.f32 0.0, %v5722
        %5724 = vmatmul.bf16.gmra.mxu0 %v5579
        %v5725 = vpop.f32.mrf.mxu0
        %v5726 = vadd.f32 0.0, %v5725
        %v5727 = vpop.f32.mrf.mxu0
        %v5728 = vadd.f32 0.0, %v5727
        %5729 = vmatmul.bf16.gmra.mxu0 %v5580
        %v5730 = vpop.f32.mrf.mxu0
        %v5731 = vadd.f32 0.0, %v5730
        %v5732 = vpop.f32.mrf.mxu0
        %v5733 = vadd.f32 0.0, %v5732
        %5734 = vdwg.mxu0
        %v5735 = vadd.f32 %v5500, %v5656
        %v5736 = vadd.f32 %v5501, %v5658
        %v5737 = vadd.f32 %v5502, %v5661
        %v5738 = vadd.f32 %v5503, %v5663
        %v5739 = vadd.f32 %v5504, %v5666
        %v5740 = vadd.f32 %v5505, %v5668
        %v5741 = vadd.f32 %v5506, %v5671
        %v5742 = vadd.f32 %v5507, %v5673
        %v5743 = vadd.f32 %v5508, %v5676
        %v5744 = vadd.f32 %v5509, %v5678
        %v5745 = vadd.f32 %v5510, %v5681
        %v5746 = vadd.f32 %v5511, %v5683
        %v5747 = vadd.f32 %v5512, %v5686
        %v5748 = vadd.f32 %v5513, %v5688
        %v5749 = vadd.f32 %v5514, %v5691
        %v5750 = vadd.f32 %v5515, %v5693
        %v5751 = vadd.f32 %v5516, %v5696
        %v5752 = vadd.f32 %v5517, %v5698
        %v5753 = vadd.f32 %v5518, %v5701
        %v5754 = vadd.f32 %v5519, %v5703
        %v5755 = vadd.f32 %v5520, %v5706
        %v5756 = vadd.f32 %v5521, %v5708
        %v5757 = vadd.f32 %v5522, %v5711
        %v5758 = vadd.f32 %v5523, %v5713
        %v5759 = vadd.f32 %v5524, %v5716
        %v5760 = vadd.f32 %v5525, %v5718
        %v5761 = vadd.f32 %v5526, %v5721
        %v5762 = vadd.f32 %v5527, %v5723
        %v5763 = vadd.f32 %v5528, %v5726
        %v5764 = vadd.f32 %v5529, %v5728
        %v5765 = vadd.f32 %v5530, %v5731
        %v5766 = vadd.f32 %v5531, %v5733
        %s5767 = scalar_lea.vmem %s11, 448
        %v5768 = vld [vmem:[%s5767] sm:$0xf]
        %v5769 = vld [vmem:[%s5767 + $0x4] sm:$0xf]
        %v5770 = vld [vmem:[%s5767 + $0x8] sm:$0xf]
        %v5771 = vld [vmem:[%s5767 + $0xc] sm:$0xf]
        %v5772 = vld [vmem:[%s5767 + $0x10] sm:$0xf]
        %v5773 = vld [vmem:[%s5767 + $0x14] sm:$0xf]
        %v5774 = vld [vmem:[%s5767 + $0x18] sm:$0xf]
        %v5775 = vld [vmem:[%s5767 + $0x1c] sm:$0xf]
        %v5776 = vld [vmem:[%s5767 + $0x20] sm:$0xf]
        %v5777 = vld [vmem:[%s5767 + $0x24] sm:$0xf]
        %v5778 = vld [vmem:[%s5767 + $0x28] sm:$0xf]
        %v5779 = vld [vmem:[%s5767 + $0x2c] sm:$0xf]
        %v5780 = vld [vmem:[%s5767 + $0x30] sm:$0xf]
        %v5781 = vld [vmem:[%s5767 + $0x34] sm:$0xf]
        %v5782 = vld [vmem:[%s5767 + $0x38] sm:$0xf]
        %v5783 = vld [vmem:[%s5767 + $0x3c] sm:$0xf]
        %v5800 = vunpack.c.l.b16 %v5768
        %v5801 = vunpack.c.l.b16 %v5769
        %v5802 = vunpack.c.l.b16 %v5770
        %v5803 = vunpack.c.l.b16 %v5771
        %v5804 = vunpack.c.l.b16 %v5772
        %v5805 = vunpack.c.l.b16 %v5773
        %v5806 = vunpack.c.l.b16 %v5774
        %v5807 = vunpack.c.l.b16 %v5775
        %v5808 = vunpack.c.l.b16 %v5776
        %v5809 = vunpack.c.l.b16 %v5777
        %v5810 = vunpack.c.l.b16 %v5778
        %v5811 = vunpack.c.l.b16 %v5779
        %v5812 = vunpack.c.l.b16 %v5780
        %v5813 = vunpack.c.l.b16 %v5781
        %v5814 = vunpack.c.l.b16 %v5782
        %v5815 = vunpack.c.l.b16 %v5783
        %v5816 = vpack.c.b16 %v5801, %v5800
        %v5817 = vpack.c.b16 %v5803, %v5802
        %v5818 = vpack.c.b16 %v5805, %v5804
        %v5819 = vpack.c.b16 %v5807, %v5806
        %v5820 = vpack.c.b16 %v5809, %v5808
        %v5821 = vpack.c.b16 %v5811, %v5810
        %v5822 = vpack.c.b16 %v5813, %v5812
        %v5823 = vpack.c.b16 %v5815, %v5814
        %5832 = vmatpush.bf16.msra.mxu0 %v5823
        %5833 = vmatpush.bf16.msra.mxu0 %v5822
        %5834 = vmatpush.bf16.msra.mxu0 %v5821
        %5835 = vmatpush.bf16.msra.mxu0 %v5820
        %5836 = vmatpush.bf16.msra.mxu0 %v5819
        %5837 = vmatpush.bf16.msra.mxu0 %v5818
        %5838 = vmatpush.bf16.msra.mxu0 %v5817
        %5839 = vmatpush.bf16.msra.mxu0 %v5816
        %5840 = vmatmul.bf16.gmra.mxu0 %v4233
        %v5841 = vpop.f32.mrf.mxu0
        %v5842 = vadd.f32 0.0, %v5841
        %v5843 = vpop.f32.mrf.mxu0
        %v5844 = vadd.f32 0.0, %v5843
        %5845 = vmatmul.bf16.gmra.mxu0 %v4234
        %v5846 = vpop.f32.mrf.mxu0
        %v5847 = vadd.f32 0.0, %v5846
        %v5848 = vpop.f32.mrf.mxu0
        %v5849 = vadd.f32 0.0, %v5848
        %5850 = vmatmul.bf16.gmra.mxu0 %v4235
        %v5851 = vpop.f32.mrf.mxu0
        %v5852 = vadd.f32 0.0, %v5851
        %v5853 = vpop.f32.mrf.mxu0
        %v5854 = vadd.f32 0.0, %v5853
        %5855 = vmatmul.bf16.gmra.mxu0 %v4236
        %v5856 = vpop.f32.mrf.mxu0
        %v5857 = vadd.f32 0.0, %v5856
        %v5858 = vpop.f32.mrf.mxu0
        %v5859 = vadd.f32 0.0, %v5858
        %5860 = vmatmul.bf16.gmra.mxu0 %v4237
        %v5861 = vpop.f32.mrf.mxu0
        %v5862 = vadd.f32 0.0, %v5861
        %v5863 = vpop.f32.mrf.mxu0
        %v5864 = vadd.f32 0.0, %v5863
        %5865 = vmatmul.bf16.gmra.mxu0 %v4238
        %v5866 = vpop.f32.mrf.mxu0
        %v5867 = vadd.f32 0.0, %v5866
        %v5868 = vpop.f32.mrf.mxu0
        %v5869 = vadd.f32 0.0, %v5868
        %5870 = vmatmul.bf16.gmra.mxu0 %v4239
        %v5871 = vpop.f32.mrf.mxu0
        %v5872 = vadd.f32 0.0, %v5871
        %v5873 = vpop.f32.mrf.mxu0
        %v5874 = vadd.f32 0.0, %v5873
        %5875 = vmatmul.bf16.gmra.mxu0 %v4240
        %v5876 = vpop.f32.mrf.mxu0
        %v5877 = vadd.f32 0.0, %v5876
        %v5878 = vpop.f32.mrf.mxu0
        %v5879 = vadd.f32 0.0, %v5878
        %5880 = vmatmul.bf16.gmra.mxu0 %v4241
        %v5881 = vpop.f32.mrf.mxu0
        %v5882 = vadd.f32 0.0, %v5881
        %v5883 = vpop.f32.mrf.mxu0
        %v5884 = vadd.f32 0.0, %v5883
        %5885 = vmatmul.bf16.gmra.mxu0 %v4242
        %v5886 = vpop.f32.mrf.mxu0
        %v5887 = vadd.f32 0.0, %v5886
        %v5888 = vpop.f32.mrf.mxu0
        %v5889 = vadd.f32 0.0, %v5888
        %5890 = vmatmul.bf16.gmra.mxu0 %v4243
        %v5891 = vpop.f32.mrf.mxu0
        %v5892 = vadd.f32 0.0, %v5891
        %v5893 = vpop.f32.mrf.mxu0
        %v5894 = vadd.f32 0.0, %v5893
        %5895 = vmatmul.bf16.gmra.mxu0 %v4244
        %v5896 = vpop.f32.mrf.mxu0
        %v5897 = vadd.f32 0.0, %v5896
        %v5898 = vpop.f32.mrf.mxu0
        %v5899 = vadd.f32 0.0, %v5898
        %5900 = vmatmul.bf16.gmra.mxu0 %v4245
        %v5901 = vpop.f32.mrf.mxu0
        %v5902 = vadd.f32 0.0, %v5901
        %v5903 = vpop.f32.mrf.mxu0
        %v5904 = vadd.f32 0.0, %v5903
        %5905 = vmatmul.bf16.gmra.mxu0 %v4246
        %v5906 = vpop.f32.mrf.mxu0
        %v5907 = vadd.f32 0.0, %v5906
        %v5908 = vpop.f32.mrf.mxu0
        %v5909 = vadd.f32 0.0, %v5908
        %5910 = vmatmul.bf16.gmra.mxu0 %v5106
        %v5911 = vpop.f32.mrf.mxu0
        %v5912 = vadd.f32 0.0, %v5911
        %v5913 = vpop.f32.mrf.mxu0
        %v5914 = vadd.f32 0.0, %v5913
        %5915 = vmatmul.bf16.gmra.mxu0 %v1493
        %v5916 = vpop.f32.mrf.mxu0
        %v5917 = vadd.f32 0.0, %v5916
        %v5918 = vpop.f32.mrf.mxu0
        %v5919 = vadd.f32 0.0, %v5918
        %5920 = vdwg.mxu0
        %v5921 = vadd.f32 %v5735, %v5842
        %v5922 = vadd.f32 %v5736, %v5844
        %v5923 = vadd.f32 %v5737, %v5847
        %v5924 = vadd.f32 %v5738, %v5849
        %v5925 = vadd.f32 %v5739, %v5852
        %v5926 = vadd.f32 %v5740, %v5854
        %v5927 = vadd.f32 %v5741, %v5857
        %v5928 = vadd.f32 %v5742, %v5859
        %v5929 = vadd.f32 %v5743, %v5862
        %v5930 = vadd.f32 %v5744, %v5864
        %v5931 = vadd.f32 %v5745, %v5867
        %v5932 = vadd.f32 %v5746, %v5869
        %v5933 = vadd.f32 %v5747, %v5872
        %v5934 = vadd.f32 %v5748, %v5874
        %v5935 = vadd.f32 %v5749, %v5877
        %v5936 = vadd.f32 %v5750, %v5879
        %v5937 = vadd.f32 %v5751, %v5882
        %v5938 = vadd.f32 %v5752, %v5884
        %v5939 = vadd.f32 %v5753, %v5887
        %v5940 = vadd.f32 %v5754, %v5889
        %v5941 = vadd.f32 %v5755, %v5892
        %v5942 = vadd.f32 %v5756, %v5894
        %v5943 = vadd.f32 %v5757, %v5897
        %v5944 = vadd.f32 %v5758, %v5899
        %v5945 = vadd.f32 %v5759, %v5902
        %v5946 = vadd.f32 %v5760, %v5904
        %v5947 = vadd.f32 %v5761, %v5907
        %v5948 = vadd.f32 %v5762, %v5909
        %v5949 = vadd.f32 %v5763, %v5912
        %v5950 = vadd.f32 %v5764, %v5914
        %v5951 = vadd.f32 %v5765, %v5917
        %v5952 = vadd.f32 %v5766, %v5919
        %v5953 = vmul.f32 %v4545, %v743
        %v5954 = vmul.f32 %v4547, %v744
        %v5955 = vmul.f32 %v4549, %v745
        %v5956 = vmul.f32 %v4551, %v746
        %v5957 = vmul.f32 %v4553, %v747
        %v5958 = vmul.f32 %v4555, %v748
        %v5959 = vmul.f32 %v4557, %v749
        %v5960 = vmul.f32 %v4559, %v750
        %v5961 = vmul.f32 %v4561, %v751
        %v5962 = vmul.f32 %v4563, %v752
        %v5963 = vmul.f32 %v4565, %v753
        %v5964 = vmul.f32 %v4567, %v754
        %v5965 = vmul.f32 %v4569, %v755
        %v5966 = vmul.f32 %v4571, %v756
        %v5967 = vmul.f32 %v4573, %v757
        %v5968 = vmul.f32 %v4575, %v758
        %v5969 = vmul.f32 %v4577, %v759
        %v5970 = vmul.f32 %v4579, %v760
        %v5971 = vmul.f32 %v4581, %v761
        %v5972 = vmul.f32 %v4583, %v762
        %v5973 = vmul.f32 %v4585, %v763
        %v5974 = vmul.f32 %v4587, %v764
        %v5975 = vmul.f32 %v4589, %v765
        %v5976 = vmul.f32 %v4591, %v766
        %v5977 = vmul.f32 %v4593, %v767
        %v5978 = vmul.f32 %v4595, %v768
        %v5979 = vmul.f32 %v4597, %v769
        %v5980 = vmul.f32 %v4599, %v770
        %v5981 = vmul.f32 %v5294, %v771
        %v5982 = vmul.f32 %v5297, %v772
        %v5983 = vpack.c.bf16 %v5954, %v5953
        %v5984 = vpack.c.bf16 %v5956, %v5955
        %v5985 = vpack.c.bf16 %v5958, %v5957
        %v5986 = vpack.c.bf16 %v5960, %v5959
        %v5987 = vpack.c.bf16 %v5962, %v5961
        %v5988 = vpack.c.bf16 %v5964, %v5963
        %v5989 = vpack.c.bf16 %v5966, %v5965
        %v5990 = vpack.c.bf16 %v5968, %v5967
        %v5991 = vpack.c.bf16 %v5970, %v5969
        %v5992 = vpack.c.bf16 %v5972, %v5971
        %v5993 = vpack.c.bf16 %v5974, %v5973
        %v5994 = vpack.c.bf16 %v5976, %v5975
        %v5995 = vpack.c.bf16 %v5978, %v5977
        %v5996 = vpack.c.bf16 %v5980, %v5979
        %v5997 = vpack.c.bf16 %v5982, %v5981
        %s5998 = scalar_lea.vmem %s11, 512
        %v5999 = vld [vmem:[%s5998] sm:$0xf]
        %v6000 = vld [vmem:[%s5998 + $0x4] sm:$0xf]
        %v6001 = vld [vmem:[%s5998 + $0x8] sm:$0xf]
        %v6002 = vld [vmem:[%s5998 + $0xc] sm:$0xf]
        %v6003 = vld [vmem:[%s5998 + $0x10] sm:$0xf]
        %v6004 = vld [vmem:[%s5998 + $0x14] sm:$0xf]
        %v6005 = vld [vmem:[%s5998 + $0x18] sm:$0xf]
        %v6006 = vld [vmem:[%s5998 + $0x1c] sm:$0xf]
        %v6007 = vld [vmem:[%s5998 + $0x20] sm:$0xf]
        %v6008 = vld [vmem:[%s5998 + $0x24] sm:$0xf]
        %v6009 = vld [vmem:[%s5998 + $0x28] sm:$0xf]
        %v6010 = vld [vmem:[%s5998 + $0x2c] sm:$0xf]
        %v6011 = vld [vmem:[%s5998 + $0x30] sm:$0xf]
        %v6012 = vld [vmem:[%s5998 + $0x34] sm:$0xf]
        %v6013 = vld [vmem:[%s5998 + $0x38] sm:$0xf]
        %v6014 = vld [vmem:[%s5998 + $0x3c] sm:$0xf]
        %v6031 = vunpack.c.l.b16 %v5999
        %v6032 = vunpack.c.l.b16 %v6000
        %v6033 = vunpack.c.l.b16 %v6001
        %v6034 = vunpack.c.l.b16 %v6002
        %v6035 = vunpack.c.l.b16 %v6003
        %v6036 = vunpack.c.l.b16 %v6004
        %v6037 = vunpack.c.l.b16 %v6005
        %v6038 = vunpack.c.l.b16 %v6006
        %v6039 = vunpack.c.l.b16 %v6007
        %v6040 = vunpack.c.l.b16 %v6008
        %v6041 = vunpack.c.l.b16 %v6009
        %v6042 = vunpack.c.l.b16 %v6010
        %v6043 = vunpack.c.l.b16 %v6011
        %v6044 = vunpack.c.l.b16 %v6012
        %v6045 = vunpack.c.l.b16 %v6013
        %v6046 = vunpack.c.l.b16 %v6014
        %v6047 = vpack.c.b16 %v6032, %v6031
        %v6048 = vpack.c.b16 %v6034, %v6033
        %v6049 = vpack.c.b16 %v6036, %v6035
        %v6050 = vpack.c.b16 %v6038, %v6037
        %v6051 = vpack.c.b16 %v6040, %v6039
        %v6052 = vpack.c.b16 %v6042, %v6041
        %v6053 = vpack.c.b16 %v6044, %v6043
        %v6054 = vpack.c.b16 %v6046, %v6045
        %6063 = vmatpush.bf16.msra.mxu0 %v6054
        %6064 = vmatpush.bf16.msra.mxu0 %v6053
        %6065 = vmatpush.bf16.msra.mxu0 %v6052
        %6066 = vmatpush.bf16.msra.mxu0 %v6051
        %6067 = vmatpush.bf16.msra.mxu0 %v6050
        %6068 = vmatpush.bf16.msra.mxu0 %v6049
        %6069 = vmatpush.bf16.msra.mxu0 %v6048
        %6070 = vmatpush.bf16.msra.mxu0 %v6047
        %6071 = vmatmul.bf16.gmra.mxu0 %v5983
        %v6072 = vpop.f32.mrf.mxu0
        %v6073 = vadd.f32 0.0, %v6072
        %v6074 = vpop.f32.mrf.mxu0
        %v6075 = vadd.f32 0.0, %v6074
        %6076 = vmatmul.bf16.gmra.mxu0 %v5984
        %v6077 = vpop.f32.mrf.mxu0
        %v6078 = vadd.f32 0.0, %v6077
        %v6079 = vpop.f32.mrf.mxu0
        %v6080 = vadd.f32 0.0, %v6079
        %6081 = vmatmul.bf16.gmra.mxu0 %v5985
        %v6082 = vpop.f32.mrf.mxu0
        %v6083 = vadd.f32 0.0, %v6082
        %v6084 = vpop.f32.mrf.mxu0
        %v6085 = vadd.f32 0.0, %v6084
        %6086 = vmatmul.bf16.gmra.mxu0 %v5986
        %v6087 = vpop.f32.mrf.mxu0
        %v6088 = vadd.f32 0.0, %v6087
        %v6089 = vpop.f32.mrf.mxu0
        %v6090 = vadd.f32 0.0, %v6089
        %6091 = vmatmul.bf16.gmra.mxu0 %v5987
        %v6092 = vpop.f32.mrf.mxu0
        %v6093 = vadd.f32 0.0, %v6092
        %v6094 = vpop.f32.mrf.mxu0
        %v6095 = vadd.f32 0.0, %v6094
        %6096 = vmatmul.bf16.gmra.mxu0 %v5988
        %v6097 = vpop.f32.mrf.mxu0
        %v6098 = vadd.f32 0.0, %v6097
        %v6099 = vpop.f32.mrf.mxu0
        %v6100 = vadd.f32 0.0, %v6099
        %6101 = vmatmul.bf16.gmra.mxu0 %v5989
        %v6102 = vpop.f32.mrf.mxu0
        %v6103 = vadd.f32 0.0, %v6102
        %v6104 = vpop.f32.mrf.mxu0
        %v6105 = vadd.f32 0.0, %v6104
        %6106 = vmatmul.bf16.gmra.mxu0 %v5990
        %v6107 = vpop.f32.mrf.mxu0
        %v6108 = vadd.f32 0.0, %v6107
        %v6109 = vpop.f32.mrf.mxu0
        %v6110 = vadd.f32 0.0, %v6109
        %6111 = vmatmul.bf16.gmra.mxu0 %v5991
        %v6112 = vpop.f32.mrf.mxu0
        %v6113 = vadd.f32 0.0, %v6112
        %v6114 = vpop.f32.mrf.mxu0
        %v6115 = vadd.f32 0.0, %v6114
        %6116 = vmatmul.bf16.gmra.mxu0 %v5992
        %v6117 = vpop.f32.mrf.mxu0
        %v6118 = vadd.f32 0.0, %v6117
        %v6119 = vpop.f32.mrf.mxu0
        %v6120 = vadd.f32 0.0, %v6119
        %6121 = vmatmul.bf16.gmra.mxu0 %v5993
        %v6122 = vpop.f32.mrf.mxu0
        %v6123 = vadd.f32 0.0, %v6122
        %v6124 = vpop.f32.mrf.mxu0
        %v6125 = vadd.f32 0.0, %v6124
        %6126 = vmatmul.bf16.gmra.mxu0 %v5994
        %v6127 = vpop.f32.mrf.mxu0
        %v6128 = vadd.f32 0.0, %v6127
        %v6129 = vpop.f32.mrf.mxu0
        %v6130 = vadd.f32 0.0, %v6129
        %6131 = vmatmul.bf16.gmra.mxu0 %v5995
        %v6132 = vpop.f32.mrf.mxu0
        %v6133 = vadd.f32 0.0, %v6132
        %v6134 = vpop.f32.mrf.mxu0
        %v6135 = vadd.f32 0.0, %v6134
        %6136 = vmatmul.bf16.gmra.mxu0 %v5996
        %v6137 = vpop.f32.mrf.mxu0
        %v6138 = vadd.f32 0.0, %v6137
        %v6139 = vpop.f32.mrf.mxu0
        %v6140 = vadd.f32 0.0, %v6139
        %6141 = vmatmul.bf16.gmra.mxu0 %v5997
        %v6142 = vpop.f32.mrf.mxu0
        %v6143 = vadd.f32 0.0, %v6142
        %v6144 = vpop.f32.mrf.mxu0
        %v6145 = vadd.f32 0.0, %v6144
        %6146 = vmatmul.bf16.gmra.mxu0 %v3308
        %v6147 = vpop.f32.mrf.mxu0
        %v6148 = vadd.f32 0.0, %v6147
        %v6149 = vpop.f32.mrf.mxu0
        %v6150 = vadd.f32 0.0, %v6149
        %6151 = vdwg.mxu0
        %v6152 = vadd.f32 %v5921, %v6073
        %v6153 = vadd.f32 %v5922, %v6075
        %v6154 = vadd.f32 %v5923, %v6078
        %v6155 = vadd.f32 %v5924, %v6080
        %v6156 = vadd.f32 %v5925, %v6083
        %v6157 = vadd.f32 %v5926, %v6085
        %v6158 = vadd.f32 %v5927, %v6088
        %v6159 = vadd.f32 %v5928, %v6090
        %v6160 = vadd.f32 %v5929, %v6093
        %v6161 = vadd.f32 %v5930, %v6095
        %v6162 = vadd.f32 %v5931, %v6098
        %v6163 = vadd.f32 %v5932, %v6100
        %v6164 = vadd.f32 %v5933, %v6103
        %v6165 = vadd.f32 %v5934, %v6105
        %v6166 = vadd.f32 %v5935, %v6108
        %v6167 = vadd.f32 %v5936, %v6110
        %v6168 = vadd.f32 %v5937, %v6113
        %v6169 = vadd.f32 %v5938, %v6115
        %v6170 = vadd.f32 %v5939, %v6118
        %v6171 = vadd.f32 %v5940, %v6120
        %v6172 = vadd.f32 %v5941, %v6123
        %v6173 = vadd.f32 %v5942, %v6125
        %v6174 = vadd.f32 %v5943, %v6128
        %v6175 = vadd.f32 %v5944, %v6130
        %v6176 = vadd.f32 %v5945, %v6133
        %v6177 = vadd.f32 %v5946, %v6135
        %v6178 = vadd.f32 %v5947, %v6138
        %v6179 = vadd.f32 %v5948, %v6140
        %v6180 = vadd.f32 %v5949, %v6143
        %v6181 = vadd.f32 %v5950, %v6145
        %v6182 = vadd.f32 %v5951, %v6148
        %v6183 = vadd.f32 %v5952, %v6150
        %v6184 = vpack.c.bf16 %v680, %v679
        %v6185 = vpack.c.bf16 %v682, %v681
        %v6186 = vpack.c.bf16 %v684, %v683
        %v6187 = vpack.c.bf16 %v686, %v685
        %v6188 = vpack.c.bf16 %v688, %v687
        %v6189 = vpack.c.bf16 %v690, %v689
        %v6190 = vpack.c.bf16 %v692, %v691
        %v6191 = vpack.c.bf16 %v694, %v693
        %v6192 = vpack.c.bf16 %v696, %v695
        %v6193 = vpack.c.bf16 %v698, %v697
        %v6194 = vpack.c.bf16 %v700, %v699
        %v6195 = vpack.c.bf16 %v702, %v701
        %v6196 = vpack.c.bf16 %v704, %v703
        %v6197 = vpack.c.bf16 %v706, %v705
        %v6198 = vpack.c.bf16 %v708, %v707
        %v6199 = vpack.c.bf16 %v710, %v709
        %v6200 = vld [vmem:[%s13] sm:$0xf]
        %v6201 = vld [vmem:[%s13 + $0x4] sm:$0xf]
        %v6202 = vld [vmem:[%s13 + $0x8] sm:$0xf]
        %v6203 = vld [vmem:[%s13 + $0xc] sm:$0xf]
        %v6204 = vld [vmem:[%s13 + $0x10] sm:$0xf]
        %v6205 = vld [vmem:[%s13 + $0x14] sm:$0xf]
        %v6206 = vld [vmem:[%s13 + $0x18] sm:$0xf]
        %v6207 = vld [vmem:[%s13 + $0x1c] sm:$0xf]
        %v6216 = vunpack.c.l.b16 %v6200
        %v6217 = vunpack.c.l.b16 %v6201
        %v6218 = vunpack.c.l.b16 %v6202
        %v6219 = vunpack.c.l.b16 %v6203
        %v6220 = vunpack.c.l.b16 %v6204
        %v6221 = vunpack.c.l.b16 %v6205
        %v6222 = vunpack.c.l.b16 %v6206
        %v6223 = vunpack.c.l.b16 %v6207
        %v6224 = vpack.c.b16 %v6217, %v6216
        %v6225 = vpack.c.b16 %v6219, %v6218
        %v6226 = vpack.c.b16 %v6221, %v6220
        %v6227 = vpack.c.b16 %v6223, %v6222
        %v6233 = vsel %vm785, %v6184, 0
        %v6236 = vsel %vm785, %v6185, 0
        %v6239 = vsel %vm785, %v6186, 0
        %v6242 = vsel %vm785, %v6187, 0
        %v6245 = vsel %vm785, %v6188, 0
        %v6248 = vsel %vm785, %v6189, 0
        %v6251 = vsel %vm785, %v6190, 0
        %v6254 = vsel %vm785, %v6191, 0
        %v6257 = vsel %vm785, %v6192, 0
        %v6260 = vsel %vm785, %v6193, 0
        %v6263 = vsel %vm785, %v6194, 0
        %v6266 = vsel %vm785, %v6195, 0
        %v6269 = vsel %vm785, %v6196, 0
        %v6272 = vsel %vm785, %v6197, 0
        %v6275 = vsel %vm785, %v6198, 0
        %v6278 = vsel %vm785, %v6199, 0
        %6280 = vmatpush.bf16.msra.mxu0 0
        %6281 = vmatpush.bf16.msra.mxu0 0
        %6282 = vmatpush.bf16.msra.mxu0 0
        %6283 = vmatpush.bf16.msra.mxu0 0
        %6284 = vmatpush.bf16.msra.mxu0 %v6227
        %6285 = vmatpush.bf16.msra.mxu0 %v6226
        %6286 = vmatpush.bf16.msra.mxu0 %v6225
        %6287 = vmatpush.bf16.msra.mxu0 %v6224
        %6288 = vmatmul.bf16.gmra.mxu0 %v6233
        %v6289 = vpop.f32.mrf.mxu0
        %v6290 = vadd.f32 0.0, %v6289
        %v6291 = vpop.f32.mrf.mxu0
        %v6292 = vadd.f32 0.0, %v6291
        %6293 = vmatmul.bf16.gmra.mxu0 %v6236
        %v6294 = vpop.f32.mrf.mxu0
        %v6295 = vadd.f32 0.0, %v6294
        %v6296 = vpop.f32.mrf.mxu0
        %v6297 = vadd.f32 0.0, %v6296
        %6298 = vmatmul.bf16.gmra.mxu0 %v6239
        %v6299 = vpop.f32.mrf.mxu0
        %v6300 = vadd.f32 0.0, %v6299
        %v6301 = vpop.f32.mrf.mxu0
        %v6302 = vadd.f32 0.0, %v6301
        %6303 = vmatmul.bf16.gmra.mxu0 %v6242
        %v6304 = vpop.f32.mrf.mxu0
        %v6305 = vadd.f32 0.0, %v6304
        %v6306 = vpop.f32.mrf.mxu0
        %v6307 = vadd.f32 0.0, %v6306
        %6308 = vmatmul.bf16.gmra.mxu0 %v6245
        %v6309 = vpop.f32.mrf.mxu0
        %v6310 = vadd.f32 0.0, %v6309
        %v6311 = vpop.f32.mrf.mxu0
        %v6312 = vadd.f32 0.0, %v6311
        %6313 = vmatmul.bf16.gmra.mxu0 %v6248
        %v6314 = vpop.f32.mrf.mxu0
        %v6315 = vadd.f32 0.0, %v6314
        %v6316 = vpop.f32.mrf.mxu0
        %v6317 = vadd.f32 0.0, %v6316
        %6318 = vmatmul.bf16.gmra.mxu0 %v6251
        %v6319 = vpop.f32.mrf.mxu0
        %v6320 = vadd.f32 0.0, %v6319
        %v6321 = vpop.f32.mrf.mxu0
        %v6322 = vadd.f32 0.0, %v6321
        %6323 = vmatmul.bf16.gmra.mxu0 %v6254
        %v6324 = vpop.f32.mrf.mxu0
        %v6325 = vadd.f32 0.0, %v6324
        %v6326 = vpop.f32.mrf.mxu0
        %v6327 = vadd.f32 0.0, %v6326
        %6328 = vmatmul.bf16.gmra.mxu0 %v6257
        %v6329 = vpop.f32.mrf.mxu0
        %v6330 = vadd.f32 0.0, %v6329
        %v6331 = vpop.f32.mrf.mxu0
        %v6332 = vadd.f32 0.0, %v6331
        %6333 = vmatmul.bf16.gmra.mxu0 %v6260
        %v6334 = vpop.f32.mrf.mxu0
        %v6335 = vadd.f32 0.0, %v6334
        %v6336 = vpop.f32.mrf.mxu0
        %v6337 = vadd.f32 0.0, %v6336
        %6338 = vmatmul.bf16.gmra.mxu0 %v6263
        %v6339 = vpop.f32.mrf.mxu0
        %v6340 = vadd.f32 0.0, %v6339
        %v6341 = vpop.f32.mrf.mxu0
        %v6342 = vadd.f32 0.0, %v6341
        %6343 = vmatmul.bf16.gmra.mxu0 %v6266
        %v6344 = vpop.f32.mrf.mxu0
        %v6345 = vadd.f32 0.0, %v6344
        %v6346 = vpop.f32.mrf.mxu0
        %v6347 = vadd.f32 0.0, %v6346
        %6348 = vmatmul.bf16.gmra.mxu0 %v6269
        %v6349 = vpop.f32.mrf.mxu0
        %v6350 = vadd.f32 0.0, %v6349
        %v6351 = vpop.f32.mrf.mxu0
        %v6352 = vadd.f32 0.0, %v6351
        %6353 = vmatmul.bf16.gmra.mxu0 %v6272
        %v6354 = vpop.f32.mrf.mxu0
        %v6355 = vadd.f32 0.0, %v6354
        %v6356 = vpop.f32.mrf.mxu0
        %v6357 = vadd.f32 0.0, %v6356
        %6358 = vmatmul.bf16.gmra.mxu0 %v6275
        %v6359 = vpop.f32.mrf.mxu0
        %v6360 = vadd.f32 0.0, %v6359
        %v6361 = vpop.f32.mrf.mxu0
        %v6362 = vadd.f32 0.0, %v6361
        %6363 = vmatmul.bf16.gmra.mxu0 %v6278
        %v6364 = vpop.f32.mrf.mxu0
        %v6365 = vadd.f32 0.0, %v6364
        %v6366 = vpop.f32.mrf.mxu0
        %v6367 = vadd.f32 0.0, %v6366
        %6368 = vdwg.mxu0
        %v6369 = vadd.f32 %v6152, %v6290
        %v6370 = vadd.f32 %v6153, %v6292
        %v6371 = vadd.f32 %v6154, %v6295
        %v6372 = vadd.f32 %v6155, %v6297
        %v6373 = vadd.f32 %v6156, %v6300
        %v6374 = vadd.f32 %v6157, %v6302
        %v6375 = vadd.f32 %v6158, %v6305
        %v6376 = vadd.f32 %v6159, %v6307
        %v6377 = vadd.f32 %v6160, %v6310
        %v6378 = vadd.f32 %v6161, %v6312
        %v6379 = vadd.f32 %v6162, %v6315
        %v6380 = vadd.f32 %v6163, %v6317
        %v6381 = vadd.f32 %v6164, %v6320
        %v6382 = vadd.f32 %v6165, %v6322
        %v6383 = vadd.f32 %v6166, %v6325
        %v6384 = vadd.f32 %v6167, %v6327
        %v6385 = vadd.f32 %v6168, %v6330
        %v6386 = vadd.f32 %v6169, %v6332
        %v6387 = vadd.f32 %v6170, %v6335
        %v6388 = vadd.f32 %v6171, %v6337
        %v6389 = vadd.f32 %v6172, %v6340
        %v6390 = vadd.f32 %v6173, %v6342
        %v6391 = vadd.f32 %v6174, %v6345
        %v6392 = vadd.f32 %v6175, %v6347
        %v6393 = vadd.f32 %v6176, %v6350
        %v6394 = vadd.f32 %v6177, %v6352
        %v6395 = vadd.f32 %v6178, %v6355
        %v6396 = vadd.f32 %v6179, %v6357
        %v6397 = vadd.f32 %v6180, %v6360
        %v6398 = vadd.f32 %v6181, %v6362
        %v6399 = vadd.f32 %v6182, %v6365
        %v6400 = vadd.f32 %v6183, %v6367
        %v6401 = vld [vmem:[%s12] sm:$0x1]
        %v6403 = vperm.slane %v6401, 0
        %v6405 = vadd.f32 %v6369, %v6403
        %v6406 = vadd.f32 %v6370, %v6403
        %v6407 = vadd.f32 %v6371, %v6403
        %v6408 = vadd.f32 %v6372, %v6403
        %v6409 = vadd.f32 %v6373, %v6403
        %v6410 = vadd.f32 %v6374, %v6403
        %v6411 = vadd.f32 %v6375, %v6403
        %v6412 = vadd.f32 %v6376, %v6403
        %v6413 = vadd.f32 %v6377, %v6403
        %v6414 = vadd.f32 %v6378, %v6403
        %v6415 = vadd.f32 %v6379, %v6403
        %v6416 = vadd.f32 %v6380, %v6403
        %v6417 = vadd.f32 %v6381, %v6403
        %v6418 = vadd.f32 %v6382, %v6403
        %v6419 = vadd.f32 %v6383, %v6403
        %v6420 = vadd.f32 %v6384, %v6403
        %v6421 = vadd.f32 %v6385, %v6403
        %v6422 = vadd.f32 %v6386, %v6403
        %v6423 = vadd.f32 %v6387, %v6403
        %v6424 = vadd.f32 %v6388, %v6403
        %v6425 = vadd.f32 %v6389, %v6403
        %v6426 = vadd.f32 %v6390, %v6403
        %v6427 = vadd.f32 %v6391, %v6403
        %v6428 = vadd.f32 %v6392, %v6403
        %v6429 = vadd.f32 %v6393, %v6403
        %v6430 = vadd.f32 %v6394, %v6403
        %v6431 = vadd.f32 %v6395, %v6403
        %v6432 = vadd.f32 %v6396, %v6403
        %v6433 = vadd.f32 %v6397, %v6403
        %v6434 = vadd.f32 %v6398, %v6403
        %v6435 = vadd.f32 %v6399, %v6403
        %v6436 = vadd.f32 %v6400, %v6403
        %v6437 = vld [vmem:[%s14] sm:$0x1]
        %v6438 = vld [vmem:[%s15] sm:$0x1]
        %v6439 = vadd.f32 %v6405, %v6406
        %v6440 = vadd.f32 %v6439, %v6407
        %v6441 = vadd.f32 %v6440, %v6408
        %v6442 = vadd.f32 %v6441, %v6409
        %v6443 = vadd.f32 %v6442, %v6410
        %v6444 = vadd.f32 %v6443, %v6411
        %v6445 = vadd.f32 %v6444, %v6412
        %v6446 = vadd.f32 %v6445, %v6413
        %v6447 = vadd.f32 %v6446, %v6414
        %v6448 = vadd.f32 %v6447, %v6415
        %v6449 = vadd.f32 %v6448, %v6416
        %v6450 = vadd.f32 %v6449, %v6417
        %v6451 = vadd.f32 %v6450, %v6418
        %v6452 = vadd.f32 %v6451, %v6419
        %v6453 = vadd.f32 %v6452, %v6420
        %v6454 = vadd.f32 %v6453, %v6421
        %v6455 = vadd.f32 %v6454, %v6422
        %v6456 = vadd.f32 %v6455, %v6423
        %v6457 = vadd.f32 %v6456, %v6424
        %v6458 = vadd.f32 %v6457, %v6425
        %v6459 = vadd.f32 %v6458, %v6426
        %v6460 = vadd.f32 %v6459, %v6427
        %v6461 = vadd.f32 %v6460, %v6428
        %v6462 = vadd.f32 %v6461, %v6429
        %v6463 = vadd.f32 %v6462, %v6430
        %v6464 = vadd.f32 %v6463, %v6431
        %v6465 = vadd.f32 %v6464, %v6432
        %v6466 = vadd.f32 %v6465, %v6433
        %v6467 = vadd.f32 %v6466, %v6434
        %v6468 = vadd.f32 %v6467, %v6435
        %v6469 = vadd.f32 %v6468, %v6436
        %v6470 = vrot.slane %v6469, 4
        %v6471 = vadd.f32 %v6469, %v6470
        %v6472 = vrot.slane %v6471, 2
        %v6473 = vadd.f32 %v6471, %v6472
        %v6474 = vrot.slane %v6473, 1
        %v6475 = vadd.f32 %v6473, %v6474
        %v6476 = vmul.f32 %v6405, %v6405
        %v6477 = vmul.f32 %v6406, %v6406
        %v6478 = vmul.f32 %v6407, %v6407
        %v6479 = vmul.f32 %v6408, %v6408
        %v6480 = vmul.f32 %v6409, %v6409
        %v6481 = vmul.f32 %v6410, %v6410
        %v6482 = vmul.f32 %v6411, %v6411
        %v6483 = vmul.f32 %v6412, %v6412
        %v6484 = vmul.f32 %v6413, %v6413
        %v6485 = vmul.f32 %v6414, %v6414
        %v6486 = vmul.f32 %v6415, %v6415
        %v6487 = vmul.f32 %v6416, %v6416
        %v6488 = vmul.f32 %v6417, %v6417
        %v6489 = vmul.f32 %v6418, %v6418
        %v6490 = vmul.f32 %v6419, %v6419
        %v6491 = vmul.f32 %v6420, %v6420
        %v6492 = vmul.f32 %v6421, %v6421
        %v6493 = vmul.f32 %v6422, %v6422
        %v6494 = vmul.f32 %v6423, %v6423
        %v6495 = vmul.f32 %v6424, %v6424
        %v6496 = vmul.f32 %v6425, %v6425
        %v6497 = vmul.f32 %v6426, %v6426
        %v6498 = vmul.f32 %v6427, %v6427
        %v6499 = vmul.f32 %v6428, %v6428
        %v6500 = vmul.f32 %v6429, %v6429
        %v6501 = vmul.f32 %v6430, %v6430
        %v6502 = vmul.f32 %v6431, %v6431
        %v6503 = vmul.f32 %v6432, %v6432
        %v6504 = vmul.f32 %v6433, %v6433
        %v6505 = vmul.f32 %v6434, %v6434
        %v6506 = vmul.f32 %v6435, %v6435
        %v6507 = vmul.f32 %v6436, %v6436
        %v6508 = vadd.f32 %v6476, %v6477
        %v6509 = vadd.f32 %v6508, %v6478
        %v6510 = vadd.f32 %v6509, %v6479
        %v6511 = vadd.f32 %v6510, %v6480
        %v6512 = vadd.f32 %v6511, %v6481
        %v6513 = vadd.f32 %v6512, %v6482
        %v6514 = vadd.f32 %v6513, %v6483
        %v6515 = vadd.f32 %v6514, %v6484
        %v6516 = vadd.f32 %v6515, %v6485
        %v6517 = vadd.f32 %v6516, %v6486
        %v6518 = vadd.f32 %v6517, %v6487
        %v6519 = vadd.f32 %v6518, %v6488
        %v6520 = vadd.f32 %v6519, %v6489
        %v6521 = vadd.f32 %v6520, %v6490
        %v6522 = vadd.f32 %v6521, %v6491
        %v6523 = vadd.f32 %v6522, %v6492
        %v6524 = vadd.f32 %v6523, %v6493
        %v6525 = vadd.f32 %v6524, %v6494
        %v6526 = vadd.f32 %v6525, %v6495
        %v6527 = vadd.f32 %v6526, %v6496
        %v6528 = vadd.f32 %v6527, %v6497
        %v6529 = vadd.f32 %v6528, %v6498
        %v6530 = vadd.f32 %v6529, %v6499
        %v6531 = vadd.f32 %v6530, %v6500
        %v6532 = vadd.f32 %v6531, %v6501
        %v6533 = vadd.f32 %v6532, %v6502
        %v6534 = vadd.f32 %v6533, %v6503
        %v6535 = vadd.f32 %v6534, %v6504
        %v6536 = vadd.f32 %v6535, %v6505
        %v6537 = vadd.f32 %v6536, %v6506
        %v6538 = vadd.f32 %v6537, %v6507
        %v6539 = vrot.slane %v6538, 4
        %v6540 = vadd.f32 %v6538, %v6539
        %v6541 = vrot.slane %v6540, 2
        %v6542 = vadd.f32 %v6540, %v6541
        %v6543 = vrot.slane %v6542, 1
        %v6544 = vadd.f32 %v6542, %v6543
        %v6545 = vsel %vm956, %v6475, %v6544
        %6546 = vmatpush.msra.mxu0 %v3564
        %6547 = vmatpush.msra.mxu0 %v3563
        %6548 = vmatpush.msra.mxu0 %v3562
        %6549 = vmatpush.msra.mxu0 %v3561
        %6550 = vmatpush.msra.mxu0 %v3560
        %6551 = vmatpush.msra.mxu0 %v3559
        %6552 = vmatpush.msra.mxu0 %v3558
        %6553 = vmatpush.msra.mxu0 %v3557
        %6554 = vmatpush.msra.mxu0 %v3556
        %6555 = vmatpush.msra.mxu0 %v3555
        %6556 = vmatpush.msra.mxu0 %v3554
        %6557 = vmatpush.msra.mxu0 %v3553
        %6558 = vmatpush.msra.mxu0 %v3552
        %6559 = vmatpush.msra.mxu0 %v3551
        %6560 = vmatpush.msra.mxu0 %v3550
        %6561 = vmatpush.msra.mxu0 %v3549
        %6562 = vmatmul.f32.gmra.mxu0 %v6545
        %v6563 = vpop.f32.mrf.mxu0
        %v6564 = vadd.f32 0.0, %v6563
        %6565 = vdwg.mxu0
        %v6566 = vmul.f32 %v6564, 0.0009765625
        %v6567 = vmul.f32 %v6566, %v6566
        %v6569 = vrot.slane %v6567, 7
        %v6571 = vsub.f32 %v6566, %v6569
        %v6572 = vmax.f32 %v6571, 0.0
        %v6573 = vadd.f32 %v6572, 1e-05
        %v6574 = vrsqrt.pop %v6573
        %v6575 = vmul.f32 %v6574, %v6573
        %v6576 = vmul.f32 %v6575, %v6574
        %v6577 = vmul.f32 0.5, %v6576
        %v6578 = vsub.f32 1.5, %v6577
        %v6579 = vmul.f32 %v6574, %v6578
        %vm6580 = vweird.f32 %v6573
        %vm6581 = vweird.f32 %v6574
        %vm6582 = vmor %vm6580, %vm6581
        %v6583 = vsel %vm6582, %v6574, %v6579
        %v6584 = vsel %vm956, %v6566, %v6583
        %v6586 = vsel %vm1000, %v6584, 0
        %6588 = vmatpush.xpose.msra.mxu0 %v3760
        %6589 = vmatpush.xpose.msra.mxu0 %v3757
        %6590 = vmatpush.xpose.msra.mxu0 %v3754
        %6591 = vmatpush.xpose.msra.mxu0 %v3751
        %6592 = vmatpush.xpose.msra.mxu0 %v3748
        %6593 = vmatpush.xpose.msra.mxu0 %v3745
        %6594 = vmatpush.xpose.msra.mxu0 %v3742
        %6595 = vmatpush.xpose.msra.mxu0 %v3739
        %6596 = vmatpush.xpose.msra.mxu0 %v3736
        %6597 = vmatpush.xpose.msra.mxu0 %v3733
        %6598 = vmatpush.xpose.msra.mxu0 %v3730
        %6599 = vmatpush.xpose.msra.mxu0 %v3727
        %6600 = vmatpush.xpose.msra.mxu0 %v3724
        %6601 = vmatpush.xpose.msra.mxu0 %v3721
        %6602 = vmatpush.xpose.msra.mxu0 %v3718
        %6603 = vmatpush.xpose.msra.mxu0 %v3715
        %6604 = vmatmul.f32.gmra.mxu0 %v6586
        %v6605 = vpop.f32.mrf.mxu0
        %v6606 = vadd.f32 0.0, %v6605
        %6607 = vdwg.mxu0
        %v6609 = vperm.slane %v6437, 0
        %v6611 = vmul.f32 %v6606, %v6609
        %v6613 = vrot.slane %v6611, 1
        %v6615 = vmul.f32 %v6606, %v6613
        %v6616 = vsub.f32 %v6438, %v6615
        %v6617 = vperm.slane %v6611, 1
        %v6618 = vmul.f32 %v6405, %v6617
        %v6619 = vmul.f32 %v6406, %v6617
        %v6620 = vmul.f32 %v6407, %v6617
        %v6621 = vmul.f32 %v6408, %v6617
        %v6622 = vmul.f32 %v6409, %v6617
        %v6623 = vmul.f32 %v6410, %v6617
        %v6624 = vmul.f32 %v6411, %v6617
        %v6625 = vmul.f32 %v6412, %v6617
        %v6626 = vmul.f32 %v6413, %v6617
        %v6627 = vmul.f32 %v6414, %v6617
        %v6628 = vmul.f32 %v6415, %v6617
        %v6629 = vmul.f32 %v6416, %v6617
        %v6630 = vmul.f32 %v6417, %v6617
        %v6631 = vmul.f32 %v6418, %v6617
        %v6632 = vmul.f32 %v6419, %v6617
        %v6633 = vmul.f32 %v6420, %v6617
        %v6634 = vmul.f32 %v6421, %v6617
        %v6635 = vmul.f32 %v6422, %v6617
        %v6636 = vmul.f32 %v6423, %v6617
        %v6637 = vmul.f32 %v6424, %v6617
        %v6638 = vmul.f32 %v6425, %v6617
        %v6639 = vmul.f32 %v6426, %v6617
        %v6640 = vmul.f32 %v6427, %v6617
        %v6641 = vmul.f32 %v6428, %v6617
        %v6642 = vmul.f32 %v6429, %v6617
        %v6643 = vmul.f32 %v6430, %v6617
        %v6644 = vmul.f32 %v6431, %v6617
        %v6645 = vmul.f32 %v6432, %v6617
        %v6646 = vmul.f32 %v6433, %v6617
        %v6647 = vmul.f32 %v6434, %v6617
        %v6648 = vmul.f32 %v6435, %v6617
        %v6649 = vmul.f32 %v6436, %v6617
        %v6651 = vperm.slane %v6616, 0
        %v6653 = vadd.f32 %v6618, %v6651
        %v6654 = vadd.f32 %v6619, %v6651
        %v6655 = vadd.f32 %v6620, %v6651
        %v6656 = vadd.f32 %v6621, %v6651
        %v6657 = vadd.f32 %v6622, %v6651
        %v6658 = vadd.f32 %v6623, %v6651
        %v6659 = vadd.f32 %v6624, %v6651
        %v6660 = vadd.f32 %v6625, %v6651
        %v6661 = vadd.f32 %v6626, %v6651
        %v6662 = vadd.f32 %v6627, %v6651
        %v6663 = vadd.f32 %v6628, %v6651
        %v6664 = vadd.f32 %v6629, %v6651
        %v6665 = vadd.f32 %v6630, %v6651
        %v6666 = vadd.f32 %v6631, %v6651
        %v6667 = vadd.f32 %v6632, %v6651
        %v6668 = vadd.f32 %v6633, %v6651
        %v6669 = vadd.f32 %v6634, %v6651
        %v6670 = vadd.f32 %v6635, %v6651
        %v6671 = vadd.f32 %v6636, %v6651
        %v6672 = vadd.f32 %v6637, %v6651
        %v6673 = vadd.f32 %v6638, %v6651
        %v6674 = vadd.f32 %v6639, %v6651
        %v6675 = vadd.f32 %v6640, %v6651
        %v6676 = vadd.f32 %v6641, %v6651
        %v6677 = vadd.f32 %v6642, %v6651
        %v6678 = vadd.f32 %v6643, %v6651
        %v6679 = vadd.f32 %v6644, %v6651
        %v6680 = vadd.f32 %v6645, %v6651
        %v6681 = vadd.f32 %v6646, %v6651
        %v6682 = vadd.f32 %v6647, %v6651
        %v6683 = vadd.f32 %v6648, %v6651
        %v6684 = vadd.f32 %v6649, %v6651
        %v6685 = vpack.c.bf16 %v6654, %v6653
        %v6686 = vpack.c.bf16 %v6656, %v6655
        %v6687 = vpack.c.bf16 %v6658, %v6657
        %v6688 = vpack.c.bf16 %v6660, %v6659
        %v6689 = vpack.c.bf16 %v6662, %v6661
        %v6690 = vpack.c.bf16 %v6664, %v6663
        %v6691 = vpack.c.bf16 %v6666, %v6665
        %v6692 = vpack.c.bf16 %v6668, %v6667
        %v6693 = vpack.c.bf16 %v6670, %v6669
        %v6694 = vpack.c.bf16 %v6672, %v6671
        %v6695 = vpack.c.bf16 %v6674, %v6673
        %v6696 = vpack.c.bf16 %v6676, %v6675
        %v6697 = vpack.c.bf16 %v6678, %v6677
        %v6698 = vpack.c.bf16 %v6680, %v6679
        %v6699 = vpack.c.bf16 %v6682, %v6681
        %v6700 = vpack.c.bf16 %v6684, %v6683
        %v6701 = vld [vmem:[#allocation7] sm:$0xff]
        %v6702 = vld [vmem:[#allocation7 + $0x8] sm:$0xf]
        %v6703 = vld [vmem:[#allocation7 + $0xc] sm:$0xff]
        %v6704 = vld [vmem:[#allocation7 + $0x14] sm:$0xf]
        %v6705 = vld [vmem:[#allocation7 + $0x18] sm:$0xff]
        %v6706 = vld [vmem:[#allocation7 + $0x20] sm:$0xf]
        %v6707 = vld [vmem:[#allocation7 + $0x24] sm:$0xff]
        %v6708 = vld [vmem:[#allocation7 + $0x2c] sm:$0xf]
        %v6709 = vld [vmem:[#allocation7 + $0x30] sm:$0xff]
        %v6710 = vld [vmem:[#allocation7 + $0x38] sm:$0xf]
        %v6711 = vld [vmem:[#allocation7 + $0x3c] sm:$0xff]
        %v6712 = vld [vmem:[#allocation7 + $0x44] sm:$0xf]
        %v6713 = vld [vmem:[#allocation7 + $0x48] sm:$0xff]
        %v6714 = vld [vmem:[#allocation7 + $0x50] sm:$0xf]
        %v6715 = vld [vmem:[#allocation7 + $0x54] sm:$0xff]
        %v6716 = vld [vmem:[#allocation7 + $0x5c] sm:$0xf]
        %v6717 = vld [vmem:[#allocation7 + $0x60] sm:$0xff]
        %v6718 = vld [vmem:[#allocation7 + $0x68] sm:$0xf]
        %v6719 = vld [vmem:[#allocation7 + $0x6c] sm:$0xff]
        %v6720 = vld [vmem:[#allocation7 + $0x74] sm:$0xf]
        %v6721 = vld [vmem:[#allocation7 + $0x78] sm:$0xff]
        %v6722 = vld [vmem:[#allocation7 + $0x80] sm:$0xf]
        %v6723 = vld [vmem:[#allocation7 + $0x84] sm:$0xff]
        %v6724 = vld [vmem:[#allocation7 + $0x8c] sm:$0xf]
        %v6725 = vld [vmem:[#allocation7 + $0x90] sm:$0xff]
        %v6726 = vld [vmem:[#allocation7 + $0x98] sm:$0xf]
        %v6727 = vld [vmem:[#allocation7 + $0x9c] sm:$0xff]
        %v6728 = vld [vmem:[#allocation7 + $0xa4] sm:$0xf]
        %v6729 = vld [vmem:[#allocation7 + $0xa8] sm:$0xff]
        %v6730 = vld [vmem:[#allocation7 + $0xb0] sm:$0xf]
        %v6731 = vld [vmem:[#allocation7 + $0xb4] sm:$0xff]
        %v6732 = vld [vmem:[#allocation7 + $0xbc] sm:$0xf]
        %v6733 = vld [vmem:[%s17] sm:$0x7]
        %v6735 = vperm.slane %v6733, 0
        %v6736 = vperm.slane %v6733, 1
        %v6737 = vperm.slane %v6733, 2
        %v6773 = vunpack.c.l.b16 %v6701
        %v6774 = vunpack.c.h.b16 %v6701
        %v6775 = vunpack.c.l.b16 %v6702
        %v6776 = vunpack.c.l.b16 %v6703
        %v6777 = vunpack.c.h.b16 %v6703
        %v6778 = vunpack.c.l.b16 %v6704
        %v6779 = vunpack.c.l.b16 %v6705
        %v6780 = vunpack.c.h.b16 %v6705
        %v6781 = vunpack.c.l.b16 %v6706
        %v6782 = vunpack.c.l.b16 %v6707
        %v6783 = vunpack.c.h.b16 %v6707
        %v6784 = vunpack.c.l.b16 %v6708
        %v6785 = vunpack.c.l.b16 %v6709
        %v6786 = vunpack.c.h.b16 %v6709
        %v6787 = vunpack.c.l.b16 %v6710
        %v6788 = vunpack.c.l.b16 %v6711
        %v6789 = vunpack.c.h.b16 %v6711
        %v6790 = vunpack.c.l.b16 %v6712
        %v6791 = vunpack.c.l.b16 %v6713
        %v6792 = vunpack.c.h.b16 %v6713
        %v6793 = vunpack.c.l.b16 %v6714
        %v6794 = vunpack.c.l.b16 %v6715
        %v6795 = vunpack.c.h.b16 %v6715
        %v6796 = vunpack.c.l.b16 %v6716
        %v6797 = vunpack.c.l.b16 %v6717
        %v6798 = vunpack.c.h.b16 %v6717
        %v6799 = vunpack.c.l.b16 %v6718
        %v6800 = vunpack.c.l.b16 %v6719
        %v6801 = vunpack.c.h.b16 %v6719
        %v6802 = vunpack.c.l.b16 %v6720
        %v6803 = vunpack.c.l.b16 %v6721
        %v6804 = vunpack.c.h.b16 %v6721
        %v6805 = vunpack.c.l.b16 %v6722
        %v6806 = vunpack.c.l.b16 %v6723
        %v6807 = vunpack.c.h.b16 %v6723
        %v6808 = vunpack.c.l.b16 %v6724
        %v6809 = vunpack.c.l.b16 %v6725
        %v6810 = vunpack.c.h.b16 %v6725
        %v6811 = vunpack.c.l.b16 %v6726
        %v6812 = vunpack.c.l.b16 %v6727
        %v6813 = vunpack.c.h.b16 %v6727
        %v6814 = vunpack.c.l.b16 %v6728
        %v6815 = vunpack.c.l.b16 %v6729
        %v6816 = vunpack.c.h.b16 %v6729
        %v6817 = vunpack.c.l.b16 %v6730
        %v6818 = vunpack.c.l.b16 %v6731
        %v6819 = vunpack.c.h.b16 %v6731
        %v6820 = vunpack.c.l.b16 %v6732
        %v6821 = vpack.c.b16 %v6776, %v6773
        %v6822 = vpack.c.b16 %v6777, %v6774
        %v6823 = vpack.c.b16 %v6778, %v6775
        %v6824 = vpack.c.b16 %v6782, %v6779
        %v6825 = vpack.c.b16 %v6783, %v6780
        %v6826 = vpack.c.b16 %v6784, %v6781
        %v6827 = vpack.c.b16 %v6788, %v6785
        %v6828 = vpack.c.b16 %v6789, %v6786
        %v6829 = vpack.c.b16 %v6790, %v6787
        %v6830 = vpack.c.b16 %v6794, %v6791
        %v6831 = vpack.c.b16 %v6795, %v6792
        %v6832 = vpack.c.b16 %v6796, %v6793
        %v6833 = vpack.c.b16 %v6800, %v6797
        %v6834 = vpack.c.b16 %v6801, %v6798
        %v6835 = vpack.c.b16 %v6802, %v6799
        %v6836 = vpack.c.b16 %v6806, %v6803
        %v6837 = vpack.c.b16 %v6807, %v6804
        %v6838 = vpack.c.b16 %v6808, %v6805
        %v6839 = vpack.c.b16 %v6812, %v6809
        %v6840 = vpack.c.b16 %v6813, %v6810
        %v6841 = vpack.c.b16 %v6814, %v6811
        %v6842 = vpack.c.b16 %v6818, %v6815
        %v6843 = vpack.c.b16 %v6819, %v6816
        %v6844 = vpack.c.b16 %v6820, %v6817
        %6869 = vmatpush.bf16.msra.mxu0 %v6842
        %6870 = vmatpush.bf16.msra.mxu0 %v6839
        %6871 = vmatpush.bf16.msra.mxu0 %v6836
        %6872 = vmatpush.bf16.msra.mxu0 %v6833
        %6873 = vmatpush.bf16.msra.mxu0 %v6830
        %6874 = vmatpush.bf16.msra.mxu0 %v6827
        %6875 = vmatpush.bf16.msra.mxu0 %v6824
        %6876 = vmatpush.bf16.msra.mxu0 %v6821
        %6877 = vmatmul.bf16.gmra.mxu0 %v6685
        %v6878 = vpop.f32.mrf.mxu0
        %v6879 = vadd.f32 %v6735, %v6878
        %v6880 = vpop.f32.mrf.mxu0
        %v6881 = vadd.f32 %v6735, %v6880
        %6882 = vmatmul.bf16.gmra.mxu0 %v6686
        %v6883 = vpop.f32.mrf.mxu0
        %v6884 = vadd.f32 %v6735, %v6883
        %v6885 = vpop.f32.mrf.mxu0
        %v6886 = vadd.f32 %v6735, %v6885
        %6887 = vmatmul.bf16.gmra.mxu0 %v6687
        %v6888 = vpop.f32.mrf.mxu0
        %v6889 = vadd.f32 %v6735, %v6888
        %v6890 = vpop.f32.mrf.mxu0
        %v6891 = vadd.f32 %v6735, %v6890
        %6892 = vmatmul.bf16.gmra.mxu0 %v6688
        %v6893 = vpop.f32.mrf.mxu0
        %v6894 = vadd.f32 %v6735, %v6893
        %v6895 = vpop.f32.mrf.mxu0
        %v6896 = vadd.f32 %v6735, %v6895
        %6897 = vmatmul.bf16.gmra.mxu0 %v6689
        %v6898 = vpop.f32.mrf.mxu0
        %v6899 = vadd.f32 %v6735, %v6898
        %v6900 = vpop.f32.mrf.mxu0
        %v6901 = vadd.f32 %v6735, %v6900
        %6902 = vmatmul.bf16.gmra.mxu0 %v6690
        %v6903 = vpop.f32.mrf.mxu0
        %v6904 = vadd.f32 %v6735, %v6903
        %v6905 = vpop.f32.mrf.mxu0
        %v6906 = vadd.f32 %v6735, %v6905
        %6907 = vmatmul.bf16.gmra.mxu0 %v6691
        %v6908 = vpop.f32.mrf.mxu0
        %v6909 = vadd.f32 %v6735, %v6908
        %v6910 = vpop.f32.mrf.mxu0
        %v6911 = vadd.f32 %v6735, %v6910
        %6912 = vmatmul.bf16.gmra.mxu0 %v6692
        %v6913 = vpop.f32.mrf.mxu0
        %v6914 = vadd.f32 %v6735, %v6913
        %v6915 = vpop.f32.mrf.mxu0
        %v6916 = vadd.f32 %v6735, %v6915
        %6917 = vmatmul.bf16.gmra.mxu0 %v6693
        %v6918 = vpop.f32.mrf.mxu0
        %v6919 = vadd.f32 %v6735, %v6918
        %v6920 = vpop.f32.mrf.mxu0
        %v6921 = vadd.f32 %v6735, %v6920
        %6922 = vmatmul.bf16.gmra.mxu0 %v6694
        %v6923 = vpop.f32.mrf.mxu0
        %v6924 = vadd.f32 %v6735, %v6923
        %v6925 = vpop.f32.mrf.mxu0
        %v6926 = vadd.f32 %v6735, %v6925
        %6927 = vmatmul.bf16.gmra.mxu0 %v6695
        %v6928 = vpop.f32.mrf.mxu0
        %v6929 = vadd.f32 %v6735, %v6928
        %v6930 = vpop.f32.mrf.mxu0
        %v6931 = vadd.f32 %v6735, %v6930
        %6932 = vmatmul.bf16.gmra.mxu0 %v6696
        %v6933 = vpop.f32.mrf.mxu0
        %v6934 = vadd.f32 %v6735, %v6933
        %v6935 = vpop.f32.mrf.mxu0
        %v6936 = vadd.f32 %v6735, %v6935
        %6937 = vmatmul.bf16.gmra.mxu0 %v6697
        %v6938 = vpop.f32.mrf.mxu0
        %v6939 = vadd.f32 %v6735, %v6938
        %v6940 = vpop.f32.mrf.mxu0
        %v6941 = vadd.f32 %v6735, %v6940
        %6942 = vmatmul.bf16.gmra.mxu0 %v6698
        %v6943 = vpop.f32.mrf.mxu0
        %v6944 = vadd.f32 %v6735, %v6943
        %v6945 = vpop.f32.mrf.mxu0
        %v6946 = vadd.f32 %v6735, %v6945
        %6947 = vmatmul.bf16.gmra.mxu0 %v6699
        %v6948 = vpop.f32.mrf.mxu0
        %v6949 = vadd.f32 %v6735, %v6948
        %v6950 = vpop.f32.mrf.mxu0
        %v6951 = vadd.f32 %v6735, %v6950
        %6952 = vmatmul.bf16.gmra.mxu0 %v6700
        %v6953 = vpop.f32.mrf.mxu0
        %v6954 = vadd.f32 %v6735, %v6953
        %v6955 = vpop.f32.mrf.mxu0
        %v6956 = vadd.f32 %v6735, %v6955
        %6957 = vdwg.mxu0
        %6958 = vmatpush.bf16.msra.mxu0 %v6843
        %6959 = vmatpush.bf16.msra.mxu0 %v6840
        %6960 = vmatpush.bf16.msra.mxu0 %v6837
        %6961 = vmatpush.bf16.msra.mxu0 %v6834
        %6962 = vmatpush.bf16.msra.mxu0 %v6831
        %6963 = vmatpush.bf16.msra.mxu0 %v6828
        %6964 = vmatpush.bf16.msra.mxu0 %v6825
        %6965 = vmatpush.bf16.msra.mxu0 %v6822
        %6966 = vmatmul.bf16.gmra.mxu0 %v6685
        %v6967 = vpop.f32.mrf.mxu0
        %v6968 = vadd.f32 %v6736, %v6967
        %v6969 = vpop.f32.mrf.mxu0
        %v6970 = vadd.f32 %v6736, %v6969
        %6971 = vmatmul.bf16.gmra.mxu0 %v6686
        %v6972 = vpop.f32.mrf.mxu0
        %v6973 = vadd.f32 %v6736, %v6972
        %v6974 = vpop.f32.mrf.mxu0
        %v6975 = vadd.f32 %v6736, %v6974
        %6976 = vmatmul.bf16.gmra.mxu0 %v6687
        %v6977 = vpop.f32.mrf.mxu0
        %v6978 = vadd.f32 %v6736, %v6977
        %v6979 = vpop.f32.mrf.mxu0
        %v6980 = vadd.f32 %v6736, %v6979
        %6981 = vmatmul.bf16.gmra.mxu0 %v6688
        %v6982 = vpop.f32.mrf.mxu0
        %v6983 = vadd.f32 %v6736, %v6982
        %v6984 = vpop.f32.mrf.mxu0
        %v6985 = vadd.f32 %v6736, %v6984
        %6986 = vmatmul.bf16.gmra.mxu0 %v6689
        %v6987 = vpop.f32.mrf.mxu0
        %v6988 = vadd.f32 %v6736, %v6987
        %v6989 = vpop.f32.mrf.mxu0
        %v6990 = vadd.f32 %v6736, %v6989
        %6991 = vmatmul.bf16.gmra.mxu0 %v6690
        %v6992 = vpop.f32.mrf.mxu0
        %v6993 = vadd.f32 %v6736, %v6992
        %v6994 = vpop.f32.mrf.mxu0
        %v6995 = vadd.f32 %v6736, %v6994
        %6996 = vmatmul.bf16.gmra.mxu0 %v6691
        %v6997 = vpop.f32.mrf.mxu0
        %v6998 = vadd.f32 %v6736, %v6997
        %v6999 = vpop.f32.mrf.mxu0
        %v7000 = vadd.f32 %v6736, %v6999
        %7001 = vmatmul.bf16.gmra.mxu0 %v6692
        %v7002 = vpop.f32.mrf.mxu0
        %v7003 = vadd.f32 %v6736, %v7002
        %v7004 = vpop.f32.mrf.mxu0
        %v7005 = vadd.f32 %v6736, %v7004
        %7006 = vmatmul.bf16.gmra.mxu0 %v6693
        %v7007 = vpop.f32.mrf.mxu0
        %v7008 = vadd.f32 %v6736, %v7007
        %v7009 = vpop.f32.mrf.mxu0
        %v7010 = vadd.f32 %v6736, %v7009
        %7011 = vmatmul.bf16.gmra.mxu0 %v6694
        %v7012 = vpop.f32.mrf.mxu0
        %v7013 = vadd.f32 %v6736, %v7012
        %v7014 = vpop.f32.mrf.mxu0
        %v7015 = vadd.f32 %v6736, %v7014
        %7016 = vmatmul.bf16.gmra.mxu0 %v6695
        %v7017 = vpop.f32.mrf.mxu0
        %v7018 = vadd.f32 %v6736, %v7017
        %v7019 = vpop.f32.mrf.mxu0
        %v7020 = vadd.f32 %v6736, %v7019
        %7021 = vmatmul.bf16.gmra.mxu0 %v6696
        %v7022 = vpop.f32.mrf.mxu0
        %v7023 = vadd.f32 %v6736, %v7022
        %v7024 = vpop.f32.mrf.mxu0
        %v7025 = vadd.f32 %v6736, %v7024
        %7026 = vmatmul.bf16.gmra.mxu0 %v6697
        %v7027 = vpop.f32.mrf.mxu0
        %v7028 = vadd.f32 %v6736, %v7027
        %v7029 = vpop.f32.mrf.mxu0
        %v7030 = vadd.f32 %v6736, %v7029
        %7031 = vmatmul.bf16.gmra.mxu0 %v6698
        %v7032 = vpop.f32.mrf.mxu0
        %v7033 = vadd.f32 %v6736, %v7032
        %v7034 = vpop.f32.mrf.mxu0
        %v7035 = vadd.f32 %v6736, %v7034
        %7036 = vmatmul.bf16.gmra.mxu0 %v6699
        %v7037 = vpop.f32.mrf.mxu0
        %v7038 = vadd.f32 %v6736, %v7037
        %v7039 = vpop.f32.mrf.mxu0
        %v7040 = vadd.f32 %v6736, %v7039
        %7041 = vmatmul.bf16.gmra.mxu0 %v6700
        %v7042 = vpop.f32.mrf.mxu0
        %v7043 = vadd.f32 %v6736, %v7042
        %v7044 = vpop.f32.mrf.mxu0
        %v7045 = vadd.f32 %v6736, %v7044
        %7046 = vdwg.mxu0
        %7047 = vmatpush.bf16.msra.mxu0 %v6844
        %7048 = vmatpush.bf16.msra.mxu0 %v6841
        %7049 = vmatpush.bf16.msra.mxu0 %v6838
        %7050 = vmatpush.bf16.msra.mxu0 %v6835
        %7051 = vmatpush.bf16.msra.mxu0 %v6832
        %7052 = vmatpush.bf16.msra.mxu0 %v6829
        %7053 = vmatpush.bf16.msra.mxu0 %v6826
        %7054 = vmatpush.bf16.msra.mxu0 %v6823
        %7055 = vmatmul.bf16.gmra.mxu0 %v6685
        %v7056 = vpop.f32.mrf.mxu0
        %v7057 = vadd.f32 %v6737, %v7056
        %v7058 = vpop.f32.mrf.mxu0
        %v7059 = vadd.f32 %v6737, %v7058
        %7060 = vmatmul.bf16.gmra.mxu0 %v6686
        %v7061 = vpop.f32.mrf.mxu0
        %v7062 = vadd.f32 %v6737, %v7061
        %v7063 = vpop.f32.mrf.mxu0
        %v7064 = vadd.f32 %v6737, %v7063
        %7065 = vmatmul.bf16.gmra.mxu0 %v6687
        %v7066 = vpop.f32.mrf.mxu0
        %v7067 = vadd.f32 %v6737, %v7066
        %v7068 = vpop.f32.mrf.mxu0
        %v7069 = vadd.f32 %v6737, %v7068
        %7070 = vmatmul.bf16.gmra.mxu0 %v6688
        %v7071 = vpop.f32.mrf.mxu0
        %v7072 = vadd.f32 %v6737, %v7071
        %v7073 = vpop.f32.mrf.mxu0
        %v7074 = vadd.f32 %v6737, %v7073
        %7075 = vmatmul.bf16.gmra.mxu0 %v6689
        %v7076 = vpop.f32.mrf.mxu0
        %v7077 = vadd.f32 %v6737, %v7076
        %v7078 = vpop.f32.mrf.mxu0
        %v7079 = vadd.f32 %v6737, %v7078
        %7080 = vmatmul.bf16.gmra.mxu0 %v6690
        %v7081 = vpop.f32.mrf.mxu0
        %v7082 = vadd.f32 %v6737, %v7081
        %v7083 = vpop.f32.mrf.mxu0
        %v7084 = vadd.f32 %v6737, %v7083
        %7085 = vmatmul.bf16.gmra.mxu0 %v6691
        %v7086 = vpop.f32.mrf.mxu0
        %v7087 = vadd.f32 %v6737, %v7086
        %v7088 = vpop.f32.mrf.mxu0
        %v7089 = vadd.f32 %v6737, %v7088
        %7090 = vmatmul.bf16.gmra.mxu0 %v6692
        %v7091 = vpop.f32.mrf.mxu0
        %v7092 = vadd.f32 %v6737, %v7091
        %v7093 = vpop.f32.mrf.mxu0
        %v7094 = vadd.f32 %v6737, %v7093
        %7095 = vmatmul.bf16.gmra.mxu0 %v6693
        %v7096 = vpop.f32.mrf.mxu0
        %v7097 = vadd.f32 %v6737, %v7096
        %v7098 = vpop.f32.mrf.mxu0
        %v7099 = vadd.f32 %v6737, %v7098
        %7100 = vmatmul.bf16.gmra.mxu0 %v6694
        %v7101 = vpop.f32.mrf.mxu0
        %v7102 = vadd.f32 %v6737, %v7101
        %v7103 = vpop.f32.mrf.mxu0
        %v7104 = vadd.f32 %v6737, %v7103
        %7105 = vmatmul.bf16.gmra.mxu0 %v6695
        %v7106 = vpop.f32.mrf.mxu0
        %v7107 = vadd.f32 %v6737, %v7106
        %v7108 = vpop.f32.mrf.mxu0
        %v7109 = vadd.f32 %v6737, %v7108
        %7110 = vmatmul.bf16.gmra.mxu0 %v6696
        %v7111 = vpop.f32.mrf.mxu0
        %v7112 = vadd.f32 %v6737, %v7111
        %v7113 = vpop.f32.mrf.mxu0
        %v7114 = vadd.f32 %v6737, %v7113
        %7115 = vmatmul.bf16.gmra.mxu0 %v6697
        %v7116 = vpop.f32.mrf.mxu0
        %v7117 = vadd.f32 %v6737, %v7116
        %v7118 = vpop.f32.mrf.mxu0
        %v7119 = vadd.f32 %v6737, %v7118
        %7120 = vmatmul.bf16.gmra.mxu0 %v6698
        %v7121 = vpop.f32.mrf.mxu0
        %v7122 = vadd.f32 %v6737, %v7121
        %v7123 = vpop.f32.mrf.mxu0
        %v7124 = vadd.f32 %v6737, %v7123
        %7125 = vmatmul.bf16.gmra.mxu0 %v6699
        %v7126 = vpop.f32.mrf.mxu0
        %v7127 = vadd.f32 %v6737, %v7126
        %v7128 = vpop.f32.mrf.mxu0
        %v7129 = vadd.f32 %v6737, %v7128
        %7130 = vmatmul.bf16.gmra.mxu0 %v6700
        %v7131 = vpop.f32.mrf.mxu0
        %v7132 = vadd.f32 %v6737, %v7131
        %v7133 = vpop.f32.mrf.mxu0
        %v7134 = vadd.f32 %v6737, %v7133
        %7135 = vdwg.mxu0
        %v7136 = vpack.c.bf16 %v6881, %v6879
        %v7137 = vpack.c.bf16 %v6886, %v6884
        %v7138 = vpack.c.bf16 %v6891, %v6889
        %v7139 = vpack.c.bf16 %v6896, %v6894
        %v7140 = vpack.c.bf16 %v6901, %v6899
        %v7141 = vpack.c.bf16 %v6906, %v6904
        %v7142 = vpack.c.bf16 %v6911, %v6909
        %v7143 = vpack.c.bf16 %v6916, %v6914
        %v7144 = vpack.c.bf16 %v6921, %v6919
        %v7145 = vpack.c.bf16 %v6926, %v6924
        %v7146 = vpack.c.bf16 %v6931, %v6929
        %v7147 = vpack.c.bf16 %v6936, %v6934
        %v7148 = vpack.c.bf16 %v6941, %v6939
        %v7149 = vpack.c.bf16 %v6946, %v6944
        %v7150 = vpack.c.bf16 %v6951, %v6949
        %v7151 = vpack.c.bf16 %v6956, %v6954
        %v7152 = vpack.c.bf16 %v6970, %v6968
        %v7153 = vpack.c.bf16 %v6975, %v6973
        %v7154 = vpack.c.bf16 %v6980, %v6978
        %v7155 = vpack.c.bf16 %v6985, %v6983
        %v7156 = vpack.c.bf16 %v6990, %v6988
        %v7157 = vpack.c.bf16 %v6995, %v6993
        %v7158 = vpack.c.bf16 %v7000, %v6998
        %v7159 = vpack.c.bf16 %v7005, %v7003
        %v7160 = vpack.c.bf16 %v7010, %v7008
        %v7161 = vpack.c.bf16 %v7015, %v7013
        %v7162 = vpack.c.bf16 %v7020, %v7018
        %v7163 = vpack.c.bf16 %v7025, %v7023
        %v7164 = vpack.c.bf16 %v7030, %v7028
        %v7165 = vpack.c.bf16 %v7035, %v7033
        %v7166 = vpack.c.bf16 %v7040, %v7038
        %v7167 = vpack.c.bf16 %v7045, %v7043
        %7168 = vmatpush.bf16.xpose.msra.mxu0 %v7159
        %7169 = vmatpush.bf16.xpose.msra.mxu0 %v7158
        %7170 = vmatpush.bf16.xpose.msra.mxu0 %v7157
        %7171 = vmatpush.bf16.xpose.msra.mxu0 %v7156
        %7172 = vmatpush.bf16.xpose.msra.mxu0 %v7155
        %7173 = vmatpush.bf16.xpose.msra.mxu0 %v7154
        %7174 = vmatpush.bf16.xpose.msra.mxu0 %v7153
        %7175 = vmatpush.bf16.xpose.msra.mxu0 %v7152
        %7176 = vmatmul.bf16.gmra.mxu0 %v7136
        %v7177 = vpop.f32.mrf.mxu0
        %v7178 = vadd.f32 0.0, %v7177
        %v7179 = vpop.f32.mrf.mxu0
        %v7180 = vadd.f32 0.0, %v7179
        %7181 = vmatmul.bf16.gmra.mxu0 %v7137
        %v7182 = vpop.f32.mrf.mxu0
        %v7183 = vadd.f32 0.0, %v7182
        %v7184 = vpop.f32.mrf.mxu0
        %v7185 = vadd.f32 0.0, %v7184
        %7186 = vmatmul.bf16.gmra.mxu0 %v7138
        %v7187 = vpop.f32.mrf.mxu0
        %v7188 = vadd.f32 0.0, %v7187
        %v7189 = vpop.f32.mrf.mxu0
        %v7190 = vadd.f32 0.0, %v7189
        %7191 = vmatmul.bf16.gmra.mxu0 %v7139
        %v7192 = vpop.f32.mrf.mxu0
        %v7193 = vadd.f32 0.0, %v7192
        %v7194 = vpop.f32.mrf.mxu0
        %v7195 = vadd.f32 0.0, %v7194
        %7196 = vmatmul.bf16.gmra.mxu0 %v7140
        %v7197 = vpop.f32.mrf.mxu0
        %v7198 = vadd.f32 0.0, %v7197
        %v7199 = vpop.f32.mrf.mxu0
        %v7200 = vadd.f32 0.0, %v7199
        %7201 = vmatmul.bf16.gmra.mxu0 %v7141
        %v7202 = vpop.f32.mrf.mxu0
        %v7203 = vadd.f32 0.0, %v7202
        %v7204 = vpop.f32.mrf.mxu0
        %v7205 = vadd.f32 0.0, %v7204
        %7206 = vmatmul.bf16.gmra.mxu0 %v7142
        %v7207 = vpop.f32.mrf.mxu0
        %v7208 = vadd.f32 0.0, %v7207
        %v7209 = vpop.f32.mrf.mxu0
        %v7210 = vadd.f32 0.0, %v7209
        %7211 = vmatmul.bf16.gmra.mxu0 %v7143
        %v7212 = vpop.f32.mrf.mxu0
        %v7213 = vadd.f32 0.0, %v7212
        %v7214 = vpop.f32.mrf.mxu0
        %v7215 = vadd.f32 0.0, %v7214
        %7216 = vmatmul.bf16.gmra.mxu0 %v7144
        %v7217 = vpop.f32.mrf.mxu0
        %v7218 = vadd.f32 0.0, %v7217
        %v7219 = vpop.f32.mrf.mxu0
        %v7220 = vadd.f32 0.0, %v7219
        %7221 = vmatmul.bf16.gmra.mxu0 %v7145
        %v7222 = vpop.f32.mrf.mxu0
        %v7223 = vadd.f32 0.0, %v7222
        %v7224 = vpop.f32.mrf.mxu0
        %v7225 = vadd.f32 0.0, %v7224
        %7226 = vmatmul.bf16.gmra.mxu0 %v7146
        %v7227 = vpop.f32.mrf.mxu0
        %v7228 = vadd.f32 0.0, %v7227
        %v7229 = vpop.f32.mrf.mxu0
        %v7230 = vadd.f32 0.0, %v7229
        %7231 = vmatmul.bf16.gmra.mxu0 %v7147
        %v7232 = vpop.f32.mrf.mxu0
        %v7233 = vadd.f32 0.0, %v7232
        %v7234 = vpop.f32.mrf.mxu0
        %v7235 = vadd.f32 0.0, %v7234
        %7236 = vmatmul.bf16.gmra.mxu0 %v7148
        %v7237 = vpop.f32.mrf.mxu0
        %v7238 = vadd.f32 0.0, %v7237
        %v7239 = vpop.f32.mrf.mxu0
        %v7240 = vadd.f32 0.0, %v7239
        %7241 = vmatmul.bf16.gmra.mxu0 %v7149
        %v7242 = vpop.f32.mrf.mxu0
        %v7243 = vadd.f32 0.0, %v7242
        %v7244 = vpop.f32.mrf.mxu0
        %v7245 = vadd.f32 0.0, %v7244
        %7246 = vmatmul.bf16.gmra.mxu0 %v7150
        %v7247 = vpop.f32.mrf.mxu0
        %v7248 = vadd.f32 0.0, %v7247
        %v7249 = vpop.f32.mrf.mxu0
        %v7250 = vadd.f32 0.0, %v7249
        %7251 = vmatmul.bf16.gmra.mxu0 %v7151
        %v7252 = vpop.f32.mrf.mxu0
        %v7253 = vadd.f32 0.0, %v7252
        %v7254 = vpop.f32.mrf.mxu0
        %v7255 = vadd.f32 0.0, %v7254
        %7256 = vdwg.mxu0
        %7257 = vmatpush.bf16.xpose.msra.mxu0 %v7167
        %7258 = vmatpush.bf16.xpose.msra.mxu0 %v7166
        %7259 = vmatpush.bf16.xpose.msra.mxu0 %v7165
        %7260 = vmatpush.bf16.xpose.msra.mxu0 %v7164
        %7261 = vmatpush.bf16.xpose.msra.mxu0 %v7163
        %7262 = vmatpush.bf16.xpose.msra.mxu0 %v7162
        %7263 = vmatpush.bf16.xpose.msra.mxu0 %v7161
        %7264 = vmatpush.bf16.xpose.msra.mxu0 %v7160
        %7265 = vmatmul.bf16.gmra.mxu0 %v7136
        %v7266 = vpop.f32.mrf.mxu0
        %v7267 = vadd.f32 0.0, %v7266
        %v7268 = vpop.f32.mrf.mxu0
        %v7269 = vadd.f32 0.0, %v7268
        %7270 = vmatmul.bf16.gmra.mxu0 %v7137
        %v7271 = vpop.f32.mrf.mxu0
        %v7272 = vadd.f32 0.0, %v7271
        %v7273 = vpop.f32.mrf.mxu0
        %v7274 = vadd.f32 0.0, %v7273
        %7275 = vmatmul.bf16.gmra.mxu0 %v7138
        %v7276 = vpop.f32.mrf.mxu0
        %v7277 = vadd.f32 0.0, %v7276
        %v7278 = vpop.f32.mrf.mxu0
        %v7279 = vadd.f32 0.0, %v7278
        %7280 = vmatmul.bf16.gmra.mxu0 %v7139
        %v7281 = vpop.f32.mrf.mxu0
        %v7282 = vadd.f32 0.0, %v7281
        %v7283 = vpop.f32.mrf.mxu0
        %v7284 = vadd.f32 0.0, %v7283
        %7285 = vmatmul.bf16.gmra.mxu0 %v7140
        %v7286 = vpop.f32.mrf.mxu0
        %v7287 = vadd.f32 0.0, %v7286
        %v7288 = vpop.f32.mrf.mxu0
        %v7289 = vadd.f32 0.0, %v7288
        %7290 = vmatmul.bf16.gmra.mxu0 %v7141
        %v7291 = vpop.f32.mrf.mxu0
        %v7292 = vadd.f32 0.0, %v7291
        %v7293 = vpop.f32.mrf.mxu0
        %v7294 = vadd.f32 0.0, %v7293
        %7295 = vmatmul.bf16.gmra.mxu0 %v7142
        %v7296 = vpop.f32.mrf.mxu0
        %v7297 = vadd.f32 0.0, %v7296
        %v7298 = vpop.f32.mrf.mxu0
        %v7299 = vadd.f32 0.0, %v7298
        %7300 = vmatmul.bf16.gmra.mxu0 %v7143
        %v7301 = vpop.f32.mrf.mxu0
        %v7302 = vadd.f32 0.0, %v7301
        %v7303 = vpop.f32.mrf.mxu0
        %v7304 = vadd.f32 0.0, %v7303
        %7305 = vmatmul.bf16.gmra.mxu0 %v7144
        %v7306 = vpop.f32.mrf.mxu0
        %v7307 = vadd.f32 0.0, %v7306
        %v7308 = vpop.f32.mrf.mxu0
        %v7309 = vadd.f32 0.0, %v7308
        %7310 = vmatmul.bf16.gmra.mxu0 %v7145
        %v7311 = vpop.f32.mrf.mxu0
        %v7312 = vadd.f32 0.0, %v7311
        %v7313 = vpop.f32.mrf.mxu0
        %v7314 = vadd.f32 0.0, %v7313
        %7315 = vmatmul.bf16.gmra.mxu0 %v7146
        %v7316 = vpop.f32.mrf.mxu0
        %v7317 = vadd.f32 0.0, %v7316
        %v7318 = vpop.f32.mrf.mxu0
        %v7319 = vadd.f32 0.0, %v7318
        %7320 = vmatmul.bf16.gmra.mxu0 %v7147
        %v7321 = vpop.f32.mrf.mxu0
        %v7322 = vadd.f32 0.0, %v7321
        %v7323 = vpop.f32.mrf.mxu0
        %v7324 = vadd.f32 0.0, %v7323
        %7325 = vmatmul.bf16.gmra.mxu0 %v7148
        %v7326 = vpop.f32.mrf.mxu0
        %v7327 = vadd.f32 0.0, %v7326
        %v7328 = vpop.f32.mrf.mxu0
        %v7329 = vadd.f32 0.0, %v7328
        %7330 = vmatmul.bf16.gmra.mxu0 %v7149
        %v7331 = vpop.f32.mrf.mxu0
        %v7332 = vadd.f32 0.0, %v7331
        %v7333 = vpop.f32.mrf.mxu0
        %v7334 = vadd.f32 0.0, %v7333
        %7335 = vmatmul.bf16.gmra.mxu0 %v7150
        %v7336 = vpop.f32.mrf.mxu0
        %v7337 = vadd.f32 0.0, %v7336
        %v7338 = vpop.f32.mrf.mxu0
        %v7339 = vadd.f32 0.0, %v7338
        %7340 = vmatmul.bf16.gmra.mxu0 %v7151
        %v7341 = vpop.f32.mrf.mxu0
        %v7342 = vadd.f32 0.0, %v7341
        %v7343 = vpop.f32.mrf.mxu0
        %v7344 = vadd.f32 0.0, %v7343
        %7345 = vdwg.mxu0
        %v7346 = vmax.f32 %v7178, %v7267
        %7347 = vmax.xlane.f32.xlu0 %v7346
        %v7348 = vpop.xlane.xlu0 %7347
        %v7349 = vmax.f32 %v7180, %v7269
        %7350 = vmax.xlane.f32.xlu0 %v7349
        %v7351 = vpop.xlane.xlu0 %7350
        %v7352 = vmax.f32 %v7183, %v7272
        %7353 = vmax.xlane.f32.xlu0 %v7352
        %v7354 = vpop.xlane.xlu0 %7353
        %v7355 = vmax.f32 %v7185, %v7274
        %7356 = vmax.xlane.f32.xlu0 %v7355
        %v7357 = vpop.xlane.xlu0 %7356
        %v7358 = vmax.f32 %v7188, %v7277
        %7359 = vmax.xlane.f32.xlu0 %v7358
        %v7360 = vpop.xlane.xlu0 %7359
        %v7361 = vmax.f32 %v7190, %v7279
        %7362 = vmax.xlane.f32.xlu0 %v7361
        %v7363 = vpop.xlane.xlu0 %7362
        %v7364 = vmax.f32 %v7193, %v7282
        %7365 = vmax.xlane.f32.xlu0 %v7364
        %v7366 = vpop.xlane.xlu0 %7365
        %v7367 = vmax.f32 %v7195, %v7284
        %7368 = vmax.xlane.f32.xlu0 %v7367
        %v7369 = vpop.xlane.xlu0 %7368
        %v7370 = vmax.f32 %v7198, %v7287
        %7371 = vmax.xlane.f32.xlu0 %v7370
        %v7372 = vpop.xlane.xlu0 %7371
        %v7373 = vmax.f32 %v7200, %v7289
        %7374 = vmax.xlane.f32.xlu0 %v7373
        %v7375 = vpop.xlane.xlu0 %7374
        %v7376 = vmax.f32 %v7203, %v7292
        %7377 = vmax.xlane.f32.xlu0 %v7376
        %v7378 = vpop.xlane.xlu0 %7377
        %v7379 = vmax.f32 %v7205, %v7294
        %7380 = vmax.xlane.f32.xlu0 %v7379
        %v7381 = vpop.xlane.xlu0 %7380
        %v7382 = vmax.f32 %v7208, %v7297
        %7383 = vmax.xlane.f32.xlu0 %v7382
        %v7384 = vpop.xlane.xlu0 %7383
        %v7385 = vmax.f32 %v7210, %v7299
        %7386 = vmax.xlane.f32.xlu0 %v7385
        %v7387 = vpop.xlane.xlu0 %7386
        %v7388 = vmax.f32 %v7213, %v7302
        %7389 = vmax.xlane.f32.xlu0 %v7388
        %v7390 = vpop.xlane.xlu0 %7389
        %v7391 = vmax.f32 %v7215, %v7304
        %7392 = vmax.xlane.f32.xlu0 %v7391
        %v7393 = vpop.xlane.xlu0 %7392
        %v7394 = vmax.f32 %v7218, %v7307
        %7395 = vmax.xlane.f32.xlu0 %v7394
        %v7396 = vpop.xlane.xlu0 %7395
        %v7397 = vmax.f32 %v7220, %v7309
        %7398 = vmax.xlane.f32.xlu0 %v7397
        %v7399 = vpop.xlane.xlu0 %7398
        %v7400 = vmax.f32 %v7223, %v7312
        %7401 = vmax.xlane.f32.xlu0 %v7400
        %v7402 = vpop.xlane.xlu0 %7401
        %v7403 = vmax.f32 %v7225, %v7314
        %7404 = vmax.xlane.f32.xlu0 %v7403
        %v7405 = vpop.xlane.xlu0 %7404
        %v7406 = vmax.f32 %v7228, %v7317
        %7407 = vmax.xlane.f32.xlu0 %v7406
        %v7408 = vpop.xlane.xlu0 %7407
        %v7409 = vmax.f32 %v7230, %v7319
        %7410 = vmax.xlane.f32.xlu0 %v7409
        %v7411 = vpop.xlane.xlu0 %7410
        %v7412 = vmax.f32 %v7233, %v7322
        %7413 = vmax.xlane.f32.xlu0 %v7412
        %v7414 = vpop.xlane.xlu0 %7413
        %v7415 = vmax.f32 %v7235, %v7324
        %7416 = vmax.xlane.f32.xlu0 %v7415
        %v7417 = vpop.xlane.xlu0 %7416
        %v7418 = vmax.f32 %v7238, %v7327
        %7419 = vmax.xlane.f32.xlu0 %v7418
        %v7420 = vpop.xlane.xlu0 %7419
        %v7421 = vmax.f32 %v7240, %v7329
        %7422 = vmax.xlane.f32.xlu0 %v7421
        %v7423 = vpop.xlane.xlu0 %7422
        %v7424 = vmax.f32 %v7243, %v7332
        %7425 = vmax.xlane.f32.xlu0 %v7424
        %v7426 = vpop.xlane.xlu0 %7425
        %v7427 = vmax.f32 %v7245, %v7334
        %7428 = vmax.xlane.f32.xlu0 %v7427
        %v7429 = vpop.xlane.xlu0 %7428
        %v7430 = vmax.f32 %v7248, %v7337
        %7431 = vmax.xlane.f32.xlu0 %v7430
        %v7432 = vpop.xlane.xlu0 %7431
        %v7433 = vmax.f32 %v7250, %v7339
        %7434 = vmax.xlane.f32.xlu0 %v7433
        %v7435 = vpop.xlane.xlu0 %7434
        %v7436 = vmax.f32 %v7253, %v7342
        %7437 = vmax.xlane.f32.xlu0 %v7436
        %v7438 = vpop.xlane.xlu0 %7437
        %v7439 = vmax.f32 %v7255, %v7344
        %7440 = vmax.xlane.f32.xlu0 %v7439
        %v7441 = vpop.xlane.xlu0 %7440
        %v7442 = vsub.f32 %v7178, %v7348
        %v7443 = vsub.f32 %v7267, %v7348
        %v7444 = vsub.f32 %v7180, %v7351
        %v7445 = vsub.f32 %v7269, %v7351
        %v7446 = vsub.f32 %v7183, %v7354
        %v7447 = vsub.f32 %v7272, %v7354
        %v7448 = vsub.f32 %v7185, %v7357
        %v7449 = vsub.f32 %v7274, %v7357
        %v7450 = vsub.f32 %v7188, %v7360
        %v7451 = vsub.f32 %v7277, %v7360
        %v7452 = vsub.f32 %v7190, %v7363
        %v7453 = vsub.f32 %v7279, %v7363
        %v7454 = vsub.f32 %v7193, %v7366
        %v7455 = vsub.f32 %v7282, %v7366
        %v7456 = vsub.f32 %v7195, %v7369
        %v7457 = vsub.f32 %v7284, %v7369
        %v7458 = vsub.f32 %v7198, %v7372
        %v7459 = vsub.f32 %v7287, %v7372
        %v7460 = vsub.f32 %v7200, %v7375
        %v7461 = vsub.f32 %v7289, %v7375
        %v7462 = vsub.f32 %v7203, %v7378
        %v7463 = vsub.f32 %v7292, %v7378
        %v7464 = vsub.f32 %v7205, %v7381
        %v7465 = vsub.f32 %v7294, %v7381
        %v7466 = vsub.f32 %v7208, %v7384
        %v7467 = vsub.f32 %v7297, %v7384
        %v7468 = vsub.f32 %v7210, %v7387
        %v7469 = vsub.f32 %v7299, %v7387
        %v7470 = vsub.f32 %v7213, %v7390
        %v7471 = vsub.f32 %v7302, %v7390
        %v7472 = vsub.f32 %v7215, %v7393
        %v7473 = vsub.f32 %v7304, %v7393
        %v7474 = vsub.f32 %v7218, %v7396
        %v7475 = vsub.f32 %v7307, %v7396
        %v7476 = vsub.f32 %v7220, %v7399
        %v7477 = vsub.f32 %v7309, %v7399
        %v7478 = vsub.f32 %v7223, %v7402
        %v7479 = vsub.f32 %v7312, %v7402
        %v7480 = vsub.f32 %v7225, %v7405
        %v7481 = vsub.f32 %v7314, %v7405
        %v7482 = vsub.f32 %v7228, %v7408
        %v7483 = vsub.f32 %v7317, %v7408
        %v7484 = vsub.f32 %v7230, %v7411
        %v7485 = vsub.f32 %v7319, %v7411
        %v7486 = vsub.f32 %v7233, %v7414
        %v7487 = vsub.f32 %v7322, %v7414
        %v7488 = vsub.f32 %v7235, %v7417
        %v7489 = vsub.f32 %v7324, %v7417
        %v7490 = vsub.f32 %v7238, %v7420
        %v7491 = vsub.f32 %v7327, %v7420
        %v7492 = vsub.f32 %v7240, %v7423
        %v7493 = vsub.f32 %v7329, %v7423
        %v7494 = vsub.f32 %v7243, %v7426
        %v7495 = vsub.f32 %v7332, %v7426
        %v7496 = vsub.f32 %v7245, %v7429
        %v7497 = vsub.f32 %v7334, %v7429
        %v7498 = vsub.f32 %v7248, %v7432
        %v7499 = vsub.f32 %v7337, %v7432
        %v7500 = vsub.f32 %v7250, %v7435
        %v7501 = vsub.f32 %v7339, %v7435
        %v7502 = vsub.f32 %v7253, %v7438
        %v7503 = vsub.f32 %v7342, %v7438
        %v7504 = vsub.f32 %v7255, %v7441
        %v7505 = vsub.f32 %v7344, %v7441
        %v7506 = vmul.f32 %v7442, 1.442695
        %v7507 = vpow.pop %v7506
        %v7508 = vmul.f32 %v7443, 1.442695
        %v7509 = vpow.pop %v7508
        %v7510 = vmul.f32 %v7444, 1.442695
        %v7511 = vpow.pop %v7510
        %v7512 = vmul.f32 %v7445, 1.442695
        %v7513 = vpow.pop %v7512
        %v7514 = vmul.f32 %v7446, 1.442695
        %v7515 = vpow.pop %v7514
        %v7516 = vmul.f32 %v7447, 1.442695
        %v7517 = vpow.pop %v7516
        %v7518 = vmul.f32 %v7448, 1.442695
        %v7519 = vpow.pop %v7518
        %v7520 = vmul.f32 %v7449, 1.442695
        %v7521 = vpow.pop %v7520
        %v7522 = vmul.f32 %v7450, 1.442695
        %v7523 = vpow.pop %v7522
        %v7524 = vmul.f32 %v7451, 1.442695
        %v7525 = vpow.pop %v7524
        %v7526 = vmul.f32 %v7452, 1.442695
        %v7527 = vpow.pop %v7526
        %v7528 = vmul.f32 %v7453, 1.442695
        %v7529 = vpow.pop %v7528
        %v7530 = vmul.f32 %v7454, 1.442695
        %v7531 = vpow.pop %v7530
        %v7532 = vmul.f32 %v7455, 1.442695
        %v7533 = vpow.pop %v7532
        %v7534 = vmul.f32 %v7456, 1.442695
        %v7535 = vpow.pop %v7534
        %v7536 = vmul.f32 %v7457, 1.442695
        %v7537 = vpow.pop %v7536
        %v7538 = vmul.f32 %v7458, 1.442695
        %v7539 = vpow.pop %v7538
        %v7540 = vmul.f32 %v7459, 1.442695
        %v7541 = vpow.pop %v7540
        %v7542 = vmul.f32 %v7460, 1.442695
        %v7543 = vpow.pop %v7542
        %v7544 = vmul.f32 %v7461, 1.442695
        %v7545 = vpow.pop %v7544
        %v7546 = vmul.f32 %v7462, 1.442695
        %v7547 = vpow.pop %v7546
        %v7548 = vmul.f32 %v7463, 1.442695
        %v7549 = vpow.pop %v7548
        %v7550 = vmul.f32 %v7464, 1.442695
        %v7551 = vpow.pop %v7550
        %v7552 = vmul.f32 %v7465, 1.442695
        %v7553 = vpow.pop %v7552
        %v7554 = vmul.f32 %v7466, 1.442695
        %v7555 = vpow.pop %v7554
        %v7556 = vmul.f32 %v7467, 1.442695
        %v7557 = vpow.pop %v7556
        %v7558 = vmul.f32 %v7468, 1.442695
        %v7559 = vpow.pop %v7558
        %v7560 = vmul.f32 %v7469, 1.442695
        %v7561 = vpow.pop %v7560
        %v7562 = vmul.f32 %v7470, 1.442695
        %v7563 = vpow.pop %v7562
        %v7564 = vmul.f32 %v7471, 1.442695
        %v7565 = vpow.pop %v7564
        %v7566 = vmul.f32 %v7472, 1.442695
        %v7567 = vpow.pop %v7566
        %v7568 = vmul.f32 %v7473, 1.442695
        %v7569 = vpow.pop %v7568
        %v7570 = vmul.f32 %v7474, 1.442695
        %v7571 = vpow.pop %v7570
        %v7572 = vmul.f32 %v7475, 1.442695
        %v7573 = vpow.pop %v7572
        %v7574 = vmul.f32 %v7476, 1.442695
        %v7575 = vpow.pop %v7574
        %v7576 = vmul.f32 %v7477, 1.442695
        %v7577 = vpow.pop %v7576
        %v7578 = vmul.f32 %v7478, 1.442695
        %v7579 = vpow.pop %v7578
        %v7580 = vmul.f32 %v7479, 1.442695
        %v7581 = vpow.pop %v7580
        %v7582 = vmul.f32 %v7480, 1.442695
        %v7583 = vpow.pop %v7582
        %v7584 = vmul.f32 %v7481, 1.442695
        %v7585 = vpow.pop %v7584
        %v7586 = vmul.f32 %v7482, 1.442695
        %v7587 = vpow.pop %v7586
        %v7588 = vmul.f32 %v7483, 1.442695
        %v7589 = vpow.pop %v7588
        %v7590 = vmul.f32 %v7484, 1.442695
        %v7591 = vpow.pop %v7590
        %v7592 = vmul.f32 %v7485, 1.442695
        %v7593 = vpow.pop %v7592
        %v7594 = vmul.f32 %v7486, 1.442695
        %v7595 = vpow.pop %v7594
        %v7596 = vmul.f32 %v7487, 1.442695
        %v7597 = vpow.pop %v7596
        %v7598 = vmul.f32 %v7488, 1.442695
        %v7599 = vpow.pop %v7598
        %v7600 = vmul.f32 %v7489, 1.442695
        %v7601 = vpow.pop %v7600
        %v7602 = vmul.f32 %v7490, 1.442695
        %v7603 = vpow.pop %v7602
        %v7604 = vmul.f32 %v7491, 1.442695
        %v7605 = vpow.pop %v7604
        %v7606 = vmul.f32 %v7492, 1.442695
        %v7607 = vpow.pop %v7606
        %v7608 = vmul.f32 %v7493, 1.442695
        %v7609 = vpow.pop %v7608
        %v7610 = vmul.f32 %v7494, 1.442695
        %v7611 = vpow.pop %v7610
        %v7612 = vmul.f32 %v7495, 1.442695
        %v7613 = vpow.pop %v7612
        %v7614 = vmul.f32 %v7496, 1.442695
        %v7615 = vpow.pop %v7614
        %v7616 = vmul.f32 %v7497, 1.442695
        %v7617 = vpow.pop %v7616
        %v7618 = vmul.f32 %v7498, 1.442695
        %v7619 = vpow.pop %v7618
        %v7620 = vmul.f32 %v7499, 1.442695
        %v7621 = vpow.pop %v7620
        %v7622 = vmul.f32 %v7500, 1.442695
        %v7623 = vpow.pop %v7622
        %v7624 = vmul.f32 %v7501, 1.442695
        %v7625 = vpow.pop %v7624
        %v7626 = vmul.f32 %v7502, 1.442695
        %v7627 = vpow.pop %v7626
        %v7628 = vmul.f32 %v7503, 1.442695
        %v7629 = vpow.pop %v7628
        %v7630 = vmul.f32 %v7504, 1.442695
        %v7631 = vpow.pop %v7630
        %v7632 = vmul.f32 %v7505, 1.442695
        %v7633 = vpow.pop %v7632
        %v7634 = vadd.f32 %v7507, %v7509
        %7635 = vadd.xlane.f32.xlu0 %v7634
        %v7636 = vpop.xlane.xlu0 %7635
        %v7637 = vadd.f32 %v7511, %v7513
        %7638 = vadd.xlane.f32.xlu0 %v7637
        %v7639 = vpop.xlane.xlu0 %7638
        %v7640 = vadd.f32 %v7515, %v7517
        %7641 = vadd.xlane.f32.xlu0 %v7640
        %v7642 = vpop.xlane.xlu0 %7641
        %v7643 = vadd.f32 %v7519, %v7521
        %7644 = vadd.xlane.f32.xlu0 %v7643
        %v7645 = vpop.xlane.xlu0 %7644
        %v7646 = vadd.f32 %v7523, %v7525
        %7647 = vadd.xlane.f32.xlu0 %v7646
        %v7648 = vpop.xlane.xlu0 %7647
        %v7649 = vadd.f32 %v7527, %v7529
        %7650 = vadd.xlane.f32.xlu0 %v7649
        %v7651 = vpop.xlane.xlu0 %7650
        %v7652 = vadd.f32 %v7531, %v7533
        %7653 = vadd.xlane.f32.xlu0 %v7652
        %v7654 = vpop.xlane.xlu0 %7653
        %v7655 = vadd.f32 %v7535, %v7537
        %7656 = vadd.xlane.f32.xlu0 %v7655
        %v7657 = vpop.xlane.xlu0 %7656
        %v7658 = vadd.f32 %v7539, %v7541
        %7659 = vadd.xlane.f32.xlu0 %v7658
        %v7660 = vpop.xlane.xlu0 %7659
        %v7661 = vadd.f32 %v7543, %v7545
        %7662 = vadd.xlane.f32.xlu0 %v7661
        %v7663 = vpop.xlane.xlu0 %7662
        %v7664 = vadd.f32 %v7547, %v7549
        %7665 = vadd.xlane.f32.xlu0 %v7664
        %v7666 = vpop.xlane.xlu0 %7665
        %v7667 = vadd.f32 %v7551, %v7553
        %7668 = vadd.xlane.f32.xlu0 %v7667
        %v7669 = vpop.xlane.xlu0 %7668
        %v7670 = vadd.f32 %v7555, %v7557
        %7671 = vadd.xlane.f32.xlu0 %v7670
        %v7672 = vpop.xlane.xlu0 %7671
        %v7673 = vadd.f32 %v7559, %v7561
        %7674 = vadd.xlane.f32.xlu0 %v7673
        %v7675 = vpop.xlane.xlu0 %7674
        %v7676 = vadd.f32 %v7563, %v7565
        %7677 = vadd.xlane.f32.xlu0 %v7676
        %v7678 = vpop.xlane.xlu0 %7677
        %v7679 = vadd.f32 %v7567, %v7569
        %7680 = vadd.xlane.f32.xlu0 %v7679
        %v7681 = vpop.xlane.xlu0 %7680
        %v7682 = vadd.f32 %v7571, %v7573
        %7683 = vadd.xlane.f32.xlu0 %v7682
        %v7684 = vpop.xlane.xlu0 %7683
        %v7685 = vadd.f32 %v7575, %v7577
        %7686 = vadd.xlane.f32.xlu0 %v7685
        %v7687 = vpop.xlane.xlu0 %7686
        %v7688 = vadd.f32 %v7579, %v7581
        %7689 = vadd.xlane.f32.xlu0 %v7688
        %v7690 = vpop.xlane.xlu0 %7689
        %v7691 = vadd.f32 %v7583, %v7585
        %7692 = vadd.xlane.f32.xlu0 %v7691
        %v7693 = vpop.xlane.xlu0 %7692
        %v7694 = vadd.f32 %v7587, %v7589
        %7695 = vadd.xlane.f32.xlu0 %v7694
        %v7696 = vpop.xlane.xlu0 %7695
        %v7697 = vadd.f32 %v7591, %v7593
        %7698 = vadd.xlane.f32.xlu0 %v7697
        %v7699 = vpop.xlane.xlu0 %7698
        %v7700 = vadd.f32 %v7595, %v7597
        %7701 = vadd.xlane.f32.xlu0 %v7700
        %v7702 = vpop.xlane.xlu0 %7701
        %v7703 = vadd.f32 %v7599, %v7601
        %7704 = vadd.xlane.f32.xlu0 %v7703
        %v7705 = vpop.xlane.xlu0 %7704
        %v7706 = vadd.f32 %v7603, %v7605
        %7707 = vadd.xlane.f32.xlu0 %v7706
        %v7708 = vpop.xlane.xlu0 %7707
        %v7709 = vadd.f32 %v7607, %v7609
        %7710 = vadd.xlane.f32.xlu0 %v7709
        %v7711 = vpop.xlane.xlu0 %7710
        %v7712 = vadd.f32 %v7611, %v7613
        %7713 = vadd.xlane.f32.xlu0 %v7712
        %v7714 = vpop.xlane.xlu0 %7713
        %v7715 = vadd.f32 %v7615, %v7617
        %7716 = vadd.xlane.f32.xlu0 %v7715
        %v7717 = vpop.xlane.xlu0 %7716
        %v7718 = vadd.f32 %v7619, %v7621
        %7719 = vadd.xlane.f32.xlu0 %v7718
        %v7720 = vpop.xlane.xlu0 %7719
        %v7721 = vadd.f32 %v7623, %v7625
        %7722 = vadd.xlane.f32.xlu0 %v7721
        %v7723 = vpop.xlane.xlu0 %7722
        %v7724 = vadd.f32 %v7627, %v7629
        %7725 = vadd.xlane.f32.xlu0 %v7724
        %v7726 = vpop.xlane.xlu0 %7725
        %v7727 = vadd.f32 %v7631, %v7633
        %7728 = vadd.xlane.f32.xlu0 %v7727
        %v7729 = vpop.xlane.xlu0 %7728
        %v7730 = vrcp.pop %v7636
        %v7731 = vrcp.pop %v7639
        %v7732 = vrcp.pop %v7642
        %v7733 = vrcp.pop %v7645
        %v7734 = vrcp.pop %v7648
        %v7735 = vrcp.pop %v7651
        %v7736 = vrcp.pop %v7654
        %v7737 = vrcp.pop %v7657
        %v7738 = vrcp.pop %v7660
        %v7739 = vrcp.pop %v7663
        %v7740 = vrcp.pop %v7666
        %v7741 = vrcp.pop %v7669
        %v7742 = vrcp.pop %v7672
        %v7743 = vrcp.pop %v7675
        %v7744 = vrcp.pop %v7678
        %v7745 = vrcp.pop %v7681
        %v7746 = vrcp.pop %v7684
        %v7747 = vrcp.pop %v7687
        %v7748 = vrcp.pop %v7690
        %v7749 = vrcp.pop %v7693
        %v7750 = vrcp.pop %v7696
        %v7751 = vrcp.pop %v7699
        %v7752 = vrcp.pop %v7702
        %v7753 = vrcp.pop %v7705
        %v7754 = vrcp.pop %v7708
        %v7755 = vrcp.pop %v7711
        %v7756 = vrcp.pop %v7714
        %v7757 = vrcp.pop %v7717
        %v7758 = vrcp.pop %v7720
        %v7759 = vrcp.pop %v7723
        %v7760 = vrcp.pop %v7726
        %v7761 = vrcp.pop %v7729
        %v7762 = vmul.f32 %v7507, %v7730
        %v7763 = vmul.f32 %v7509, %v7730
        %v7764 = vmul.f32 %v7511, %v7731
        %v7765 = vmul.f32 %v7513, %v7731
        %v7766 = vmul.f32 %v7515, %v7732
        %v7767 = vmul.f32 %v7517, %v7732
        %v7768 = vmul.f32 %v7519, %v7733
        %v7769 = vmul.f32 %v7521, %v7733
        %v7770 = vmul.f32 %v7523, %v7734
        %v7771 = vmul.f32 %v7525, %v7734
        %v7772 = vmul.f32 %v7527, %v7735
        %v7773 = vmul.f32 %v7529, %v7735
        %v7774 = vmul.f32 %v7531, %v7736
        %v7775 = vmul.f32 %v7533, %v7736
        %v7776 = vmul.f32 %v7535, %v7737
        %v7777 = vmul.f32 %v7537, %v7737
        %v7778 = vmul.f32 %v7539, %v7738
        %v7779 = vmul.f32 %v7541, %v7738
        %v7780 = vmul.f32 %v7543, %v7739
        %v7781 = vmul.f32 %v7545, %v7739
        %v7782 = vmul.f32 %v7547, %v7740
        %v7783 = vmul.f32 %v7549, %v7740
        %v7784 = vmul.f32 %v7551, %v7741
        %v7785 = vmul.f32 %v7553, %v7741
        %v7786 = vmul.f32 %v7555, %v7742
        %v7787 = vmul.f32 %v7557, %v7742
        %v7788 = vmul.f32 %v7559, %v7743
        %v7789 = vmul.f32 %v7561, %v7743
        %v7790 = vmul.f32 %v7563, %v7744
        %v7791 = vmul.f32 %v7565, %v7744
        %v7792 = vmul.f32 %v7567, %v7745
        %v7793 = vmul.f32 %v7569, %v7745
        %v7794 = vmul.f32 %v7571, %v7746
        %v7795 = vmul.f32 %v7573, %v7746
        %v7796 = vmul.f32 %v7575, %v7747
        %v7797 = vmul.f32 %v7577, %v7747
        %v7798 = vmul.f32 %v7579, %v7748
        %v7799 = vmul.f32 %v7581, %v7748
        %v7800 = vmul.f32 %v7583, %v7749
        %v7801 = vmul.f32 %v7585, %v7749
        %v7802 = vmul.f32 %v7587, %v7750
        %v7803 = vmul.f32 %v7589, %v7750
        %v7804 = vmul.f32 %v7591, %v7751
        %v7805 = vmul.f32 %v7593, %v7751
        %v7806 = vmul.f32 %v7595, %v7752
        %v7807 = vmul.f32 %v7597, %v7752
        %v7808 = vmul.f32 %v7599, %v7753
        %v7809 = vmul.f32 %v7601, %v7753
        %v7810 = vmul.f32 %v7603, %v7754
        %v7811 = vmul.f32 %v7605, %v7754
        %v7812 = vmul.f32 %v7607, %v7755
        %v7813 = vmul.f32 %v7609, %v7755
        %v7814 = vmul.f32 %v7611, %v7756
        %v7815 = vmul.f32 %v7613, %v7756
        %v7816 = vmul.f32 %v7615, %v7757
        %v7817 = vmul.f32 %v7617, %v7757
        %v7818 = vmul.f32 %v7619, %v7758
        %v7819 = vmul.f32 %v7621, %v7758
        %v7820 = vmul.f32 %v7623, %v7759
        %v7821 = vmul.f32 %v7625, %v7759
        %v7822 = vmul.f32 %v7627, %v7760
        %v7823 = vmul.f32 %v7629, %v7760
        %v7824 = vmul.f32 %v7631, %v7761
        %v7825 = vmul.f32 %v7633, %v7761
        %v7826 = vpack.c.bf16 %v7764, %v7762
        %v7827 = vpack.c.bf16 %v7765, %v7763
        %v7828 = vpack.c.bf16 %v7768, %v7766
        %v7829 = vpack.c.bf16 %v7769, %v7767
        %v7830 = vpack.c.bf16 %v7772, %v7770
        %v7831 = vpack.c.bf16 %v7773, %v7771
        %v7832 = vpack.c.bf16 %v7776, %v7774
        %v7833 = vpack.c.bf16 %v7777, %v7775
        %v7834 = vpack.c.bf16 %v7780, %v7778
        %v7835 = vpack.c.bf16 %v7781, %v7779
        %v7836 = vpack.c.bf16 %v7784, %v7782
        %v7837 = vpack.c.bf16 %v7785, %v7783
        %v7838 = vpack.c.bf16 %v7788, %v7786
        %v7839 = vpack.c.bf16 %v7789, %v7787
        %v7840 = vpack.c.bf16 %v7792, %v7790
        %v7841 = vpack.c.bf16 %v7793, %v7791
        %v7842 = vpack.c.bf16 %v7796, %v7794
        %v7843 = vpack.c.bf16 %v7797, %v7795
        %v7844 = vpack.c.bf16 %v7800, %v7798
        %v7845 = vpack.c.bf16 %v7801, %v7799
        %v7846 = vpack.c.bf16 %v7804, %v7802
        %v7847 = vpack.c.bf16 %v7805, %v7803
        %v7848 = vpack.c.bf16 %v7808, %v7806
        %v7849 = vpack.c.bf16 %v7809, %v7807
        %v7850 = vpack.c.bf16 %v7812, %v7810
        %v7851 = vpack.c.bf16 %v7813, %v7811
        %v7852 = vpack.c.bf16 %v7816, %v7814
        %v7853 = vpack.c.bf16 %v7817, %v7815
        %v7854 = vpack.c.bf16 %v7820, %v7818
        %v7855 = vpack.c.bf16 %v7821, %v7819
        %v7856 = vpack.c.bf16 %v7824, %v7822
        %v7857 = vpack.c.bf16 %v7825, %v7823
        %v7858 = vpack.c.bf16 %v7059, %v7057
        %v7859 = vpack.c.bf16 %v7064, %v7062
        %v7860 = vpack.c.bf16 %v7069, %v7067
        %v7861 = vpack.c.bf16 %v7074, %v7072
        %v7862 = vpack.c.bf16 %v7079, %v7077
        %v7863 = vpack.c.bf16 %v7084, %v7082
        %v7864 = vpack.c.bf16 %v7089, %v7087
        %v7865 = vpack.c.bf16 %v7094, %v7092
        %v7866 = vpack.c.bf16 %v7099, %v7097
        %v7867 = vpack.c.bf16 %v7104, %v7102
        %v7868 = vpack.c.bf16 %v7109, %v7107
        %v7869 = vpack.c.bf16 %v7114, %v7112
        %v7870 = vpack.c.bf16 %v7119, %v7117
        %v7871 = vpack.c.bf16 %v7124, %v7122
        %v7872 = vpack.c.bf16 %v7129, %v7127
        %v7873 = vpack.c.bf16 %v7134, %v7132
        %7874 = vmatpush.bf16.msra.mxu0 %v7865
        %7875 = vmatpush.bf16.msra.mxu0 %v7864
        %7876 = vmatpush.bf16.msra.mxu0 %v7863
        %7877 = vmatpush.bf16.msra.mxu0 %v7862
        %7878 = vmatpush.bf16.msra.mxu0 %v7861
        %7879 = vmatpush.bf16.msra.mxu0 %v7860
        %7880 = vmatpush.bf16.msra.mxu0 %v7859
        %7881 = vmatpush.bf16.msra.mxu0 %v7858
        %7882 = vmatmul.bf16.gmra.mxu0 %v7826
        %v7883 = vpop.f32.mrf.mxu0
        %v7884 = vadd.f32 0.0, %v7883
        %v7885 = vpop.f32.mrf.mxu0
        %v7886 = vadd.f32 0.0, %v7885
        %7887 = vmatmul.bf16.gmra.mxu0 %v7828
        %v7888 = vpop.f32.mrf.mxu0
        %v7889 = vadd.f32 0.0, %v7888
        %v7890 = vpop.f32.mrf.mxu0
        %v7891 = vadd.f32 0.0, %v7890
        %7892 = vmatmul.bf16.gmra.mxu0 %v7830
        %v7893 = vpop.f32.mrf.mxu0
        %v7894 = vadd.f32 0.0, %v7893
        %v7895 = vpop.f32.mrf.mxu0
        %v7896 = vadd.f32 0.0, %v7895
        %7897 = vmatmul.bf16.gmra.mxu0 %v7832
        %v7898 = vpop.f32.mrf.mxu0
        %v7899 = vadd.f32 0.0, %v7898
        %v7900 = vpop.f32.mrf.mxu0
        %v7901 = vadd.f32 0.0, %v7900
        %7902 = vmatmul.bf16.gmra.mxu0 %v7834
        %v7903 = vpop.f32.mrf.mxu0
        %v7904 = vadd.f32 0.0, %v7903
        %v7905 = vpop.f32.mrf.mxu0
        %v7906 = vadd.f32 0.0, %v7905
        %7907 = vmatmul.bf16.gmra.mxu0 %v7836
        %v7908 = vpop.f32.mrf.mxu0
        %v7909 = vadd.f32 0.0, %v7908
        %v7910 = vpop.f32.mrf.mxu0
        %v7911 = vadd.f32 0.0, %v7910
        %7912 = vmatmul.bf16.gmra.mxu0 %v7838
        %v7913 = vpop.f32.mrf.mxu0
        %v7914 = vadd.f32 0.0, %v7913
        %v7915 = vpop.f32.mrf.mxu0
        %v7916 = vadd.f32 0.0, %v7915
        %7917 = vmatmul.bf16.gmra.mxu0 %v7840
        %v7918 = vpop.f32.mrf.mxu0
        %v7919 = vadd.f32 0.0, %v7918
        %v7920 = vpop.f32.mrf.mxu0
        %v7921 = vadd.f32 0.0, %v7920
        %7922 = vmatmul.bf16.gmra.mxu0 %v7842
        %v7923 = vpop.f32.mrf.mxu0
        %v7924 = vadd.f32 0.0, %v7923
        %v7925 = vpop.f32.mrf.mxu0
        %v7926 = vadd.f32 0.0, %v7925
        %7927 = vmatmul.bf16.gmra.mxu0 %v7844
        %v7928 = vpop.f32.mrf.mxu0
        %v7929 = vadd.f32 0.0, %v7928
        %v7930 = vpop.f32.mrf.mxu0
        %v7931 = vadd.f32 0.0, %v7930
        %7932 = vmatmul.bf16.gmra.mxu0 %v7846
        %v7933 = vpop.f32.mrf.mxu0
        %v7934 = vadd.f32 0.0, %v7933
        %v7935 = vpop.f32.mrf.mxu0
        %v7936 = vadd.f32 0.0, %v7935
        %7937 = vmatmul.bf16.gmra.mxu0 %v7848
        %v7938 = vpop.f32.mrf.mxu0
        %v7939 = vadd.f32 0.0, %v7938
        %v7940 = vpop.f32.mrf.mxu0
        %v7941 = vadd.f32 0.0, %v7940
        %7942 = vmatmul.bf16.gmra.mxu0 %v7850
        %v7943 = vpop.f32.mrf.mxu0
        %v7944 = vadd.f32 0.0, %v7943
        %v7945 = vpop.f32.mrf.mxu0
        %v7946 = vadd.f32 0.0, %v7945
        %7947 = vmatmul.bf16.gmra.mxu0 %v7852
        %v7948 = vpop.f32.mrf.mxu0
        %v7949 = vadd.f32 0.0, %v7948
        %v7950 = vpop.f32.mrf.mxu0
        %v7951 = vadd.f32 0.0, %v7950
        %7952 = vmatmul.bf16.gmra.mxu0 %v7854
        %v7953 = vpop.f32.mrf.mxu0
        %v7954 = vadd.f32 0.0, %v7953
        %v7955 = vpop.f32.mrf.mxu0
        %v7956 = vadd.f32 0.0, %v7955
        %7957 = vmatmul.bf16.gmra.mxu0 %v7856
        %v7958 = vpop.f32.mrf.mxu0
        %v7959 = vadd.f32 0.0, %v7958
        %v7960 = vpop.f32.mrf.mxu0
        %v7961 = vadd.f32 0.0, %v7960
        %7962 = vdwg.mxu0
        %7963 = vmatpush.bf16.msra.mxu0 %v7873
        %7964 = vmatpush.bf16.msra.mxu0 %v7872
        %7965 = vmatpush.bf16.msra.mxu0 %v7871
        %7966 = vmatpush.bf16.msra.mxu0 %v7870
        %7967 = vmatpush.bf16.msra.mxu0 %v7869
        %7968 = vmatpush.bf16.msra.mxu0 %v7868
        %7969 = vmatpush.bf16.msra.mxu0 %v7867
        %7970 = vmatpush.bf16.msra.mxu0 %v7866
        %7971 = vmatmul.bf16.gmra.mxu0 %v7827
        %v7972 = vpop.f32.mrf.mxu0
        %v7973 = vadd.f32 %v7884, %v7972
        %v7974 = vpop.f32.mrf.mxu0
        %v7975 = vadd.f32 %v7886, %v7974
        %7976 = vmatmul.bf16.gmra.mxu0 %v7829
        %v7977 = vpop.f32.mrf.mxu0
        %v7978 = vadd.f32 %v7889, %v7977
        %v7979 = vpop.f32.mrf.mxu0
        %v7980 = vadd.f32 %v7891, %v7979
        %7981 = vmatmul.bf16.gmra.mxu0 %v7831
        %v7982 = vpop.f32.mrf.mxu0
        %v7983 = vadd.f32 %v7894, %v7982
        %v7984 = vpop.f32.mrf.mxu0
        %v7985 = vadd.f32 %v7896, %v7984
        %7986 = vmatmul.bf16.gmra.mxu0 %v7833
        %v7987 = vpop.f32.mrf.mxu0
        %v7988 = vadd.f32 %v7899, %v7987
        %v7989 = vpop.f32.mrf.mxu0
        %v7990 = vadd.f32 %v7901, %v7989
        %7991 = vmatmul.bf16.gmra.mxu0 %v7835
        %v7992 = vpop.f32.mrf.mxu0
        %v7993 = vadd.f32 %v7904, %v7992
        %v7994 = vpop.f32.mrf.mxu0
        %v7995 = vadd.f32 %v7906, %v7994
        %7996 = vmatmul.bf16.gmra.mxu0 %v7837
        %v7997 = vpop.f32.mrf.mxu0
        %v7998 = vadd.f32 %v7909, %v7997
        %v7999 = vpop.f32.mrf.mxu0
        %v8000 = vadd.f32 %v7911, %v7999
        %8001 = vmatmul.bf16.gmra.mxu0 %v7839
        %v8002 = vpop.f32.mrf.mxu0
        %v8003 = vadd.f32 %v7914, %v8002
        %v8004 = vpop.f32.mrf.mxu0
        %v8005 = vadd.f32 %v7916, %v8004
        %8006 = vmatmul.bf16.gmra.mxu0 %v7841
        %v8007 = vpop.f32.mrf.mxu0
        %v8008 = vadd.f32 %v7919, %v8007
        %v8009 = vpop.f32.mrf.mxu0
        %v8010 = vadd.f32 %v7921, %v8009
        %8011 = vmatmul.bf16.gmra.mxu0 %v7843
        %v8012 = vpop.f32.mrf.mxu0
        %v8013 = vadd.f32 %v7924, %v8012
        %v8014 = vpop.f32.mrf.mxu0
        %v8015 = vadd.f32 %v7926, %v8014
        %8016 = vmatmul.bf16.gmra.mxu0 %v7845
        %v8017 = vpop.f32.mrf.mxu0
        %v8018 = vadd.f32 %v7929, %v8017
        %v8019 = vpop.f32.mrf.mxu0
        %v8020 = vadd.f32 %v7931, %v8019
        %8021 = vmatmul.bf16.gmra.mxu0 %v7847
        %v8022 = vpop.f32.mrf.mxu0
        %v8023 = vadd.f32 %v7934, %v8022
        %v8024 = vpop.f32.mrf.mxu0
        %v8025 = vadd.f32 %v7936, %v8024
        %8026 = vmatmul.bf16.gmra.mxu0 %v7849
        %v8027 = vpop.f32.mrf.mxu0
        %v8028 = vadd.f32 %v7939, %v8027
        %v8029 = vpop.f32.mrf.mxu0
        %v8030 = vadd.f32 %v7941, %v8029
        %8031 = vmatmul.bf16.gmra.mxu0 %v7851
        %v8032 = vpop.f32.mrf.mxu0
        %v8033 = vadd.f32 %v7944, %v8032
        %v8034 = vpop.f32.mrf.mxu0
        %v8035 = vadd.f32 %v7946, %v8034
        %8036 = vmatmul.bf16.gmra.mxu0 %v7853
        %v8037 = vpop.f32.mrf.mxu0
        %v8038 = vadd.f32 %v7949, %v8037
        %v8039 = vpop.f32.mrf.mxu0
        %v8040 = vadd.f32 %v7951, %v8039
        %8041 = vmatmul.bf16.gmra.mxu0 %v7855
        %v8042 = vpop.f32.mrf.mxu0
        %v8043 = vadd.f32 %v7954, %v8042
        %v8044 = vpop.f32.mrf.mxu0
        %v8045 = vadd.f32 %v7956, %v8044
        %8046 = vmatmul.bf16.gmra.mxu0 %v7857
        %v8047 = vpop.f32.mrf.mxu0
        %v8048 = vadd.f32 %v7959, %v8047
        %v8049 = vpop.f32.mrf.mxu0
        %v8050 = vadd.f32 %v7961, %v8049
        %8051 = vdwg.mxu0
        %v8052 = vpack.c.bf16 %v7975, %v7973
        %v8053 = vpack.c.bf16 %v7980, %v7978
        %v8054 = vpack.c.bf16 %v7985, %v7983
        %v8055 = vpack.c.bf16 %v7990, %v7988
        %v8056 = vpack.c.bf16 %v7995, %v7993
        %v8057 = vpack.c.bf16 %v8000, %v7998
        %v8058 = vpack.c.bf16 %v8005, %v8003
        %v8059 = vpack.c.bf16 %v8010, %v8008
        %v8060 = vpack.c.bf16 %v8015, %v8013
        %v8061 = vpack.c.bf16 %v8020, %v8018
        %v8062 = vpack.c.bf16 %v8025, %v8023
        %v8063 = vpack.c.bf16 %v8030, %v8028
        %v8064 = vpack.c.bf16 %v8035, %v8033
        %v8065 = vpack.c.bf16 %v8040, %v8038
        %v8066 = vpack.c.bf16 %v8045, %v8043
        %v8067 = vpack.c.bf16 %v8050, %v8048
        %v8068 = vld [vmem:[%s18] sm:$0xf]
        %v8069 = vld [vmem:[%s18 + $0x4] sm:$0xf]
        %v8070 = vld [vmem:[%s18 + $0x8] sm:$0xf]
        %v8071 = vld [vmem:[%s18 + $0xc] sm:$0xf]
        %v8072 = vld [vmem:[%s18 + $0x10] sm:$0xf]
        %v8073 = vld [vmem:[%s18 + $0x14] sm:$0xf]
        %v8074 = vld [vmem:[%s18 + $0x18] sm:$0xf]
        %v8075 = vld [vmem:[%s18 + $0x1c] sm:$0xf]
        %v8076 = vld [vmem:[%s18 + $0x20] sm:$0xf]
        %v8077 = vld [vmem:[%s18 + $0x24] sm:$0xf]
        %v8078 = vld [vmem:[%s18 + $0x28] sm:$0xf]
        %v8079 = vld [vmem:[%s18 + $0x2c] sm:$0xf]
        %v8080 = vld [vmem:[%s18 + $0x30] sm:$0xf]
        %v8081 = vld [vmem:[%s18 + $0x34] sm:$0xf]
        %v8082 = vld [vmem:[%s18 + $0x38] sm:$0xf]
        %v8083 = vld [vmem:[%s18 + $0x3c] sm:$0xf]
        %v8084 = vld [vmem:[%s19] sm:$0x1]
        %v8086 = vperm.slane %v8084, 0
        %v8104 = vunpack.c.l.b16 %v8068
        %v8105 = vunpack.c.l.b16 %v8069
        %v8106 = vunpack.c.l.b16 %v8070
        %v8107 = vunpack.c.l.b16 %v8071
        %v8108 = vunpack.c.l.b16 %v8072
        %v8109 = vunpack.c.l.b16 %v8073
        %v8110 = vunpack.c.l.b16 %v8074
        %v8111 = vunpack.c.l.b16 %v8075
        %v8112 = vunpack.c.l.b16 %v8076
        %v8113 = vunpack.c.l.b16 %v8077
        %v8114 = vunpack.c.l.b16 %v8078
        %v8115 = vunpack.c.l.b16 %v8079
        %v8116 = vunpack.c.l.b16 %v8080
        %v8117 = vunpack.c.l.b16 %v8081
        %v8118 = vunpack.c.l.b16 %v8082
        %v8119 = vunpack.c.l.b16 %v8083
        %v8120 = vpack.c.b16 %v8105, %v8104
        %v8121 = vpack.c.b16 %v8107, %v8106
        %v8122 = vpack.c.b16 %v8109, %v8108
        %v8123 = vpack.c.b16 %v8111, %v8110
        %v8124 = vpack.c.b16 %v8113, %v8112
        %v8125 = vpack.c.b16 %v8115, %v8114
        %v8126 = vpack.c.b16 %v8117, %v8116
        %v8127 = vpack.c.b16 %v8119, %v8118
        %8136 = vmatpush.bf16.msra.mxu0 %v8127
        %8137 = vmatpush.bf16.msra.mxu0 %v8126
        %8138 = vmatpush.bf16.msra.mxu0 %v8125
        %8139 = vmatpush.bf16.msra.mxu0 %v8124
        %8140 = vmatpush.bf16.msra.mxu0 %v8123
        %8141 = vmatpush.bf16.msra.mxu0 %v8122
        %8142 = vmatpush.bf16.msra.mxu0 %v8121
        %8143 = vmatpush.bf16.msra.mxu0 %v8120
        %8144 = vmatmul.bf16.gmra.mxu0 %v8052
        %v8145 = vpop.f32.mrf.mxu0
        %v8146 = vadd.f32 %v8086, %v8145
        %v8147 = vpop.f32.mrf.mxu0
        %v8148 = vadd.f32 %v8086, %v8147
        %8149 = vmatmul.bf16.gmra.mxu0 %v8053
        %v8150 = vpop.f32.mrf.mxu0
        %v8151 = vadd.f32 %v8086, %v8150
        %v8152 = vpop.f32.mrf.mxu0
        %v8153 = vadd.f32 %v8086, %v8152
        %8154 = vmatmul.bf16.gmra.mxu0 %v8054
        %v8155 = vpop.f32.mrf.mxu0
        %v8156 = vadd.f32 %v8086, %v8155
        %v8157 = vpop.f32.mrf.mxu0
        %v8158 = vadd.f32 %v8086, %v8157
        %8159 = vmatmul.bf16.gmra.mxu0 %v8055
        %v8160 = vpop.f32.mrf.mxu0
        %v8161 = vadd.f32 %v8086, %v8160
        %v8162 = vpop.f32.mrf.mxu0
        %v8163 = vadd.f32 %v8086, %v8162
        %8164 = vmatmul.bf16.gmra.mxu0 %v8056
        %v8165 = vpop.f32.mrf.mxu0
        %v8166 = vadd.f32 %v8086, %v8165
        %v8167 = vpop.f32.mrf.mxu0
        %v8168 = vadd.f32 %v8086, %v8167
        %8169 = vmatmul.bf16.gmra.mxu0 %v8057
        %v8170 = vpop.f32.mrf.mxu0
        %v8171 = vadd.f32 %v8086, %v8170
        %v8172 = vpop.f32.mrf.mxu0
        %v8173 = vadd.f32 %v8086, %v8172
        %8174 = vmatmul.bf16.gmra.mxu0 %v8058
        %v8175 = vpop.f32.mrf.mxu0
        %v8176 = vadd.f32 %v8086, %v8175
        %v8177 = vpop.f32.mrf.mxu0
        %v8178 = vadd.f32 %v8086, %v8177
        %8179 = vmatmul.bf16.gmra.mxu0 %v8059
        %v8180 = vpop.f32.mrf.mxu0
        %v8181 = vadd.f32 %v8086, %v8180
        %v8182 = vpop.f32.mrf.mxu0
        %v8183 = vadd.f32 %v8086, %v8182
        %8184 = vmatmul.bf16.gmra.mxu0 %v8060
        %v8185 = vpop.f32.mrf.mxu0
        %v8186 = vadd.f32 %v8086, %v8185
        %v8187 = vpop.f32.mrf.mxu0
        %v8188 = vadd.f32 %v8086, %v8187
        %8189 = vmatmul.bf16.gmra.mxu0 %v8061
        %v8190 = vpop.f32.mrf.mxu0
        %v8191 = vadd.f32 %v8086, %v8190
        %v8192 = vpop.f32.mrf.mxu0
        %v8193 = vadd.f32 %v8086, %v8192
        %8194 = vmatmul.bf16.gmra.mxu0 %v8062
        %v8195 = vpop.f32.mrf.mxu0
        %v8196 = vadd.f32 %v8086, %v8195
        %v8197 = vpop.f32.mrf.mxu0
        %v8198 = vadd.f32 %v8086, %v8197
        %8199 = vmatmul.bf16.gmra.mxu0 %v8063
        %v8200 = vpop.f32.mrf.mxu0
        %v8201 = vadd.f32 %v8086, %v8200
        %v8202 = vpop.f32.mrf.mxu0
        %v8203 = vadd.f32 %v8086, %v8202
        %8204 = vmatmul.bf16.gmra.mxu0 %v8064
        %v8205 = vpop.f32.mrf.mxu0
        %v8206 = vadd.f32 %v8086, %v8205
        %v8207 = vpop.f32.mrf.mxu0
        %v8208 = vadd.f32 %v8086, %v8207
        %8209 = vmatmul.bf16.gmra.mxu0 %v8065
        %v8210 = vpop.f32.mrf.mxu0
        %v8211 = vadd.f32 %v8086, %v8210
        %v8212 = vpop.f32.mrf.mxu0
        %v8213 = vadd.f32 %v8086, %v8212
        %8214 = vmatmul.bf16.gmra.mxu0 %v8066
        %v8215 = vpop.f32.mrf.mxu0
        %v8216 = vadd.f32 %v8086, %v8215
        %v8217 = vpop.f32.mrf.mxu0
        %v8218 = vadd.f32 %v8086, %v8217
        %8219 = vmatmul.bf16.gmra.mxu0 %v8067
        %v8220 = vpop.f32.mrf.mxu0
        %v8221 = vadd.f32 %v8086, %v8220
        %v8222 = vpop.f32.mrf.mxu0
        %v8223 = vadd.f32 %v8086, %v8222
        %8224 = vdwg.mxu0
        %v8225 = vadd.f32 %v6405, %v8146
        %v8226 = vadd.f32 %v6406, %v8148
        %v8227 = vadd.f32 %v6407, %v8151
        %v8228 = vadd.f32 %v6408, %v8153
        %v8229 = vadd.f32 %v6409, %v8156
        %v8230 = vadd.f32 %v6410, %v8158
        %v8231 = vadd.f32 %v6411, %v8161
        %v8232 = vadd.f32 %v6412, %v8163
        %v8233 = vadd.f32 %v6413, %v8166
        %v8234 = vadd.f32 %v6414, %v8168
        %v8235 = vadd.f32 %v6415, %v8171
        %v8236 = vadd.f32 %v6416, %v8173
        %v8237 = vadd.f32 %v6417, %v8176
        %v8238 = vadd.f32 %v6418, %v8178
        %v8239 = vadd.f32 %v6419, %v8181
        %v8240 = vadd.f32 %v6420, %v8183
        %v8241 = vadd.f32 %v6421, %v8186
        %v8242 = vadd.f32 %v6422, %v8188
        %v8243 = vadd.f32 %v6423, %v8191
        %v8244 = vadd.f32 %v6424, %v8193
        %v8245 = vadd.f32 %v6425, %v8196
        %v8246 = vadd.f32 %v6426, %v8198
        %v8247 = vadd.f32 %v6427, %v8201
        %v8248 = vadd.f32 %v6428, %v8203
        %v8249 = vadd.f32 %v6429, %v8206
        %v8250 = vadd.f32 %v6430, %v8208
        %v8251 = vadd.f32 %v6431, %v8211
        %v8252 = vadd.f32 %v6432, %v8213
        %v8253 = vadd.f32 %v6433, %v8216
        %v8254 = vadd.f32 %v6434, %v8218
        %v8255 = vadd.f32 %v6435, %v8221
        %v8256 = vadd.f32 %v6436, %v8223
        %8257 = vst [vmem:[%s672] sm:$0xff] %v8225
        %8258 = vst [vmem:[%s672 + $0x8] sm:$0xff] %v8226
        %8259 = vst [vmem:[%s672 + $0x10] sm:$0xff] %v8227
        %8260 = vst [vmem:[%s672 + $0x18] sm:$0xff] %v8228
        %8261 = vst [vmem:[%s672 + $0x20] sm:$0xff] %v8229
        %8262 = vst [vmem:[%s672 + $0x28] sm:$0xff] %v8230
        %8263 = vst [vmem:[%s672 + $0x30] sm:$0xff] %v8231
        %8264 = vst [vmem:[%s672 + $0x38] sm:$0xff] %v8232
        %8265 = vst [vmem:[%s672 + $0x40] sm:$0xff] %v8233
        %8266 = vst [vmem:[%s672 + $0x48] sm:$0xff] %v8234
        %8267 = vst [vmem:[%s672 + $0x50] sm:$0xff] %v8235
        %8268 = vst [vmem:[%s672 + $0x58] sm:$0xff] %v8236
        %8269 = vst [vmem:[%s672 + $0x60] sm:$0xff] %v8237
        %8270 = vst [vmem:[%s672 + $0x68] sm:$0xff] %v8238
        %8271 = vst [vmem:[%s672 + $0x70] sm:$0xff] %v8239
        %8272 = vst [vmem:[%s672 + $0x78] sm:$0xff] %v8240
        %8273 = vst [vmem:[%s672 + $0x80] sm:$0xff] %v8241
        %8274 = vst [vmem:[%s672 + $0x88] sm:$0xff] %v8242
        %8275 = vst [vmem:[%s672 + $0x90] sm:$0xff] %v8243
        %8276 = vst [vmem:[%s672 + $0x98] sm:$0xff] %v8244
        %8277 = vst [vmem:[%s672 + $0xa0] sm:$0xff] %v8245
        %8278 = vst [vmem:[%s672 + $0xa8] sm:$0xff] %v8246
        %8279 = vst [vmem:[%s672 + $0xb0] sm:$0xff] %v8247
        %8280 = vst [vmem:[%s672 + $0xb8] sm:$0xff] %v8248
        %8281 = vst [vmem:[%s672 + $0xc0] sm:$0xff] %v8249
        %8282 = vst [vmem:[%s672 + $0xc8] sm:$0xff] %v8250
        %8283 = vst [vmem:[%s672 + $0xd0] sm:$0xff] %v8251
        %8284 = vst [vmem:[%s672 + $0xd8] sm:$0xff] %v8252
        %8285 = vst [vmem:[%s672 + $0xe0] sm:$0xff] %v8253
        %8286 = vst [vmem:[%s672 + $0xe8] sm:$0xff] %v8254
        %8287 = vst [vmem:[%s672 + $0xf0] sm:$0xff] %v8255
        %8288 = vst [vmem:[%s672 + $0xf8] sm:$0xff] %v8256
        %s8289 = sand.u32 %s469, 1
        %s8290 = scalar_lea.sflag [#allocation4], %s8289
        %s8291 = sand.u32 %s469, 1
        %s8292 = smul.addr %s8291, 256
        %s8293 = scalar_lea.vmem [#allocation8], %s8292
        // Predicated region
        $region113: #{tpu_custom_call.1} parent=99 // pred_check
          %p8294 = pneg %p479
        $region114: #{tpu_custom_call.1} parent=99 // pred_check_branch
          %8296 = sbr.rel (%p8294) target = $region116
        $region115: #{tpu_custom_call.1} parent=99 // pred_region
          %8298 = vsyncadd %s8290, 0
          %s8299 = smul.addr %s36, 32
          %s8300 = smul.addr %s8299, 8
          %s8301 = scalar_lea.hbm %s20, %s8300
          %s8302 = sshll.u32 %s8293, 4
          %s8303 = int_to_ptr.vmem [resolvable:$true] %s8302
          %s8304 = sshll.u32 %s8301, 4
          %s8305 = int_to_ptr.hbm [resolvable:$true] %s8304
          %8310 = dma.vmem_to_hbm [thread:$0]  %s8303, 4096, %s8305, %s8290, 128, 128, 8
        $region116: #{tpu_custom_call.1} parent=99 // pred_fallthru
          _
      $region100: #{tpu_custom_call.1} parent=5 // pred_fallthru
        _
      %p8311 = scmp.le.s32.totalorder 2, %s31
      // Predicated region
      $region117: #{tpu_custom_call.1} parent=5 // pred_check
        %p8312 = pneg %p8311
      $region118: #{tpu_custom_call.1} parent=5 // pred_check_branch
        %8314 = sbr.rel (%p8312) target = $region120
      $region119: #{tpu_custom_call.1} parent=5 // pred_region
        %s8315 = ssub.s32 %s31, 2
        // Predicated region
        $region121: #{tpu_custom_call.1} parent=119 // pred_check
          %p8316 = pneg %p485
        $region122: #{tpu_custom_call.1} parent=119 // pred_check_branch
          %8318 = sbr.rel (%p8316) target = $region124
        $region123: #{tpu_custom_call.1} parent=119 // pred_region
          %s8319 = sand.u32 %s470, 1
          %s8320 = scalar_lea.sflag [#allocation4], %s8319
          %s8321 = sand.u32 %s470, 1
          %s8322 = smul.addr %s8321, 256
          %s8323 = scalar_lea.vmem [#allocation8], %s8322
          %8325 = dma.done %s8320, 4096
        $region124: #{tpu_custom_call.1} parent=119 // pred_fallthru
          _
      $region120: #{tpu_custom_call.1} parent=5 // pred_fallthru
        _
    $region6: #{tpu_custom_call.1} parent=1 // loop_footer
      %s35 = sadd.s32 1, %s31
    $region7: #{tpu_custom_call.1} parent=1 // loop_footer_branch
      %30 = sbr.rel target = $region3
    $region8: #{tpu_custom_call.1} parent=1 // loop_exit
      _
    %8326 = vsyncpa [#allocation3], 1
    %s8327 = scalar_lea.sflag [#allocation3], 1
    %8328 = vsyncpa %s8327, 1
    %8329 = vsyncpa [#allocation6], 1
    %8330 = vsyncpa [#allocation4], 1
    %s8331 = scalar_lea.sflag [#allocation4], 1
    %8332 = vsyncpa %s8331, 1

</llo_original>
